<compile_context>
chip_gen: v7x
topology: tpu7x:2x2x1
jax: 0.10.0
libtpu: 0.0.40
codegen_flags: <defaults>
</compile_context>

<pallas_src>
import jax
import jax.numpy as jnp
from jax import lax
from jax.experimental import pallas as pl
from jax.experimental.pallas import tpu as pltpu


# ----------------------------------------------------------------------------
# Fused kernel: one grid step == NB batch elements
# ----------------------------------------------------------------------------
def _basic_block_kernel(x_ref, w1_ref, b1_ref, w2_ref, b2_ref,
                        caw1_ref, caw2_ref, saw_ref, o_ref,
                        pad1_ref, pad2_ref, sapad_ref):
    """Fused BasicBlock forward for NB images.

    x_ref    : (NB, H, W, Cin)     input images, NHWC
    w1_ref   : (9*Cin, C)          conv1 weights, im2col-packed, BN1 scale folded
    b1_ref   : (1, C)              folded BN1 bias
    w2_ref   : (9*C, C)            conv2 weights, im2col-packed, BN2 scale folded
    b2_ref   : (1, C)              folded BN2 bias
    caw1_ref : (C, C//16)          channel-attention squeeze (1x1 conv) weights
    caw2_ref : (C//16, C)          channel-attention excite (1x1 conv) weights
    saw_ref  : (98, 1)             spatial-attention 7x7 conv weights, im2col-packed
    o_ref    : (NB, H, W, C)       output
    pad1_ref : (NB, H+2, W+2, Cin) VMEM scratch: zero-padded conv1 input
    pad2_ref : (NB, H+2, W+2, C)   VMEM scratch: zero-padded conv2 input
    sapad_ref: (NB, H+6, W+6, 2)   VMEM scratch: zero-padded SA (mean, max) maps
    """
    NB, H, W, Cin = x_ref.shape
    C = w1_ref.shape[-1]
    HW = H * W
    M = NB * HW
    f32 = jnp.float32

    def conv_same_im2col(pad_ref, x_nhwc, w_packed, k, p):
        # Zero-pad into VMEM scratch, build (M, k*k*cin) patch matrix, do ONE
        # MXU matmul (instead of k*k tiny K=cin matmuls + accumulator adds).
        cin = x_nhwc.shape[-1]
        pad_ref[...] = jnp.zeros_like(pad_ref)
        pad_ref[:, p:p + H, p:p + W, :] = x_nhwc
        taps = [pad_ref[:, dh:dh + H, dw:dw + W, :].reshape(M, cin)
                for dh in range(k) for dw in range(k)]
        patch = jnp.concatenate(taps, axis=-1)                     # (M, k*k*cin)
        return jnp.dot(patch, w_packed, preferred_element_type=f32)

    x = x_ref[...].astype(f32)                                     # (NB, H, W, Cin)

    # ---- conv1 (BN1 scale pre-folded into weights) + bias + relu -----------
    y1 = conv_same_im2col(pad1_ref, x, w1_ref[...], 3, 1)
    y1 = jnp.maximum(y1 + b1_ref[...], 0.0)                        # (M, C)

    # ---- conv2 (BN2 scale pre-folded) + bias --------------------------------
    y2 = conv_same_im2col(pad2_ref, y1.reshape(NB, H, W, C), w2_ref[...], 3, 1)
    y2 = y2 + b2_ref[...]                                          # (M, C)

    # ---- channel attention (avg & max pooled stats stacked into one tile) ---
    y2b = y2.reshape(NB, HW, C)
    stats = jnp.concatenate([jnp.mean(y2b, axis=1),
                             jnp.max(y2b, axis=1)], axis=0)        # (2*NB, C)
    hid = jnp.maximum(
        jnp.dot(stats, caw1_ref[...], preferred_element_type=f32), 0.0)
    z = jnp.dot(hid, caw2_ref[...], preferred_element_type=f32)    # (2*NB, C)
    ca = jax.nn.sigmoid(z[:NB, :] + z[NB:, :])                     # (NB, C)
    out_ca = y2b * ca.reshape(NB, 1, C)                            # (NB, HW, C)

    # ---- spatial attention: 7x7 'SAME' conv over [mean, max] channel maps ---
    sa_in = jnp.concatenate([jnp.mean(out_ca, axis=-1, keepdims=True),
                             jnp.max(out_ca, axis=-1, keepdims=True)],
                            axis=-1).reshape(NB, H, W, 2)
    sa = jax.nn.sigmoid(
        conv_same_im2col(sapad_ref, sa_in, saw_ref[...], 7, 3))    # (M, 1)

    # ---- residual add + final ReLU ------------------------------------------
    res = x.reshape(M, Cin)
    y = jnp.maximum(out_ca.reshape(M, C) * sa + res, 0.0)
    # TODO(synk): a lane-dense store (fold W*C -> 128-lane slab) would remove
    # masked vst when C < 128; skipped to keep the final reshape lowering simple.
    o_ref[...] = y.reshape(NB, H, W, C).astype(o_ref.dtype)


# ----------------------------------------------------------------------------
# Wrapper
# ----------------------------------------------------------------------------
def basic_block_forward(x_nchw, p, *, batch_block=None):
    """BasicBlock.forward with stride=1, downsample=None (the module defaults)."""
    # TODO(synk): stride>1 / downsample path of BasicBlock is not implemented.
    x = jnp.transpose(x_nchw, (0, 2, 3, 1))                        # NCHW -> NHWC
    N, H, W, Cin = x.shape
    C = p["conv1_w"].shape[-1]
    Cr = p["ca_w1"].shape[-1]
    assert Cin == C, "identity residual requires inplanes == planes"
    HW = H * W

    # Pack conv weights for the in-kernel im2col (tap-major, channel-minor) and
    # fold the BatchNorm scales into the conv weights (exact: conv is linear).
    w1p = p["conv1_w"].reshape(9 * Cin, C).astype(jnp.float32) * p["scale1"]
    w2p = p["conv2_w"].reshape(9 * C, C).astype(jnp.float32) * p["scale2"]
    sawp = p["sa_w"].reshape(49 * 2, 1)

    # Batch blocking: aim for ~512 im2col rows per MXU matmul at small spatial
    # sizes; NB must divide N. At realistic ResNet spatial sizes this is 1.
    if batch_block is None:
        target = max(1, 512 // HW)
        nb = 1
        for d in range(1, N + 1):
            if N % d == 0 and d <= target:
                nb = d
    else:
        nb = batch_block
    assert N % nb == 0

    const = lambda n: (0, 0)
    out = pl.pallas_call(
        _basic_block_kernel,
        out_shape=jax.ShapeDtypeStruct((N, H, W, C), x.dtype),
        grid=(N // nb,),
        in_specs=[
            pl.BlockSpec((nb, H, W, Cin), lambda n: (n, 0, 0, 0)),
            pl.BlockSpec((9 * Cin, C), const),
            pl.BlockSpec((1, C), const),
            pl.BlockSpec((9 * C, C), const),
            pl.BlockSpec((1, C), const),
            pl.BlockSpec((C, Cr), const),
            pl.BlockSpec((Cr, C), const),
            pl.BlockSpec((98, 1), const),
        ],
        out_specs=pl.BlockSpec((nb, H, W, C), lambda n: (n, 0, 0, 0)),
        scratch_shapes=[
            pltpu.VMEM((nb, H + 2, W + 2, Cin), jnp.float32),
            pltpu.VMEM((nb, H + 2, W + 2, C), jnp.float32),
            pltpu.VMEM((nb, H + 6, W + 6, 2), jnp.float32),
        ],
        compiler_params=pltpu.CompilerParams(
            dimension_semantics=("parallel",)),
    )(x, w1p, p["bias1"], w2p, p["bias2"], p["ca_w1"], p["ca_w2"], sawp)
    return jnp.transpose(out, (0, 3, 1, 2))                        # NHWC -> NCHW


# ----------------------------------------------------------------------------
# Parameter setup (deterministic, synthetic)
# ----------------------------------------------------------------------------
def init_params(key, inplanes, planes):
    assert planes // 16 >= 1, "ChannelAttention reduces channels by 16"
    eps = 1e-5
    ks = jax.random.split(key, 13)
    conv1_w = 0.1 * jax.random.normal(ks[0], (3, 3, inplanes, planes), jnp.float32)
    conv2_w = 0.1 * jax.random.normal(ks[1], (3, 3, planes, planes), jnp.float32)

    # TODO(synk): BatchNorm uses inference (running-stats) semantics folded into
    # per-channel scale/bias; training-mode batch statistics are not reproduced.
    def bn_fold(kg, kb, km, kv):
        gamma = 1.0 + 0.1 * jax.random.normal(kg, (planes,), jnp.float32)
        beta = 0.1 * jax.random.normal(kb, (planes,), jnp.float32)
        mean = 0.1 * jax.random.normal(km, (planes,), jnp.float32)
        var = jax.random.uniform(kv, (planes,), jnp.float32, minval=0.5, maxval=1.5)
        scale = gamma / jnp.sqrt(var + eps)
        bias = beta - mean * scale
        return scale.reshape(1, planes), bias.reshape(1, planes)

    scale1, bias1 = bn_fold(ks[2], ks[3], ks[4], ks[5])
    scale2, bias2 = bn_fold(ks[6], ks[7], ks[8], ks[9])

    cr = planes // 16
    ca_w1 = 0.3 * jax.random.normal(ks[10], (planes, cr), jnp.float32)
    ca_w2 = 0.3 * jax.random.normal(ks[11], (cr, planes), jnp.float32)
    sa_w = 0.2 * jax.random.normal(ks[12], (7, 7, 2), jnp.float32)   # HWI (avg, max)

    return dict(conv1_w=conv1_w, conv2_w=conv2_w,
                scale1=scale1, bias1=bias1, scale2=scale2, bias2=bias2,
                ca_w1=ca_w1, ca_w2=ca_w2, sa_w=sa_w)


# ----------------------------------------------------------------------------
# Pure-JAX reference (for the correctness check)
# ----------------------------------------------------------------------------
def reference_forward(x_nchw, p):
    x = jnp.transpose(x_nchw, (0, 2, 3, 1))
    hi = lax.Precision.HIGHEST

    def conv(inp, w):
        return lax.conv_general_dilated(
            inp, w, (1, 1), "SAME",
            dimension_numbers=("NHWC", "HWIO", "NHWC"), precision=hi)

    out = (conv(x, p["conv1_w"]) * p["scale1"].reshape(1, 1, 1, -1)
           + p["bias1"].reshape(1, 1, 1, -1))
    out = jnp.maximum(out, 0.0)
    out = (conv(out, p["conv2_w"]) * p["scale2"].reshape(1, 1, 1, -1)
           + p["bias2"].reshape(1, 1, 1, -1))

    avg = jnp.mean(out, axis=(1, 2))
    mx = jnp.max(out, axis=(1, 2))

    def fc(v):
        h = jnp.maximum(jnp.dot(v, p["ca_w1"], precision=hi), 0.0)
        return jnp.dot(h, p["ca_w2"], precision=hi)

    ca = jax.nn.sigmoid(fc(avg) + fc(mx))                           # (N, C)
    out = out * ca[:, None, None, :]

    avg_c = jnp.mean(out, axis=-1, keepdims=True)
    max_c = jnp.max(out, axis=-1, keepdims=True)
    sa_in = jnp.concatenate([avg_c, max_c], axis=-1)
    sa = jax.nn.sigmoid(conv(sa_in, p["sa_w"].reshape(7, 7, 2, 1)))
    out = out * sa

    out = jnp.maximum(out + x, 0.0)
    return jnp.transpose(out, (0, 3, 1, 2))


# ----------------------------------------------------------------------------
if __name__ == "__main__":
    key = jax.random.PRNGKey(0)
    kx, kp = jax.random.split(key)

    # small shapes: batch=2, inplanes=planes=16 (so planes//16 == 1), spatial=8
    N, C, H, W = 2, 16, 8, 8
    params = init_params(kp, C, C)
    x = jax.random.normal(kx, (N, C, H, W), jnp.float32)             # NCHW like PyTorch

    fwd = jax.jit(lambda xx: basic_block_forward(xx, params))
    out = jax.block_until_ready(fwd(x))

    ref = reference_forward(x, params)
    err = float(jnp.max(jnp.abs(out - ref)))
    assert out.shape == (N, C, H, W) and out.dtype == jnp.float32
    # All-f32 path: observed error is ~1e-5; the margin only covers possible
    # MXU precision-mode differences between the kernel and the XLA reference.
    assert err < 2e-2, f"mismatch vs reference: max abs err = {err}"
    print("KERNEL_OK")
</pallas_src>

<mosaic_0001>
module attributes {stable_mosaic.version = 11 : i64} {
  func.func @_basic_block_kernel(%arg0: i32, %arg1: memref<2x8x8x16xf32, #tpu.memory_space<vmem>>, %arg2: memref<144x16xf32, #tpu.memory_space<vmem>>, %arg3: memref<1x16xf32, #tpu.memory_space<vmem>>, %arg4: memref<144x16xf32, #tpu.memory_space<vmem>>, %arg5: memref<1x16xf32, #tpu.memory_space<vmem>>, %arg6: memref<16x1xf32, #tpu.memory_space<vmem>>, %arg7: memref<1x16xf32, #tpu.memory_space<vmem>>, %arg8: memref<98x1xf32, #tpu.memory_space<vmem>>, %arg9: memref<2x8x8x16xf32, #tpu.memory_space<vmem>>, %arg10: memref<2x10x10x16xf32, #tpu.memory_space<vmem>>, %arg11: memref<2x10x10x16xf32, #tpu.memory_space<vmem>>, %arg12: memref<2x14x14x2xf32, #tpu.memory_space<vmem>>) attributes {dimension_semantics = [#tpu.dimension_semantics<parallel>], iteration_bounds = array<i64: 1>, scalar_prefetch = 0 : i64, scratch_operands = 3 : i64, tpu.core_type = #tpu.core_type<tc>, window_params = [{transform_indices = @transform_0, window_bounds = array<i64: 2, 8, 8, 16>}, {pipeline_mode = #tpu.pipeline_mode<synchronous>, transform_indices = @transform_1, window_bounds = array<i64: 144, 16>}, {pipeline_mode = #tpu.pipeline_mode<synchronous>, transform_indices = @transform_2, window_bounds = array<i64: 1, 16>}, {pipeline_mode = #tpu.pipeline_mode<synchronous>, transform_indices = @transform_3, window_bounds = array<i64: 144, 16>}, {pipeline_mode = #tpu.pipeline_mode<synchronous>, transform_indices = @transform_4, window_bounds = array<i64: 1, 16>}, {pipeline_mode = #tpu.pipeline_mode<synchronous>, transform_indices = @transform_5, window_bounds = array<i64: 16, 1>}, {pipeline_mode = #tpu.pipeline_mode<synchronous>, transform_indices = @transform_6, window_bounds = array<i64: 1, 16>}, {pipeline_mode = #tpu.pipeline_mode<synchronous>, transform_indices = @transform_7, window_bounds = array<i64: 98, 1>}, {transform_indices = @transform_8, window_bounds = array<i64: 2, 8, 8, 16>}]} {
    %c0 = arith.constant 0 : index
    %c0_0 = arith.constant 0 : index
    %c0_1 = arith.constant 0 : index
    %c0_2 = arith.constant 0 : index
    %0 = vector.load %arg1[%c0, %c0_0, %c0_1, %c0_2] : memref<2x8x8x16xf32, #tpu.memory_space<vmem>>, vector<2x8x8x16xf32>
    %c0_3 = arith.constant 0 : index
    %c0_4 = arith.constant 0 : index
    %1 = vector.load %arg2[%c0_3, %c0_4] : memref<144x16xf32, #tpu.memory_space<vmem>>, vector<144x16xf32>
    %cst = arith.constant 0.000000e+00 : f32
    %2 = vector.broadcast %cst : f32 to vector<2x10x10x16xf32>
    %c0_5 = arith.constant 0 : index
    %c0_6 = arith.constant 0 : index
    %c0_7 = arith.constant 0 : index
    %c0_8 = arith.constant 0 : index
    %3 = vector.load %arg10[%c0_5, %c0_6, %c0_7, %c0_8] : memref<2x10x10x16xf32, #tpu.memory_space<vmem>>, vector<2x10x10x16xf32>
    tpu.vector_store %arg10[%c0_5, %c0_6, %c0_7, %c0_8], %2 {strides = array<i32>} : memref<2x10x10x16xf32, #tpu.memory_space<vmem>>, vector<2x10x10x16xf32>,
    %c0_9 = arith.constant 0 : index
    %c1 = arith.constant 1 : index
    %c1_10 = arith.constant 1 : index
    %c0_11 = arith.constant 0 : index
    %4 = vector.load %arg10[%c0_9, %c1, %c1_10, %c0_11] : memref<2x10x10x16xf32, #tpu.memory_space<vmem>>, vector<2x8x8x16xf32>
    tpu.vector_store %arg10[%c0_9, %c1, %c1_10, %c0_11], %0 {strides = array<i32>} : memref<2x10x10x16xf32, #tpu.memory_space<vmem>>, vector<2x8x8x16xf32>,
    %c0_12 = arith.constant 0 : index
    %c0_13 = arith.constant 0 : index
    %c0_14 = arith.constant 0 : index
    %c0_15 = arith.constant 0 : index
    %5 = vector.load %arg10[%c0_12, %c0_13, %c0_14, %c0_15] : memref<2x10x10x16xf32, #tpu.memory_space<vmem>>, vector<2x8x8x16xf32>
    %6 = vector.shape_cast %5 : vector<2x8x8x16xf32> to vector<128x16xf32>
    %c0_16 = arith.constant 0 : index
    %c0_17 = arith.constant 0 : index
    %c1_18 = arith.constant 1 : index
    %c0_19 = arith.constant 0 : index
    %7 = vector.load %arg10[%c0_16, %c0_17, %c1_18, %c0_19] : memref<2x10x10x16xf32, #tpu.memory_space<vmem>>, vector<2x8x8x16xf32>
    %8 = vector.shape_cast %7 : vector<2x8x8x16xf32> to vector<128x16xf32>
    %c0_20 = arith.constant 0 : index
    %c0_21 = arith.constant 0 : index
    %c2 = arith.constant 2 : index
    %c0_22 = arith.constant 0 : index
    %9 = vector.load %arg10[%c0_20, %c0_21, %c2, %c0_22] : memref<2x10x10x16xf32, #tpu.memory_space<vmem>>, vector<2x8x8x16xf32>
    %10 = vector.shape_cast %9 : vector<2x8x8x16xf32> to vector<128x16xf32>
    %c0_23 = arith.constant 0 : index
    %c1_24 = arith.constant 1 : index
    %c0_25 = arith.constant 0 : index
    %c0_26 = arith.constant 0 : index
    %11 = vector.load %arg10[%c0_23, %c1_24, %c0_25, %c0_26] : memref<2x10x10x16xf32, #tpu.memory_space<vmem>>, vector<2x8x8x16xf32>
    %12 = vector.shape_cast %11 : vector<2x8x8x16xf32> to vector<128x16xf32>
    %c0_27 = arith.constant 0 : index
    %c1_28 = arith.constant 1 : index
    %c1_29 = arith.constant 1 : index
    %c0_30 = arith.constant 0 : index
    %13 = vector.load %arg10[%c0_27, %c1_28, %c1_29, %c0_30] : memref<2x10x10x16xf32, #tpu.memory_space<vmem>>, vector<2x8x8x16xf32>
    %14 = vector.shape_cast %13 : vector<2x8x8x16xf32> to vector<128x16xf32>
    %c0_31 = arith.constant 0 : index
    %c1_32 = arith.constant 1 : index
    %c2_33 = arith.constant 2 : index
    %c0_34 = arith.constant 0 : index
    %15 = vector.load %arg10[%c0_31, %c1_32, %c2_33, %c0_34] : memref<2x10x10x16xf32, #tpu.memory_space<vmem>>, vector<2x8x8x16xf32>
    %16 = vector.shape_cast %15 : vector<2x8x8x16xf32> to vector<128x16xf32>
    %c0_35 = arith.constant 0 : index
    %c2_36 = arith.constant 2 : index
    %c0_37 = arith.constant 0 : index
    %c0_38 = arith.constant 0 : index
    %17 = vector.load %arg10[%c0_35, %c2_36, %c0_37, %c0_38] : memref<2x10x10x16xf32, #tpu.memory_space<vmem>>, vector<2x8x8x16xf32>
    %18 = vector.shape_cast %17 : vector<2x8x8x16xf32> to vector<128x16xf32>
    %c0_39 = arith.constant 0 : index
    %c2_40 = arith.constant 2 : index
    %c1_41 = arith.constant 1 : index
    %c0_42 = arith.constant 0 : index
    %19 = vector.load %arg10[%c0_39, %c2_40, %c1_41, %c0_42] : memref<2x10x10x16xf32, #tpu.memory_space<vmem>>, vector<2x8x8x16xf32>
    %20 = vector.shape_cast %19 : vector<2x8x8x16xf32> to vector<128x16xf32>
    %c0_43 = arith.constant 0 : index
    %c2_44 = arith.constant 2 : index
    %c2_45 = arith.constant 2 : index
    %c0_46 = arith.constant 0 : index
    %21 = vector.load %arg10[%c0_43, %c2_44, %c2_45, %c0_46] : memref<2x10x10x16xf32, #tpu.memory_space<vmem>>, vector<2x8x8x16xf32>
    %22 = vector.shape_cast %21 : vector<2x8x8x16xf32> to vector<128x16xf32>
    %23 = tpu.concatenate %6, %8, %10, %12, %14, %16, %18, %20, %22 in 1 : vector<128x16xf32>, vector<128x16xf32>, vector<128x16xf32>, vector<128x16xf32>, vector<128x16xf32>, vector<128x16xf32>, vector<128x16xf32>, vector<128x16xf32>, vector<128x16xf32> -> vector<128x144xf32>
    %cst_47 = arith.constant dense<0.000000e+00> : vector<128x16xf32>
    %24 = tpu.matmul %23, %1, %cst_47 {dimension_numbers = #tpu.dot_dimension_numbers<[1], [0], [0], [1], [0, 0, 1, 1], [], []>} : vector<128x144xf32>, vector<144x16xf32>, vector<128x16xf32> -> vector<128x16xf32>
    %c0_48 = arith.constant 0 : index
    %c0_49 = arith.constant 0 : index
    %25 = vector.load %arg3[%c0_48, %c0_49] : memref<1x16xf32, #tpu.memory_space<vmem>>, vector<1x16xf32>
    %26 = vector.broadcast %25 : vector<1x16xf32> to vector<128x16xf32>
    %27 = arith.addf %24, %26 : vector<128x16xf32>
    %cst_50 = arith.constant 0.000000e+00 : f32
    %28 = vector.broadcast %cst_50 : f32 to vector<128x16xf32>
    %29 = arith.maximumf %27, %28 : vector<128x16xf32>
    %30 = vector.shape_cast %29 : vector<128x16xf32> to vector<2x8x8x16xf32>
    %c0_51 = arith.constant 0 : index
    %c0_52 = arith.constant 0 : index
    %31 = vector.load %arg4[%c0_51, %c0_52] : memref<144x16xf32, #tpu.memory_space<vmem>>, vector<144x16xf32>
    %cst_53 = arith.constant 0.000000e+00 : f32
    %32 = vector.broadcast %cst_53 : f32 to vector<2x10x10x16xf32>
    %c0_54 = arith.constant 0 : index
    %c0_55 = arith.constant 0 : index
    %c0_56 = arith.constant 0 : index
    %c0_57 = arith.constant 0 : index
    %33 = vector.load %arg11[%c0_54, %c0_55, %c0_56, %c0_57] : memref<2x10x10x16xf32, #tpu.memory_space<vmem>>, vector<2x10x10x16xf32>
    tpu.vector_store %arg11[%c0_54, %c0_55, %c0_56, %c0_57], %32 {strides = array<i32>} : memref<2x10x10x16xf32, #tpu.memory_space<vmem>>, vector<2x10x10x16xf32>,
    %c0_58 = arith.constant 0 : index
    %c1_59 = arith.constant 1 : index
    %c1_60 = arith.constant 1 : index
    %c0_61 = arith.constant 0 : index
    %34 = vector.load %arg11[%c0_58, %c1_59, %c1_60, %c0_61] : memref<2x10x10x16xf32, #tpu.memory_space<vmem>>, vector<2x8x8x16xf32>
    tpu.vector_store %arg11[%c0_58, %c1_59, %c1_60, %c0_61], %30 {strides = array<i32>} : memref<2x10x10x16xf32, #tpu.memory_space<vmem>>, vector<2x8x8x16xf32>,
    %c0_62 = arith.constant 0 : index
    %c0_63 = arith.constant 0 : index
    %c0_64 = arith.constant 0 : index
    %c0_65 = arith.constant 0 : index
    %35 = vector.load %arg11[%c0_62, %c0_63, %c0_64, %c0_65] : memref<2x10x10x16xf32, #tpu.memory_space<vmem>>, vector<2x8x8x16xf32>
    %36 = vector.shape_cast %35 : vector<2x8x8x16xf32> to vector<128x16xf32>
    %c0_66 = arith.constant 0 : index
    %c0_67 = arith.constant 0 : index
    %c1_68 = arith.constant 1 : index
    %c0_69 = arith.constant 0 : index
    %37 = vector.load %arg11[%c0_66, %c0_67, %c1_68, %c0_69] : memref<2x10x10x16xf32, #tpu.memory_space<vmem>>, vector<2x8x8x16xf32>
    %38 = vector.shape_cast %37 : vector<2x8x8x16xf32> to vector<128x16xf32>
    %c0_70 = arith.constant 0 : index
    %c0_71 = arith.constant 0 : index
    %c2_72 = arith.constant 2 : index
    %c0_73 = arith.constant 0 : index
    %39 = vector.load %arg11[%c0_70, %c0_71, %c2_72, %c0_73] : memref<2x10x10x16xf32, #tpu.memory_space<vmem>>, vector<2x8x8x16xf32>
    %40 = vector.shape_cast %39 : vector<2x8x8x16xf32> to vector<128x16xf32>
    %c0_74 = arith.constant 0 : index
    %c1_75 = arith.constant 1 : index
    %c0_76 = arith.constant 0 : index
    %c0_77 = arith.constant 0 : index
    %41 = vector.load %arg11[%c0_74, %c1_75, %c0_76, %c0_77] : memref<2x10x10x16xf32, #tpu.memory_space<vmem>>, vector<2x8x8x16xf32>
    %42 = vector.shape_cast %41 : vector<2x8x8x16xf32> to vector<128x16xf32>
    %c0_78 = arith.constant 0 : index
    %c1_79 = arith.constant 1 : index
    %c1_80 = arith.constant 1 : index
    %c0_81 = arith.constant 0 : index
    %43 = vector.load %arg11[%c0_78, %c1_79, %c1_80, %c0_81] : memref<2x10x10x16xf32, #tpu.memory_space<vmem>>, vector<2x8x8x16xf32>
    %44 = vector.shape_cast %43 : vector<2x8x8x16xf32> to vector<128x16xf32>
    %c0_82 = arith.constant 0 : index
    %c1_83 = arith.constant 1 : index
    %c2_84 = arith.constant 2 : index
    %c0_85 = arith.constant 0 : index
    %45 = vector.load %arg11[%c0_82, %c1_83, %c2_84, %c0_85] : memref<2x10x10x16xf32, #tpu.memory_space<vmem>>, vector<2x8x8x16xf32>
    %46 = vector.shape_cast %45 : vector<2x8x8x16xf32> to vector<128x16xf32>
    %c0_86 = arith.constant 0 : index
    %c2_87 = arith.constant 2 : index
    %c0_88 = arith.constant 0 : index
    %c0_89 = arith.constant 0 : index
    %47 = vector.load %arg11[%c0_86, %c2_87, %c0_88, %c0_89] : memref<2x10x10x16xf32, #tpu.memory_space<vmem>>, vector<2x8x8x16xf32>
    %48 = vector.shape_cast %47 : vector<2x8x8x16xf32> to vector<128x16xf32>
    %c0_90 = arith.constant 0 : index
    %c2_91 = arith.constant 2 : index
    %c1_92 = arith.constant 1 : index
    %c0_93 = arith.constant 0 : index
    %49 = vector.load %arg11[%c0_90, %c2_91, %c1_92, %c0_93] : memref<2x10x10x16xf32, #tpu.memory_space<vmem>>, vector<2x8x8x16xf32>
    %50 = vector.shape_cast %49 : vector<2x8x8x16xf32> to vector<128x16xf32>
    %c0_94 = arith.constant 0 : index
    %c2_95 = arith.constant 2 : index
    %c2_96 = arith.constant 2 : index
    %c0_97 = arith.constant 0 : index
    %51 = vector.load %arg11[%c0_94, %c2_95, %c2_96, %c0_97] : memref<2x10x10x16xf32, #tpu.memory_space<vmem>>, vector<2x8x8x16xf32>
    %52 = vector.shape_cast %51 : vector<2x8x8x16xf32> to vector<128x16xf32>
    %53 = tpu.concatenate %36, %38, %40, %42, %44, %46, %48, %50, %52 in 1 : vector<128x16xf32>, vector<128x16xf32>, vector<128x16xf32>, vector<128x16xf32>, vector<128x16xf32>, vector<128x16xf32>, vector<128x16xf32>, vector<128x16xf32>, vector<128x16xf32> -> vector<128x144xf32>
    %cst_98 = arith.constant dense<0.000000e+00> : vector<128x16xf32>
    %54 = tpu.matmul %53, %31, %cst_98 {dimension_numbers = #tpu.dot_dimension_numbers<[1], [0], [0], [1], [0, 0, 1, 1], [], []>} : vector<128x144xf32>, vector<144x16xf32>, vector<128x16xf32> -> vector<128x16xf32>
    %c0_99 = arith.constant 0 : index
    %c0_100 = arith.constant 0 : index
    %55 = vector.load %arg5[%c0_99, %c0_100] : memref<1x16xf32, #tpu.memory_space<vmem>>, vector<1x16xf32>
    %56 = vector.broadcast %55 : vector<1x16xf32> to vector<128x16xf32>
    %57 = arith.addf %54, %56 : vector<128x16xf32>
    %58 = vector.shape_cast %57 : vector<128x16xf32> to vector<2x64x16xf32>
    %cst_101 = arith.constant dense<0.000000e+00> : vector<2x16xf32>
    %59 = vector.multi_reduction <add>, %58, %cst_101 [1] : vector<2x64x16xf32> to vector<2x16xf32>
    %cst_102 = arith.constant 6.400000e+01 : f32
    %60 = vector.broadcast %cst_102 : f32 to vector<2x16xf32>
    %61 = arith.divf %59, %60 : vector<2x16xf32>
    %cst_103 = arith.constant dense<0xFF800000> : vector<2x16xf32>
    %62 = vector.multi_reduction <maximumf>, %58, %cst_103 [1] : vector<2x64x16xf32> to vector<2x16xf32>
    %63 = tpu.concatenate %61, %62 in 0 : vector<2x16xf32>, vector<2x16xf32> -> vector<4x16xf32>
    %c0_104 = arith.constant 0 : index
    %c0_105 = arith.constant 0 : index
    %64 = vector.load %arg6[%c0_104, %c0_105] : memref<16x1xf32, #tpu.memory_space<vmem>>, vector<16x1xf32>
    %cst_106 = arith.constant dense<0.000000e+00> : vector<4x1xf32>
    %65 = tpu.matmul %63, %64, %cst_106 {dimension_numbers = #tpu.dot_dimension_numbers<[1], [0], [0], [1], [0, 0, 1, 1], [], []>} : vector<4x16xf32>, vector<16x1xf32>, vector<4x1xf32> -> vector<4x1xf32>
    %cst_107 = arith.constant 0.000000e+00 : f32
    %66 = vector.broadcast %cst_107 : f32 to vector<4x1xf32>
    %67 = arith.maximumf %65, %66 : vector<4x1xf32>
    %c0_108 = arith.constant 0 : index
    %c0_109 = arith.constant 0 : index
    %68 = vector.load %arg7[%c0_108, %c0_109] : memref<1x16xf32, #tpu.memory_space<vmem>>, vector<1x16xf32>
    %cst_110 = arith.constant dense<0.000000e+00> : vector<4x16xf32>
    %69 = tpu.matmul %67, %68, %cst_110 {dimension_numbers = #tpu.dot_dimension_numbers<[1], [0], [0], [1], [0, 0, 1, 1], [], []>} : vector<4x1xf32>, vector<1x16xf32>, vector<4x16xf32> -> vector<4x16xf32>
    %70 = vector.extract_strided_slice %69 {offsets = [0, 0], sizes = [2, 16], strides = [1, 1]} : vector<4x16xf32> to vector<2x16xf32>
    %71 = vector.extract_strided_slice %69 {offsets = [2, 0], sizes = [2, 16], strides = [1, 1]} : vector<4x16xf32> to vector<2x16xf32>
    %72 = arith.addf %70, %71 : vector<2x16xf32>
    %73 = arith.negf %72 : vector<2x16xf32>
    %74 = math.exp %73 : vector<2x16xf32>
    %cst_111 = arith.constant 1.000000e+00 : f32
    %75 = vector.broadcast %cst_111 : f32 to vector<2x16xf32>
    %76 = arith.addf %75, %74 : vector<2x16xf32>
    %77 = arith.divf %75, %76 : vector<2x16xf32>
    %78 = vector.shape_cast %77 : vector<2x16xf32> to vector<2x1x16xf32>
    %79 = vector.broadcast %78 : vector<2x1x16xf32> to vector<2x64x16xf32>
    %80 = arith.mulf %58, %79 : vector<2x64x16xf32>
    %cst_112 = arith.constant dense<0.000000e+00> : vector<2x64xf32>
    %81 = vector.multi_reduction <add>, %80, %cst_112 [2] : vector<2x64x16xf32> to vector<2x64xf32>
    %82 = vector.shape_cast %81 : vector<2x64xf32> to vector<2x64x1xf32>
    %cst_113 = arith.constant 1.600000e+01 : f32
    %83 = vector.broadcast %cst_113 : f32 to vector<2x64x1xf32>
    %84 = arith.divf %82, %83 : vector<2x64x1xf32>
    %cst_114 = arith.constant dense<0xFF800000> : vector<2x64xf32>
    %85 = vector.multi_reduction <maximumf>, %80, %cst_114 [2] : vector<2x64x16xf32> to vector<2x64xf32>
    %86 = vector.shape_cast %85 : vector<2x64xf32> to vector<2x64x1xf32>
    %87 = tpu.concatenate %84, %86 in 2 : vector<2x64x1xf32>, vector<2x64x1xf32> -> vector<2x64x2xf32>
    %88 = vector.shape_cast %87 : vector<2x64x2xf32> to vector<2x8x8x2xf32>
    %c0_115 = arith.constant 0 : index
    %c0_116 = arith.constant 0 : index
    %89 = vector.load %arg8[%c0_115, %c0_116] : memref<98x1xf32, #tpu.memory_space<vmem>>, vector<98x1xf32>
    %cst_117 = arith.constant 0.000000e+00 : f32
    %90 = vector.broadcast %cst_117 : f32 to vector<2x14x14x2xf32>
    %c0_118 = arith.constant 0 : index
    %c0_119 = arith.constant 0 : index
    %c0_120 = arith.constant 0 : index
    %c0_121 = arith.constant 0 : index
    %91 = vector.load %arg12[%c0_118, %c0_119, %c0_120, %c0_121] : memref<2x14x14x2xf32, #tpu.memory_space<vmem>>, vector<2x14x14x2xf32>
    tpu.vector_store %arg12[%c0_118, %c0_119, %c0_120, %c0_121], %90 {strides = array<i32>} : memref<2x14x14x2xf32, #tpu.memory_space<vmem>>, vector<2x14x14x2xf32>,
    %c0_122 = arith.constant 0 : index
    %c3 = arith.constant 3 : index
    %c3_123 = arith.constant 3 : index
    %c0_124 = arith.constant 0 : index
    %92 = vector.load %arg12[%c0_122, %c3, %c3_123, %c0_124] : memref<2x14x14x2xf32, #tpu.memory_space<vmem>>, vector<2x8x8x2xf32>
    tpu.vector_store %arg12[%c0_122, %c3, %c3_123, %c0_124], %88 {strides = array<i32>} : memref<2x14x14x2xf32, #tpu.memory_space<vmem>>, vector<2x8x8x2xf32>,
    %c0_125 = arith.constant 0 : index
    %c0_126 = arith.constant 0 : index
    %c0_127 = arith.constant 0 : index
    %c0_128 = arith.constant 0 : index
    %93 = vector.load %arg12[%c0_125, %c0_126, %c0_127, %c0_128] : memref<2x14x14x2xf32, #tpu.memory_space<vmem>>, vector<2x8x8x2xf32>
    %94 = vector.shape_cast %93 : vector<2x8x8x2xf32> to vector<128x2xf32>
    %c0_129 = arith.constant 0 : index
    %c0_130 = arith.constant 0 : index
    %c1_131 = arith.constant 1 : index
    %c0_132 = arith.constant 0 : index
    %95 = vector.load %arg12[%c0_129, %c0_130, %c1_131, %c0_132] : memref<2x14x14x2xf32, #tpu.memory_space<vmem>>, vector<2x8x8x2xf32>
    %96 = vector.shape_cast %95 : vector<2x8x8x2xf32> to vector<128x2xf32>
    %c0_133 = arith.constant 0 : index
    %c0_134 = arith.constant 0 : index
    %c2_135 = arith.constant 2 : index
    %c0_136 = arith.constant 0 : index
    %97 = vector.load %arg12[%c0_133, %c0_134, %c2_135, %c0_136] : memref<2x14x14x2xf32, #tpu.memory_space<vmem>>, vector<2x8x8x2xf32>
    %98 = vector.shape_cast %97 : vector<2x8x8x2xf32> to vector<128x2xf32>
    %c0_137 = arith.constant 0 : index
    %c0_138 = arith.constant 0 : index
    %c3_139 = arith.constant 3 : index
    %c0_140 = arith.constant 0 : index
    %99 = vector.load %arg12[%c0_137, %c0_138, %c3_139, %c0_140] : memref<2x14x14x2xf32, #tpu.memory_space<vmem>>, vector<2x8x8x2xf32>
    %100 = vector.shape_cast %99 : vector<2x8x8x2xf32> to vector<128x2xf32>
    %c0_141 = arith.constant 0 : index
    %c0_142 = arith.constant 0 : index
    %c4 = arith.constant 4 : index
    %c0_143 = arith.constant 0 : index
    %101 = vector.load %arg12[%c0_141, %c0_142, %c4, %c0_143] : memref<2x14x14x2xf32, #tpu.memory_space<vmem>>, vector<2x8x8x2xf32>
    %102 = vector.shape_cast %101 : vector<2x8x8x2xf32> to vector<128x2xf32>
    %c0_144 = arith.constant 0 : index
    %c0_145 = arith.constant 0 : index
    %c5 = arith.constant 5 : index
    %c0_146 = arith.constant 0 : index
    %103 = vector.load %arg12[%c0_144, %c0_145, %c5, %c0_146] : memref<2x14x14x2xf32, #tpu.memory_space<vmem>>, vector<2x8x8x2xf32>
    %104 = vector.shape_cast %103 : vector<2x8x8x2xf32> to vector<128x2xf32>
    %c0_147 = arith.constant 0 : index
    %c0_148 = arith.constant 0 : index
    %c6 = arith.constant 6 : index
    %c0_149 = arith.constant 0 : index
    %105 = vector.load %arg12[%c0_147, %c0_148, %c6, %c0_149] : memref<2x14x14x2xf32, #tpu.memory_space<vmem>>, vector<2x8x8x2xf32>
    %106 = vector.shape_cast %105 : vector<2x8x8x2xf32> to vector<128x2xf32>
    %c0_150 = arith.constant 0 : index
    %c1_151 = arith.constant 1 : index
    %c0_152 = arith.constant 0 : index
    %c0_153 = arith.constant 0 : index
    %107 = vector.load %arg12[%c0_150, %c1_151, %c0_152, %c0_153] : memref<2x14x14x2xf32, #tpu.memory_space<vmem>>, vector<2x8x8x2xf32>
    %108 = vector.shape_cast %107 : vector<2x8x8x2xf32> to vector<128x2xf32>
    %c0_154 = arith.constant 0 : index
    %c1_155 = arith.constant 1 : index
    %c1_156 = arith.constant 1 : index
    %c0_157 = arith.constant 0 : index
    %109 = vector.load %arg12[%c0_154, %c1_155, %c1_156, %c0_157] : memref<2x14x14x2xf32, #tpu.memory_space<vmem>>, vector<2x8x8x2xf32>
    %110 = vector.shape_cast %109 : vector<2x8x8x2xf32> to vector<128x2xf32>
    %c0_158 = arith.constant 0 : index
    %c1_159 = arith.constant 1 : index
    %c2_160 = arith.constant 2 : index
    %c0_161 = arith.constant 0 : index
    %111 = vector.load %arg12[%c0_158, %c1_159, %c2_160, %c0_161] : memref<2x14x14x2xf32, #tpu.memory_space<vmem>>, vector<2x8x8x2xf32>
    %112 = vector.shape_cast %111 : vector<2x8x8x2xf32> to vector<128x2xf32>
    %c0_162 = arith.constant 0 : index
    %c1_163 = arith.constant 1 : index
    %c3_164 = arith.constant 3 : index
    %c0_165 = arith.constant 0 : index
    %113 = vector.load %arg12[%c0_162, %c1_163, %c3_164, %c0_165] : memref<2x14x14x2xf32, #tpu.memory_space<vmem>>, vector<2x8x8x2xf32>
    %114 = vector.shape_cast %113 : vector<2x8x8x2xf32> to vector<128x2xf32>
    %c0_166 = arith.constant 0 : index
    %c1_167 = arith.constant 1 : index
    %c4_168 = arith.constant 4 : index
    %c0_169 = arith.constant 0 : index
    %115 = vector.load %arg12[%c0_166, %c1_167, %c4_168, %c0_169] : memref<2x14x14x2xf32, #tpu.memory_space<vmem>>, vector<2x8x8x2xf32>
    %116 = vector.shape_cast %115 : vector<2x8x8x2xf32> to vector<128x2xf32>
    %c0_170 = arith.constant 0 : index
    %c1_171 = arith.constant 1 : index
    %c5_172 = arith.constant 5 : index
    %c0_173 = arith.constant 0 : index
    %117 = vector.load %arg12[%c0_170, %c1_171, %c5_172, %c0_173] : memref<2x14x14x2xf32, #tpu.memory_space<vmem>>, vector<2x8x8x2xf32>
    %118 = vector.shape_cast %117 : vector<2x8x8x2xf32> to vector<128x2xf32>
    %c0_174 = arith.constant 0 : index
    %c1_175 = arith.constant 1 : index
    %c6_176 = arith.constant 6 : index
    %c0_177 = arith.constant 0 : index
    %119 = vector.load %arg12[%c0_174, %c1_175, %c6_176, %c0_177] : memref<2x14x14x2xf32, #tpu.memory_space<vmem>>, vector<2x8x8x2xf32>
    %120 = vector.shape_cast %119 : vector<2x8x8x2xf32> to vector<128x2xf32>
    %c0_178 = arith.constant 0 : index
    %c2_179 = arith.constant 2 : index
    %c0_180 = arith.constant 0 : index
    %c0_181 = arith.constant 0 : index
    %121 = vector.load %arg12[%c0_178, %c2_179, %c0_180, %c0_181] : memref<2x14x14x2xf32, #tpu.memory_space<vmem>>, vector<2x8x8x2xf32>
    %122 = vector.shape_cast %121 : vector<2x8x8x2xf32> to vector<128x2xf32>
    %c0_182 = arith.constant 0 : index
    %c2_183 = arith.constant 2 : index
    %c1_184 = arith.constant 1 : index
    %c0_185 = arith.constant 0 : index
    %123 = vector.load %arg12[%c0_182, %c2_183, %c1_184, %c0_185] : memref<2x14x14x2xf32, #tpu.memory_space<vmem>>, vector<2x8x8x2xf32>
    %124 = vector.shape_cast %123 : vector<2x8x8x2xf32> to vector<128x2xf32>
    %c0_186 = arith.constant 0 : index
    %c2_187 = arith.constant 2 : index
    %c2_188 = arith.constant 2 : index
    %c0_189 = arith.constant 0 : index
    %125 = vector.load %arg12[%c0_186, %c2_187, %c2_188, %c0_189] : memref<2x14x14x2xf32, #tpu.memory_space<vmem>>, vector<2x8x8x2xf32>
    %126 = vector.shape_cast %125 : vector<2x8x8x2xf32> to vector<128x2xf32>
    %c0_190 = arith.constant 0 : index
    %c2_191 = arith.constant 2 : index
    %c3_192 = arith.constant 3 : index
    %c0_193 = arith.constant 0 : index
    %127 = vector.load %arg12[%c0_190, %c2_191, %c3_192, %c0_193] : memref<2x14x14x2xf32, #tpu.memory_space<vmem>>, vector<2x8x8x2xf32>
    %128 = vector.shape_cast %127 : vector<2x8x8x2xf32> to vector<128x2xf32>
    %c0_194 = arith.constant 0 : index
    %c2_195 = arith.constant 2 : index
    %c4_196 = arith.constant 4 : index
    %c0_197 = arith.constant 0 : index
    %129 = vector.load %arg12[%c0_194, %c2_195, %c4_196, %c0_197] : memref<2x14x14x2xf32, #tpu.memory_space<vmem>>, vector<2x8x8x2xf32>
    %130 = vector.shape_cast %129 : vector<2x8x8x2xf32> to vector<128x2xf32>
    %c0_198 = arith.constant 0 : index
    %c2_199 = arith.constant 2 : index
    %c5_200 = arith.constant 5 : index
    %c0_201 = arith.constant 0 : index
    %131 = vector.load %arg12[%c0_198, %c2_199, %c5_200, %c0_201] : memref<2x14x14x2xf32, #tpu.memory_space<vmem>>, vector<2x8x8x2xf32>
    %132 = vector.shape_cast %131 : vector<2x8x8x2xf32> to vector<128x2xf32>
    %c0_202 = arith.constant 0 : index
    %c2_203 = arith.constant 2 : index
    %c6_204 = arith.constant 6 : index
    %c0_205 = arith.constant 0 : index
    %133 = vector.load %arg12[%c0_202, %c2_203, %c6_204, %c0_205] : memref<2x14x14x2xf32, #tpu.memory_space<vmem>>, vector<2x8x8x2xf32>
    %134 = vector.shape_cast %133 : vector<2x8x8x2xf32> to vector<128x2xf32>
    %c0_206 = arith.constant 0 : index
    %c3_207 = arith.constant 3 : index
    %c0_208 = arith.constant 0 : index
    %c0_209 = arith.constant 0 : index
    %135 = vector.load %arg12[%c0_206, %c3_207, %c0_208, %c0_209] : memref<2x14x14x2xf32, #tpu.memory_space<vmem>>, vector<2x8x8x2xf32>
    %136 = vector.shape_cast %135 : vector<2x8x8x2xf32> to vector<128x2xf32>
    %c0_210 = arith.constant 0 : index
    %c3_211 = arith.constant 3 : index
    %c1_212 = arith.constant 1 : index
    %c0_213 = arith.constant 0 : index
    %137 = vector.load %arg12[%c0_210, %c3_211, %c1_212, %c0_213] : memref<2x14x14x2xf32, #tpu.memory_space<vmem>>, vector<2x8x8x2xf32>
    %138 = vector.shape_cast %137 : vector<2x8x8x2xf32> to vector<128x2xf32>
    %c0_214 = arith.constant 0 : index
    %c3_215 = arith.constant 3 : index
    %c2_216 = arith.constant 2 : index
    %c0_217 = arith.constant 0 : index
    %139 = vector.load %arg12[%c0_214, %c3_215, %c2_216, %c0_217] : memref<2x14x14x2xf32, #tpu.memory_space<vmem>>, vector<2x8x8x2xf32>
    %140 = vector.shape_cast %139 : vector<2x8x8x2xf32> to vector<128x2xf32>
    %c0_218 = arith.constant 0 : index
    %c3_219 = arith.constant 3 : index
    %c3_220 = arith.constant 3 : index
    %c0_221 = arith.constant 0 : index
    %141 = vector.load %arg12[%c0_218, %c3_219, %c3_220, %c0_221] : memref<2x14x14x2xf32, #tpu.memory_space<vmem>>, vector<2x8x8x2xf32>
    %142 = vector.shape_cast %141 : vector<2x8x8x2xf32> to vector<128x2xf32>
    %c0_222 = arith.constant 0 : index
    %c3_223 = arith.constant 3 : index
    %c4_224 = arith.constant 4 : index
    %c0_225 = arith.constant 0 : index
    %143 = vector.load %arg12[%c0_222, %c3_223, %c4_224, %c0_225] : memref<2x14x14x2xf32, #tpu.memory_space<vmem>>, vector<2x8x8x2xf32>
    %144 = vector.shape_cast %143 : vector<2x8x8x2xf32> to vector<128x2xf32>
    %c0_226 = arith.constant 0 : index
    %c3_227 = arith.constant 3 : index
    %c5_228 = arith.constant 5 : index
    %c0_229 = arith.constant 0 : index
    %145 = vector.load %arg12[%c0_226, %c3_227, %c5_228, %c0_229] : memref<2x14x14x2xf32, #tpu.memory_space<vmem>>, vector<2x8x8x2xf32>
    %146 = vector.shape_cast %145 : vector<2x8x8x2xf32> to vector<128x2xf32>
    %c0_230 = arith.constant 0 : index
    %c3_231 = arith.constant 3 : index
    %c6_232 = arith.constant 6 : index
    %c0_233 = arith.constant 0 : index
    %147 = vector.load %arg12[%c0_230, %c3_231, %c6_232, %c0_233] : memref<2x14x14x2xf32, #tpu.memory_space<vmem>>, vector<2x8x8x2xf32>
    %148 = vector.shape_cast %147 : vector<2x8x8x2xf32> to vector<128x2xf32>
    %c0_234 = arith.constant 0 : index
    %c4_235 = arith.constant 4 : index
    %c0_236 = arith.constant 0 : index
    %c0_237 = arith.constant 0 : index
    %149 = vector.load %arg12[%c0_234, %c4_235, %c0_236, %c0_237] : memref<2x14x14x2xf32, #tpu.memory_space<vmem>>, vector<2x8x8x2xf32>
    %150 = vector.shape_cast %149 : vector<2x8x8x2xf32> to vector<128x2xf32>
    %c0_238 = arith.constant 0 : index
    %c4_239 = arith.constant 4 : index
    %c1_240 = arith.constant 1 : index
    %c0_241 = arith.constant 0 : index
    %151 = vector.load %arg12[%c0_238, %c4_239, %c1_240, %c0_241] : memref<2x14x14x2xf32, #tpu.memory_space<vmem>>, vector<2x8x8x2xf32>
    %152 = vector.shape_cast %151 : vector<2x8x8x2xf32> to vector<128x2xf32>
    %c0_242 = arith.constant 0 : index
    %c4_243 = arith.constant 4 : index
    %c2_244 = arith.constant 2 : index
    %c0_245 = arith.constant 0 : index
    %153 = vector.load %arg12[%c0_242, %c4_243, %c2_244, %c0_245] : memref<2x14x14x2xf32, #tpu.memory_space<vmem>>, vector<2x8x8x2xf32>
    %154 = vector.shape_cast %153 : vector<2x8x8x2xf32> to vector<128x2xf32>
    %c0_246 = arith.constant 0 : index
    %c4_247 = arith.constant 4 : index
    %c3_248 = arith.constant 3 : index
    %c0_249 = arith.constant 0 : index
    %155 = vector.load %arg12[%c0_246, %c4_247, %c3_248, %c0_249] : memref<2x14x14x2xf32, #tpu.memory_space<vmem>>, vector<2x8x8x2xf32>
    %156 = vector.shape_cast %155 : vector<2x8x8x2xf32> to vector<128x2xf32>
    %c0_250 = arith.constant 0 : index
    %c4_251 = arith.constant 4 : index
    %c4_252 = arith.constant 4 : index
    %c0_253 = arith.constant 0 : index
    %157 = vector.load %arg12[%c0_250, %c4_251, %c4_252, %c0_253] : memref<2x14x14x2xf32, #tpu.memory_space<vmem>>, vector<2x8x8x2xf32>
    %158 = vector.shape_cast %157 : vector<2x8x8x2xf32> to vector<128x2xf32>
    %c0_254 = arith.constant 0 : index
    %c4_255 = arith.constant 4 : index
    %c5_256 = arith.constant 5 : index
    %c0_257 = arith.constant 0 : index
    %159 = vector.load %arg12[%c0_254, %c4_255, %c5_256, %c0_257] : memref<2x14x14x2xf32, #tpu.memory_space<vmem>>, vector<2x8x8x2xf32>
    %160 = vector.shape_cast %159 : vector<2x8x8x2xf32> to vector<128x2xf32>
    %c0_258 = arith.constant 0 : index
    %c4_259 = arith.constant 4 : index
    %c6_260 = arith.constant 6 : index
    %c0_261 = arith.constant 0 : index
    %161 = vector.load %arg12[%c0_258, %c4_259, %c6_260, %c0_261] : memref<2x14x14x2xf32, #tpu.memory_space<vmem>>, vector<2x8x8x2xf32>
    %162 = vector.shape_cast %161 : vector<2x8x8x2xf32> to vector<128x2xf32>
    %c0_262 = arith.constant 0 : index
    %c5_263 = arith.constant 5 : index
    %c0_264 = arith.constant 0 : index
    %c0_265 = arith.constant 0 : index
    %163 = vector.load %arg12[%c0_262, %c5_263, %c0_264, %c0_265] : memref<2x14x14x2xf32, #tpu.memory_space<vmem>>, vector<2x8x8x2xf32>
    %164 = vector.shape_cast %163 : vector<2x8x8x2xf32> to vector<128x2xf32>
    %c0_266 = arith.constant 0 : index
    %c5_267 = arith.constant 5 : index
    %c1_268 = arith.constant 1 : index
    %c0_269 = arith.constant 0 : index
    %165 = vector.load %arg12[%c0_266, %c5_267, %c1_268, %c0_269] : memref<2x14x14x2xf32, #tpu.memory_space<vmem>>, vector<2x8x8x2xf32>
    %166 = vector.shape_cast %165 : vector<2x8x8x2xf32> to vector<128x2xf32>
    %c0_270 = arith.constant 0 : index
    %c5_271 = arith.constant 5 : index
    %c2_272 = arith.constant 2 : index
    %c0_273 = arith.constant 0 : index
    %167 = vector.load %arg12[%c0_270, %c5_271, %c2_272, %c0_273] : memref<2x14x14x2xf32, #tpu.memory_space<vmem>>, vector<2x8x8x2xf32>
    %168 = vector.shape_cast %167 : vector<2x8x8x2xf32> to vector<128x2xf32>
    %c0_274 = arith.constant 0 : index
    %c5_275 = arith.constant 5 : index
    %c3_276 = arith.constant 3 : index
    %c0_277 = arith.constant 0 : index
    %169 = vector.load %arg12[%c0_274, %c5_275, %c3_276, %c0_277] : memref<2x14x14x2xf32, #tpu.memory_space<vmem>>, vector<2x8x8x2xf32>
    %170 = vector.shape_cast %169 : vector<2x8x8x2xf32> to vector<128x2xf32>
    %c0_278 = arith.constant 0 : index
    %c5_279 = arith.constant 5 : index
    %c4_280 = arith.constant 4 : index
    %c0_281 = arith.constant 0 : index
    %171 = vector.load %arg12[%c0_278, %c5_279, %c4_280, %c0_281] : memref<2x14x14x2xf32, #tpu.memory_space<vmem>>, vector<2x8x8x2xf32>
    %172 = vector.shape_cast %171 : vector<2x8x8x2xf32> to vector<128x2xf32>
    %c0_282 = arith.constant 0 : index
    %c5_283 = arith.constant 5 : index
    %c5_284 = arith.constant 5 : index
    %c0_285 = arith.constant 0 : index
    %173 = vector.load %arg12[%c0_282, %c5_283, %c5_284, %c0_285] : memref<2x14x14x2xf32, #tpu.memory_space<vmem>>, vector<2x8x8x2xf32>
    %174 = vector.shape_cast %173 : vector<2x8x8x2xf32> to vector<128x2xf32>
    %c0_286 = arith.constant 0 : index
    %c5_287 = arith.constant 5 : index
    %c6_288 = arith.constant 6 : index
    %c0_289 = arith.constant 0 : index
    %175 = vector.load %arg12[%c0_286, %c5_287, %c6_288, %c0_289] : memref<2x14x14x2xf32, #tpu.memory_space<vmem>>, vector<2x8x8x2xf32>
    %176 = vector.shape_cast %175 : vector<2x8x8x2xf32> to vector<128x2xf32>
    %c0_290 = arith.constant 0 : index
    %c6_291 = arith.constant 6 : index
    %c0_292 = arith.constant 0 : index
    %c0_293 = arith.constant 0 : index
    %177 = vector.load %arg12[%c0_290, %c6_291, %c0_292, %c0_293] : memref<2x14x14x2xf32, #tpu.memory_space<vmem>>, vector<2x8x8x2xf32>
    %178 = vector.shape_cast %177 : vector<2x8x8x2xf32> to vector<128x2xf32>
    %c0_294 = arith.constant 0 : index
    %c6_295 = arith.constant 6 : index
    %c1_296 = arith.constant 1 : index
    %c0_297 = arith.constant 0 : index
    %179 = vector.load %arg12[%c0_294, %c6_295, %c1_296, %c0_297] : memref<2x14x14x2xf32, #tpu.memory_space<vmem>>, vector<2x8x8x2xf32>
    %180 = vector.shape_cast %179 : vector<2x8x8x2xf32> to vector<128x2xf32>
    %c0_298 = arith.constant 0 : index
    %c6_299 = arith.constant 6 : index
    %c2_300 = arith.constant 2 : index
    %c0_301 = arith.constant 0 : index
    %181 = vector.load %arg12[%c0_298, %c6_299, %c2_300, %c0_301] : memref<2x14x14x2xf32, #tpu.memory_space<vmem>>, vector<2x8x8x2xf32>
    %182 = vector.shape_cast %181 : vector<2x8x8x2xf32> to vector<128x2xf32>
    %c0_302 = arith.constant 0 : index
    %c6_303 = arith.constant 6 : index
    %c3_304 = arith.constant 3 : index
    %c0_305 = arith.constant 0 : index
    %183 = vector.load %arg12[%c0_302, %c6_303, %c3_304, %c0_305] : memref<2x14x14x2xf32, #tpu.memory_space<vmem>>, vector<2x8x8x2xf32>
    %184 = vector.shape_cast %183 : vector<2x8x8x2xf32> to vector<128x2xf32>
    %c0_306 = arith.constant 0 : index
    %c6_307 = arith.constant 6 : index
    %c4_308 = arith.constant 4 : index
    %c0_309 = arith.constant 0 : index
    %185 = vector.load %arg12[%c0_306, %c6_307, %c4_308, %c0_309] : memref<2x14x14x2xf32, #tpu.memory_space<vmem>>, vector<2x8x8x2xf32>
    %186 = vector.shape_cast %185 : vector<2x8x8x2xf32> to vector<128x2xf32>
    %c0_310 = arith.constant 0 : index
    %c6_311 = arith.constant 6 : index
    %c5_312 = arith.constant 5 : index
    %c0_313 = arith.constant 0 : index
    %187 = vector.load %arg12[%c0_310, %c6_311, %c5_312, %c0_313] : memref<2x14x14x2xf32, #tpu.memory_space<vmem>>, vector<2x8x8x2xf32>
    %188 = vector.shape_cast %187 : vector<2x8x8x2xf32> to vector<128x2xf32>
    %c0_314 = arith.constant 0 : index
    %c6_315 = arith.constant 6 : index
    %c6_316 = arith.constant 6 : index
    %c0_317 = arith.constant 0 : index
    %189 = vector.load %arg12[%c0_314, %c6_315, %c6_316, %c0_317] : memref<2x14x14x2xf32, #tpu.memory_space<vmem>>, vector<2x8x8x2xf32>
    %190 = vector.shape_cast %189 : vector<2x8x8x2xf32> to vector<128x2xf32>
    %191 = tpu.concatenate %94, %96, %98, %100, %102, %104, %106, %108, %110, %112, %114, %116, %118, %120, %122, %124 in 1 : vector<128x2xf32>, vector<128x2xf32>, vector<128x2xf32>, vector<128x2xf32>, vector<128x2xf32>, vector<128x2xf32>, vector<128x2xf32>, vector<128x2xf32>, vector<128x2xf32>, vector<128x2xf32>, vector<128x2xf32>, vector<128x2xf32>, vector<128x2xf32>, vector<128x2xf32>, vector<128x2xf32>, vector<128x2xf32> -> vector<128x32xf32>
    %192 = tpu.concatenate %126, %128, %130, %132, %134, %136, %138, %140, %142, %144, %146, %148, %150, %152, %154, %156 in 1 : vector<128x2xf32>, vector<128x2xf32>, vector<128x2xf32>, vector<128x2xf32>, vector<128x2xf32>, vector<128x2xf32>, vector<128x2xf32>, vector<128x2xf32>, vector<128x2xf32>, vector<128x2xf32>, vector<128x2xf32>, vector<128x2xf32>, vector<128x2xf32>, vector<128x2xf32>, vector<128x2xf32>, vector<128x2xf32> -> vector<128x32xf32>
    %193 = tpu.concatenate %158, %160, %162, %164, %166, %168, %170, %172, %174, %176, %178, %180, %182, %184, %186, %188 in 1 : vector<128x2xf32>, vector<128x2xf32>, vector<128x2xf32>, vector<128x2xf32>, vector<128x2xf32>, vector<128x2xf32>, vector<128x2xf32>, vector<128x2xf32>, vector<128x2xf32>, vector<128x2xf32>, vector<128x2xf32>, vector<128x2xf32>, vector<128x2xf32>, vector<128x2xf32>, vector<128x2xf32>, vector<128x2xf32> -> vector<128x32xf32>
    %194 = tpu.concatenate %191, %192, %193, %190 in 1 : vector<128x32xf32>, vector<128x32xf32>, vector<128x32xf32>, vector<128x2xf32> -> vector<128x98xf32>
    %cst_318 = arith.constant dense<0.000000e+00> : vector<128x1xf32>
    %195 = tpu.matmul %194, %89, %cst_318 {dimension_numbers = #tpu.dot_dimension_numbers<[1], [0], [0], [1], [0, 0, 1, 1], [], []>} : vector<128x98xf32>, vector<98x1xf32>, vector<128x1xf32> -> vector<128x1xf32>
    %196 = arith.negf %195 : vector<128x1xf32>
    %197 = math.exp %196 : vector<128x1xf32>
    %cst_319 = arith.constant 1.000000e+00 : f32
    %198 = vector.broadcast %cst_319 : f32 to vector<128x1xf32>
    %199 = arith.addf %198, %197 : vector<128x1xf32>
    %200 = arith.divf %198, %199 : vector<128x1xf32>
    %201 = vector.shape_cast %0 : vector<2x8x8x16xf32> to vector<128x16xf32>
    %202 = vector.shape_cast %80 : vector<2x64x16xf32> to vector<128x16xf32>
    %203 = vector.broadcast %200 : vector<128x1xf32> to vector<128x16xf32>
    %204 = arith.mulf %202, %203 : vector<128x16xf32>
    %205 = arith.addf %204, %201 : vector<128x16xf32>
    %cst_320 = arith.constant 0.000000e+00 : f32
    %206 = vector.broadcast %cst_320 : f32 to vector<128x16xf32>
    %207 = arith.maximumf %205, %206 : vector<128x16xf32>
    %208 = vector.shape_cast %207 : vector<128x16xf32> to vector<2x8x8x16xf32>
    %c0_321 = arith.constant 0 : index
    %c0_322 = arith.constant 0 : index
    %c0_323 = arith.constant 0 : index
    %c0_324 = arith.constant 0 : index
    %209 = vector.load %arg9[%c0_321, %c0_322, %c0_323, %c0_324] : memref<2x8x8x16xf32, #tpu.memory_space<vmem>>, vector<2x8x8x16xf32>
    tpu.vector_store %arg9[%c0_321, %c0_322, %c0_323, %c0_324], %208 {strides = array<i32>} : memref<2x8x8x16xf32, #tpu.memory_space<vmem>>, vector<2x8x8x16xf32>,
    return
  }
  func.func @transform_0(%arg0: i32) -> (i32, i32, i32, i32) {
    %c0_i32 = arith.constant 0 : i32
    %c0_i32_0 = arith.constant 0 : i32
    %c0_i32_1 = arith.constant 0 : i32
    %c0_i32_2 = arith.constant 0 : i32
    return %arg0, %c0_i32, %c0_i32_0, %c0_i32_1 : i32, i32, i32, i32
  }
  func.func @transform_1(%arg0: i32) -> (i32, i32) {
    %c0_i32 = arith.constant 0 : i32
    %c0_i32_0 = arith.constant 0 : i32
    %c0_i32_1 = arith.constant 0 : i32
    return %c0_i32, %c0_i32_0 : i32, i32
  }
  func.func @transform_2(%arg0: i32) -> (i32, i32) {
    %c0_i32 = arith.constant 0 : i32
    %c0_i32_0 = arith.constant 0 : i32
    %c0_i32_1 = arith.constant 0 : i32
    return %c0_i32, %c0_i32_0 : i32, i32
  }
  func.func @transform_3(%arg0: i32) -> (i32, i32) {
    %c0_i32 = arith.constant 0 : i32
    %c0_i32_0 = arith.constant 0 : i32
    %c0_i32_1 = arith.constant 0 : i32
    return %c0_i32, %c0_i32_0 : i32, i32
  }
  func.func @transform_4(%arg0: i32) -> (i32, i32) {
    %c0_i32 = arith.constant 0 : i32
    %c0_i32_0 = arith.constant 0 : i32
    %c0_i32_1 = arith.constant 0 : i32
    return %c0_i32, %c0_i32_0 : i32, i32
  }
  func.func @transform_5(%arg0: i32) -> (i32, i32) {
    %c0_i32 = arith.constant 0 : i32
    %c0_i32_0 = arith.constant 0 : i32
    %c0_i32_1 = arith.constant 0 : i32
    return %c0_i32, %c0_i32_0 : i32, i32
  }
  func.func @transform_6(%arg0: i32) -> (i32, i32) {
    %c0_i32 = arith.constant 0 : i32
    %c0_i32_0 = arith.constant 0 : i32
    %c0_i32_1 = arith.constant 0 : i32
    return %c0_i32, %c0_i32_0 : i32, i32
  }
  func.func @transform_7(%arg0: i32) -> (i32, i32) {
    %c0_i32 = arith.constant 0 : i32
    %c0_i32_0 = arith.constant 0 : i32
    %c0_i32_1 = arith.constant 0 : i32
    return %c0_i32, %c0_i32_0 : i32, i32
  }
  func.func @transform_8(%arg0: i32) -> (i32, i32, i32, i32) {
    %c0_i32 = arith.constant 0 : i32
    %c0_i32_0 = arith.constant 0 : i32
    %c0_i32_1 = arith.constant 0 : i32
    %c0_i32_2 = arith.constant 0 : i32
    return %arg0, %c0_i32, %c0_i32_0, %c0_i32_1 : i32, i32, i32, i32
  }
}

</mosaic_0001>

<llo_original>
// kernel: _lambda_.1
$region0: #{_lambda_.1}
  #allocation0 [shape = 'u32[]', space=smem, size = 0x4, offset = 0x4, fixed_abs, tag = 'smem constant byte address 0x4 - core index']
  #allocation1 [shape = 'u32[144,128]{1,0:T(1,128)}', space=vmem, size = 0x12000, scoped, tag = 'internal scratch']
  #allocation2 [shape = 'f32[2,10,10,16]{3,2,1,0:T(8,128)}', space=vmem, size = 0x28000, scoped, tag = 'scratch operand']
  #allocation3 [shape = 'f32[2,10,10,16]{3,2,1,0:T(8,128)}', space=vmem, size = 0x28000, scoped, tag = 'scratch operand']
  #allocation4 [shape = 'f32[2,14,14,2]{3,2,1,0:T(8,128)}', space=vmem, size = 0x38000, scoped, tag = 'scratch operand']
  %s0 = inlined_call_operand.hbm [shape: f32[2,8,8,16], index: 0, kind: input, shape index: {}]
  %s1 = inlined_call_operand.hbm [shape: f32[144,16], index: 1, kind: input, shape index: {}]
  %s2 = inlined_call_operand.hbm [shape: f32[1,16], index: 2, kind: input, shape index: {}]
  %s3 = inlined_call_operand.hbm [shape: f32[144,16], index: 3, kind: input, shape index: {}]
  %s4 = inlined_call_operand.vmem [shape: f32[1,16], index: 4, kind: input, shape index: {}]
  %s5 = inlined_call_operand.vmem [shape: f32[16,1], index: 5, kind: input, shape index: {}]
  %s6 = inlined_call_operand.vmem [shape: f32[1,16], index: 6, kind: input, shape index: {}]
  %s7 = inlined_call_operand.hbm [shape: f32[98,1], index: 7, kind: input, shape index: {}]
  %s8 = inlined_call_operand.hbm [shape: f32[2,8,8,16], index: 8, kind: output, shape index: {}]
  %s9 = sld [smem:[#allocation0]]
  $region62: #{_lambda_.1} parent=0
    _
  %s11 = ssub.s32 1, %s9
  %s12 = scalar_select 0, %s11, %s9
  $region1: #{_lambda_.1} parent=0
    #allocation5 [shape = 'u8[65536]{0}', space=vmem, size = 0x10000, scoped, tag = 'input window, operand 0, single buffered']
    #allocation6 [shape = 's32[1]{0}', space=sflag, size = 0x4, scoped, tag = 'scoped memory for _lambda_.1']
    #allocation7 [shape = 's32[1]{0}', space=sflag, size = 0x4, scoped, tag = 'scoped memory for _lambda_.1']
    #allocation8 [shape = 'u8[73728]{0}', space=vmem, size = 0x12000, scoped, tag = 'input window, operand 1, single buffered']
    #allocation9 [shape = 's32[1]{0}', space=sflag, size = 0x4, scoped, tag = 'scoped memory for _lambda_.1']
    #allocation10 [shape = 'u8[512]{0}', space=vmem, size = 0x400, scoped, tag = 'input window, operand 2, single buffered']
    #allocation11 [shape = 'u8[73728]{0}', space=vmem, size = 0x12000, scoped, tag = 'input window, operand 3, single buffered']
    #allocation12 [shape = 's32[1]{0}', space=sflag, size = 0x4, scoped, tag = 'scoped memory for _lambda_.1']
    #allocation13 [shape = 'u8[53248]{0}', space=vmem, size = 0xd000, scoped, tag = 'input window, operand 7, single buffered']
    #allocation14 [shape = 'u8[65536]{0}', space=vmem, size = 0x10000, scoped, tag = 'output window, operand 0, single buffered']
    %13 = vsyncpa [#allocation6], 0
    %14 = vsyncpa [#allocation9], 0
    %15 = vsyncpa [#allocation12], 0
    %16 = vsyncpa [#allocation7], 0
    // Predicated region
    $region2: #{_lambda_.1} parent=1 // pred_check
      _
    $region3: #{_lambda_.1} parent=1 // pred_check_branch
      %18 = sbr.rel (0) target = $region5
    $region4: #{_lambda_.1} parent=1 // pred_region
      %s20 = ssub.s32 2048, 2048
      %21 = vsyncadd [#allocation6], %s20
      %s22 = sshll.u32 [#allocation5], 4
      %s23 = int_to_ptr.vmem [resolvable:$true] %s22
      %28 = dma.hbm_to_vmem [thread:$0]  %s0, 2048, %s23, [#allocation6], 128, 128, 8
    $region5: #{_lambda_.1} parent=1 // pred_fallthru
      _
    // Predicated region
    $region6: #{_lambda_.1} parent=1 // pred_check
      _
    $region7: #{_lambda_.1} parent=1 // pred_check_branch
      %30 = sbr.rel (0) target = $region9
    $region8: #{_lambda_.1} parent=1 // pred_region
      %s32 = ssub.s32 2304, 2304
      %33 = vsyncadd [#allocation9], %s32
      %s34 = sshll.u32 [#allocation8], 4
      %s35 = int_to_ptr.vmem [resolvable:$true] %s34
      %40 = dma.hbm_to_vmem [thread:$0]  %s1, 2304, %s35, [#allocation9], 128, 128, 8
    $region9: #{_lambda_.1} parent=1 // pred_fallthru
      _
    // Predicated region
    $region10: #{_lambda_.1} parent=1 // pred_check
      _
    $region11: #{_lambda_.1} parent=1 // pred_check_branch
      %42 = sbr.rel (0) target = $region13
    $region12: #{_lambda_.1} parent=1 // pred_region
      %s44 = ssub.s32 16, 16
      %45 = vsyncadd [#allocation9], %s44
      %s47 = sshll.u32 [#allocation10], 4
      %s48 = int_to_ptr.vmem [resolvable:$true] %s47
      %50 = dma.hbm_to_vmem [thread:$0]  %s2, 16, %s48, [#allocation9]
    $region13: #{_lambda_.1} parent=1 // pred_fallthru
      _
    // Predicated region
    $region14: #{_lambda_.1} parent=1 // pred_check
      _
    $region15: #{_lambda_.1} parent=1 // pred_check_branch
      %52 = sbr.rel (0) target = $region17
    $region16: #{_lambda_.1} parent=1 // pred_region
      %s54 = ssub.s32 2304, 2304
      %55 = vsyncadd [#allocation12], %s54
      %s56 = sshll.u32 [#allocation11], 4
      %s57 = int_to_ptr.vmem [resolvable:$true] %s56
      %62 = dma.hbm_to_vmem [thread:$0]  %s3, 2304, %s57, [#allocation12], 128, 128, 8
    $region17: #{_lambda_.1} parent=1 // pred_fallthru
      _
    // Predicated region
    $region18: #{_lambda_.1} parent=1 // pred_check
      _
    $region19: #{_lambda_.1} parent=1 // pred_check_branch
      %64 = sbr.rel (0) target = $region21
    $region20: #{_lambda_.1} parent=1 // pred_region
      _
    $region21: #{_lambda_.1} parent=1 // pred_fallthru
      _
    // Predicated region
    $region22: #{_lambda_.1} parent=1 // pred_check
      _
    $region23: #{_lambda_.1} parent=1 // pred_check_branch
      %66 = sbr.rel (0) target = $region25
    $region24: #{_lambda_.1} parent=1 // pred_region
      _
    $region25: #{_lambda_.1} parent=1 // pred_fallthru
      _
    // Predicated region
    $region26: #{_lambda_.1} parent=1 // pred_check
      _
    $region27: #{_lambda_.1} parent=1 // pred_check_branch
      %68 = sbr.rel (0) target = $region29
    $region28: #{_lambda_.1} parent=1 // pred_region
      _
    $region29: #{_lambda_.1} parent=1 // pred_fallthru
      _
    // Predicated region
    $region30: #{_lambda_.1} parent=1 // pred_check
      _
    $region31: #{_lambda_.1} parent=1 // pred_check_branch
      %70 = sbr.rel (0) target = $region33
    $region32: #{_lambda_.1} parent=1 // pred_region
      %s72 = ssub.s32 1664, 1664
      %73 = vsyncadd [#allocation12], %s72
      %s74 = sshll.u32 [#allocation13], 4
      %s75 = int_to_ptr.vmem [resolvable:$true] %s74
      %80 = dma.hbm_to_vmem [thread:$0]  %s7, 1664, %s75, [#allocation12], 128, 128, 8
    $region33: #{_lambda_.1} parent=1 // pred_fallthru
      _
    // Predicated region
    $region34: #{_lambda_.1} parent=1 // pred_check
      _
    $region35: #{_lambda_.1} parent=1 // pred_check_branch
      %82 = sbr.rel (0) target = $region37
    $region36: #{_lambda_.1} parent=1 // pred_region
      %83 = dma.done [#allocation6], 2048
    $region37: #{_lambda_.1} parent=1 // pred_fallthru
      _
    // Predicated region
    $region38: #{_lambda_.1} parent=1 // pred_check
      _
    $region39: #{_lambda_.1} parent=1 // pred_check_branch
      %85 = sbr.rel (0) target = $region41
    $region40: #{_lambda_.1} parent=1 // pred_region
      %86 = dma.done [#allocation9], 2304
    $region41: #{_lambda_.1} parent=1 // pred_fallthru
      _
    // Predicated region
    $region42: #{_lambda_.1} parent=1 // pred_check
      _
    $region43: #{_lambda_.1} parent=1 // pred_check_branch
      %88 = sbr.rel (0) target = $region45
    $region44: #{_lambda_.1} parent=1 // pred_region
      %89 = dma.done [#allocation9], 16
    $region45: #{_lambda_.1} parent=1 // pred_fallthru
      _
    // Predicated region
    $region46: #{_lambda_.1} parent=1 // pred_check
      _
    $region47: #{_lambda_.1} parent=1 // pred_check_branch
      %91 = sbr.rel (0) target = $region49
    $region48: #{_lambda_.1} parent=1 // pred_region
      %92 = dma.done [#allocation12], 2304
    $region49: #{_lambda_.1} parent=1 // pred_fallthru
      _
    // Predicated region
    $region50: #{_lambda_.1} parent=1 // pred_check
      _
    $region51: #{_lambda_.1} parent=1 // pred_check_branch
      %94 = sbr.rel (0) target = $region53
    $region52: #{_lambda_.1} parent=1 // pred_region
      %95 = dma.done [#allocation12], 1664
    $region53: #{_lambda_.1} parent=1 // pred_fallthru
      _
    %v96 = vld [vmem:[#allocation5] sm:$0xff]
    %v97 = vld [vmem:[#allocation5 + $0x8] sm:$0xff]
    %v98 = vld [vmem:[#allocation5 + $0x10] sm:$0xff]
    %v99 = vld [vmem:[#allocation5 + $0x18] sm:$0xff]
    %v100 = vld [vmem:[#allocation5 + $0x20] sm:$0xff]
    %v101 = vld [vmem:[#allocation5 + $0x28] sm:$0xff]
    %v102 = vld [vmem:[#allocation5 + $0x30] sm:$0xff]
    %v103 = vld [vmem:[#allocation5 + $0x38] sm:$0xff]
    %v104 = vld [vmem:[#allocation5 + $0x40] sm:$0xff]
    %v105 = vld [vmem:[#allocation5 + $0x48] sm:$0xff]
    %v106 = vld [vmem:[#allocation5 + $0x50] sm:$0xff]
    %v107 = vld [vmem:[#allocation5 + $0x58] sm:$0xff]
    %v108 = vld [vmem:[#allocation5 + $0x60] sm:$0xff]
    %v109 = vld [vmem:[#allocation5 + $0x68] sm:$0xff]
    %v110 = vld [vmem:[#allocation5 + $0x70] sm:$0xff]
    %v111 = vld [vmem:[#allocation5 + $0x78] sm:$0xff]
    %v112 = vld [vmem:[#allocation8] sm:$0xff]
    %v113 = vld [vmem:[#allocation8 + $0x8] sm:$0xff]
    %v114 = vld [vmem:[#allocation8 + $0x10] sm:$0xff]
    %v115 = vld [vmem:[#allocation8 + $0x18] sm:$0xff]
    %v116 = vld [vmem:[#allocation8 + $0x20] sm:$0xff]
    %v117 = vld [vmem:[#allocation8 + $0x28] sm:$0xff]
    %v118 = vld [vmem:[#allocation8 + $0x30] sm:$0xff]
    %v119 = vld [vmem:[#allocation8 + $0x38] sm:$0xff]
    %v120 = vld [vmem:[#allocation8 + $0x40] sm:$0xff]
    %v121 = vld [vmem:[#allocation8 + $0x48] sm:$0xff]
    %v122 = vld [vmem:[#allocation8 + $0x50] sm:$0xff]
    %v123 = vld [vmem:[#allocation8 + $0x58] sm:$0xff]
    %v124 = vld [vmem:[#allocation8 + $0x60] sm:$0xff]
    %v125 = vld [vmem:[#allocation8 + $0x68] sm:$0xff]
    %v126 = vld [vmem:[#allocation8 + $0x70] sm:$0xff]
    %v127 = vld [vmem:[#allocation8 + $0x78] sm:$0xff]
    %v128 = vld [vmem:[#allocation8 + $0x80] sm:$0xff]
    %v129 = vld [vmem:[#allocation8 + $0x88] sm:$0xff]
    %vm130 = vcmask 130048
    %131 = vst.msk [vmem:[#allocation2] sm:$0xff] %vm130, 0.0
    %vm132 = vcmask 123904
    %133 = vst.msk [vmem:[#allocation2 + $0x8] sm:$0x3] %vm132, 0.0
    %134 = vst.msk [vmem:[#allocation2 + $0x10] sm:$0xff] %vm130, 0.0
    %135 = vst.msk [vmem:[#allocation2 + $0x18] sm:$0x3] %vm132, 0.0
    %136 = vst.msk [vmem:[#allocation2 + $0x20] sm:$0xff] %vm130, 0.0
    %137 = vst.msk [vmem:[#allocation2 + $0x28] sm:$0x3] %vm132, 0.0
    %138 = vst.msk [vmem:[#allocation2 + $0x30] sm:$0xff] %vm130, 0.0
    %139 = vst.msk [vmem:[#allocation2 + $0x38] sm:$0x3] %vm132, 0.0
    %140 = vst.msk [vmem:[#allocation2 + $0x40] sm:$0xff] %vm130, 0.0
    %141 = vst.msk [vmem:[#allocation2 + $0x48] sm:$0x3] %vm132, 0.0
    %142 = vst.msk [vmem:[#allocation2 + $0x50] sm:$0xff] %vm130, 0.0
    %143 = vst.msk [vmem:[#allocation2 + $0x58] sm:$0x3] %vm132, 0.0
    %144 = vst.msk [vmem:[#allocation2 + $0x60] sm:$0xff] %vm130, 0.0
    %145 = vst.msk [vmem:[#allocation2 + $0x68] sm:$0x3] %vm132, 0.0
    %146 = vst.msk [vmem:[#allocation2 + $0x70] sm:$0xff] %vm130, 0.0
    %147 = vst.msk [vmem:[#allocation2 + $0x78] sm:$0x3] %vm132, 0.0
    %148 = vst.msk [vmem:[#allocation2 + $0x80] sm:$0xff] %vm130, 0.0
    %149 = vst.msk [vmem:[#allocation2 + $0x88] sm:$0x3] %vm132, 0.0
    %150 = vst.msk [vmem:[#allocation2 + $0x90] sm:$0xff] %vm130, 0.0
    %151 = vst.msk [vmem:[#allocation2 + $0x98] sm:$0x3] %vm132, 0.0
    %152 = vst.msk [vmem:[#allocation2 + $0xa0] sm:$0xff] %vm130, 0.0
    %153 = vst.msk [vmem:[#allocation2 + $0xa8] sm:$0x3] %vm132, 0.0
    %154 = vst.msk [vmem:[#allocation2 + $0xb0] sm:$0xff] %vm130, 0.0
    %155 = vst.msk [vmem:[#allocation2 + $0xb8] sm:$0x3] %vm132, 0.0
    %156 = vst.msk [vmem:[#allocation2 + $0xc0] sm:$0xff] %vm130, 0.0
    %157 = vst.msk [vmem:[#allocation2 + $0xc8] sm:$0x3] %vm132, 0.0
    %158 = vst.msk [vmem:[#allocation2 + $0xd0] sm:$0xff] %vm130, 0.0
    %159 = vst.msk [vmem:[#allocation2 + $0xd8] sm:$0x3] %vm132, 0.0
    %160 = vst.msk [vmem:[#allocation2 + $0xe0] sm:$0xff] %vm130, 0.0
    %161 = vst.msk [vmem:[#allocation2 + $0xe8] sm:$0x3] %vm132, 0.0
    %162 = vst.msk [vmem:[#allocation2 + $0xf0] sm:$0xff] %vm130, 0.0
    %163 = vst.msk [vmem:[#allocation2 + $0xf8] sm:$0x3] %vm132, 0.0
    %164 = vst.msk [vmem:[#allocation2 + $0x100] sm:$0xff] %vm130, 0.0
    %165 = vst.msk [vmem:[#allocation2 + $0x108] sm:$0x3] %vm132, 0.0
    %166 = vst.msk [vmem:[#allocation2 + $0x110] sm:$0xff] %vm130, 0.0
    %167 = vst.msk [vmem:[#allocation2 + $0x118] sm:$0x3] %vm132, 0.0
    %168 = vst.msk [vmem:[#allocation2 + $0x120] sm:$0xff] %vm130, 0.0
    %169 = vst.msk [vmem:[#allocation2 + $0x128] sm:$0x3] %vm132, 0.0
    %170 = vst.msk [vmem:[#allocation2 + $0x130] sm:$0xff] %vm130, 0.0
    %171 = vst.msk [vmem:[#allocation2 + $0x138] sm:$0x3] %vm132, 0.0
    %s172 = scalar_lea.vmem [#allocation2], 16
    %173 = vst.msk [vmem:[%s172 + $0x1] sm:$0xff] %vm130, %v96
    %174 = vst.msk [vmem:[%s172 + $0x11] sm:$0xff] %vm130, %v97
    %175 = vst.msk [vmem:[%s172 + $0x21] sm:$0xff] %vm130, %v98
    %176 = vst.msk [vmem:[%s172 + $0x31] sm:$0xff] %vm130, %v99
    %177 = vst.msk [vmem:[%s172 + $0x41] sm:$0xff] %vm130, %v100
    %178 = vst.msk [vmem:[%s172 + $0x51] sm:$0xff] %vm130, %v101
    %179 = vst.msk [vmem:[%s172 + $0x61] sm:$0xff] %vm130, %v102
    %180 = vst.msk [vmem:[%s172 + $0x71] sm:$0xff] %vm130, %v103
    %181 = vst.msk [vmem:[%s172 + $0xa1] sm:$0xff] %vm130, %v104
    %182 = vst.msk [vmem:[%s172 + $0xb1] sm:$0xff] %vm130, %v105
    %183 = vst.msk [vmem:[%s172 + $0xc1] sm:$0xff] %vm130, %v106
    %184 = vst.msk [vmem:[%s172 + $0xd1] sm:$0xff] %vm130, %v107
    %185 = vst.msk [vmem:[%s172 + $0xe1] sm:$0xff] %vm130, %v108
    %186 = vst.msk [vmem:[%s172 + $0xf1] sm:$0xff] %vm130, %v109
    %187 = vst.msk [vmem:[%s172 + $0x101] sm:$0xff] %vm130, %v110
    %188 = vst.msk [vmem:[%s172 + $0x111] sm:$0xff] %vm130, %v111
    %v189 = vld [vmem:[#allocation2] sm:$0xff]
    %v190 = vld [vmem:[#allocation2 + $0x10] sm:$0xff]
    %v191 = vld [vmem:[#allocation2 + $0x20] sm:$0xff]
    %v192 = vld [vmem:[#allocation2 + $0x30] sm:$0xff]
    %v193 = vld [vmem:[#allocation2 + $0x40] sm:$0xff]
    %v194 = vld [vmem:[#allocation2 + $0x50] sm:$0xff]
    %v195 = vld [vmem:[#allocation2 + $0x60] sm:$0xff]
    %v196 = vld [vmem:[#allocation2 + $0x70] sm:$0xff]
    %v197 = vld [vmem:[#allocation2 + $0xa0] sm:$0xff]
    %v198 = vld [vmem:[#allocation2 + $0xb0] sm:$0xff]
    %v199 = vld [vmem:[#allocation2 + $0xc0] sm:$0xff]
    %v200 = vld [vmem:[#allocation2 + $0xd0] sm:$0xff]
    %v201 = vld [vmem:[#allocation2 + $0xe0] sm:$0xff]
    %v202 = vld [vmem:[#allocation2 + $0xf0] sm:$0xff]
    %v203 = vld [vmem:[#allocation2 + $0x100] sm:$0xff]
    %v204 = vld [vmem:[#allocation2 + $0x110] sm:$0xff]
    %v205 = vld [vmem:[#allocation2 + $0x1] sm:$0xff]
    %v206 = vld [vmem:[#allocation2 + $0x11] sm:$0xff]
    %v207 = vld [vmem:[#allocation2 + $0x21] sm:$0xff]
    %v208 = vld [vmem:[#allocation2 + $0x31] sm:$0xff]
    %v209 = vld [vmem:[#allocation2 + $0x41] sm:$0xff]
    %v210 = vld [vmem:[#allocation2 + $0x51] sm:$0xff]
    %v211 = vld [vmem:[#allocation2 + $0x61] sm:$0xff]
    %v212 = vld [vmem:[#allocation2 + $0x71] sm:$0xff]
    %v213 = vld [vmem:[#allocation2 + $0xa1] sm:$0xff]
    %v214 = vld [vmem:[#allocation2 + $0xb1] sm:$0xff]
    %v215 = vld [vmem:[#allocation2 + $0xc1] sm:$0xff]
    %v216 = vld [vmem:[#allocation2 + $0xd1] sm:$0xff]
    %v217 = vld [vmem:[#allocation2 + $0xe1] sm:$0xff]
    %v218 = vld [vmem:[#allocation2 + $0xf1] sm:$0xff]
    %v219 = vld [vmem:[#allocation2 + $0x101] sm:$0xff]
    %v220 = vld [vmem:[#allocation2 + $0x111] sm:$0xff]
    %v221 = vld [vmem:[#allocation2 + $0x2] sm:$0xff]
    %v222 = vld [vmem:[#allocation2 + $0x12] sm:$0xff]
    %v223 = vld [vmem:[#allocation2 + $0x22] sm:$0xff]
    %v224 = vld [vmem:[#allocation2 + $0x32] sm:$0xff]
    %v225 = vld [vmem:[#allocation2 + $0x42] sm:$0xff]
    %v226 = vld [vmem:[#allocation2 + $0x52] sm:$0xff]
    %v227 = vld [vmem:[#allocation2 + $0x62] sm:$0xff]
    %v228 = vld [vmem:[#allocation2 + $0x72] sm:$0xff]
    %v229 = vld [vmem:[#allocation2 + $0xa2] sm:$0xff]
    %v230 = vld [vmem:[#allocation2 + $0xb2] sm:$0xff]
    %v231 = vld [vmem:[#allocation2 + $0xc2] sm:$0xff]
    %v232 = vld [vmem:[#allocation2 + $0xd2] sm:$0xff]
    %v233 = vld [vmem:[#allocation2 + $0xe2] sm:$0xff]
    %v234 = vld [vmem:[#allocation2 + $0xf2] sm:$0xff]
    %v235 = vld [vmem:[#allocation2 + $0x102] sm:$0xff]
    %v236 = vld [vmem:[#allocation2 + $0x112] sm:$0xff]
    %v237 = vld [vmem:[%s172] sm:$0xff]
    %v238 = vld [vmem:[%s172 + $0x10] sm:$0xff]
    %v239 = vld [vmem:[%s172 + $0x20] sm:$0xff]
    %v240 = vld [vmem:[%s172 + $0x30] sm:$0xff]
    %v241 = vld [vmem:[%s172 + $0x40] sm:$0xff]
    %v242 = vld [vmem:[%s172 + $0x50] sm:$0xff]
    %v243 = vld [vmem:[%s172 + $0x60] sm:$0xff]
    %v244 = vld [vmem:[%s172 + $0x70] sm:$0xff]
    %v245 = vld [vmem:[%s172 + $0xa0] sm:$0xff]
    %v246 = vld [vmem:[%s172 + $0xb0] sm:$0xff]
    %v247 = vld [vmem:[%s172 + $0xc0] sm:$0xff]
    %v248 = vld [vmem:[%s172 + $0xd0] sm:$0xff]
    %v249 = vld [vmem:[%s172 + $0xe0] sm:$0xff]
    %v250 = vld [vmem:[%s172 + $0xf0] sm:$0xff]
    %v251 = vld [vmem:[%s172 + $0x100] sm:$0xff]
    %v252 = vld [vmem:[%s172 + $0x110] sm:$0xff]
    %v253 = vld [vmem:[%s172 + $0x1] sm:$0xff]
    %v254 = vld [vmem:[%s172 + $0x11] sm:$0xff]
    %v255 = vld [vmem:[%s172 + $0x21] sm:$0xff]
    %v256 = vld [vmem:[%s172 + $0x31] sm:$0xff]
    %v257 = vld [vmem:[%s172 + $0x41] sm:$0xff]
    %v258 = vld [vmem:[%s172 + $0x51] sm:$0xff]
    %v259 = vld [vmem:[%s172 + $0x61] sm:$0xff]
    %v260 = vld [vmem:[%s172 + $0x71] sm:$0xff]
    %v261 = vld [vmem:[%s172 + $0xa1] sm:$0xff]
    %v262 = vld [vmem:[%s172 + $0xb1] sm:$0xff]
    %v263 = vld [vmem:[%s172 + $0xc1] sm:$0xff]
    %v264 = vld [vmem:[%s172 + $0xd1] sm:$0xff]
    %v265 = vld [vmem:[%s172 + $0xe1] sm:$0xff]
    %v266 = vld [vmem:[%s172 + $0xf1] sm:$0xff]
    %v267 = vld [vmem:[%s172 + $0x101] sm:$0xff]
    %v268 = vld [vmem:[%s172 + $0x111] sm:$0xff]
    %v269 = vld [vmem:[%s172 + $0x2] sm:$0xff]
    %v270 = vld [vmem:[%s172 + $0x12] sm:$0xff]
    %v271 = vld [vmem:[%s172 + $0x22] sm:$0xff]
    %v272 = vld [vmem:[%s172 + $0x32] sm:$0xff]
    %v273 = vld [vmem:[%s172 + $0x42] sm:$0xff]
    %v274 = vld [vmem:[%s172 + $0x52] sm:$0xff]
    %v275 = vld [vmem:[%s172 + $0x62] sm:$0xff]
    %v276 = vld [vmem:[%s172 + $0x72] sm:$0xff]
    %v277 = vld [vmem:[%s172 + $0xa2] sm:$0xff]
    %v278 = vld [vmem:[%s172 + $0xb2] sm:$0xff]
    %v279 = vld [vmem:[%s172 + $0xc2] sm:$0xff]
    %v280 = vld [vmem:[%s172 + $0xd2] sm:$0xff]
    %v281 = vld [vmem:[%s172 + $0xe2] sm:$0xff]
    %v282 = vld [vmem:[%s172 + $0xf2] sm:$0xff]
    %v283 = vld [vmem:[%s172 + $0x102] sm:$0xff]
    %v284 = vld [vmem:[%s172 + $0x112] sm:$0xff]
    %s285 = scalar_lea.vmem [#allocation2], 32
    %v286 = vld [vmem:[%s285] sm:$0xff]
    %v287 = vld [vmem:[%s285 + $0x10] sm:$0xff]
    %v288 = vld [vmem:[%s285 + $0x20] sm:$0xff]
    %v289 = vld [vmem:[%s285 + $0x30] sm:$0xff]
    %v290 = vld [vmem:[%s285 + $0x40] sm:$0xff]
    %v291 = vld [vmem:[%s285 + $0x50] sm:$0xff]
    %v292 = vld [vmem:[%s285 + $0x60] sm:$0xff]
    %v293 = vld [vmem:[%s285 + $0x70] sm:$0xff]
    %v294 = vld [vmem:[%s285 + $0xa0] sm:$0xff]
    %v295 = vld [vmem:[%s285 + $0xb0] sm:$0xff]
    %v296 = vld [vmem:[%s285 + $0xc0] sm:$0xff]
    %v297 = vld [vmem:[%s285 + $0xd0] sm:$0xff]
    %v298 = vld [vmem:[%s285 + $0xe0] sm:$0xff]
    %v299 = vld [vmem:[%s285 + $0xf0] sm:$0xff]
    %v300 = vld [vmem:[%s285 + $0x100] sm:$0xff]
    %v301 = vld [vmem:[%s285 + $0x110] sm:$0xff]
    %v302 = vld [vmem:[%s285 + $0x1] sm:$0xff]
    %v303 = vld [vmem:[%s285 + $0x11] sm:$0xff]
    %v304 = vld [vmem:[%s285 + $0x21] sm:$0xff]
    %v305 = vld [vmem:[%s285 + $0x31] sm:$0xff]
    %v306 = vld [vmem:[%s285 + $0x41] sm:$0xff]
    %v307 = vld [vmem:[%s285 + $0x51] sm:$0xff]
    %v308 = vld [vmem:[%s285 + $0x61] sm:$0xff]
    %v309 = vld [vmem:[%s285 + $0x71] sm:$0xff]
    %v310 = vld [vmem:[%s285 + $0xa1] sm:$0xff]
    %v311 = vld [vmem:[%s285 + $0xb1] sm:$0xff]
    %v312 = vld [vmem:[%s285 + $0xc1] sm:$0xff]
    %v313 = vld [vmem:[%s285 + $0xd1] sm:$0xff]
    %v314 = vld [vmem:[%s285 + $0xe1] sm:$0xff]
    %v315 = vld [vmem:[%s285 + $0xf1] sm:$0xff]
    %v316 = vld [vmem:[%s285 + $0x101] sm:$0xff]
    %v317 = vld [vmem:[%s285 + $0x111] sm:$0xff]
    %v318 = vld [vmem:[%s285 + $0x2] sm:$0xff]
    %v319 = vld [vmem:[%s285 + $0x12] sm:$0xff]
    %v320 = vld [vmem:[%s285 + $0x22] sm:$0xff]
    %v321 = vld [vmem:[%s285 + $0x32] sm:$0xff]
    %v322 = vld [vmem:[%s285 + $0x42] sm:$0xff]
    %v323 = vld [vmem:[%s285 + $0x52] sm:$0xff]
    %v324 = vld [vmem:[%s285 + $0x62] sm:$0xff]
    %v325 = vld [vmem:[%s285 + $0x72] sm:$0xff]
    %v326 = vld [vmem:[%s285 + $0xa2] sm:$0xff]
    %v327 = vld [vmem:[%s285 + $0xb2] sm:$0xff]
    %v328 = vld [vmem:[%s285 + $0xc2] sm:$0xff]
    %v329 = vld [vmem:[%s285 + $0xd2] sm:$0xff]
    %v330 = vld [vmem:[%s285 + $0xe2] sm:$0xff]
    %v331 = vld [vmem:[%s285 + $0xf2] sm:$0xff]
    %v332 = vld [vmem:[%s285 + $0x102] sm:$0xff]
    %v333 = vld [vmem:[%s285 + $0x112] sm:$0xff]
    %350 = vrot.lane.b32.xlu0 %v205, 16
    %v351 = vpop.permute.xlu0 %350
    %352 = vrot.lane.b32.xlu0 %v206, 16
    %v353 = vpop.permute.xlu0 %352
    %354 = vrot.lane.b32.xlu0 %v207, 16
    %v355 = vpop.permute.xlu0 %354
    %356 = vrot.lane.b32.xlu0 %v208, 16
    %v357 = vpop.permute.xlu0 %356
    %358 = vrot.lane.b32.xlu0 %v209, 16
    %v359 = vpop.permute.xlu0 %358
    %360 = vrot.lane.b32.xlu0 %v210, 16
    %v361 = vpop.permute.xlu0 %360
    %362 = vrot.lane.b32.xlu0 %v211, 16
    %v363 = vpop.permute.xlu0 %362
    %364 = vrot.lane.b32.xlu0 %v212, 16
    %v365 = vpop.permute.xlu0 %364
    %366 = vrot.lane.b32.xlu0 %v213, 16
    %v367 = vpop.permute.xlu0 %366
    %368 = vrot.lane.b32.xlu0 %v214, 16
    %v369 = vpop.permute.xlu0 %368
    %370 = vrot.lane.b32.xlu0 %v215, 16
    %v371 = vpop.permute.xlu0 %370
    %372 = vrot.lane.b32.xlu0 %v216, 16
    %v373 = vpop.permute.xlu0 %372
    %374 = vrot.lane.b32.xlu0 %v217, 16
    %v375 = vpop.permute.xlu0 %374
    %376 = vrot.lane.b32.xlu0 %v218, 16
    %v377 = vpop.permute.xlu0 %376
    %378 = vrot.lane.b32.xlu0 %v219, 16
    %v379 = vpop.permute.xlu0 %378
    %380 = vrot.lane.b32.xlu0 %v220, 16
    %v381 = vpop.permute.xlu0 %380
    %414 = vrot.lane.b32.xlu0 %v221, 32
    %v415 = vpop.permute.xlu0 %414
    %416 = vrot.lane.b32.xlu0 %v222, 32
    %v417 = vpop.permute.xlu0 %416
    %418 = vrot.lane.b32.xlu0 %v223, 32
    %v419 = vpop.permute.xlu0 %418
    %420 = vrot.lane.b32.xlu0 %v224, 32
    %v421 = vpop.permute.xlu0 %420
    %422 = vrot.lane.b32.xlu0 %v225, 32
    %v423 = vpop.permute.xlu0 %422
    %424 = vrot.lane.b32.xlu0 %v226, 32
    %v425 = vpop.permute.xlu0 %424
    %426 = vrot.lane.b32.xlu0 %v227, 32
    %v427 = vpop.permute.xlu0 %426
    %428 = vrot.lane.b32.xlu0 %v228, 32
    %v429 = vpop.permute.xlu0 %428
    %430 = vrot.lane.b32.xlu0 %v229, 32
    %v431 = vpop.permute.xlu0 %430
    %432 = vrot.lane.b32.xlu0 %v230, 32
    %v433 = vpop.permute.xlu0 %432
    %434 = vrot.lane.b32.xlu0 %v231, 32
    %v435 = vpop.permute.xlu0 %434
    %436 = vrot.lane.b32.xlu0 %v232, 32
    %v437 = vpop.permute.xlu0 %436
    %438 = vrot.lane.b32.xlu0 %v233, 32
    %v439 = vpop.permute.xlu0 %438
    %440 = vrot.lane.b32.xlu0 %v234, 32
    %v441 = vpop.permute.xlu0 %440
    %442 = vrot.lane.b32.xlu0 %v235, 32
    %v443 = vpop.permute.xlu0 %442
    %444 = vrot.lane.b32.xlu0 %v236, 32
    %v445 = vpop.permute.xlu0 %444
    %478 = vrot.lane.b32.xlu0 %v237, 48
    %v479 = vpop.permute.xlu0 %478
    %480 = vrot.lane.b32.xlu0 %v238, 48
    %v481 = vpop.permute.xlu0 %480
    %482 = vrot.lane.b32.xlu0 %v239, 48
    %v483 = vpop.permute.xlu0 %482
    %484 = vrot.lane.b32.xlu0 %v240, 48
    %v485 = vpop.permute.xlu0 %484
    %486 = vrot.lane.b32.xlu0 %v241, 48
    %v487 = vpop.permute.xlu0 %486
    %488 = vrot.lane.b32.xlu0 %v242, 48
    %v489 = vpop.permute.xlu0 %488
    %490 = vrot.lane.b32.xlu0 %v243, 48
    %v491 = vpop.permute.xlu0 %490
    %492 = vrot.lane.b32.xlu0 %v244, 48
    %v493 = vpop.permute.xlu0 %492
    %494 = vrot.lane.b32.xlu0 %v245, 48
    %v495 = vpop.permute.xlu0 %494
    %496 = vrot.lane.b32.xlu0 %v246, 48
    %v497 = vpop.permute.xlu0 %496
    %498 = vrot.lane.b32.xlu0 %v247, 48
    %v499 = vpop.permute.xlu0 %498
    %500 = vrot.lane.b32.xlu0 %v248, 48
    %v501 = vpop.permute.xlu0 %500
    %502 = vrot.lane.b32.xlu0 %v249, 48
    %v503 = vpop.permute.xlu0 %502
    %504 = vrot.lane.b32.xlu0 %v250, 48
    %v505 = vpop.permute.xlu0 %504
    %506 = vrot.lane.b32.xlu0 %v251, 48
    %v507 = vpop.permute.xlu0 %506
    %508 = vrot.lane.b32.xlu0 %v252, 48
    %v509 = vpop.permute.xlu0 %508
    %542 = vrot.lane.b32.xlu0 %v253, 64
    %v543 = vpop.permute.xlu0 %542
    %544 = vrot.lane.b32.xlu0 %v254, 64
    %v545 = vpop.permute.xlu0 %544
    %546 = vrot.lane.b32.xlu0 %v255, 64
    %v547 = vpop.permute.xlu0 %546
    %548 = vrot.lane.b32.xlu0 %v256, 64
    %v549 = vpop.permute.xlu0 %548
    %550 = vrot.lane.b32.xlu0 %v257, 64
    %v551 = vpop.permute.xlu0 %550
    %552 = vrot.lane.b32.xlu0 %v258, 64
    %v553 = vpop.permute.xlu0 %552
    %554 = vrot.lane.b32.xlu0 %v259, 64
    %v555 = vpop.permute.xlu0 %554
    %556 = vrot.lane.b32.xlu0 %v260, 64
    %v557 = vpop.permute.xlu0 %556
    %558 = vrot.lane.b32.xlu0 %v261, 64
    %v559 = vpop.permute.xlu0 %558
    %560 = vrot.lane.b32.xlu0 %v262, 64
    %v561 = vpop.permute.xlu0 %560
    %562 = vrot.lane.b32.xlu0 %v263, 64
    %v563 = vpop.permute.xlu0 %562
    %564 = vrot.lane.b32.xlu0 %v264, 64
    %v565 = vpop.permute.xlu0 %564
    %566 = vrot.lane.b32.xlu0 %v265, 64
    %v567 = vpop.permute.xlu0 %566
    %568 = vrot.lane.b32.xlu0 %v266, 64
    %v569 = vpop.permute.xlu0 %568
    %570 = vrot.lane.b32.xlu0 %v267, 64
    %v571 = vpop.permute.xlu0 %570
    %572 = vrot.lane.b32.xlu0 %v268, 64
    %v573 = vpop.permute.xlu0 %572
    %606 = vrot.lane.b32.xlu0 %v269, 80
    %v607 = vpop.permute.xlu0 %606
    %608 = vrot.lane.b32.xlu0 %v270, 80
    %v609 = vpop.permute.xlu0 %608
    %610 = vrot.lane.b32.xlu0 %v271, 80
    %v611 = vpop.permute.xlu0 %610
    %612 = vrot.lane.b32.xlu0 %v272, 80
    %v613 = vpop.permute.xlu0 %612
    %614 = vrot.lane.b32.xlu0 %v273, 80
    %v615 = vpop.permute.xlu0 %614
    %616 = vrot.lane.b32.xlu0 %v274, 80
    %v617 = vpop.permute.xlu0 %616
    %618 = vrot.lane.b32.xlu0 %v275, 80
    %v619 = vpop.permute.xlu0 %618
    %620 = vrot.lane.b32.xlu0 %v276, 80
    %v621 = vpop.permute.xlu0 %620
    %622 = vrot.lane.b32.xlu0 %v277, 80
    %v623 = vpop.permute.xlu0 %622
    %624 = vrot.lane.b32.xlu0 %v278, 80
    %v625 = vpop.permute.xlu0 %624
    %626 = vrot.lane.b32.xlu0 %v279, 80
    %v627 = vpop.permute.xlu0 %626
    %628 = vrot.lane.b32.xlu0 %v280, 80
    %v629 = vpop.permute.xlu0 %628
    %630 = vrot.lane.b32.xlu0 %v281, 80
    %v631 = vpop.permute.xlu0 %630
    %632 = vrot.lane.b32.xlu0 %v282, 80
    %v633 = vpop.permute.xlu0 %632
    %634 = vrot.lane.b32.xlu0 %v283, 80
    %v635 = vpop.permute.xlu0 %634
    %636 = vrot.lane.b32.xlu0 %v284, 80
    %v637 = vpop.permute.xlu0 %636
    %670 = vrot.lane.b32.xlu0 %v286, 96
    %v671 = vpop.permute.xlu0 %670
    %672 = vrot.lane.b32.xlu0 %v287, 96
    %v673 = vpop.permute.xlu0 %672
    %674 = vrot.lane.b32.xlu0 %v288, 96
    %v675 = vpop.permute.xlu0 %674
    %676 = vrot.lane.b32.xlu0 %v289, 96
    %v677 = vpop.permute.xlu0 %676
    %678 = vrot.lane.b32.xlu0 %v290, 96
    %v679 = vpop.permute.xlu0 %678
    %680 = vrot.lane.b32.xlu0 %v291, 96
    %v681 = vpop.permute.xlu0 %680
    %682 = vrot.lane.b32.xlu0 %v292, 96
    %v683 = vpop.permute.xlu0 %682
    %684 = vrot.lane.b32.xlu0 %v293, 96
    %v685 = vpop.permute.xlu0 %684
    %686 = vrot.lane.b32.xlu0 %v294, 96
    %v687 = vpop.permute.xlu0 %686
    %688 = vrot.lane.b32.xlu0 %v295, 96
    %v689 = vpop.permute.xlu0 %688
    %690 = vrot.lane.b32.xlu0 %v296, 96
    %v691 = vpop.permute.xlu0 %690
    %692 = vrot.lane.b32.xlu0 %v297, 96
    %v693 = vpop.permute.xlu0 %692
    %694 = vrot.lane.b32.xlu0 %v298, 96
    %v695 = vpop.permute.xlu0 %694
    %696 = vrot.lane.b32.xlu0 %v299, 96
    %v697 = vpop.permute.xlu0 %696
    %698 = vrot.lane.b32.xlu0 %v300, 96
    %v699 = vpop.permute.xlu0 %698
    %700 = vrot.lane.b32.xlu0 %v301, 96
    %v701 = vpop.permute.xlu0 %700
    %734 = vrot.lane.b32.xlu0 %v302, 112
    %v735 = vpop.permute.xlu0 %734
    %736 = vrot.lane.b32.xlu0 %v303, 112
    %v737 = vpop.permute.xlu0 %736
    %738 = vrot.lane.b32.xlu0 %v304, 112
    %v739 = vpop.permute.xlu0 %738
    %740 = vrot.lane.b32.xlu0 %v305, 112
    %v741 = vpop.permute.xlu0 %740
    %742 = vrot.lane.b32.xlu0 %v306, 112
    %v743 = vpop.permute.xlu0 %742
    %744 = vrot.lane.b32.xlu0 %v307, 112
    %v745 = vpop.permute.xlu0 %744
    %746 = vrot.lane.b32.xlu0 %v308, 112
    %v747 = vpop.permute.xlu0 %746
    %748 = vrot.lane.b32.xlu0 %v309, 112
    %v749 = vpop.permute.xlu0 %748
    %750 = vrot.lane.b32.xlu0 %v310, 112
    %v751 = vpop.permute.xlu0 %750
    %752 = vrot.lane.b32.xlu0 %v311, 112
    %v753 = vpop.permute.xlu0 %752
    %754 = vrot.lane.b32.xlu0 %v312, 112
    %v755 = vpop.permute.xlu0 %754
    %756 = vrot.lane.b32.xlu0 %v313, 112
    %v757 = vpop.permute.xlu0 %756
    %758 = vrot.lane.b32.xlu0 %v314, 112
    %v759 = vpop.permute.xlu0 %758
    %760 = vrot.lane.b32.xlu0 %v315, 112
    %v761 = vpop.permute.xlu0 %760
    %762 = vrot.lane.b32.xlu0 %v316, 112
    %v763 = vpop.permute.xlu0 %762
    %764 = vrot.lane.b32.xlu0 %v317, 112
    %v765 = vpop.permute.xlu0 %764
    %v782 = vsel %vm130, %v189, %v351
    %v783 = vsel %vm130, %v190, %v353
    %v784 = vsel %vm130, %v191, %v355
    %v785 = vsel %vm130, %v192, %v357
    %v786 = vsel %vm130, %v193, %v359
    %v787 = vsel %vm130, %v194, %v361
    %v788 = vsel %vm130, %v195, %v363
    %v789 = vsel %vm130, %v196, %v365
    %v790 = vsel %vm130, %v197, %v367
    %v791 = vsel %vm130, %v198, %v369
    %v792 = vsel %vm130, %v199, %v371
    %v793 = vsel %vm130, %v200, %v373
    %v794 = vsel %vm130, %v201, %v375
    %v795 = vsel %vm130, %v202, %v377
    %v796 = vsel %vm130, %v203, %v379
    %v797 = vsel %vm130, %v204, %v381
    %vm798 = vcmask 261120
    %v799 = vsel %vm798, %v782, %v415
    %v800 = vsel %vm798, %v783, %v417
    %v801 = vsel %vm798, %v784, %v419
    %v802 = vsel %vm798, %v785, %v421
    %v803 = vsel %vm798, %v786, %v423
    %v804 = vsel %vm798, %v787, %v425
    %v805 = vsel %vm798, %v788, %v427
    %v806 = vsel %vm798, %v789, %v429
    %v807 = vsel %vm798, %v790, %v431
    %v808 = vsel %vm798, %v791, %v433
    %v809 = vsel %vm798, %v792, %v435
    %v810 = vsel %vm798, %v793, %v437
    %v811 = vsel %vm798, %v794, %v439
    %v812 = vsel %vm798, %v795, %v441
    %v813 = vsel %vm798, %v796, %v443
    %v814 = vsel %vm798, %v797, %v445
    %vm815 = vcmask 392192
    %v816 = vsel %vm815, %v799, %v479
    %v817 = vsel %vm815, %v800, %v481
    %v818 = vsel %vm815, %v801, %v483
    %v819 = vsel %vm815, %v802, %v485
    %v820 = vsel %vm815, %v803, %v487
    %v821 = vsel %vm815, %v804, %v489
    %v822 = vsel %vm815, %v805, %v491
    %v823 = vsel %vm815, %v806, %v493
    %v824 = vsel %vm815, %v807, %v495
    %v825 = vsel %vm815, %v808, %v497
    %v826 = vsel %vm815, %v809, %v499
    %v827 = vsel %vm815, %v810, %v501
    %v828 = vsel %vm815, %v811, %v503
    %v829 = vsel %vm815, %v812, %v505
    %v830 = vsel %vm815, %v813, %v507
    %v831 = vsel %vm815, %v814, %v509
    %vm832 = vcmask 523264
    %v833 = vsel %vm832, %v816, %v543
    %v834 = vsel %vm832, %v817, %v545
    %v835 = vsel %vm832, %v818, %v547
    %v836 = vsel %vm832, %v819, %v549
    %v837 = vsel %vm832, %v820, %v551
    %v838 = vsel %vm832, %v821, %v553
    %v839 = vsel %vm832, %v822, %v555
    %v840 = vsel %vm832, %v823, %v557
    %v841 = vsel %vm832, %v824, %v559
    %v842 = vsel %vm832, %v825, %v561
    %v843 = vsel %vm832, %v826, %v563
    %v844 = vsel %vm832, %v827, %v565
    %v845 = vsel %vm832, %v828, %v567
    %v846 = vsel %vm832, %v829, %v569
    %v847 = vsel %vm832, %v830, %v571
    %v848 = vsel %vm832, %v831, %v573
    %vm849 = vcmask 654336
    %v850 = vsel %vm849, %v833, %v607
    %v851 = vsel %vm849, %v834, %v609
    %v852 = vsel %vm849, %v835, %v611
    %v853 = vsel %vm849, %v836, %v613
    %v854 = vsel %vm849, %v837, %v615
    %v855 = vsel %vm849, %v838, %v617
    %v856 = vsel %vm849, %v839, %v619
    %v857 = vsel %vm849, %v840, %v621
    %v858 = vsel %vm849, %v841, %v623
    %v859 = vsel %vm849, %v842, %v625
    %v860 = vsel %vm849, %v843, %v627
    %v861 = vsel %vm849, %v844, %v629
    %v862 = vsel %vm849, %v845, %v631
    %v863 = vsel %vm849, %v846, %v633
    %v864 = vsel %vm849, %v847, %v635
    %v865 = vsel %vm849, %v848, %v637
    %vm866 = vcmask 785408
    %v867 = vsel %vm866, %v850, %v671
    %v868 = vsel %vm866, %v851, %v673
    %v869 = vsel %vm866, %v852, %v675
    %v870 = vsel %vm866, %v853, %v677
    %v871 = vsel %vm866, %v854, %v679
    %v872 = vsel %vm866, %v855, %v681
    %v873 = vsel %vm866, %v856, %v683
    %v874 = vsel %vm866, %v857, %v685
    %v875 = vsel %vm866, %v858, %v687
    %v876 = vsel %vm866, %v859, %v689
    %v877 = vsel %vm866, %v860, %v691
    %v878 = vsel %vm866, %v861, %v693
    %v879 = vsel %vm866, %v862, %v695
    %v880 = vsel %vm866, %v863, %v697
    %v881 = vsel %vm866, %v864, %v699
    %v882 = vsel %vm866, %v865, %v701
    %vm883 = vcmask 916480
    %v884 = vsel %vm883, %v867, %v735
    %v885 = vsel %vm883, %v868, %v737
    %v886 = vsel %vm883, %v869, %v739
    %v887 = vsel %vm883, %v870, %v741
    %v888 = vsel %vm883, %v871, %v743
    %v889 = vsel %vm883, %v872, %v745
    %v890 = vsel %vm883, %v873, %v747
    %v891 = vsel %vm883, %v874, %v749
    %v892 = vsel %vm883, %v875, %v751
    %v893 = vsel %vm883, %v876, %v753
    %v894 = vsel %vm883, %v877, %v755
    %v895 = vsel %vm883, %v878, %v757
    %v896 = vsel %vm883, %v879, %v759
    %v897 = vsel %vm883, %v880, %v761
    %v898 = vsel %vm883, %v881, %v763
    %v899 = vsel %vm883, %v882, %v765
    %v900 = vld [vmem:[#allocation10] sm:$0x1]
    %v902 = vlaneseq
    %v903 = vshrl.u32 %v902, 7
    %v904 = vsub.s32 0, %v903
    %v905 = vrot.slane %v900, %v904
    %v908 = vsel %vm130, %v318, 0
    %v911 = vsel %vm130, %v319, 0
    %v914 = vsel %vm130, %v320, 0
    %v917 = vsel %vm130, %v321, 0
    %v920 = vsel %vm130, %v322, 0
    %v923 = vsel %vm130, %v323, 0
    %v926 = vsel %vm130, %v324, 0
    %v929 = vsel %vm130, %v325, 0
    %v932 = vsel %vm130, %v326, 0
    %v935 = vsel %vm130, %v327, 0
    %v938 = vsel %vm130, %v328, 0
    %v941 = vsel %vm130, %v329, 0
    %v944 = vsel %vm130, %v330, 0
    %v947 = vsel %vm130, %v331, 0
    %v950 = vsel %vm130, %v332, 0
    %v953 = vsel %vm130, %v333, 0
    %955 = vmatprep.subr.mxu0 0.0
    %956 = vmatpush1.msra.mxu0 %v112
    %957 = vmatprep.subr.mxu0 0.0
    %958 = vmatpush1.msra.mxu0 %v113
    %959 = vmatprep.subr.mxu0 0.0
    %960 = vmatpush1.msra.mxu0 %v114
    %961 = vmatprep.subr.mxu0 0.0
    %962 = vmatpush1.msra.mxu0 %v115
    %963 = vmatprep.subr.mxu0 0.0
    %964 = vmatpush1.msra.mxu0 %v116
    %965 = vmatprep.subr.mxu0 0.0
    %966 = vmatpush1.msra.mxu0 %v117
    %967 = vmatprep.subr.mxu0 0.0
    %968 = vmatpush1.msra.mxu0 %v118
    %969 = vmatprep.subr.mxu0 0.0
    %970 = vmatpush1.msra.mxu0 %v119
    %971 = vmatprep.subr.mxu0 0.0
    %972 = vmatpush1.msra.mxu0 %v120
    %973 = vmatprep.subr.mxu0 0.0
    %974 = vmatpush1.msra.mxu0 %v121
    %975 = vmatprep.subr.mxu0 0.0
    %976 = vmatpush1.msra.mxu0 %v122
    %977 = vmatprep.subr.mxu0 0.0
    %978 = vmatpush1.msra.mxu0 %v123
    %979 = vmatprep.subr.mxu0 0.0
    %980 = vmatpush1.msra.mxu0 %v124
    %981 = vmatprep.subr.mxu0 0.0
    %982 = vmatpush1.msra.mxu0 %v125
    %983 = vmatprep.subr.mxu0 0.0
    %984 = vmatpush1.msra.mxu0 %v126
    %985 = vmatprep.subr.mxu0 0.0
    %986 = vmatpush1.msra.mxu0 %v127
    %987 = vmatprep.subr.mxu0 0.0
    %988 = vmatpush1.msra.mxu0 %v128
    %989 = vmatprep.subr.mxu0 0.0
    %990 = vmatpush1.msra.mxu0 %v129
    %991 = vmatprep.subr.mxu0 0.0
    %992 = vmatpush1.msra.mxu0 0.0
    %993 = vmatprep.subr.mxu0 0.0
    %994 = vmatpush1.msra.mxu0 0.0
    %995 = vmatprep.subr.mxu0 0.0
    %996 = vmatpush1.msra.mxu0 0.0
    %997 = vmatprep.subr.mxu0 0.0
    %998 = vmatpush1.msra.mxu0 0.0
    %999 = vmatprep.subr.mxu0 0.0
    %1000 = vmatpush1.msra.mxu0 0.0
    %1001 = vmatprep.subr.mxu0 0.0
    %1002 = vmatpush1.msra.mxu0 0.0
    %1003 = vmatprep.subr.mxu0 0.0
    %1004 = vmatpush1.msra.mxu0 0.0
    %1005 = vmatprep.subr.mxu0 0.0
    %1006 = vmatpush1.msra.mxu0 0.0
    %1007 = vmatprep.subr.mxu0 0.0
    %1008 = vmatpush1.msra.mxu0 0.0
    %1009 = vmatprep.subr.mxu0 0.0
    %1010 = vmatpush1.msra.mxu0 0.0
    %1011 = vmatprep.subr.mxu0 0.0
    %1012 = vmatpush1.msra.mxu0 0.0
    %1013 = vmatprep.subr.mxu0 0.0
    %1014 = vmatpush1.msra.mxu0 0.0
    %1015 = vmatprep.subr.mxu0 0.0
    %1016 = vmatpush1.msra.mxu0 0.0
    %1017 = vmatprep.subr.mxu0 0.0
    %1018 = vmatpush1.msra.mxu0 0.0
    %1019 = vmatprep.mubr.f32.mxu0 %v908
    %1020 = vmatmul.mubr.f32.gmra.mrb[0].mxu0 %v884
    %v1021 = vpop.f32.mrb[0].mxu0
    %v1022 = vadd.f32 %v905, %v1021
    %v1023 = vpop.f32.mrb[0].mxu0
    %1024 = vmatprep.mubr.f32.mxu0 %v911
    %1025 = vmatmul.mubr.f32.gmra.mrb[0].mxu0 %v885
    %v1026 = vpop.f32.mrb[0].mxu0
    %v1027 = vadd.f32 %v905, %v1026
    %v1028 = vpop.f32.mrb[0].mxu0
    %1029 = vmatprep.mubr.f32.mxu0 %v914
    %1030 = vmatmul.mubr.f32.gmra.mrb[0].mxu0 %v886
    %v1031 = vpop.f32.mrb[0].mxu0
    %v1032 = vadd.f32 %v905, %v1031
    %v1033 = vpop.f32.mrb[0].mxu0
    %1034 = vmatprep.mubr.f32.mxu0 %v917
    %1035 = vmatmul.mubr.f32.gmra.mrb[0].mxu0 %v887
    %v1036 = vpop.f32.mrb[0].mxu0
    %v1037 = vadd.f32 %v905, %v1036
    %v1038 = vpop.f32.mrb[0].mxu0
    %1039 = vmatprep.mubr.f32.mxu0 %v920
    %1040 = vmatmul.mubr.f32.gmra.mrb[0].mxu0 %v888
    %v1041 = vpop.f32.mrb[0].mxu0
    %v1042 = vadd.f32 %v905, %v1041
    %v1043 = vpop.f32.mrb[0].mxu0
    %1044 = vmatprep.mubr.f32.mxu0 %v923
    %1045 = vmatmul.mubr.f32.gmra.mrb[0].mxu0 %v889
    %v1046 = vpop.f32.mrb[0].mxu0
    %v1047 = vadd.f32 %v905, %v1046
    %v1048 = vpop.f32.mrb[0].mxu0
    %1049 = vmatprep.mubr.f32.mxu0 %v926
    %1050 = vmatmul.mubr.f32.gmra.mrb[0].mxu0 %v890
    %v1051 = vpop.f32.mrb[0].mxu0
    %v1052 = vadd.f32 %v905, %v1051
    %v1053 = vpop.f32.mrb[0].mxu0
    %1054 = vmatprep.mubr.f32.mxu0 %v929
    %1055 = vmatmul.mubr.f32.gmra.mrb[0].mxu0 %v891
    %v1056 = vpop.f32.mrb[0].mxu0
    %v1057 = vadd.f32 %v905, %v1056
    %v1058 = vpop.f32.mrb[0].mxu0
    %1059 = vmatprep.mubr.f32.mxu0 %v932
    %1060 = vmatmul.mubr.f32.gmra.mrb[0].mxu0 %v892
    %v1061 = vpop.f32.mrb[0].mxu0
    %v1062 = vadd.f32 %v905, %v1061
    %v1063 = vpop.f32.mrb[0].mxu0
    %1064 = vmatprep.mubr.f32.mxu0 %v935
    %1065 = vmatmul.mubr.f32.gmra.mrb[0].mxu0 %v893
    %v1066 = vpop.f32.mrb[0].mxu0
    %v1067 = vadd.f32 %v905, %v1066
    %v1068 = vpop.f32.mrb[0].mxu0
    %1069 = vmatprep.mubr.f32.mxu0 %v938
    %1070 = vmatmul.mubr.f32.gmra.mrb[0].mxu0 %v894
    %v1071 = vpop.f32.mrb[0].mxu0
    %v1072 = vadd.f32 %v905, %v1071
    %v1073 = vpop.f32.mrb[0].mxu0
    %1074 = vmatprep.mubr.f32.mxu0 %v941
    %1075 = vmatmul.mubr.f32.gmra.mrb[0].mxu0 %v895
    %v1076 = vpop.f32.mrb[0].mxu0
    %v1077 = vadd.f32 %v905, %v1076
    %v1078 = vpop.f32.mrb[0].mxu0
    %1079 = vmatprep.mubr.f32.mxu0 %v944
    %1080 = vmatmul.mubr.f32.gmra.mrb[0].mxu0 %v896
    %v1081 = vpop.f32.mrb[0].mxu0
    %v1082 = vadd.f32 %v905, %v1081
    %v1083 = vpop.f32.mrb[0].mxu0
    %1084 = vmatprep.mubr.f32.mxu0 %v947
    %1085 = vmatmul.mubr.f32.gmra.mrb[0].mxu0 %v897
    %v1086 = vpop.f32.mrb[0].mxu0
    %v1087 = vadd.f32 %v905, %v1086
    %v1088 = vpop.f32.mrb[0].mxu0
    %1089 = vmatprep.mubr.f32.mxu0 %v950
    %1090 = vmatmul.mubr.f32.gmra.mrb[0].mxu0 %v898
    %v1091 = vpop.f32.mrb[0].mxu0
    %v1092 = vadd.f32 %v905, %v1091
    %v1093 = vpop.f32.mrb[0].mxu0
    %1094 = vmatprep.mubr.f32.mxu0 %v953
    %1095 = vmatmul.mubr.f32.gmra.mrb[0].mxu0 %v899
    %v1096 = vpop.f32.mrb[0].mxu0
    %v1097 = vadd.f32 %v905, %v1096
    %v1098 = vpop.f32.mrb[0].mxu0
    %1099 = vdwg.mxu0
    %v1100 = vmax.f32 %v1022, 0.0
    %v1101 = vmax.f32 %v1027, 0.0
    %v1102 = vmax.f32 %v1032, 0.0
    %v1103 = vmax.f32 %v1037, 0.0
    %v1104 = vmax.f32 %v1042, 0.0
    %v1105 = vmax.f32 %v1047, 0.0
    %v1106 = vmax.f32 %v1052, 0.0
    %v1107 = vmax.f32 %v1057, 0.0
    %v1108 = vmax.f32 %v1062, 0.0
    %v1109 = vmax.f32 %v1067, 0.0
    %v1110 = vmax.f32 %v1072, 0.0
    %v1111 = vmax.f32 %v1077, 0.0
    %v1112 = vmax.f32 %v1082, 0.0
    %v1113 = vmax.f32 %v1087, 0.0
    %v1114 = vmax.f32 %v1092, 0.0
    %v1115 = vmax.f32 %v1097, 0.0
    %v1116 = vld [vmem:[#allocation11] sm:$0xff]
    %v1117 = vld [vmem:[#allocation11 + $0x8] sm:$0xff]
    %v1118 = vld [vmem:[#allocation11 + $0x10] sm:$0xff]
    %v1119 = vld [vmem:[#allocation11 + $0x18] sm:$0xff]
    %v1120 = vld [vmem:[#allocation11 + $0x20] sm:$0xff]
    %v1121 = vld [vmem:[#allocation11 + $0x28] sm:$0xff]
    %v1122 = vld [vmem:[#allocation11 + $0x30] sm:$0xff]
    %v1123 = vld [vmem:[#allocation11 + $0x38] sm:$0xff]
    %v1124 = vld [vmem:[#allocation11 + $0x40] sm:$0xff]
    %v1125 = vld [vmem:[#allocation11 + $0x48] sm:$0xff]
    %v1126 = vld [vmem:[#allocation11 + $0x50] sm:$0xff]
    %v1127 = vld [vmem:[#allocation11 + $0x58] sm:$0xff]
    %v1128 = vld [vmem:[#allocation11 + $0x60] sm:$0xff]
    %v1129 = vld [vmem:[#allocation11 + $0x68] sm:$0xff]
    %v1130 = vld [vmem:[#allocation11 + $0x70] sm:$0xff]
    %v1131 = vld [vmem:[#allocation11 + $0x78] sm:$0xff]
    %v1132 = vld [vmem:[#allocation11 + $0x80] sm:$0xff]
    %v1133 = vld [vmem:[#allocation11 + $0x88] sm:$0xff]
    %1134 = vst.msk [vmem:[#allocation3] sm:$0xff] %vm130, 0.0
    %1135 = vst.msk [vmem:[#allocation3 + $0x8] sm:$0x3] %vm132, 0.0
    %1136 = vst.msk [vmem:[#allocation3 + $0x10] sm:$0xff] %vm130, 0.0
    %1137 = vst.msk [vmem:[#allocation3 + $0x18] sm:$0x3] %vm132, 0.0
    %1138 = vst.msk [vmem:[#allocation3 + $0x20] sm:$0xff] %vm130, 0.0
    %1139 = vst.msk [vmem:[#allocation3 + $0x28] sm:$0x3] %vm132, 0.0
    %1140 = vst.msk [vmem:[#allocation3 + $0x30] sm:$0xff] %vm130, 0.0
    %1141 = vst.msk [vmem:[#allocation3 + $0x38] sm:$0x3] %vm132, 0.0
    %1142 = vst.msk [vmem:[#allocation3 + $0x40] sm:$0xff] %vm130, 0.0
    %1143 = vst.msk [vmem:[#allocation3 + $0x48] sm:$0x3] %vm132, 0.0
    %1144 = vst.msk [vmem:[#allocation3 + $0x50] sm:$0xff] %vm130, 0.0
    %1145 = vst.msk [vmem:[#allocation3 + $0x58] sm:$0x3] %vm132, 0.0
    %1146 = vst.msk [vmem:[#allocation3 + $0x60] sm:$0xff] %vm130, 0.0
    %1147 = vst.msk [vmem:[#allocation3 + $0x68] sm:$0x3] %vm132, 0.0
    %1148 = vst.msk [vmem:[#allocation3 + $0x70] sm:$0xff] %vm130, 0.0
    %1149 = vst.msk [vmem:[#allocation3 + $0x78] sm:$0x3] %vm132, 0.0
    %1150 = vst.msk [vmem:[#allocation3 + $0x80] sm:$0xff] %vm130, 0.0
    %1151 = vst.msk [vmem:[#allocation3 + $0x88] sm:$0x3] %vm132, 0.0
    %1152 = vst.msk [vmem:[#allocation3 + $0x90] sm:$0xff] %vm130, 0.0
    %1153 = vst.msk [vmem:[#allocation3 + $0x98] sm:$0x3] %vm132, 0.0
    %1154 = vst.msk [vmem:[#allocation3 + $0xa0] sm:$0xff] %vm130, 0.0
    %1155 = vst.msk [vmem:[#allocation3 + $0xa8] sm:$0x3] %vm132, 0.0
    %1156 = vst.msk [vmem:[#allocation3 + $0xb0] sm:$0xff] %vm130, 0.0
    %1157 = vst.msk [vmem:[#allocation3 + $0xb8] sm:$0x3] %vm132, 0.0
    %1158 = vst.msk [vmem:[#allocation3 + $0xc0] sm:$0xff] %vm130, 0.0
    %1159 = vst.msk [vmem:[#allocation3 + $0xc8] sm:$0x3] %vm132, 0.0
    %1160 = vst.msk [vmem:[#allocation3 + $0xd0] sm:$0xff] %vm130, 0.0
    %1161 = vst.msk [vmem:[#allocation3 + $0xd8] sm:$0x3] %vm132, 0.0
    %1162 = vst.msk [vmem:[#allocation3 + $0xe0] sm:$0xff] %vm130, 0.0
    %1163 = vst.msk [vmem:[#allocation3 + $0xe8] sm:$0x3] %vm132, 0.0
    %1164 = vst.msk [vmem:[#allocation3 + $0xf0] sm:$0xff] %vm130, 0.0
    %1165 = vst.msk [vmem:[#allocation3 + $0xf8] sm:$0x3] %vm132, 0.0
    %1166 = vst.msk [vmem:[#allocation3 + $0x100] sm:$0xff] %vm130, 0.0
    %1167 = vst.msk [vmem:[#allocation3 + $0x108] sm:$0x3] %vm132, 0.0
    %1168 = vst.msk [vmem:[#allocation3 + $0x110] sm:$0xff] %vm130, 0.0
    %1169 = vst.msk [vmem:[#allocation3 + $0x118] sm:$0x3] %vm132, 0.0
    %1170 = vst.msk [vmem:[#allocation3 + $0x120] sm:$0xff] %vm130, 0.0
    %1171 = vst.msk [vmem:[#allocation3 + $0x128] sm:$0x3] %vm132, 0.0
    %1172 = vst.msk [vmem:[#allocation3 + $0x130] sm:$0xff] %vm130, 0.0
    %1173 = vst.msk [vmem:[#allocation3 + $0x138] sm:$0x3] %vm132, 0.0
    %s1174 = scalar_lea.vmem [#allocation3], 16
    %1175 = vst.msk [vmem:[%s1174 + $0x1] sm:$0xff] %vm130, %v1100
    %1176 = vst.msk [vmem:[%s1174 + $0x11] sm:$0xff] %vm130, %v1101
    %1177 = vst.msk [vmem:[%s1174 + $0x21] sm:$0xff] %vm130, %v1102
    %1178 = vst.msk [vmem:[%s1174 + $0x31] sm:$0xff] %vm130, %v1103
    %1179 = vst.msk [vmem:[%s1174 + $0x41] sm:$0xff] %vm130, %v1104
    %1180 = vst.msk [vmem:[%s1174 + $0x51] sm:$0xff] %vm130, %v1105
    %1181 = vst.msk [vmem:[%s1174 + $0x61] sm:$0xff] %vm130, %v1106
    %1182 = vst.msk [vmem:[%s1174 + $0x71] sm:$0xff] %vm130, %v1107
    %1183 = vst.msk [vmem:[%s1174 + $0xa1] sm:$0xff] %vm130, %v1108
    %1184 = vst.msk [vmem:[%s1174 + $0xb1] sm:$0xff] %vm130, %v1109
    %1185 = vst.msk [vmem:[%s1174 + $0xc1] sm:$0xff] %vm130, %v1110
    %1186 = vst.msk [vmem:[%s1174 + $0xd1] sm:$0xff] %vm130, %v1111
    %1187 = vst.msk [vmem:[%s1174 + $0xe1] sm:$0xff] %vm130, %v1112
    %1188 = vst.msk [vmem:[%s1174 + $0xf1] sm:$0xff] %vm130, %v1113
    %1189 = vst.msk [vmem:[%s1174 + $0x101] sm:$0xff] %vm130, %v1114
    %1190 = vst.msk [vmem:[%s1174 + $0x111] sm:$0xff] %vm130, %v1115
    %v1191 = vld [vmem:[#allocation3] sm:$0xff]
    %v1192 = vld [vmem:[#allocation3 + $0x10] sm:$0xff]
    %v1193 = vld [vmem:[#allocation3 + $0x20] sm:$0xff]
    %v1194 = vld [vmem:[#allocation3 + $0x30] sm:$0xff]
    %v1195 = vld [vmem:[#allocation3 + $0x40] sm:$0xff]
    %v1196 = vld [vmem:[#allocation3 + $0x50] sm:$0xff]
    %v1197 = vld [vmem:[#allocation3 + $0x60] sm:$0xff]
    %v1198 = vld [vmem:[#allocation3 + $0x70] sm:$0xff]
    %v1199 = vld [vmem:[#allocation3 + $0xa0] sm:$0xff]
    %v1200 = vld [vmem:[#allocation3 + $0xb0] sm:$0xff]
    %v1201 = vld [vmem:[#allocation3 + $0xc0] sm:$0xff]
    %v1202 = vld [vmem:[#allocation3 + $0xd0] sm:$0xff]
    %v1203 = vld [vmem:[#allocation3 + $0xe0] sm:$0xff]
    %v1204 = vld [vmem:[#allocation3 + $0xf0] sm:$0xff]
    %v1205 = vld [vmem:[#allocation3 + $0x100] sm:$0xff]
    %v1206 = vld [vmem:[#allocation3 + $0x110] sm:$0xff]
    %v1207 = vld [vmem:[#allocation3 + $0x1] sm:$0xff]
    %v1208 = vld [vmem:[#allocation3 + $0x11] sm:$0xff]
    %v1209 = vld [vmem:[#allocation3 + $0x21] sm:$0xff]
    %v1210 = vld [vmem:[#allocation3 + $0x31] sm:$0xff]
    %v1211 = vld [vmem:[#allocation3 + $0x41] sm:$0xff]
    %v1212 = vld [vmem:[#allocation3 + $0x51] sm:$0xff]
    %v1213 = vld [vmem:[#allocation3 + $0x61] sm:$0xff]
    %v1214 = vld [vmem:[#allocation3 + $0x71] sm:$0xff]
    %v1215 = vld [vmem:[#allocation3 + $0xa1] sm:$0xff]
    %v1216 = vld [vmem:[#allocation3 + $0xb1] sm:$0xff]
    %v1217 = vld [vmem:[#allocation3 + $0xc1] sm:$0xff]
    %v1218 = vld [vmem:[#allocation3 + $0xd1] sm:$0xff]
    %v1219 = vld [vmem:[#allocation3 + $0xe1] sm:$0xff]
    %v1220 = vld [vmem:[#allocation3 + $0xf1] sm:$0xff]
    %v1221 = vld [vmem:[#allocation3 + $0x101] sm:$0xff]
    %v1222 = vld [vmem:[#allocation3 + $0x111] sm:$0xff]
    %v1223 = vld [vmem:[#allocation3 + $0x2] sm:$0xff]
    %v1224 = vld [vmem:[#allocation3 + $0x12] sm:$0xff]
    %v1225 = vld [vmem:[#allocation3 + $0x22] sm:$0xff]
    %v1226 = vld [vmem:[#allocation3 + $0x32] sm:$0xff]
    %v1227 = vld [vmem:[#allocation3 + $0x42] sm:$0xff]
    %v1228 = vld [vmem:[#allocation3 + $0x52] sm:$0xff]
    %v1229 = vld [vmem:[#allocation3 + $0x62] sm:$0xff]
    %v1230 = vld [vmem:[#allocation3 + $0x72] sm:$0xff]
    %v1231 = vld [vmem:[#allocation3 + $0xa2] sm:$0xff]
    %v1232 = vld [vmem:[#allocation3 + $0xb2] sm:$0xff]
    %v1233 = vld [vmem:[#allocation3 + $0xc2] sm:$0xff]
    %v1234 = vld [vmem:[#allocation3 + $0xd2] sm:$0xff]
    %v1235 = vld [vmem:[#allocation3 + $0xe2] sm:$0xff]
    %v1236 = vld [vmem:[#allocation3 + $0xf2] sm:$0xff]
    %v1237 = vld [vmem:[#allocation3 + $0x102] sm:$0xff]
    %v1238 = vld [vmem:[#allocation3 + $0x112] sm:$0xff]
    %v1239 = vld [vmem:[%s1174] sm:$0xff]
    %v1240 = vld [vmem:[%s1174 + $0x10] sm:$0xff]
    %v1241 = vld [vmem:[%s1174 + $0x20] sm:$0xff]
    %v1242 = vld [vmem:[%s1174 + $0x30] sm:$0xff]
    %v1243 = vld [vmem:[%s1174 + $0x40] sm:$0xff]
    %v1244 = vld [vmem:[%s1174 + $0x50] sm:$0xff]
    %v1245 = vld [vmem:[%s1174 + $0x60] sm:$0xff]
    %v1246 = vld [vmem:[%s1174 + $0x70] sm:$0xff]
    %v1247 = vld [vmem:[%s1174 + $0xa0] sm:$0xff]
    %v1248 = vld [vmem:[%s1174 + $0xb0] sm:$0xff]
    %v1249 = vld [vmem:[%s1174 + $0xc0] sm:$0xff]
    %v1250 = vld [vmem:[%s1174 + $0xd0] sm:$0xff]
    %v1251 = vld [vmem:[%s1174 + $0xe0] sm:$0xff]
    %v1252 = vld [vmem:[%s1174 + $0xf0] sm:$0xff]
    %v1253 = vld [vmem:[%s1174 + $0x100] sm:$0xff]
    %v1254 = vld [vmem:[%s1174 + $0x110] sm:$0xff]
    %v1255 = vld [vmem:[%s1174 + $0x1] sm:$0xff]
    %v1256 = vld [vmem:[%s1174 + $0x11] sm:$0xff]
    %v1257 = vld [vmem:[%s1174 + $0x21] sm:$0xff]
    %v1258 = vld [vmem:[%s1174 + $0x31] sm:$0xff]
    %v1259 = vld [vmem:[%s1174 + $0x41] sm:$0xff]
    %v1260 = vld [vmem:[%s1174 + $0x51] sm:$0xff]
    %v1261 = vld [vmem:[%s1174 + $0x61] sm:$0xff]
    %v1262 = vld [vmem:[%s1174 + $0x71] sm:$0xff]
    %v1263 = vld [vmem:[%s1174 + $0xa1] sm:$0xff]
    %v1264 = vld [vmem:[%s1174 + $0xb1] sm:$0xff]
    %v1265 = vld [vmem:[%s1174 + $0xc1] sm:$0xff]
    %v1266 = vld [vmem:[%s1174 + $0xd1] sm:$0xff]
    %v1267 = vld [vmem:[%s1174 + $0xe1] sm:$0xff]
    %v1268 = vld [vmem:[%s1174 + $0xf1] sm:$0xff]
    %v1269 = vld [vmem:[%s1174 + $0x101] sm:$0xff]
    %v1270 = vld [vmem:[%s1174 + $0x111] sm:$0xff]
    %v1271 = vld [vmem:[%s1174 + $0x2] sm:$0xff]
    %v1272 = vld [vmem:[%s1174 + $0x12] sm:$0xff]
    %v1273 = vld [vmem:[%s1174 + $0x22] sm:$0xff]
    %v1274 = vld [vmem:[%s1174 + $0x32] sm:$0xff]
    %v1275 = vld [vmem:[%s1174 + $0x42] sm:$0xff]
    %v1276 = vld [vmem:[%s1174 + $0x52] sm:$0xff]
    %v1277 = vld [vmem:[%s1174 + $0x62] sm:$0xff]
    %v1278 = vld [vmem:[%s1174 + $0x72] sm:$0xff]
    %v1279 = vld [vmem:[%s1174 + $0xa2] sm:$0xff]
    %v1280 = vld [vmem:[%s1174 + $0xb2] sm:$0xff]
    %v1281 = vld [vmem:[%s1174 + $0xc2] sm:$0xff]
    %v1282 = vld [vmem:[%s1174 + $0xd2] sm:$0xff]
    %v1283 = vld [vmem:[%s1174 + $0xe2] sm:$0xff]
    %v1284 = vld [vmem:[%s1174 + $0xf2] sm:$0xff]
    %v1285 = vld [vmem:[%s1174 + $0x102] sm:$0xff]
    %v1286 = vld [vmem:[%s1174 + $0x112] sm:$0xff]
    %s1287 = scalar_lea.vmem [#allocation3], 32
    %v1288 = vld [vmem:[%s1287] sm:$0xff]
    %v1289 = vld [vmem:[%s1287 + $0x10] sm:$0xff]
    %v1290 = vld [vmem:[%s1287 + $0x20] sm:$0xff]
    %v1291 = vld [vmem:[%s1287 + $0x30] sm:$0xff]
    %v1292 = vld [vmem:[%s1287 + $0x40] sm:$0xff]
    %v1293 = vld [vmem:[%s1287 + $0x50] sm:$0xff]
    %v1294 = vld [vmem:[%s1287 + $0x60] sm:$0xff]
    %v1295 = vld [vmem:[%s1287 + $0x70] sm:$0xff]
    %v1296 = vld [vmem:[%s1287 + $0xa0] sm:$0xff]
    %v1297 = vld [vmem:[%s1287 + $0xb0] sm:$0xff]
    %v1298 = vld [vmem:[%s1287 + $0xc0] sm:$0xff]
    %v1299 = vld [vmem:[%s1287 + $0xd0] sm:$0xff]
    %v1300 = vld [vmem:[%s1287 + $0xe0] sm:$0xff]
    %v1301 = vld [vmem:[%s1287 + $0xf0] sm:$0xff]
    %v1302 = vld [vmem:[%s1287 + $0x100] sm:$0xff]
    %v1303 = vld [vmem:[%s1287 + $0x110] sm:$0xff]
    %v1304 = vld [vmem:[%s1287 + $0x1] sm:$0xff]
    %v1305 = vld [vmem:[%s1287 + $0x11] sm:$0xff]
    %v1306 = vld [vmem:[%s1287 + $0x21] sm:$0xff]
    %v1307 = vld [vmem:[%s1287 + $0x31] sm:$0xff]
    %v1308 = vld [vmem:[%s1287 + $0x41] sm:$0xff]
    %v1309 = vld [vmem:[%s1287 + $0x51] sm:$0xff]
    %v1310 = vld [vmem:[%s1287 + $0x61] sm:$0xff]
    %v1311 = vld [vmem:[%s1287 + $0x71] sm:$0xff]
    %v1312 = vld [vmem:[%s1287 + $0xa1] sm:$0xff]
    %v1313 = vld [vmem:[%s1287 + $0xb1] sm:$0xff]
    %v1314 = vld [vmem:[%s1287 + $0xc1] sm:$0xff]
    %v1315 = vld [vmem:[%s1287 + $0xd1] sm:$0xff]
    %v1316 = vld [vmem:[%s1287 + $0xe1] sm:$0xff]
    %v1317 = vld [vmem:[%s1287 + $0xf1] sm:$0xff]
    %v1318 = vld [vmem:[%s1287 + $0x101] sm:$0xff]
    %v1319 = vld [vmem:[%s1287 + $0x111] sm:$0xff]
    %v1320 = vld [vmem:[%s1287 + $0x2] sm:$0xff]
    %v1321 = vld [vmem:[%s1287 + $0x12] sm:$0xff]
    %v1322 = vld [vmem:[%s1287 + $0x22] sm:$0xff]
    %v1323 = vld [vmem:[%s1287 + $0x32] sm:$0xff]
    %v1324 = vld [vmem:[%s1287 + $0x42] sm:$0xff]
    %v1325 = vld [vmem:[%s1287 + $0x52] sm:$0xff]
    %v1326 = vld [vmem:[%s1287 + $0x62] sm:$0xff]
    %v1327 = vld [vmem:[%s1287 + $0x72] sm:$0xff]
    %v1328 = vld [vmem:[%s1287 + $0xa2] sm:$0xff]
    %v1329 = vld [vmem:[%s1287 + $0xb2] sm:$0xff]
    %v1330 = vld [vmem:[%s1287 + $0xc2] sm:$0xff]
    %v1331 = vld [vmem:[%s1287 + $0xd2] sm:$0xff]
    %v1332 = vld [vmem:[%s1287 + $0xe2] sm:$0xff]
    %v1333 = vld [vmem:[%s1287 + $0xf2] sm:$0xff]
    %v1334 = vld [vmem:[%s1287 + $0x102] sm:$0xff]
    %v1335 = vld [vmem:[%s1287 + $0x112] sm:$0xff]
    %1352 = vrot.lane.b32.xlu0 %v1207, 16
    %v1353 = vpop.permute.xlu0 %1352
    %1354 = vrot.lane.b32.xlu0 %v1208, 16
    %v1355 = vpop.permute.xlu0 %1354
    %1356 = vrot.lane.b32.xlu0 %v1209, 16
    %v1357 = vpop.permute.xlu0 %1356
    %1358 = vrot.lane.b32.xlu0 %v1210, 16
    %v1359 = vpop.permute.xlu0 %1358
    %1360 = vrot.lane.b32.xlu0 %v1211, 16
    %v1361 = vpop.permute.xlu0 %1360
    %1362 = vrot.lane.b32.xlu0 %v1212, 16
    %v1363 = vpop.permute.xlu0 %1362
    %1364 = vrot.lane.b32.xlu0 %v1213, 16
    %v1365 = vpop.permute.xlu0 %1364
    %1366 = vrot.lane.b32.xlu0 %v1214, 16
    %v1367 = vpop.permute.xlu0 %1366
    %1368 = vrot.lane.b32.xlu0 %v1215, 16
    %v1369 = vpop.permute.xlu0 %1368
    %1370 = vrot.lane.b32.xlu0 %v1216, 16
    %v1371 = vpop.permute.xlu0 %1370
    %1372 = vrot.lane.b32.xlu0 %v1217, 16
    %v1373 = vpop.permute.xlu0 %1372
    %1374 = vrot.lane.b32.xlu0 %v1218, 16
    %v1375 = vpop.permute.xlu0 %1374
    %1376 = vrot.lane.b32.xlu0 %v1219, 16
    %v1377 = vpop.permute.xlu0 %1376
    %1378 = vrot.lane.b32.xlu0 %v1220, 16
    %v1379 = vpop.permute.xlu0 %1378
    %1380 = vrot.lane.b32.xlu0 %v1221, 16
    %v1381 = vpop.permute.xlu0 %1380
    %1382 = vrot.lane.b32.xlu0 %v1222, 16
    %v1383 = vpop.permute.xlu0 %1382
    %1416 = vrot.lane.b32.xlu0 %v1223, 32
    %v1417 = vpop.permute.xlu0 %1416
    %1418 = vrot.lane.b32.xlu0 %v1224, 32
    %v1419 = vpop.permute.xlu0 %1418
    %1420 = vrot.lane.b32.xlu0 %v1225, 32
    %v1421 = vpop.permute.xlu0 %1420
    %1422 = vrot.lane.b32.xlu0 %v1226, 32
    %v1423 = vpop.permute.xlu0 %1422
    %1424 = vrot.lane.b32.xlu0 %v1227, 32
    %v1425 = vpop.permute.xlu0 %1424
    %1426 = vrot.lane.b32.xlu0 %v1228, 32
    %v1427 = vpop.permute.xlu0 %1426
    %1428 = vrot.lane.b32.xlu0 %v1229, 32
    %v1429 = vpop.permute.xlu0 %1428
    %1430 = vrot.lane.b32.xlu0 %v1230, 32
    %v1431 = vpop.permute.xlu0 %1430
    %1432 = vrot.lane.b32.xlu0 %v1231, 32
    %v1433 = vpop.permute.xlu0 %1432
    %1434 = vrot.lane.b32.xlu0 %v1232, 32
    %v1435 = vpop.permute.xlu0 %1434
    %1436 = vrot.lane.b32.xlu0 %v1233, 32
    %v1437 = vpop.permute.xlu0 %1436
    %1438 = vrot.lane.b32.xlu0 %v1234, 32
    %v1439 = vpop.permute.xlu0 %1438
    %1440 = vrot.lane.b32.xlu0 %v1235, 32
    %v1441 = vpop.permute.xlu0 %1440
    %1442 = vrot.lane.b32.xlu0 %v1236, 32
    %v1443 = vpop.permute.xlu0 %1442
    %1444 = vrot.lane.b32.xlu0 %v1237, 32
    %v1445 = vpop.permute.xlu0 %1444
    %1446 = vrot.lane.b32.xlu0 %v1238, 32
    %v1447 = vpop.permute.xlu0 %1446
    %1480 = vrot.lane.b32.xlu0 %v1239, 48
    %v1481 = vpop.permute.xlu0 %1480
    %1482 = vrot.lane.b32.xlu0 %v1240, 48
    %v1483 = vpop.permute.xlu0 %1482
    %1484 = vrot.lane.b32.xlu0 %v1241, 48
    %v1485 = vpop.permute.xlu0 %1484
    %1486 = vrot.lane.b32.xlu0 %v1242, 48
    %v1487 = vpop.permute.xlu0 %1486
    %1488 = vrot.lane.b32.xlu0 %v1243, 48
    %v1489 = vpop.permute.xlu0 %1488
    %1490 = vrot.lane.b32.xlu0 %v1244, 48
    %v1491 = vpop.permute.xlu0 %1490
    %1492 = vrot.lane.b32.xlu0 %v1245, 48
    %v1493 = vpop.permute.xlu0 %1492
    %1494 = vrot.lane.b32.xlu0 %v1246, 48
    %v1495 = vpop.permute.xlu0 %1494
    %1496 = vrot.lane.b32.xlu0 %v1247, 48
    %v1497 = vpop.permute.xlu0 %1496
    %1498 = vrot.lane.b32.xlu0 %v1248, 48
    %v1499 = vpop.permute.xlu0 %1498
    %1500 = vrot.lane.b32.xlu0 %v1249, 48
    %v1501 = vpop.permute.xlu0 %1500
    %1502 = vrot.lane.b32.xlu0 %v1250, 48
    %v1503 = vpop.permute.xlu0 %1502
    %1504 = vrot.lane.b32.xlu0 %v1251, 48
    %v1505 = vpop.permute.xlu0 %1504
    %1506 = vrot.lane.b32.xlu0 %v1252, 48
    %v1507 = vpop.permute.xlu0 %1506
    %1508 = vrot.lane.b32.xlu0 %v1253, 48
    %v1509 = vpop.permute.xlu0 %1508
    %1510 = vrot.lane.b32.xlu0 %v1254, 48
    %v1511 = vpop.permute.xlu0 %1510
    %1544 = vrot.lane.b32.xlu0 %v1255, 64
    %v1545 = vpop.permute.xlu0 %1544
    %1546 = vrot.lane.b32.xlu0 %v1256, 64
    %v1547 = vpop.permute.xlu0 %1546
    %1548 = vrot.lane.b32.xlu0 %v1257, 64
    %v1549 = vpop.permute.xlu0 %1548
    %1550 = vrot.lane.b32.xlu0 %v1258, 64
    %v1551 = vpop.permute.xlu0 %1550
    %1552 = vrot.lane.b32.xlu0 %v1259, 64
    %v1553 = vpop.permute.xlu0 %1552
    %1554 = vrot.lane.b32.xlu0 %v1260, 64
    %v1555 = vpop.permute.xlu0 %1554
    %1556 = vrot.lane.b32.xlu0 %v1261, 64
    %v1557 = vpop.permute.xlu0 %1556
    %1558 = vrot.lane.b32.xlu0 %v1262, 64
    %v1559 = vpop.permute.xlu0 %1558
    %1560 = vrot.lane.b32.xlu0 %v1263, 64
    %v1561 = vpop.permute.xlu0 %1560
    %1562 = vrot.lane.b32.xlu0 %v1264, 64
    %v1563 = vpop.permute.xlu0 %1562
    %1564 = vrot.lane.b32.xlu0 %v1265, 64
    %v1565 = vpop.permute.xlu0 %1564
    %1566 = vrot.lane.b32.xlu0 %v1266, 64
    %v1567 = vpop.permute.xlu0 %1566
    %1568 = vrot.lane.b32.xlu0 %v1267, 64
    %v1569 = vpop.permute.xlu0 %1568
    %1570 = vrot.lane.b32.xlu0 %v1268, 64
    %v1571 = vpop.permute.xlu0 %1570
    %1572 = vrot.lane.b32.xlu0 %v1269, 64
    %v1573 = vpop.permute.xlu0 %1572
    %1574 = vrot.lane.b32.xlu0 %v1270, 64
    %v1575 = vpop.permute.xlu0 %1574
    %1608 = vrot.lane.b32.xlu0 %v1271, 80
    %v1609 = vpop.permute.xlu0 %1608
    %1610 = vrot.lane.b32.xlu0 %v1272, 80
    %v1611 = vpop.permute.xlu0 %1610
    %1612 = vrot.lane.b32.xlu0 %v1273, 80
    %v1613 = vpop.permute.xlu0 %1612
    %1614 = vrot.lane.b32.xlu0 %v1274, 80
    %v1615 = vpop.permute.xlu0 %1614
    %1616 = vrot.lane.b32.xlu0 %v1275, 80
    %v1617 = vpop.permute.xlu0 %1616
    %1618 = vrot.lane.b32.xlu0 %v1276, 80
    %v1619 = vpop.permute.xlu0 %1618
    %1620 = vrot.lane.b32.xlu0 %v1277, 80
    %v1621 = vpop.permute.xlu0 %1620
    %1622 = vrot.lane.b32.xlu0 %v1278, 80
    %v1623 = vpop.permute.xlu0 %1622
    %1624 = vrot.lane.b32.xlu0 %v1279, 80
    %v1625 = vpop.permute.xlu0 %1624
    %1626 = vrot.lane.b32.xlu0 %v1280, 80
    %v1627 = vpop.permute.xlu0 %1626
    %1628 = vrot.lane.b32.xlu0 %v1281, 80
    %v1629 = vpop.permute.xlu0 %1628
    %1630 = vrot.lane.b32.xlu0 %v1282, 80
    %v1631 = vpop.permute.xlu0 %1630
    %1632 = vrot.lane.b32.xlu0 %v1283, 80
    %v1633 = vpop.permute.xlu0 %1632
    %1634 = vrot.lane.b32.xlu0 %v1284, 80
    %v1635 = vpop.permute.xlu0 %1634
    %1636 = vrot.lane.b32.xlu0 %v1285, 80
    %v1637 = vpop.permute.xlu0 %1636
    %1638 = vrot.lane.b32.xlu0 %v1286, 80
    %v1639 = vpop.permute.xlu0 %1638
    %1672 = vrot.lane.b32.xlu0 %v1288, 96
    %v1673 = vpop.permute.xlu0 %1672
    %1674 = vrot.lane.b32.xlu0 %v1289, 96
    %v1675 = vpop.permute.xlu0 %1674
    %1676 = vrot.lane.b32.xlu0 %v1290, 96
    %v1677 = vpop.permute.xlu0 %1676
    %1678 = vrot.lane.b32.xlu0 %v1291, 96
    %v1679 = vpop.permute.xlu0 %1678
    %1680 = vrot.lane.b32.xlu0 %v1292, 96
    %v1681 = vpop.permute.xlu0 %1680
    %1682 = vrot.lane.b32.xlu0 %v1293, 96
    %v1683 = vpop.permute.xlu0 %1682
    %1684 = vrot.lane.b32.xlu0 %v1294, 96
    %v1685 = vpop.permute.xlu0 %1684
    %1686 = vrot.lane.b32.xlu0 %v1295, 96
    %v1687 = vpop.permute.xlu0 %1686
    %1688 = vrot.lane.b32.xlu0 %v1296, 96
    %v1689 = vpop.permute.xlu0 %1688
    %1690 = vrot.lane.b32.xlu0 %v1297, 96
    %v1691 = vpop.permute.xlu0 %1690
    %1692 = vrot.lane.b32.xlu0 %v1298, 96
    %v1693 = vpop.permute.xlu0 %1692
    %1694 = vrot.lane.b32.xlu0 %v1299, 96
    %v1695 = vpop.permute.xlu0 %1694
    %1696 = vrot.lane.b32.xlu0 %v1300, 96
    %v1697 = vpop.permute.xlu0 %1696
    %1698 = vrot.lane.b32.xlu0 %v1301, 96
    %v1699 = vpop.permute.xlu0 %1698
    %1700 = vrot.lane.b32.xlu0 %v1302, 96
    %v1701 = vpop.permute.xlu0 %1700
    %1702 = vrot.lane.b32.xlu0 %v1303, 96
    %v1703 = vpop.permute.xlu0 %1702
    %1736 = vrot.lane.b32.xlu0 %v1304, 112
    %v1737 = vpop.permute.xlu0 %1736
    %1738 = vrot.lane.b32.xlu0 %v1305, 112
    %v1739 = vpop.permute.xlu0 %1738
    %1740 = vrot.lane.b32.xlu0 %v1306, 112
    %v1741 = vpop.permute.xlu0 %1740
    %1742 = vrot.lane.b32.xlu0 %v1307, 112
    %v1743 = vpop.permute.xlu0 %1742
    %1744 = vrot.lane.b32.xlu0 %v1308, 112
    %v1745 = vpop.permute.xlu0 %1744
    %1746 = vrot.lane.b32.xlu0 %v1309, 112
    %v1747 = vpop.permute.xlu0 %1746
    %1748 = vrot.lane.b32.xlu0 %v1310, 112
    %v1749 = vpop.permute.xlu0 %1748
    %1750 = vrot.lane.b32.xlu0 %v1311, 112
    %v1751 = vpop.permute.xlu0 %1750
    %1752 = vrot.lane.b32.xlu0 %v1312, 112
    %v1753 = vpop.permute.xlu0 %1752
    %1754 = vrot.lane.b32.xlu0 %v1313, 112
    %v1755 = vpop.permute.xlu0 %1754
    %1756 = vrot.lane.b32.xlu0 %v1314, 112
    %v1757 = vpop.permute.xlu0 %1756
    %1758 = vrot.lane.b32.xlu0 %v1315, 112
    %v1759 = vpop.permute.xlu0 %1758
    %1760 = vrot.lane.b32.xlu0 %v1316, 112
    %v1761 = vpop.permute.xlu0 %1760
    %1762 = vrot.lane.b32.xlu0 %v1317, 112
    %v1763 = vpop.permute.xlu0 %1762
    %1764 = vrot.lane.b32.xlu0 %v1318, 112
    %v1765 = vpop.permute.xlu0 %1764
    %1766 = vrot.lane.b32.xlu0 %v1319, 112
    %v1767 = vpop.permute.xlu0 %1766
    %v1784 = vsel %vm130, %v1191, %v1353
    %v1785 = vsel %vm130, %v1192, %v1355
    %v1786 = vsel %vm130, %v1193, %v1357
    %v1787 = vsel %vm130, %v1194, %v1359
    %v1788 = vsel %vm130, %v1195, %v1361
    %v1789 = vsel %vm130, %v1196, %v1363
    %v1790 = vsel %vm130, %v1197, %v1365
    %v1791 = vsel %vm130, %v1198, %v1367
    %v1792 = vsel %vm130, %v1199, %v1369
    %v1793 = vsel %vm130, %v1200, %v1371
    %v1794 = vsel %vm130, %v1201, %v1373
    %v1795 = vsel %vm130, %v1202, %v1375
    %v1796 = vsel %vm130, %v1203, %v1377
    %v1797 = vsel %vm130, %v1204, %v1379
    %v1798 = vsel %vm130, %v1205, %v1381
    %v1799 = vsel %vm130, %v1206, %v1383
    %v1800 = vsel %vm798, %v1784, %v1417
    %v1801 = vsel %vm798, %v1785, %v1419
    %v1802 = vsel %vm798, %v1786, %v1421
    %v1803 = vsel %vm798, %v1787, %v1423
    %v1804 = vsel %vm798, %v1788, %v1425
    %v1805 = vsel %vm798, %v1789, %v1427
    %v1806 = vsel %vm798, %v1790, %v1429
    %v1807 = vsel %vm798, %v1791, %v1431
    %v1808 = vsel %vm798, %v1792, %v1433
    %v1809 = vsel %vm798, %v1793, %v1435
    %v1810 = vsel %vm798, %v1794, %v1437
    %v1811 = vsel %vm798, %v1795, %v1439
    %v1812 = vsel %vm798, %v1796, %v1441
    %v1813 = vsel %vm798, %v1797, %v1443
    %v1814 = vsel %vm798, %v1798, %v1445
    %v1815 = vsel %vm798, %v1799, %v1447
    %v1816 = vsel %vm815, %v1800, %v1481
    %v1817 = vsel %vm815, %v1801, %v1483
    %v1818 = vsel %vm815, %v1802, %v1485
    %v1819 = vsel %vm815, %v1803, %v1487
    %v1820 = vsel %vm815, %v1804, %v1489
    %v1821 = vsel %vm815, %v1805, %v1491
    %v1822 = vsel %vm815, %v1806, %v1493
    %v1823 = vsel %vm815, %v1807, %v1495
    %v1824 = vsel %vm815, %v1808, %v1497
    %v1825 = vsel %vm815, %v1809, %v1499
    %v1826 = vsel %vm815, %v1810, %v1501
    %v1827 = vsel %vm815, %v1811, %v1503
    %v1828 = vsel %vm815, %v1812, %v1505
    %v1829 = vsel %vm815, %v1813, %v1507
    %v1830 = vsel %vm815, %v1814, %v1509
    %v1831 = vsel %vm815, %v1815, %v1511
    %v1832 = vsel %vm832, %v1816, %v1545
    %v1833 = vsel %vm832, %v1817, %v1547
    %v1834 = vsel %vm832, %v1818, %v1549
    %v1835 = vsel %vm832, %v1819, %v1551
    %v1836 = vsel %vm832, %v1820, %v1553
    %v1837 = vsel %vm832, %v1821, %v1555
    %v1838 = vsel %vm832, %v1822, %v1557
    %v1839 = vsel %vm832, %v1823, %v1559
    %v1840 = vsel %vm832, %v1824, %v1561
    %v1841 = vsel %vm832, %v1825, %v1563
    %v1842 = vsel %vm832, %v1826, %v1565
    %v1843 = vsel %vm832, %v1827, %v1567
    %v1844 = vsel %vm832, %v1828, %v1569
    %v1845 = vsel %vm832, %v1829, %v1571
    %v1846 = vsel %vm832, %v1830, %v1573
    %v1847 = vsel %vm832, %v1831, %v1575
    %v1848 = vsel %vm849, %v1832, %v1609
    %v1849 = vsel %vm849, %v1833, %v1611
    %v1850 = vsel %vm849, %v1834, %v1613
    %v1851 = vsel %vm849, %v1835, %v1615
    %v1852 = vsel %vm849, %v1836, %v1617
    %v1853 = vsel %vm849, %v1837, %v1619
    %v1854 = vsel %vm849, %v1838, %v1621
    %v1855 = vsel %vm849, %v1839, %v1623
    %v1856 = vsel %vm849, %v1840, %v1625
    %v1857 = vsel %vm849, %v1841, %v1627
    %v1858 = vsel %vm849, %v1842, %v1629
    %v1859 = vsel %vm849, %v1843, %v1631
    %v1860 = vsel %vm849, %v1844, %v1633
    %v1861 = vsel %vm849, %v1845, %v1635
    %v1862 = vsel %vm849, %v1846, %v1637
    %v1863 = vsel %vm849, %v1847, %v1639
    %v1864 = vsel %vm866, %v1848, %v1673
    %v1865 = vsel %vm866, %v1849, %v1675
    %v1866 = vsel %vm866, %v1850, %v1677
    %v1867 = vsel %vm866, %v1851, %v1679
    %v1868 = vsel %vm866, %v1852, %v1681
    %v1869 = vsel %vm866, %v1853, %v1683
    %v1870 = vsel %vm866, %v1854, %v1685
    %v1871 = vsel %vm866, %v1855, %v1687
    %v1872 = vsel %vm866, %v1856, %v1689
    %v1873 = vsel %vm866, %v1857, %v1691
    %v1874 = vsel %vm866, %v1858, %v1693
    %v1875 = vsel %vm866, %v1859, %v1695
    %v1876 = vsel %vm866, %v1860, %v1697
    %v1877 = vsel %vm866, %v1861, %v1699
    %v1878 = vsel %vm866, %v1862, %v1701
    %v1879 = vsel %vm866, %v1863, %v1703
    %v1880 = vsel %vm883, %v1864, %v1737
    %v1881 = vsel %vm883, %v1865, %v1739
    %v1882 = vsel %vm883, %v1866, %v1741
    %v1883 = vsel %vm883, %v1867, %v1743
    %v1884 = vsel %vm883, %v1868, %v1745
    %v1885 = vsel %vm883, %v1869, %v1747
    %v1886 = vsel %vm883, %v1870, %v1749
    %v1887 = vsel %vm883, %v1871, %v1751
    %v1888 = vsel %vm883, %v1872, %v1753
    %v1889 = vsel %vm883, %v1873, %v1755
    %v1890 = vsel %vm883, %v1874, %v1757
    %v1891 = vsel %vm883, %v1875, %v1759
    %v1892 = vsel %vm883, %v1876, %v1761
    %v1893 = vsel %vm883, %v1877, %v1763
    %v1894 = vsel %vm883, %v1878, %v1765
    %v1895 = vsel %vm883, %v1879, %v1767
    %v1896 = vld [vmem:[%s4] sm:$0x1]
    %v1898 = vlaneseq
    %v1899 = vshrl.u32 %v1898, 7
    %v1900 = vsub.s32 0, %v1899
    %v1901 = vrot.slane %v1896, %v1900
    %v1904 = vsel %vm130, %v1320, 0
    %v1907 = vsel %vm130, %v1321, 0
    %v1910 = vsel %vm130, %v1322, 0
    %v1913 = vsel %vm130, %v1323, 0
    %v1916 = vsel %vm130, %v1324, 0
    %v1919 = vsel %vm130, %v1325, 0
    %v1922 = vsel %vm130, %v1326, 0
    %v1925 = vsel %vm130, %v1327, 0
    %v1928 = vsel %vm130, %v1328, 0
    %v1931 = vsel %vm130, %v1329, 0
    %v1934 = vsel %vm130, %v1330, 0
    %v1937 = vsel %vm130, %v1331, 0
    %v1940 = vsel %vm130, %v1332, 0
    %v1943 = vsel %vm130, %v1333, 0
    %v1946 = vsel %vm130, %v1334, 0
    %v1949 = vsel %vm130, %v1335, 0
    %1951 = vmatprep.subr.mxu0 0.0
    %1952 = vmatpush1.msra.mxu0 %v1116
    %1953 = vmatprep.subr.mxu0 0.0
    %1954 = vmatpush1.msra.mxu0 %v1117
    %1955 = vmatprep.subr.mxu0 0.0
    %1956 = vmatpush1.msra.mxu0 %v1118
    %1957 = vmatprep.subr.mxu0 0.0
    %1958 = vmatpush1.msra.mxu0 %v1119
    %1959 = vmatprep.subr.mxu0 0.0
    %1960 = vmatpush1.msra.mxu0 %v1120
    %1961 = vmatprep.subr.mxu0 0.0
    %1962 = vmatpush1.msra.mxu0 %v1121
    %1963 = vmatprep.subr.mxu0 0.0
    %1964 = vmatpush1.msra.mxu0 %v1122
    %1965 = vmatprep.subr.mxu0 0.0
    %1966 = vmatpush1.msra.mxu0 %v1123
    %1967 = vmatprep.subr.mxu0 0.0
    %1968 = vmatpush1.msra.mxu0 %v1124
    %1969 = vmatprep.subr.mxu0 0.0
    %1970 = vmatpush1.msra.mxu0 %v1125
    %1971 = vmatprep.subr.mxu0 0.0
    %1972 = vmatpush1.msra.mxu0 %v1126
    %1973 = vmatprep.subr.mxu0 0.0
    %1974 = vmatpush1.msra.mxu0 %v1127
    %1975 = vmatprep.subr.mxu0 0.0
    %1976 = vmatpush1.msra.mxu0 %v1128
    %1977 = vmatprep.subr.mxu0 0.0
    %1978 = vmatpush1.msra.mxu0 %v1129
    %1979 = vmatprep.subr.mxu0 0.0
    %1980 = vmatpush1.msra.mxu0 %v1130
    %1981 = vmatprep.subr.mxu0 0.0
    %1982 = vmatpush1.msra.mxu0 %v1131
    %1983 = vmatprep.subr.mxu0 0.0
    %1984 = vmatpush1.msra.mxu0 %v1132
    %1985 = vmatprep.subr.mxu0 0.0
    %1986 = vmatpush1.msra.mxu0 %v1133
    %1987 = vmatprep.subr.mxu0 0.0
    %1988 = vmatpush1.msra.mxu0 0.0
    %1989 = vmatprep.subr.mxu0 0.0
    %1990 = vmatpush1.msra.mxu0 0.0
    %1991 = vmatprep.subr.mxu0 0.0
    %1992 = vmatpush1.msra.mxu0 0.0
    %1993 = vmatprep.subr.mxu0 0.0
    %1994 = vmatpush1.msra.mxu0 0.0
    %1995 = vmatprep.subr.mxu0 0.0
    %1996 = vmatpush1.msra.mxu0 0.0
    %1997 = vmatprep.subr.mxu0 0.0
    %1998 = vmatpush1.msra.mxu0 0.0
    %1999 = vmatprep.subr.mxu0 0.0
    %2000 = vmatpush1.msra.mxu0 0.0
    %2001 = vmatprep.subr.mxu0 0.0
    %2002 = vmatpush1.msra.mxu0 0.0
    %2003 = vmatprep.subr.mxu0 0.0
    %2004 = vmatpush1.msra.mxu0 0.0
    %2005 = vmatprep.subr.mxu0 0.0
    %2006 = vmatpush1.msra.mxu0 0.0
    %2007 = vmatprep.subr.mxu0 0.0
    %2008 = vmatpush1.msra.mxu0 0.0
    %2009 = vmatprep.subr.mxu0 0.0
    %2010 = vmatpush1.msra.mxu0 0.0
    %2011 = vmatprep.subr.mxu0 0.0
    %2012 = vmatpush1.msra.mxu0 0.0
    %2013 = vmatprep.subr.mxu0 0.0
    %2014 = vmatpush1.msra.mxu0 0.0
    %2015 = vmatprep.mubr.f32.mxu0 %v1904
    %2016 = vmatmul.mubr.f32.gmra.mrb[0].mxu0 %v1880
    %v2017 = vpop.f32.mrb[0].mxu0
    %v2018 = vadd.f32 %v1901, %v2017
    %v2019 = vpop.f32.mrb[0].mxu0
    %2020 = vmatprep.mubr.f32.mxu0 %v1907
    %2021 = vmatmul.mubr.f32.gmra.mrb[0].mxu0 %v1881
    %v2022 = vpop.f32.mrb[0].mxu0
    %v2023 = vadd.f32 %v1901, %v2022
    %v2024 = vpop.f32.mrb[0].mxu0
    %2025 = vmatprep.mubr.f32.mxu0 %v1910
    %2026 = vmatmul.mubr.f32.gmra.mrb[0].mxu0 %v1882
    %v2027 = vpop.f32.mrb[0].mxu0
    %v2028 = vadd.f32 %v1901, %v2027
    %v2029 = vpop.f32.mrb[0].mxu0
    %2030 = vmatprep.mubr.f32.mxu0 %v1913
    %2031 = vmatmul.mubr.f32.gmra.mrb[0].mxu0 %v1883
    %v2032 = vpop.f32.mrb[0].mxu0
    %v2033 = vadd.f32 %v1901, %v2032
    %v2034 = vpop.f32.mrb[0].mxu0
    %2035 = vmatprep.mubr.f32.mxu0 %v1916
    %2036 = vmatmul.mubr.f32.gmra.mrb[0].mxu0 %v1884
    %v2037 = vpop.f32.mrb[0].mxu0
    %v2038 = vadd.f32 %v1901, %v2037
    %v2039 = vpop.f32.mrb[0].mxu0
    %2040 = vmatprep.mubr.f32.mxu0 %v1919
    %2041 = vmatmul.mubr.f32.gmra.mrb[0].mxu0 %v1885
    %v2042 = vpop.f32.mrb[0].mxu0
    %v2043 = vadd.f32 %v1901, %v2042
    %v2044 = vpop.f32.mrb[0].mxu0
    %2045 = vmatprep.mubr.f32.mxu0 %v1922
    %2046 = vmatmul.mubr.f32.gmra.mrb[0].mxu0 %v1886
    %v2047 = vpop.f32.mrb[0].mxu0
    %v2048 = vadd.f32 %v1901, %v2047
    %v2049 = vpop.f32.mrb[0].mxu0
    %2050 = vmatprep.mubr.f32.mxu0 %v1925
    %2051 = vmatmul.mubr.f32.gmra.mrb[0].mxu0 %v1887
    %v2052 = vpop.f32.mrb[0].mxu0
    %v2053 = vadd.f32 %v1901, %v2052
    %v2054 = vpop.f32.mrb[0].mxu0
    %2055 = vmatprep.mubr.f32.mxu0 %v1928
    %2056 = vmatmul.mubr.f32.gmra.mrb[0].mxu0 %v1888
    %v2057 = vpop.f32.mrb[0].mxu0
    %v2058 = vadd.f32 %v1901, %v2057
    %v2059 = vpop.f32.mrb[0].mxu0
    %2060 = vmatprep.mubr.f32.mxu0 %v1931
    %2061 = vmatmul.mubr.f32.gmra.mrb[0].mxu0 %v1889
    %v2062 = vpop.f32.mrb[0].mxu0
    %v2063 = vadd.f32 %v1901, %v2062
    %v2064 = vpop.f32.mrb[0].mxu0
    %2065 = vmatprep.mubr.f32.mxu0 %v1934
    %2066 = vmatmul.mubr.f32.gmra.mrb[0].mxu0 %v1890
    %v2067 = vpop.f32.mrb[0].mxu0
    %v2068 = vadd.f32 %v1901, %v2067
    %v2069 = vpop.f32.mrb[0].mxu0
    %2070 = vmatprep.mubr.f32.mxu0 %v1937
    %2071 = vmatmul.mubr.f32.gmra.mrb[0].mxu0 %v1891
    %v2072 = vpop.f32.mrb[0].mxu0
    %v2073 = vadd.f32 %v1901, %v2072
    %v2074 = vpop.f32.mrb[0].mxu0
    %2075 = vmatprep.mubr.f32.mxu0 %v1940
    %2076 = vmatmul.mubr.f32.gmra.mrb[0].mxu0 %v1892
    %v2077 = vpop.f32.mrb[0].mxu0
    %v2078 = vadd.f32 %v1901, %v2077
    %v2079 = vpop.f32.mrb[0].mxu0
    %2080 = vmatprep.mubr.f32.mxu0 %v1943
    %2081 = vmatmul.mubr.f32.gmra.mrb[0].mxu0 %v1893
    %v2082 = vpop.f32.mrb[0].mxu0
    %v2083 = vadd.f32 %v1901, %v2082
    %v2084 = vpop.f32.mrb[0].mxu0
    %2085 = vmatprep.mubr.f32.mxu0 %v1946
    %2086 = vmatmul.mubr.f32.gmra.mrb[0].mxu0 %v1894
    %v2087 = vpop.f32.mrb[0].mxu0
    %v2088 = vadd.f32 %v1901, %v2087
    %v2089 = vpop.f32.mrb[0].mxu0
    %2090 = vmatprep.mubr.f32.mxu0 %v1949
    %2091 = vmatmul.mubr.f32.gmra.mrb[0].mxu0 %v1895
    %v2092 = vpop.f32.mrb[0].mxu0
    %v2093 = vadd.f32 %v1901, %v2092
    %v2094 = vpop.f32.mrb[0].mxu0
    %2095 = vdwg.mxu0
    %v2096 = vsel %vm130, %v2018, 0.0
    %v2097 = vsel %vm130, %v2023, 0.0
    %v2098 = vadd.f32 %v2096, %v2097
    %v2099 = vsel %vm130, %v2028, 0.0
    %v2100 = vadd.f32 %v2098, %v2099
    %v2101 = vsel %vm130, %v2033, 0.0
    %v2102 = vadd.f32 %v2100, %v2101
    %v2103 = vsel %vm130, %v2038, 0.0
    %v2104 = vadd.f32 %v2102, %v2103
    %v2105 = vsel %vm130, %v2043, 0.0
    %v2106 = vadd.f32 %v2104, %v2105
    %v2107 = vsel %vm130, %v2048, 0.0
    %v2108 = vadd.f32 %v2106, %v2107
    %v2109 = vsel %vm130, %v2053, 0.0
    %v2110 = vadd.f32 %v2108, %v2109
    %v2111 = vrot.slane %v2110, 4
    %v2112 = vadd.f32 %v2110, %v2111
    %v2113 = vrot.slane %v2112, 2
    %v2114 = vadd.f32 %v2112, %v2113
    %v2115 = vrot.slane %v2114, 1
    %v2116 = vadd.f32 %v2114, %v2115
    %v2117 = vsel %vm130, %v2058, 0.0
    %v2118 = vsel %vm130, %v2063, 0.0
    %v2119 = vadd.f32 %v2117, %v2118
    %v2120 = vsel %vm130, %v2068, 0.0
    %v2121 = vadd.f32 %v2119, %v2120
    %v2122 = vsel %vm130, %v2073, 0.0
    %v2123 = vadd.f32 %v2121, %v2122
    %v2124 = vsel %vm130, %v2078, 0.0
    %v2125 = vadd.f32 %v2123, %v2124
    %v2126 = vsel %vm130, %v2083, 0.0
    %v2127 = vadd.f32 %v2125, %v2126
    %v2128 = vsel %vm130, %v2088, 0.0
    %v2129 = vadd.f32 %v2127, %v2128
    %v2130 = vsel %vm130, %v2093, 0.0
    %v2131 = vadd.f32 %v2129, %v2130
    %v2132 = vrot.slane %v2131, 4
    %v2133 = vadd.f32 %v2131, %v2132
    %v2134 = vrot.slane %v2133, 2
    %v2135 = vadd.f32 %v2133, %v2134
    %v2136 = vrot.slane %v2135, 1
    %v2137 = vadd.f32 %v2135, %v2136
    %v2138 = vrcp.pop 64.0
    %v2139 = vmul.f32 %v2116, %v2138
    %v2140 = vmul.f32 %v2137, %v2138
    %v2141 = vsel %vm130, %v2018, -inf
    %v2142 = vsel %vm130, %v2023, -inf
    %v2143 = vsel %vm130, %v2028, -inf
    %v2144 = vmax.f32 %v2141, %v2143
    %v2145 = vsel %vm130, %v2033, -inf
    %v2146 = vmax.f32 %v2142, %v2145
    %v2147 = vsel %vm130, %v2038, -inf
    %v2148 = vmax.f32 %v2144, %v2147
    %v2149 = vsel %vm130, %v2043, -inf
    %v2150 = vmax.f32 %v2146, %v2149
    %v2151 = vsel %vm130, %v2048, -inf
    %v2152 = vmax.f32 %v2148, %v2151
    %v2153 = vsel %vm130, %v2053, -inf
    %v2154 = vmax.f32 %v2150, %v2153
    %v2155 = vmax.f32 %v2152, %v2154
    %v2156 = vrot.slane %v2155, 4
    %v2157 = vmax.f32 %v2155, %v2156
    %v2158 = vrot.slane %v2157, 2
    %v2159 = vmax.f32 %v2157, %v2158
    %v2160 = vrot.slane %v2159, 1
    %v2161 = vmax.f32 %v2159, %v2160
    %v2162 = vsel %vm130, %v2058, -inf
    %v2163 = vsel %vm130, %v2063, -inf
    %v2164 = vsel %vm130, %v2068, -inf
    %v2165 = vmax.f32 %v2162, %v2164
    %v2166 = vsel %vm130, %v2073, -inf
    %v2167 = vmax.f32 %v2163, %v2166
    %v2168 = vsel %vm130, %v2078, -inf
    %v2169 = vmax.f32 %v2165, %v2168
    %v2170 = vsel %vm130, %v2083, -inf
    %v2171 = vmax.f32 %v2167, %v2170
    %v2172 = vsel %vm130, %v2088, -inf
    %v2173 = vmax.f32 %v2169, %v2172
    %v2174 = vsel %vm130, %v2093, -inf
    %v2175 = vmax.f32 %v2171, %v2174
    %v2176 = vmax.f32 %v2173, %v2175
    %v2177 = vrot.slane %v2176, 4
    %v2178 = vmax.f32 %v2176, %v2177
    %v2179 = vrot.slane %v2178, 2
    %v2180 = vmax.f32 %v2178, %v2179
    %v2181 = vrot.slane %v2180, 1
    %v2182 = vmax.f32 %v2180, %v2181
    %vm2185 = vcmask 1041409
    %v2186 = vsel %vm2185, %v2140, %v2139
    %vm2190 = vcmask 1043459
    %v2191 = vsel %vm2190, %v2182, %v2161
    %vm2193 = vcmask 1041408
    %v2194 = vsel %vm2193, %v2186, %v2191
    %v2195 = vld [vmem:[%s5] sm:$0xff]
    %v2196 = vld [vmem:[%s5 + $0x8] sm:$0xff]
    %v2198 = vsel %vm130, %v2194, 0
    %2200 = vmatprep.subr.mxu0 0.0
    %2201 = vmatpush1.msra.mxu0 %v2195
    %2202 = vmatprep.subr.mxu0 0.0
    %2203 = vmatpush1.msra.mxu0 %v2196
    %2204 = vmatprep.subr.mxu0 0.0
    %2205 = vmatpush1.msra.mxu0 0.0
    %2206 = vmatprep.subr.mxu0 0.0
    %2207 = vmatpush1.msra.mxu0 0.0
    %2208 = vmatprep.subr.mxu0 0.0
    %2209 = vmatpush1.msra.mxu0 0.0
    %2210 = vmatprep.subr.mxu0 0.0
    %2211 = vmatpush1.msra.mxu0 0.0
    %2212 = vmatprep.subr.mxu0 0.0
    %2213 = vmatpush1.msra.mxu0 0.0
    %2214 = vmatprep.subr.mxu0 0.0
    %2215 = vmatpush1.msra.mxu0 0.0
    %2216 = vmatprep.subr.mxu0 0.0
    %2217 = vmatpush1.msra.mxu0 0.0
    %2218 = vmatprep.subr.mxu0 0.0
    %2219 = vmatpush1.msra.mxu0 0.0
    %2220 = vmatprep.subr.mxu0 0.0
    %2221 = vmatpush1.msra.mxu0 0.0
    %2222 = vmatprep.subr.mxu0 0.0
    %2223 = vmatpush1.msra.mxu0 0.0
    %2224 = vmatprep.subr.mxu0 0.0
    %2225 = vmatpush1.msra.mxu0 0.0
    %2226 = vmatprep.subr.mxu0 0.0
    %2227 = vmatpush1.msra.mxu0 0.0
    %2228 = vmatprep.subr.mxu0 0.0
    %2229 = vmatpush1.msra.mxu0 0.0
    %2230 = vmatprep.subr.mxu0 0.0
    %2231 = vmatpush1.msra.mxu0 0.0
    %2232 = vmatprep.subr.mxu0 0.0
    %2233 = vmatpush1.msra.mxu0 0.0
    %2234 = vmatprep.subr.mxu0 0.0
    %2235 = vmatpush1.msra.mxu0 0.0
    %2236 = vmatprep.subr.mxu0 0.0
    %2237 = vmatpush1.msra.mxu0 0.0
    %2238 = vmatprep.subr.mxu0 0.0
    %2239 = vmatpush1.msra.mxu0 0.0
    %2240 = vmatprep.subr.mxu0 0.0
    %2241 = vmatpush1.msra.mxu0 0.0
    %2242 = vmatprep.subr.mxu0 0.0
    %2243 = vmatpush1.msra.mxu0 0.0
    %2244 = vmatprep.subr.mxu0 0.0
    %2245 = vmatpush1.msra.mxu0 0.0
    %2246 = vmatprep.subr.mxu0 0.0
    %2247 = vmatpush1.msra.mxu0 0.0
    %2248 = vmatprep.subr.mxu0 0.0
    %2249 = vmatpush1.msra.mxu0 0.0
    %2250 = vmatprep.subr.mxu0 0.0
    %2251 = vmatpush1.msra.mxu0 0.0
    %2252 = vmatprep.subr.mxu0 0.0
    %2253 = vmatpush1.msra.mxu0 0.0
    %2254 = vmatprep.subr.mxu0 0.0
    %2255 = vmatpush1.msra.mxu0 0.0
    %2256 = vmatprep.subr.mxu0 0.0
    %2257 = vmatpush1.msra.mxu0 0.0
    %2258 = vmatprep.subr.mxu0 0.0
    %2259 = vmatpush1.msra.mxu0 0.0
    %2260 = vmatprep.subr.mxu0 0.0
    %2261 = vmatpush1.msra.mxu0 0.0
    %2262 = vmatprep.subr.mxu0 0.0
    %2263 = vmatpush1.msra.mxu0 0.0
    %2264 = vmatprep.mubr.f32.mxu0 0.0
    %2265 = vmatmul.mubr.f32.gmra.mrb[0].mxu0 %v2198
    %v2266 = vpop.f32.mrb[0].mxu0
    %v2267 = vadd.f32 0.0, %v2266
    %v2268 = vpop.f32.mrb[0].mxu0
    %2269 = vdwg.mxu0
    %v2270 = vmax.f32 %v2267, 0.0
    %v2271 = vld [vmem:[%s6] sm:$0x1]
    %vm2272 = vcmask 7168
    %v2274 = vsel %vm2272, %v2270, 0
    %vm2276 = vcmask 1040384
    %v2278 = vsel %vm2276, %v2271, 0
    %2280 = vmatprep.subr.mxu0 0.0
    %2281 = vmatpush1.msra.mxu0 %v2278
    %2282 = vmatprep.subr.mxu0 0.0
    %2283 = vmatpush1.msra.mxu0 0.0
    %2284 = vmatprep.subr.mxu0 0.0
    %2285 = vmatpush1.msra.mxu0 0.0
    %2286 = vmatprep.subr.mxu0 0.0
    %2287 = vmatpush1.msra.mxu0 0.0
    %2288 = vmatprep.subr.mxu0 0.0
    %2289 = vmatpush1.msra.mxu0 0.0
    %2290 = vmatprep.subr.mxu0 0.0
    %2291 = vmatpush1.msra.mxu0 0.0
    %2292 = vmatprep.subr.mxu0 0.0
    %2293 = vmatpush1.msra.mxu0 0.0
    %2294 = vmatprep.subr.mxu0 0.0
    %2295 = vmatpush1.msra.mxu0 0.0
    %2296 = vmatprep.subr.mxu0 0.0
    %2297 = vmatpush1.msra.mxu0 0.0
    %2298 = vmatprep.subr.mxu0 0.0
    %2299 = vmatpush1.msra.mxu0 0.0
    %2300 = vmatprep.subr.mxu0 0.0
    %2301 = vmatpush1.msra.mxu0 0.0
    %2302 = vmatprep.subr.mxu0 0.0
    %2303 = vmatpush1.msra.mxu0 0.0
    %2304 = vmatprep.subr.mxu0 0.0
    %2305 = vmatpush1.msra.mxu0 0.0
    %2306 = vmatprep.subr.mxu0 0.0
    %2307 = vmatpush1.msra.mxu0 0.0
    %2308 = vmatprep.subr.mxu0 0.0
    %2309 = vmatpush1.msra.mxu0 0.0
    %2310 = vmatprep.subr.mxu0 0.0
    %2311 = vmatpush1.msra.mxu0 0.0
    %2312 = vmatprep.subr.mxu0 0.0
    %2313 = vmatpush1.msra.mxu0 0.0
    %2314 = vmatprep.subr.mxu0 0.0
    %2315 = vmatpush1.msra.mxu0 0.0
    %2316 = vmatprep.subr.mxu0 0.0
    %2317 = vmatpush1.msra.mxu0 0.0
    %2318 = vmatprep.subr.mxu0 0.0
    %2319 = vmatpush1.msra.mxu0 0.0
    %2320 = vmatprep.subr.mxu0 0.0
    %2321 = vmatpush1.msra.mxu0 0.0
    %2322 = vmatprep.subr.mxu0 0.0
    %2323 = vmatpush1.msra.mxu0 0.0
    %2324 = vmatprep.subr.mxu0 0.0
    %2325 = vmatpush1.msra.mxu0 0.0
    %2326 = vmatprep.subr.mxu0 0.0
    %2327 = vmatpush1.msra.mxu0 0.0
    %2328 = vmatprep.subr.mxu0 0.0
    %2329 = vmatpush1.msra.mxu0 0.0
    %2330 = vmatprep.subr.mxu0 0.0
    %2331 = vmatpush1.msra.mxu0 0.0
    %2332 = vmatprep.subr.mxu0 0.0
    %2333 = vmatpush1.msra.mxu0 0.0
    %2334 = vmatprep.subr.mxu0 0.0
    %2335 = vmatpush1.msra.mxu0 0.0
    %2336 = vmatprep.subr.mxu0 0.0
    %2337 = vmatpush1.msra.mxu0 0.0
    %2338 = vmatprep.subr.mxu0 0.0
    %2339 = vmatpush1.msra.mxu0 0.0
    %2340 = vmatprep.subr.mxu0 0.0
    %2341 = vmatpush1.msra.mxu0 0.0
    %2342 = vmatprep.subr.mxu0 0.0
    %2343 = vmatpush1.msra.mxu0 0.0
    %2344 = vmatprep.mubr.f32.mxu0 0.0
    %2345 = vmatmul.mubr.f32.gmra.mrb[0].mxu0 %v2274
    %v2346 = vpop.f32.mrb[0].mxu0
    %v2347 = vadd.f32 0.0, %v2346
    %v2348 = vpop.f32.mrb[0].mxu0
    %2349 = vdwg.mxu0
    %v2351 = vrot.slane %v2347, 2
    %v2353 = vadd.f32 %v2347, %v2351
    %v2354 = vxor.u32 %v2353, 2147483648
    %v2355 = vmul.f32 %v2354, 1.442695
    %v2356 = vpow.pop %v2355
    %v2357 = vadd.f32 %v2356, 1.0
    %v2358 = vrcp.pop %v2357
    %v2359 = vmul.f32 1.0, %v2358
    %v2362 = vunpack.c.l.s4 1966171168
    %v2363 = vunpack.c.0.s8 %v2362
    %v2364 = vlaneseq
    %v2365 = vshrl.u32 %v2364, 7
    %v2366 = vsub.s32 %v2363, %v2365
    %v2367 = vrot.slane %v2359, %v2366
    %v2368 = vcombine.high %v2367, %v2367
    %v2370 = vunpack.c.l.s4 1966171168
    %v2371 = vunpack.c.0.s8 %v2370
    %v2372 = vlaneseq
    %v2373 = vshrl.u32 %v2372, 7
    %v2374 = vsub.s32 %v2371, %v2373
    %v2375 = vrot.slane %v2367, %v2374
    %v2377 = vunpack.c.l.s4 1966171168
    %v2378 = vunpack.c.0.s8 %v2377
    %v2379 = vlaneseq
    %v2380 = vshrl.u32 %v2379, 7
    %v2381 = vsub.s32 %v2378, %v2380
    %v2382 = vrot.slane %v2368, %v2381
    %v2383 = vlaneseq
    %v2384 = vshrl.u32 %v2383, 7
    %v2385 = vsub.s32 0, %v2384
    %v2386 = vrot.slane %v2375, %v2385
    %v2387 = vlaneseq
    %v2388 = vshrl.u32 %v2387, 7
    %v2389 = vsub.s32 0, %v2388
    %v2390 = vrot.slane %v2382, %v2389
    %v2393 = vmul.f32 %v2018, %v2386
    %v2394 = vmul.f32 %v2023, %v2386
    %v2395 = vmul.f32 %v2028, %v2386
    %v2396 = vmul.f32 %v2033, %v2386
    %v2397 = vmul.f32 %v2038, %v2386
    %v2398 = vmul.f32 %v2043, %v2386
    %v2399 = vmul.f32 %v2048, %v2386
    %v2400 = vmul.f32 %v2053, %v2386
    %v2401 = vmul.f32 %v2058, %v2390
    %v2402 = vmul.f32 %v2063, %v2390
    %v2403 = vmul.f32 %v2068, %v2390
    %v2404 = vmul.f32 %v2073, %v2390
    %v2405 = vmul.f32 %v2078, %v2390
    %v2406 = vmul.f32 %v2083, %v2390
    %v2407 = vmul.f32 %v2088, %v2390
    %v2408 = vmul.f32 %v2093, %v2390
    %v2409 = vsel %vm130, %v2393, 0.0
    %2410 = vadd.xlane.f32.xlu0 %v2409
    %v2411 = vpop.xlane.xlu0 %2410
    %v2412 = vsel %vm130, %v2394, 0.0
    %2413 = vadd.xlane.f32.xlu0 %v2412
    %v2414 = vpop.xlane.xlu0 %2413
    %v2415 = vsel %vm130, %v2395, 0.0
    %2416 = vadd.xlane.f32.xlu0 %v2415
    %v2417 = vpop.xlane.xlu0 %2416
    %v2418 = vsel %vm130, %v2396, 0.0
    %2419 = vadd.xlane.f32.xlu0 %v2418
    %v2420 = vpop.xlane.xlu0 %2419
    %v2421 = vsel %vm130, %v2397, 0.0
    %2422 = vadd.xlane.f32.xlu0 %v2421
    %v2423 = vpop.xlane.xlu0 %2422
    %v2424 = vsel %vm130, %v2398, 0.0
    %2425 = vadd.xlane.f32.xlu0 %v2424
    %v2426 = vpop.xlane.xlu0 %2425
    %v2427 = vsel %vm130, %v2399, 0.0
    %2428 = vadd.xlane.f32.xlu0 %v2427
    %v2429 = vpop.xlane.xlu0 %2428
    %v2430 = vsel %vm130, %v2400, 0.0
    %2431 = vadd.xlane.f32.xlu0 %v2430
    %v2432 = vpop.xlane.xlu0 %2431
    %v2433 = vsel %vm130, %v2401, 0.0
    %2434 = vadd.xlane.f32.xlu0 %v2433
    %v2435 = vpop.xlane.xlu0 %2434
    %v2436 = vsel %vm130, %v2402, 0.0
    %2437 = vadd.xlane.f32.xlu0 %v2436
    %v2438 = vpop.xlane.xlu0 %2437
    %v2439 = vsel %vm130, %v2403, 0.0
    %2440 = vadd.xlane.f32.xlu0 %v2439
    %v2441 = vpop.xlane.xlu0 %2440
    %v2442 = vsel %vm130, %v2404, 0.0
    %2443 = vadd.xlane.f32.xlu0 %v2442
    %v2444 = vpop.xlane.xlu0 %2443
    %v2445 = vsel %vm130, %v2405, 0.0
    %2446 = vadd.xlane.f32.xlu0 %v2445
    %v2447 = vpop.xlane.xlu0 %2446
    %v2448 = vsel %vm130, %v2406, 0.0
    %2449 = vadd.xlane.f32.xlu0 %v2448
    %v2450 = vpop.xlane.xlu0 %2449
    %v2451 = vsel %vm130, %v2407, 0.0
    %2452 = vadd.xlane.f32.xlu0 %v2451
    %v2453 = vpop.xlane.xlu0 %2452
    %v2454 = vsel %vm130, %v2408, 0.0
    %2455 = vadd.xlane.f32.xlu0 %v2454
    %v2456 = vpop.xlane.xlu0 %2455
    %v2457 = vrcp.pop 16.0
    %v2458 = vmul.f32 %v2411, %v2457
    %v2459 = vmul.f32 %v2414, %v2457
    %v2460 = vmul.f32 %v2417, %v2457
    %v2461 = vmul.f32 %v2420, %v2457
    %v2462 = vmul.f32 %v2423, %v2457
    %v2463 = vmul.f32 %v2426, %v2457
    %v2464 = vmul.f32 %v2429, %v2457
    %v2465 = vmul.f32 %v2432, %v2457
    %v2466 = vmul.f32 %v2435, %v2457
    %v2467 = vmul.f32 %v2438, %v2457
    %v2468 = vmul.f32 %v2441, %v2457
    %v2469 = vmul.f32 %v2444, %v2457
    %v2470 = vmul.f32 %v2447, %v2457
    %v2471 = vmul.f32 %v2450, %v2457
    %v2472 = vmul.f32 %v2453, %v2457
    %v2473 = vmul.f32 %v2456, %v2457
    %v2474 = vsel %vm130, %v2393, -inf
    %2475 = vmax.xlane.f32.xlu0 %v2474
    %v2476 = vpop.xlane.xlu0 %2475
    %v2477 = vsel %vm130, %v2394, -inf
    %2478 = vmax.xlane.f32.xlu0 %v2477
    %v2479 = vpop.xlane.xlu0 %2478
    %v2480 = vsel %vm130, %v2395, -inf
    %2481 = vmax.xlane.f32.xlu0 %v2480
    %v2482 = vpop.xlane.xlu0 %2481
    %v2483 = vsel %vm130, %v2396, -inf
    %2484 = vmax.xlane.f32.xlu0 %v2483
    %v2485 = vpop.xlane.xlu0 %2484
    %v2486 = vsel %vm130, %v2397, -inf
    %2487 = vmax.xlane.f32.xlu0 %v2486
    %v2488 = vpop.xlane.xlu0 %2487
    %v2489 = vsel %vm130, %v2398, -inf
    %2490 = vmax.xlane.f32.xlu0 %v2489
    %v2491 = vpop.xlane.xlu0 %2490
    %v2492 = vsel %vm130, %v2399, -inf
    %2493 = vmax.xlane.f32.xlu0 %v2492
    %v2494 = vpop.xlane.xlu0 %2493
    %v2495 = vsel %vm130, %v2400, -inf
    %2496 = vmax.xlane.f32.xlu0 %v2495
    %v2497 = vpop.xlane.xlu0 %2496
    %v2498 = vsel %vm130, %v2401, -inf
    %2499 = vmax.xlane.f32.xlu0 %v2498
    %v2500 = vpop.xlane.xlu0 %2499
    %v2501 = vsel %vm130, %v2402, -inf
    %2502 = vmax.xlane.f32.xlu0 %v2501
    %v2503 = vpop.xlane.xlu0 %2502
    %v2504 = vsel %vm130, %v2403, -inf
    %2505 = vmax.xlane.f32.xlu0 %v2504
    %v2506 = vpop.xlane.xlu0 %2505
    %v2507 = vsel %vm130, %v2404, -inf
    %2508 = vmax.xlane.f32.xlu0 %v2507
    %v2509 = vpop.xlane.xlu0 %2508
    %v2510 = vsel %vm130, %v2405, -inf
    %2511 = vmax.xlane.f32.xlu0 %v2510
    %v2512 = vpop.xlane.xlu0 %2511
    %v2513 = vsel %vm130, %v2406, -inf
    %2514 = vmax.xlane.f32.xlu0 %v2513
    %v2515 = vpop.xlane.xlu0 %2514
    %v2516 = vsel %vm130, %v2407, -inf
    %2517 = vmax.xlane.f32.xlu0 %v2516
    %v2518 = vpop.xlane.xlu0 %2517
    %v2519 = vsel %vm130, %v2408, -inf
    %2520 = vmax.xlane.f32.xlu0 %v2519
    %v2521 = vpop.xlane.xlu0 %2520
    %v2522 = vsel %vm2272, %v2458, %v2476
    %v2523 = vsel %vm2272, %v2459, %v2479
    %v2524 = vsel %vm2272, %v2460, %v2482
    %v2525 = vsel %vm2272, %v2461, %v2485
    %v2526 = vsel %vm2272, %v2462, %v2488
    %v2527 = vsel %vm2272, %v2463, %v2491
    %v2528 = vsel %vm2272, %v2464, %v2494
    %v2529 = vsel %vm2272, %v2465, %v2497
    %v2530 = vsel %vm2272, %v2466, %v2500
    %v2531 = vsel %vm2272, %v2467, %v2503
    %v2532 = vsel %vm2272, %v2468, %v2506
    %v2533 = vsel %vm2272, %v2469, %v2509
    %v2534 = vsel %vm2272, %v2470, %v2512
    %v2535 = vsel %vm2272, %v2471, %v2515
    %v2536 = vsel %vm2272, %v2472, %v2518
    %v2537 = vsel %vm2272, %v2473, %v2521
    %v2538 = vld [vmem:[#allocation13] sm:$0xff]
    %v2539 = vld [vmem:[#allocation13 + $0x8] sm:$0xff]
    %v2540 = vld [vmem:[#allocation13 + $0x10] sm:$0xff]
    %v2541 = vld [vmem:[#allocation13 + $0x18] sm:$0xff]
    %v2542 = vld [vmem:[#allocation13 + $0x20] sm:$0xff]
    %v2543 = vld [vmem:[#allocation13 + $0x28] sm:$0xff]
    %v2544 = vld [vmem:[#allocation13 + $0x30] sm:$0xff]
    %v2545 = vld [vmem:[#allocation13 + $0x38] sm:$0xff]
    %v2546 = vld [vmem:[#allocation13 + $0x40] sm:$0xff]
    %v2547 = vld [vmem:[#allocation13 + $0x48] sm:$0xff]
    %v2548 = vld [vmem:[#allocation13 + $0x50] sm:$0xff]
    %v2549 = vld [vmem:[#allocation13 + $0x58] sm:$0xff]
    %v2550 = vld [vmem:[#allocation13 + $0x60] sm:$0x3]
    %vm2551 = vcmask 15360
    %2552 = vst.msk [vmem:[#allocation4] sm:$0xff] %vm2551, 0.0
    %vm2553 = vcmask 13312
    %2554 = vst.msk [vmem:[#allocation4 + $0x8] sm:$0x3f] %vm2553, 0.0
    %2555 = vst.msk [vmem:[#allocation4 + $0x10] sm:$0xff] %vm2551, 0.0
    %2556 = vst.msk [vmem:[#allocation4 + $0x18] sm:$0x3f] %vm2553, 0.0
    %2557 = vst.msk [vmem:[#allocation4 + $0x20] sm:$0xff] %vm2551, 0.0
    %2558 = vst.msk [vmem:[#allocation4 + $0x28] sm:$0x3f] %vm2553, 0.0
    %2559 = vst.msk [vmem:[#allocation4 + $0x30] sm:$0xff] %vm2551, 0.0
    %2560 = vst.msk [vmem:[#allocation4 + $0x38] sm:$0x3f] %vm2553, 0.0
    %2561 = vst.msk [vmem:[#allocation4 + $0x40] sm:$0xff] %vm2551, 0.0
    %2562 = vst.msk [vmem:[#allocation4 + $0x48] sm:$0x3f] %vm2553, 0.0
    %2563 = vst.msk [vmem:[#allocation4 + $0x50] sm:$0xff] %vm2551, 0.0
    %2564 = vst.msk [vmem:[#allocation4 + $0x58] sm:$0x3f] %vm2553, 0.0
    %2565 = vst.msk [vmem:[#allocation4 + $0x60] sm:$0xff] %vm2551, 0.0
    %2566 = vst.msk [vmem:[#allocation4 + $0x68] sm:$0x3f] %vm2553, 0.0
    %2567 = vst.msk [vmem:[#allocation4 + $0x70] sm:$0xff] %vm2551, 0.0
    %2568 = vst.msk [vmem:[#allocation4 + $0x78] sm:$0x3f] %vm2553, 0.0
    %2569 = vst.msk [vmem:[#allocation4 + $0x80] sm:$0xff] %vm2551, 0.0
    %2570 = vst.msk [vmem:[#allocation4 + $0x88] sm:$0x3f] %vm2553, 0.0
    %2571 = vst.msk [vmem:[#allocation4 + $0x90] sm:$0xff] %vm2551, 0.0
    %2572 = vst.msk [vmem:[#allocation4 + $0x98] sm:$0x3f] %vm2553, 0.0
    %2573 = vst.msk [vmem:[#allocation4 + $0xa0] sm:$0xff] %vm2551, 0.0
    %2574 = vst.msk [vmem:[#allocation4 + $0xa8] sm:$0x3f] %vm2553, 0.0
    %2575 = vst.msk [vmem:[#allocation4 + $0xb0] sm:$0xff] %vm2551, 0.0
    %2576 = vst.msk [vmem:[#allocation4 + $0xb8] sm:$0x3f] %vm2553, 0.0
    %2577 = vst.msk [vmem:[#allocation4 + $0xc0] sm:$0xff] %vm2551, 0.0
    %2578 = vst.msk [vmem:[#allocation4 + $0xc8] sm:$0x3f] %vm2553, 0.0
    %2579 = vst.msk [vmem:[#allocation4 + $0xd0] sm:$0xff] %vm2551, 0.0
    %2580 = vst.msk [vmem:[#allocation4 + $0xd8] sm:$0x3f] %vm2553, 0.0
    %2581 = vst.msk [vmem:[#allocation4 + $0xe0] sm:$0xff] %vm2551, 0.0
    %2582 = vst.msk [vmem:[#allocation4 + $0xe8] sm:$0x3f] %vm2553, 0.0
    %2583 = vst.msk [vmem:[#allocation4 + $0xf0] sm:$0xff] %vm2551, 0.0
    %2584 = vst.msk [vmem:[#allocation4 + $0xf8] sm:$0x3f] %vm2553, 0.0
    %2585 = vst.msk [vmem:[#allocation4 + $0x100] sm:$0xff] %vm2551, 0.0
    %2586 = vst.msk [vmem:[#allocation4 + $0x108] sm:$0x3f] %vm2553, 0.0
    %2587 = vst.msk [vmem:[#allocation4 + $0x110] sm:$0xff] %vm2551, 0.0
    %2588 = vst.msk [vmem:[#allocation4 + $0x118] sm:$0x3f] %vm2553, 0.0
    %2589 = vst.msk [vmem:[#allocation4 + $0x120] sm:$0xff] %vm2551, 0.0
    %2590 = vst.msk [vmem:[#allocation4 + $0x128] sm:$0x3f] %vm2553, 0.0
    %2591 = vst.msk [vmem:[#allocation4 + $0x130] sm:$0xff] %vm2551, 0.0
    %2592 = vst.msk [vmem:[#allocation4 + $0x138] sm:$0x3f] %vm2553, 0.0
    %2593 = vst.msk [vmem:[#allocation4 + $0x140] sm:$0xff] %vm2551, 0.0
    %2594 = vst.msk [vmem:[#allocation4 + $0x148] sm:$0x3f] %vm2553, 0.0
    %2595 = vst.msk [vmem:[#allocation4 + $0x150] sm:$0xff] %vm2551, 0.0
    %2596 = vst.msk [vmem:[#allocation4 + $0x158] sm:$0x3f] %vm2553, 0.0
    %2597 = vst.msk [vmem:[#allocation4 + $0x160] sm:$0xff] %vm2551, 0.0
    %2598 = vst.msk [vmem:[#allocation4 + $0x168] sm:$0x3f] %vm2553, 0.0
    %2599 = vst.msk [vmem:[#allocation4 + $0x170] sm:$0xff] %vm2551, 0.0
    %2600 = vst.msk [vmem:[#allocation4 + $0x178] sm:$0x3f] %vm2553, 0.0
    %2601 = vst.msk [vmem:[#allocation4 + $0x180] sm:$0xff] %vm2551, 0.0
    %2602 = vst.msk [vmem:[#allocation4 + $0x188] sm:$0x3f] %vm2553, 0.0
    %2603 = vst.msk [vmem:[#allocation4 + $0x190] sm:$0xff] %vm2551, 0.0
    %2604 = vst.msk [vmem:[#allocation4 + $0x198] sm:$0x3f] %vm2553, 0.0
    %2605 = vst.msk [vmem:[#allocation4 + $0x1a0] sm:$0xff] %vm2551, 0.0
    %2606 = vst.msk [vmem:[#allocation4 + $0x1a8] sm:$0x3f] %vm2553, 0.0
    %2607 = vst.msk [vmem:[#allocation4 + $0x1b0] sm:$0xff] %vm2551, 0.0
    %2608 = vst.msk [vmem:[#allocation4 + $0x1b8] sm:$0x3f] %vm2553, 0.0
    %s2609 = scalar_lea.vmem [#allocation4], 48
    %2610 = vst.msk [vmem:[%s2609 + $0x3] sm:$0xff] %vm2551, %v2522
    %2611 = vst.msk [vmem:[%s2609 + $0x13] sm:$0xff] %vm2551, %v2523
    %2612 = vst.msk [vmem:[%s2609 + $0x23] sm:$0xff] %vm2551, %v2524
    %2613 = vst.msk [vmem:[%s2609 + $0x33] sm:$0xff] %vm2551, %v2525
    %2614 = vst.msk [vmem:[%s2609 + $0x43] sm:$0xff] %vm2551, %v2526
    %2615 = vst.msk [vmem:[%s2609 + $0x53] sm:$0xff] %vm2551, %v2527
    %2616 = vst.msk [vmem:[%s2609 + $0x63] sm:$0xff] %vm2551, %v2528
    %2617 = vst.msk [vmem:[%s2609 + $0x73] sm:$0xff] %vm2551, %v2529
    %2618 = vst.msk [vmem:[%s2609 + $0xe3] sm:$0xff] %vm2551, %v2530
    %2619 = vst.msk [vmem:[%s2609 + $0xf3] sm:$0xff] %vm2551, %v2531
    %2620 = vst.msk [vmem:[%s2609 + $0x103] sm:$0xff] %vm2551, %v2532
    %2621 = vst.msk [vmem:[%s2609 + $0x113] sm:$0xff] %vm2551, %v2533
    %2622 = vst.msk [vmem:[%s2609 + $0x123] sm:$0xff] %vm2551, %v2534
    %2623 = vst.msk [vmem:[%s2609 + $0x133] sm:$0xff] %vm2551, %v2535
    %2624 = vst.msk [vmem:[%s2609 + $0x143] sm:$0xff] %vm2551, %v2536
    %2625 = vst.msk [vmem:[%s2609 + $0x153] sm:$0xff] %vm2551, %v2537
    %v2626 = vld [vmem:[#allocation4] sm:$0xff]
    %v2627 = vld [vmem:[#allocation4 + $0x10] sm:$0xff]
    %v2628 = vld [vmem:[#allocation4 + $0x20] sm:$0xff]
    %v2629 = vld [vmem:[#allocation4 + $0x30] sm:$0xff]
    %v2630 = vld [vmem:[#allocation4 + $0x40] sm:$0xff]
    %v2631 = vld [vmem:[#allocation4 + $0x50] sm:$0xff]
    %v2632 = vld [vmem:[#allocation4 + $0x60] sm:$0xff]
    %v2633 = vld [vmem:[#allocation4 + $0x70] sm:$0xff]
    %v2634 = vld [vmem:[#allocation4 + $0xe0] sm:$0xff]
    %v2635 = vld [vmem:[#allocation4 + $0xf0] sm:$0xff]
    %v2636 = vld [vmem:[#allocation4 + $0x100] sm:$0xff]
    %v2637 = vld [vmem:[#allocation4 + $0x110] sm:$0xff]
    %v2638 = vld [vmem:[#allocation4 + $0x120] sm:$0xff]
    %v2639 = vld [vmem:[#allocation4 + $0x130] sm:$0xff]
    %v2640 = vld [vmem:[#allocation4 + $0x140] sm:$0xff]
    %v2641 = vld [vmem:[#allocation4 + $0x150] sm:$0xff]
    %v2642 = vld [vmem:[#allocation4 + $0x1] sm:$0xff]
    %v2643 = vld [vmem:[#allocation4 + $0x11] sm:$0xff]
    %v2644 = vld [vmem:[#allocation4 + $0x21] sm:$0xff]
    %v2645 = vld [vmem:[#allocation4 + $0x31] sm:$0xff]
    %v2646 = vld [vmem:[#allocation4 + $0x41] sm:$0xff]
    %v2647 = vld [vmem:[#allocation4 + $0x51] sm:$0xff]
    %v2648 = vld [vmem:[#allocation4 + $0x61] sm:$0xff]
    %v2649 = vld [vmem:[#allocation4 + $0x71] sm:$0xff]
    %v2650 = vld [vmem:[#allocation4 + $0xe1] sm:$0xff]
    %v2651 = vld [vmem:[#allocation4 + $0xf1] sm:$0xff]
    %v2652 = vld [vmem:[#allocation4 + $0x101] sm:$0xff]
    %v2653 = vld [vmem:[#allocation4 + $0x111] sm:$0xff]
    %v2654 = vld [vmem:[#allocation4 + $0x121] sm:$0xff]
    %v2655 = vld [vmem:[#allocation4 + $0x131] sm:$0xff]
    %v2656 = vld [vmem:[#allocation4 + $0x141] sm:$0xff]
    %v2657 = vld [vmem:[#allocation4 + $0x151] sm:$0xff]
    %v2658 = vld [vmem:[#allocation4 + $0x2] sm:$0xff]
    %v2659 = vld [vmem:[#allocation4 + $0x12] sm:$0xff]
    %v2660 = vld [vmem:[#allocation4 + $0x22] sm:$0xff]
    %v2661 = vld [vmem:[#allocation4 + $0x32] sm:$0xff]
    %v2662 = vld [vmem:[#allocation4 + $0x42] sm:$0xff]
    %v2663 = vld [vmem:[#allocation4 + $0x52] sm:$0xff]
    %v2664 = vld [vmem:[#allocation4 + $0x62] sm:$0xff]
    %v2665 = vld [vmem:[#allocation4 + $0x72] sm:$0xff]
    %v2666 = vld [vmem:[#allocation4 + $0xe2] sm:$0xff]
    %v2667 = vld [vmem:[#allocation4 + $0xf2] sm:$0xff]
    %v2668 = vld [vmem:[#allocation4 + $0x102] sm:$0xff]
    %v2669 = vld [vmem:[#allocation4 + $0x112] sm:$0xff]
    %v2670 = vld [vmem:[#allocation4 + $0x122] sm:$0xff]
    %v2671 = vld [vmem:[#allocation4 + $0x132] sm:$0xff]
    %v2672 = vld [vmem:[#allocation4 + $0x142] sm:$0xff]
    %v2673 = vld [vmem:[#allocation4 + $0x152] sm:$0xff]
    %v2674 = vld [vmem:[#allocation4 + $0x3] sm:$0xff]
    %v2675 = vld [vmem:[#allocation4 + $0x13] sm:$0xff]
    %v2676 = vld [vmem:[#allocation4 + $0x23] sm:$0xff]
    %v2677 = vld [vmem:[#allocation4 + $0x33] sm:$0xff]
    %v2678 = vld [vmem:[#allocation4 + $0x43] sm:$0xff]
    %v2679 = vld [vmem:[#allocation4 + $0x53] sm:$0xff]
    %v2680 = vld [vmem:[#allocation4 + $0x63] sm:$0xff]
    %v2681 = vld [vmem:[#allocation4 + $0x73] sm:$0xff]
    %v2682 = vld [vmem:[#allocation4 + $0xe3] sm:$0xff]
    %v2683 = vld [vmem:[#allocation4 + $0xf3] sm:$0xff]
    %v2684 = vld [vmem:[#allocation4 + $0x103] sm:$0xff]
    %v2685 = vld [vmem:[#allocation4 + $0x113] sm:$0xff]
    %v2686 = vld [vmem:[#allocation4 + $0x123] sm:$0xff]
    %v2687 = vld [vmem:[#allocation4 + $0x133] sm:$0xff]
    %v2688 = vld [vmem:[#allocation4 + $0x143] sm:$0xff]
    %v2689 = vld [vmem:[#allocation4 + $0x153] sm:$0xff]
    %v2690 = vld [vmem:[#allocation4 + $0x4] sm:$0xff]
    %v2691 = vld [vmem:[#allocation4 + $0x14] sm:$0xff]
    %v2692 = vld [vmem:[#allocation4 + $0x24] sm:$0xff]
    %v2693 = vld [vmem:[#allocation4 + $0x34] sm:$0xff]
    %v2694 = vld [vmem:[#allocation4 + $0x44] sm:$0xff]
    %v2695 = vld [vmem:[#allocation4 + $0x54] sm:$0xff]
    %v2696 = vld [vmem:[#allocation4 + $0x64] sm:$0xff]
    %v2697 = vld [vmem:[#allocation4 + $0x74] sm:$0xff]
    %v2698 = vld [vmem:[#allocation4 + $0xe4] sm:$0xff]
    %v2699 = vld [vmem:[#allocation4 + $0xf4] sm:$0xff]
    %v2700 = vld [vmem:[#allocation4 + $0x104] sm:$0xff]
    %v2701 = vld [vmem:[#allocation4 + $0x114] sm:$0xff]
    %v2702 = vld [vmem:[#allocation4 + $0x124] sm:$0xff]
    %v2703 = vld [vmem:[#allocation4 + $0x134] sm:$0xff]
    %v2704 = vld [vmem:[#allocation4 + $0x144] sm:$0xff]
    %v2705 = vld [vmem:[#allocation4 + $0x154] sm:$0xff]
    %v2706 = vld [vmem:[#allocation4 + $0x5] sm:$0xff]
    %v2707 = vld [vmem:[#allocation4 + $0x15] sm:$0xff]
    %v2708 = vld [vmem:[#allocation4 + $0x25] sm:$0xff]
    %v2709 = vld [vmem:[#allocation4 + $0x35] sm:$0xff]
    %v2710 = vld [vmem:[#allocation4 + $0x45] sm:$0xff]
    %v2711 = vld [vmem:[#allocation4 + $0x55] sm:$0xff]
    %v2712 = vld [vmem:[#allocation4 + $0x65] sm:$0xff]
    %v2713 = vld [vmem:[#allocation4 + $0x75] sm:$0xff]
    %v2714 = vld [vmem:[#allocation4 + $0xe5] sm:$0xff]
    %v2715 = vld [vmem:[#allocation4 + $0xf5] sm:$0xff]
    %v2716 = vld [vmem:[#allocation4 + $0x105] sm:$0xff]
    %v2717 = vld [vmem:[#allocation4 + $0x115] sm:$0xff]
    %v2718 = vld [vmem:[#allocation4 + $0x125] sm:$0xff]
    %v2719 = vld [vmem:[#allocation4 + $0x135] sm:$0xff]
    %v2720 = vld [vmem:[#allocation4 + $0x145] sm:$0xff]
    %v2721 = vld [vmem:[#allocation4 + $0x155] sm:$0xff]
    %v2722 = vld [vmem:[#allocation4 + $0x6] sm:$0xff]
    %v2723 = vld [vmem:[#allocation4 + $0x16] sm:$0xff]
    %v2724 = vld [vmem:[#allocation4 + $0x26] sm:$0xff]
    %v2725 = vld [vmem:[#allocation4 + $0x36] sm:$0xff]
    %v2726 = vld [vmem:[#allocation4 + $0x46] sm:$0xff]
    %v2727 = vld [vmem:[#allocation4 + $0x56] sm:$0xff]
    %v2728 = vld [vmem:[#allocation4 + $0x66] sm:$0xff]
    %v2729 = vld [vmem:[#allocation4 + $0x76] sm:$0xff]
    %v2730 = vld [vmem:[#allocation4 + $0xe6] sm:$0xff]
    %v2731 = vld [vmem:[#allocation4 + $0xf6] sm:$0xff]
    %v2732 = vld [vmem:[#allocation4 + $0x106] sm:$0xff]
    %v2733 = vld [vmem:[#allocation4 + $0x116] sm:$0xff]
    %v2734 = vld [vmem:[#allocation4 + $0x126] sm:$0xff]
    %v2735 = vld [vmem:[#allocation4 + $0x136] sm:$0xff]
    %v2736 = vld [vmem:[#allocation4 + $0x146] sm:$0xff]
    %v2737 = vld [vmem:[#allocation4 + $0x156] sm:$0xff]
    %s2738 = scalar_lea.vmem [#allocation4], 16
    %v2739 = vld [vmem:[%s2738] sm:$0xff]
    %v2740 = vld [vmem:[%s2738 + $0x10] sm:$0xff]
    %v2741 = vld [vmem:[%s2738 + $0x20] sm:$0xff]
    %v2742 = vld [vmem:[%s2738 + $0x30] sm:$0xff]
    %v2743 = vld [vmem:[%s2738 + $0x40] sm:$0xff]
    %v2744 = vld [vmem:[%s2738 + $0x50] sm:$0xff]
    %v2745 = vld [vmem:[%s2738 + $0x60] sm:$0xff]
    %v2746 = vld [vmem:[%s2738 + $0x70] sm:$0xff]
    %v2747 = vld [vmem:[%s2738 + $0xe0] sm:$0xff]
    %v2748 = vld [vmem:[%s2738 + $0xf0] sm:$0xff]
    %v2749 = vld [vmem:[%s2738 + $0x100] sm:$0xff]
    %v2750 = vld [vmem:[%s2738 + $0x110] sm:$0xff]
    %v2751 = vld [vmem:[%s2738 + $0x120] sm:$0xff]
    %v2752 = vld [vmem:[%s2738 + $0x130] sm:$0xff]
    %v2753 = vld [vmem:[%s2738 + $0x140] sm:$0xff]
    %v2754 = vld [vmem:[%s2738 + $0x150] sm:$0xff]
    %v2755 = vld [vmem:[%s2738 + $0x1] sm:$0xff]
    %v2756 = vld [vmem:[%s2738 + $0x11] sm:$0xff]
    %v2757 = vld [vmem:[%s2738 + $0x21] sm:$0xff]
    %v2758 = vld [vmem:[%s2738 + $0x31] sm:$0xff]
    %v2759 = vld [vmem:[%s2738 + $0x41] sm:$0xff]
    %v2760 = vld [vmem:[%s2738 + $0x51] sm:$0xff]
    %v2761 = vld [vmem:[%s2738 + $0x61] sm:$0xff]
    %v2762 = vld [vmem:[%s2738 + $0x71] sm:$0xff]
    %v2763 = vld [vmem:[%s2738 + $0xe1] sm:$0xff]
    %v2764 = vld [vmem:[%s2738 + $0xf1] sm:$0xff]
    %v2765 = vld [vmem:[%s2738 + $0x101] sm:$0xff]
    %v2766 = vld [vmem:[%s2738 + $0x111] sm:$0xff]
    %v2767 = vld [vmem:[%s2738 + $0x121] sm:$0xff]
    %v2768 = vld [vmem:[%s2738 + $0x131] sm:$0xff]
    %v2769 = vld [vmem:[%s2738 + $0x141] sm:$0xff]
    %v2770 = vld [vmem:[%s2738 + $0x151] sm:$0xff]
    %v2771 = vld [vmem:[%s2738 + $0x2] sm:$0xff]
    %v2772 = vld [vmem:[%s2738 + $0x12] sm:$0xff]
    %v2773 = vld [vmem:[%s2738 + $0x22] sm:$0xff]
    %v2774 = vld [vmem:[%s2738 + $0x32] sm:$0xff]
    %v2775 = vld [vmem:[%s2738 + $0x42] sm:$0xff]
    %v2776 = vld [vmem:[%s2738 + $0x52] sm:$0xff]
    %v2777 = vld [vmem:[%s2738 + $0x62] sm:$0xff]
    %v2778 = vld [vmem:[%s2738 + $0x72] sm:$0xff]
    %v2779 = vld [vmem:[%s2738 + $0xe2] sm:$0xff]
    %v2780 = vld [vmem:[%s2738 + $0xf2] sm:$0xff]
    %v2781 = vld [vmem:[%s2738 + $0x102] sm:$0xff]
    %v2782 = vld [vmem:[%s2738 + $0x112] sm:$0xff]
    %v2783 = vld [vmem:[%s2738 + $0x122] sm:$0xff]
    %v2784 = vld [vmem:[%s2738 + $0x132] sm:$0xff]
    %v2785 = vld [vmem:[%s2738 + $0x142] sm:$0xff]
    %v2786 = vld [vmem:[%s2738 + $0x152] sm:$0xff]
    %v2787 = vld [vmem:[%s2738 + $0x3] sm:$0xff]
    %v2788 = vld [vmem:[%s2738 + $0x13] sm:$0xff]
    %v2789 = vld [vmem:[%s2738 + $0x23] sm:$0xff]
    %v2790 = vld [vmem:[%s2738 + $0x33] sm:$0xff]
    %v2791 = vld [vmem:[%s2738 + $0x43] sm:$0xff]
    %v2792 = vld [vmem:[%s2738 + $0x53] sm:$0xff]
    %v2793 = vld [vmem:[%s2738 + $0x63] sm:$0xff]
    %v2794 = vld [vmem:[%s2738 + $0x73] sm:$0xff]
    %v2795 = vld [vmem:[%s2738 + $0xe3] sm:$0xff]
    %v2796 = vld [vmem:[%s2738 + $0xf3] sm:$0xff]
    %v2797 = vld [vmem:[%s2738 + $0x103] sm:$0xff]
    %v2798 = vld [vmem:[%s2738 + $0x113] sm:$0xff]
    %v2799 = vld [vmem:[%s2738 + $0x123] sm:$0xff]
    %v2800 = vld [vmem:[%s2738 + $0x133] sm:$0xff]
    %v2801 = vld [vmem:[%s2738 + $0x143] sm:$0xff]
    %v2802 = vld [vmem:[%s2738 + $0x153] sm:$0xff]
    %v2803 = vld [vmem:[%s2738 + $0x4] sm:$0xff]
    %v2804 = vld [vmem:[%s2738 + $0x14] sm:$0xff]
    %v2805 = vld [vmem:[%s2738 + $0x24] sm:$0xff]
    %v2806 = vld [vmem:[%s2738 + $0x34] sm:$0xff]
    %v2807 = vld [vmem:[%s2738 + $0x44] sm:$0xff]
    %v2808 = vld [vmem:[%s2738 + $0x54] sm:$0xff]
    %v2809 = vld [vmem:[%s2738 + $0x64] sm:$0xff]
    %v2810 = vld [vmem:[%s2738 + $0x74] sm:$0xff]
    %v2811 = vld [vmem:[%s2738 + $0xe4] sm:$0xff]
    %v2812 = vld [vmem:[%s2738 + $0xf4] sm:$0xff]
    %v2813 = vld [vmem:[%s2738 + $0x104] sm:$0xff]
    %v2814 = vld [vmem:[%s2738 + $0x114] sm:$0xff]
    %v2815 = vld [vmem:[%s2738 + $0x124] sm:$0xff]
    %v2816 = vld [vmem:[%s2738 + $0x134] sm:$0xff]
    %v2817 = vld [vmem:[%s2738 + $0x144] sm:$0xff]
    %v2818 = vld [vmem:[%s2738 + $0x154] sm:$0xff]
    %v2819 = vld [vmem:[%s2738 + $0x5] sm:$0xff]
    %v2820 = vld [vmem:[%s2738 + $0x15] sm:$0xff]
    %v2821 = vld [vmem:[%s2738 + $0x25] sm:$0xff]
    %v2822 = vld [vmem:[%s2738 + $0x35] sm:$0xff]
    %v2823 = vld [vmem:[%s2738 + $0x45] sm:$0xff]
    %v2824 = vld [vmem:[%s2738 + $0x55] sm:$0xff]
    %v2825 = vld [vmem:[%s2738 + $0x65] sm:$0xff]
    %v2826 = vld [vmem:[%s2738 + $0x75] sm:$0xff]
    %v2827 = vld [vmem:[%s2738 + $0xe5] sm:$0xff]
    %v2828 = vld [vmem:[%s2738 + $0xf5] sm:$0xff]
    %v2829 = vld [vmem:[%s2738 + $0x105] sm:$0xff]
    %v2830 = vld [vmem:[%s2738 + $0x115] sm:$0xff]
    %v2831 = vld [vmem:[%s2738 + $0x125] sm:$0xff]
    %v2832 = vld [vmem:[%s2738 + $0x135] sm:$0xff]
    %v2833 = vld [vmem:[%s2738 + $0x145] sm:$0xff]
    %v2834 = vld [vmem:[%s2738 + $0x155] sm:$0xff]
    %v2835 = vld [vmem:[%s2738 + $0x6] sm:$0xff]
    %v2836 = vld [vmem:[%s2738 + $0x16] sm:$0xff]
    %v2837 = vld [vmem:[%s2738 + $0x26] sm:$0xff]
    %v2838 = vld [vmem:[%s2738 + $0x36] sm:$0xff]
    %v2839 = vld [vmem:[%s2738 + $0x46] sm:$0xff]
    %v2840 = vld [vmem:[%s2738 + $0x56] sm:$0xff]
    %v2841 = vld [vmem:[%s2738 + $0x66] sm:$0xff]
    %v2842 = vld [vmem:[%s2738 + $0x76] sm:$0xff]
    %v2843 = vld [vmem:[%s2738 + $0xe6] sm:$0xff]
    %v2844 = vld [vmem:[%s2738 + $0xf6] sm:$0xff]
    %v2845 = vld [vmem:[%s2738 + $0x106] sm:$0xff]
    %v2846 = vld [vmem:[%s2738 + $0x116] sm:$0xff]
    %v2847 = vld [vmem:[%s2738 + $0x126] sm:$0xff]
    %v2848 = vld [vmem:[%s2738 + $0x136] sm:$0xff]
    %v2849 = vld [vmem:[%s2738 + $0x146] sm:$0xff]
    %v2850 = vld [vmem:[%s2738 + $0x156] sm:$0xff]
    %s2851 = scalar_lea.vmem [#allocation4], 32
    %v2852 = vld [vmem:[%s2851] sm:$0xff]
    %v2853 = vld [vmem:[%s2851 + $0x10] sm:$0xff]
    %v2854 = vld [vmem:[%s2851 + $0x20] sm:$0xff]
    %v2855 = vld [vmem:[%s2851 + $0x30] sm:$0xff]
    %v2856 = vld [vmem:[%s2851 + $0x40] sm:$0xff]
    %v2857 = vld [vmem:[%s2851 + $0x50] sm:$0xff]
    %v2858 = vld [vmem:[%s2851 + $0x60] sm:$0xff]
    %v2859 = vld [vmem:[%s2851 + $0x70] sm:$0xff]
    %v2860 = vld [vmem:[%s2851 + $0xe0] sm:$0xff]
    %v2861 = vld [vmem:[%s2851 + $0xf0] sm:$0xff]
    %v2862 = vld [vmem:[%s2851 + $0x100] sm:$0xff]
    %v2863 = vld [vmem:[%s2851 + $0x110] sm:$0xff]
    %v2864 = vld [vmem:[%s2851 + $0x120] sm:$0xff]
    %v2865 = vld [vmem:[%s2851 + $0x130] sm:$0xff]
    %v2866 = vld [vmem:[%s2851 + $0x140] sm:$0xff]
    %v2867 = vld [vmem:[%s2851 + $0x150] sm:$0xff]
    %v2868 = vld [vmem:[%s2851 + $0x1] sm:$0xff]
    %v2869 = vld [vmem:[%s2851 + $0x11] sm:$0xff]
    %v2870 = vld [vmem:[%s2851 + $0x21] sm:$0xff]
    %v2871 = vld [vmem:[%s2851 + $0x31] sm:$0xff]
    %v2872 = vld [vmem:[%s2851 + $0x41] sm:$0xff]
    %v2873 = vld [vmem:[%s2851 + $0x51] sm:$0xff]
    %v2874 = vld [vmem:[%s2851 + $0x61] sm:$0xff]
    %v2875 = vld [vmem:[%s2851 + $0x71] sm:$0xff]
    %v2876 = vld [vmem:[%s2851 + $0xe1] sm:$0xff]
    %v2877 = vld [vmem:[%s2851 + $0xf1] sm:$0xff]
    %v2878 = vld [vmem:[%s2851 + $0x101] sm:$0xff]
    %v2879 = vld [vmem:[%s2851 + $0x111] sm:$0xff]
    %v2880 = vld [vmem:[%s2851 + $0x121] sm:$0xff]
    %v2881 = vld [vmem:[%s2851 + $0x131] sm:$0xff]
    %v2882 = vld [vmem:[%s2851 + $0x141] sm:$0xff]
    %v2883 = vld [vmem:[%s2851 + $0x151] sm:$0xff]
    %v2884 = vld [vmem:[%s2851 + $0x2] sm:$0xff]
    %v2885 = vld [vmem:[%s2851 + $0x12] sm:$0xff]
    %v2886 = vld [vmem:[%s2851 + $0x22] sm:$0xff]
    %v2887 = vld [vmem:[%s2851 + $0x32] sm:$0xff]
    %v2888 = vld [vmem:[%s2851 + $0x42] sm:$0xff]
    %v2889 = vld [vmem:[%s2851 + $0x52] sm:$0xff]
    %v2890 = vld [vmem:[%s2851 + $0x62] sm:$0xff]
    %v2891 = vld [vmem:[%s2851 + $0x72] sm:$0xff]
    %v2892 = vld [vmem:[%s2851 + $0xe2] sm:$0xff]
    %v2893 = vld [vmem:[%s2851 + $0xf2] sm:$0xff]
    %v2894 = vld [vmem:[%s2851 + $0x102] sm:$0xff]
    %v2895 = vld [vmem:[%s2851 + $0x112] sm:$0xff]
    %v2896 = vld [vmem:[%s2851 + $0x122] sm:$0xff]
    %v2897 = vld [vmem:[%s2851 + $0x132] sm:$0xff]
    %v2898 = vld [vmem:[%s2851 + $0x142] sm:$0xff]
    %v2899 = vld [vmem:[%s2851 + $0x152] sm:$0xff]
    %v2900 = vld [vmem:[%s2851 + $0x3] sm:$0xff]
    %v2901 = vld [vmem:[%s2851 + $0x13] sm:$0xff]
    %v2902 = vld [vmem:[%s2851 + $0x23] sm:$0xff]
    %v2903 = vld [vmem:[%s2851 + $0x33] sm:$0xff]
    %v2904 = vld [vmem:[%s2851 + $0x43] sm:$0xff]
    %v2905 = vld [vmem:[%s2851 + $0x53] sm:$0xff]
    %v2906 = vld [vmem:[%s2851 + $0x63] sm:$0xff]
    %v2907 = vld [vmem:[%s2851 + $0x73] sm:$0xff]
    %v2908 = vld [vmem:[%s2851 + $0xe3] sm:$0xff]
    %v2909 = vld [vmem:[%s2851 + $0xf3] sm:$0xff]
    %v2910 = vld [vmem:[%s2851 + $0x103] sm:$0xff]
    %v2911 = vld [vmem:[%s2851 + $0x113] sm:$0xff]
    %v2912 = vld [vmem:[%s2851 + $0x123] sm:$0xff]
    %v2913 = vld [vmem:[%s2851 + $0x133] sm:$0xff]
    %v2914 = vld [vmem:[%s2851 + $0x143] sm:$0xff]
    %v2915 = vld [vmem:[%s2851 + $0x153] sm:$0xff]
    %v2916 = vld [vmem:[%s2851 + $0x4] sm:$0xff]
    %v2917 = vld [vmem:[%s2851 + $0x14] sm:$0xff]
    %v2918 = vld [vmem:[%s2851 + $0x24] sm:$0xff]
    %v2919 = vld [vmem:[%s2851 + $0x34] sm:$0xff]
    %v2920 = vld [vmem:[%s2851 + $0x44] sm:$0xff]
    %v2921 = vld [vmem:[%s2851 + $0x54] sm:$0xff]
    %v2922 = vld [vmem:[%s2851 + $0x64] sm:$0xff]
    %v2923 = vld [vmem:[%s2851 + $0x74] sm:$0xff]
    %v2924 = vld [vmem:[%s2851 + $0xe4] sm:$0xff]
    %v2925 = vld [vmem:[%s2851 + $0xf4] sm:$0xff]
    %v2926 = vld [vmem:[%s2851 + $0x104] sm:$0xff]
    %v2927 = vld [vmem:[%s2851 + $0x114] sm:$0xff]
    %v2928 = vld [vmem:[%s2851 + $0x124] sm:$0xff]
    %v2929 = vld [vmem:[%s2851 + $0x134] sm:$0xff]
    %v2930 = vld [vmem:[%s2851 + $0x144] sm:$0xff]
    %v2931 = vld [vmem:[%s2851 + $0x154] sm:$0xff]
    %v2932 = vld [vmem:[%s2851 + $0x5] sm:$0xff]
    %v2933 = vld [vmem:[%s2851 + $0x15] sm:$0xff]
    %v2934 = vld [vmem:[%s2851 + $0x25] sm:$0xff]
    %v2935 = vld [vmem:[%s2851 + $0x35] sm:$0xff]
    %v2936 = vld [vmem:[%s2851 + $0x45] sm:$0xff]
    %v2937 = vld [vmem:[%s2851 + $0x55] sm:$0xff]
    %v2938 = vld [vmem:[%s2851 + $0x65] sm:$0xff]
    %v2939 = vld [vmem:[%s2851 + $0x75] sm:$0xff]
    %v2940 = vld [vmem:[%s2851 + $0xe5] sm:$0xff]
    %v2941 = vld [vmem:[%s2851 + $0xf5] sm:$0xff]
    %v2942 = vld [vmem:[%s2851 + $0x105] sm:$0xff]
    %v2943 = vld [vmem:[%s2851 + $0x115] sm:$0xff]
    %v2944 = vld [vmem:[%s2851 + $0x125] sm:$0xff]
    %v2945 = vld [vmem:[%s2851 + $0x135] sm:$0xff]
    %v2946 = vld [vmem:[%s2851 + $0x145] sm:$0xff]
    %v2947 = vld [vmem:[%s2851 + $0x155] sm:$0xff]
    %v2948 = vld [vmem:[%s2851 + $0x6] sm:$0xff]
    %v2949 = vld [vmem:[%s2851 + $0x16] sm:$0xff]
    %v2950 = vld [vmem:[%s2851 + $0x26] sm:$0xff]
    %v2951 = vld [vmem:[%s2851 + $0x36] sm:$0xff]
    %v2952 = vld [vmem:[%s2851 + $0x46] sm:$0xff]
    %v2953 = vld [vmem:[%s2851 + $0x56] sm:$0xff]
    %v2954 = vld [vmem:[%s2851 + $0x66] sm:$0xff]
    %v2955 = vld [vmem:[%s2851 + $0x76] sm:$0xff]
    %v2956 = vld [vmem:[%s2851 + $0xe6] sm:$0xff]
    %v2957 = vld [vmem:[%s2851 + $0xf6] sm:$0xff]
    %v2958 = vld [vmem:[%s2851 + $0x106] sm:$0xff]
    %v2959 = vld [vmem:[%s2851 + $0x116] sm:$0xff]
    %v2960 = vld [vmem:[%s2851 + $0x126] sm:$0xff]
    %v2961 = vld [vmem:[%s2851 + $0x136] sm:$0xff]
    %v2962 = vld [vmem:[%s2851 + $0x146] sm:$0xff]
    %v2963 = vld [vmem:[%s2851 + $0x156] sm:$0xff]
    %v2964 = vld [vmem:[%s2609] sm:$0xff]
    %v2965 = vld [vmem:[%s2609 + $0x10] sm:$0xff]
    %v2966 = vld [vmem:[%s2609 + $0x20] sm:$0xff]
    %v2967 = vld [vmem:[%s2609 + $0x30] sm:$0xff]
    %v2968 = vld [vmem:[%s2609 + $0x40] sm:$0xff]
    %v2969 = vld [vmem:[%s2609 + $0x50] sm:$0xff]
    %v2970 = vld [vmem:[%s2609 + $0x60] sm:$0xff]
    %v2971 = vld [vmem:[%s2609 + $0x70] sm:$0xff]
    %v2972 = vld [vmem:[%s2609 + $0xe0] sm:$0xff]
    %v2973 = vld [vmem:[%s2609 + $0xf0] sm:$0xff]
    %v2974 = vld [vmem:[%s2609 + $0x100] sm:$0xff]
    %v2975 = vld [vmem:[%s2609 + $0x110] sm:$0xff]
    %v2976 = vld [vmem:[%s2609 + $0x120] sm:$0xff]
    %v2977 = vld [vmem:[%s2609 + $0x130] sm:$0xff]
    %v2978 = vld [vmem:[%s2609 + $0x140] sm:$0xff]
    %v2979 = vld [vmem:[%s2609 + $0x150] sm:$0xff]
    %v2980 = vld [vmem:[%s2609 + $0x1] sm:$0xff]
    %v2981 = vld [vmem:[%s2609 + $0x11] sm:$0xff]
    %v2982 = vld [vmem:[%s2609 + $0x21] sm:$0xff]
    %v2983 = vld [vmem:[%s2609 + $0x31] sm:$0xff]
    %v2984 = vld [vmem:[%s2609 + $0x41] sm:$0xff]
    %v2985 = vld [vmem:[%s2609 + $0x51] sm:$0xff]
    %v2986 = vld [vmem:[%s2609 + $0x61] sm:$0xff]
    %v2987 = vld [vmem:[%s2609 + $0x71] sm:$0xff]
    %v2988 = vld [vmem:[%s2609 + $0xe1] sm:$0xff]
    %v2989 = vld [vmem:[%s2609 + $0xf1] sm:$0xff]
    %v2990 = vld [vmem:[%s2609 + $0x101] sm:$0xff]
    %v2991 = vld [vmem:[%s2609 + $0x111] sm:$0xff]
    %v2992 = vld [vmem:[%s2609 + $0x121] sm:$0xff]
    %v2993 = vld [vmem:[%s2609 + $0x131] sm:$0xff]
    %v2994 = vld [vmem:[%s2609 + $0x141] sm:$0xff]
    %v2995 = vld [vmem:[%s2609 + $0x151] sm:$0xff]
    %v2996 = vld [vmem:[%s2609 + $0x2] sm:$0xff]
    %v2997 = vld [vmem:[%s2609 + $0x12] sm:$0xff]
    %v2998 = vld [vmem:[%s2609 + $0x22] sm:$0xff]
    %v2999 = vld [vmem:[%s2609 + $0x32] sm:$0xff]
    %v3000 = vld [vmem:[%s2609 + $0x42] sm:$0xff]
    %v3001 = vld [vmem:[%s2609 + $0x52] sm:$0xff]
    %v3002 = vld [vmem:[%s2609 + $0x62] sm:$0xff]
    %v3003 = vld [vmem:[%s2609 + $0x72] sm:$0xff]
    %v3004 = vld [vmem:[%s2609 + $0xe2] sm:$0xff]
    %v3005 = vld [vmem:[%s2609 + $0xf2] sm:$0xff]
    %v3006 = vld [vmem:[%s2609 + $0x102] sm:$0xff]
    %v3007 = vld [vmem:[%s2609 + $0x112] sm:$0xff]
    %v3008 = vld [vmem:[%s2609 + $0x122] sm:$0xff]
    %v3009 = vld [vmem:[%s2609 + $0x132] sm:$0xff]
    %v3010 = vld [vmem:[%s2609 + $0x142] sm:$0xff]
    %v3011 = vld [vmem:[%s2609 + $0x152] sm:$0xff]
    %v3012 = vld [vmem:[%s2609 + $0x3] sm:$0xff]
    %v3013 = vld [vmem:[%s2609 + $0x13] sm:$0xff]
    %v3014 = vld [vmem:[%s2609 + $0x23] sm:$0xff]
    %v3015 = vld [vmem:[%s2609 + $0x33] sm:$0xff]
    %v3016 = vld [vmem:[%s2609 + $0x43] sm:$0xff]
    %v3017 = vld [vmem:[%s2609 + $0x53] sm:$0xff]
    %v3018 = vld [vmem:[%s2609 + $0x63] sm:$0xff]
    %v3019 = vld [vmem:[%s2609 + $0x73] sm:$0xff]
    %v3020 = vld [vmem:[%s2609 + $0xe3] sm:$0xff]
    %v3021 = vld [vmem:[%s2609 + $0xf3] sm:$0xff]
    %v3022 = vld [vmem:[%s2609 + $0x103] sm:$0xff]
    %v3023 = vld [vmem:[%s2609 + $0x113] sm:$0xff]
    %v3024 = vld [vmem:[%s2609 + $0x123] sm:$0xff]
    %v3025 = vld [vmem:[%s2609 + $0x133] sm:$0xff]
    %v3026 = vld [vmem:[%s2609 + $0x143] sm:$0xff]
    %v3027 = vld [vmem:[%s2609 + $0x153] sm:$0xff]
    %v3028 = vld [vmem:[%s2609 + $0x4] sm:$0xff]
    %v3029 = vld [vmem:[%s2609 + $0x14] sm:$0xff]
    %v3030 = vld [vmem:[%s2609 + $0x24] sm:$0xff]
    %v3031 = vld [vmem:[%s2609 + $0x34] sm:$0xff]
    %v3032 = vld [vmem:[%s2609 + $0x44] sm:$0xff]
    %v3033 = vld [vmem:[%s2609 + $0x54] sm:$0xff]
    %v3034 = vld [vmem:[%s2609 + $0x64] sm:$0xff]
    %v3035 = vld [vmem:[%s2609 + $0x74] sm:$0xff]
    %v3036 = vld [vmem:[%s2609 + $0xe4] sm:$0xff]
    %v3037 = vld [vmem:[%s2609 + $0xf4] sm:$0xff]
    %v3038 = vld [vmem:[%s2609 + $0x104] sm:$0xff]
    %v3039 = vld [vmem:[%s2609 + $0x114] sm:$0xff]
    %v3040 = vld [vmem:[%s2609 + $0x124] sm:$0xff]
    %v3041 = vld [vmem:[%s2609 + $0x134] sm:$0xff]
    %v3042 = vld [vmem:[%s2609 + $0x144] sm:$0xff]
    %v3043 = vld [vmem:[%s2609 + $0x154] sm:$0xff]
    %v3044 = vld [vmem:[%s2609 + $0x5] sm:$0xff]
    %v3045 = vld [vmem:[%s2609 + $0x15] sm:$0xff]
    %v3046 = vld [vmem:[%s2609 + $0x25] sm:$0xff]
    %v3047 = vld [vmem:[%s2609 + $0x35] sm:$0xff]
    %v3048 = vld [vmem:[%s2609 + $0x45] sm:$0xff]
    %v3049 = vld [vmem:[%s2609 + $0x55] sm:$0xff]
    %v3050 = vld [vmem:[%s2609 + $0x65] sm:$0xff]
    %v3051 = vld [vmem:[%s2609 + $0x75] sm:$0xff]
    %v3052 = vld [vmem:[%s2609 + $0xe5] sm:$0xff]
    %v3053 = vld [vmem:[%s2609 + $0xf5] sm:$0xff]
    %v3054 = vld [vmem:[%s2609 + $0x105] sm:$0xff]
    %v3055 = vld [vmem:[%s2609 + $0x115] sm:$0xff]
    %v3056 = vld [vmem:[%s2609 + $0x125] sm:$0xff]
    %v3057 = vld [vmem:[%s2609 + $0x135] sm:$0xff]
    %v3058 = vld [vmem:[%s2609 + $0x145] sm:$0xff]
    %v3059 = vld [vmem:[%s2609 + $0x155] sm:$0xff]
    %v3060 = vld [vmem:[%s2609 + $0x6] sm:$0xff]
    %v3061 = vld [vmem:[%s2609 + $0x16] sm:$0xff]
    %v3062 = vld [vmem:[%s2609 + $0x26] sm:$0xff]
    %v3063 = vld [vmem:[%s2609 + $0x36] sm:$0xff]
    %v3064 = vld [vmem:[%s2609 + $0x46] sm:$0xff]
    %v3065 = vld [vmem:[%s2609 + $0x56] sm:$0xff]
    %v3066 = vld [vmem:[%s2609 + $0x66] sm:$0xff]
    %v3067 = vld [vmem:[%s2609 + $0x76] sm:$0xff]
    %v3068 = vld [vmem:[%s2609 + $0xe6] sm:$0xff]
    %v3069 = vld [vmem:[%s2609 + $0xf6] sm:$0xff]
    %v3070 = vld [vmem:[%s2609 + $0x106] sm:$0xff]
    %v3071 = vld [vmem:[%s2609 + $0x116] sm:$0xff]
    %v3072 = vld [vmem:[%s2609 + $0x126] sm:$0xff]
    %v3073 = vld [vmem:[%s2609 + $0x136] sm:$0xff]
    %v3074 = vld [vmem:[%s2609 + $0x146] sm:$0xff]
    %v3075 = vld [vmem:[%s2609 + $0x156] sm:$0xff]
    %s3076 = scalar_lea.vmem [#allocation4], 64
    %v3077 = vld [vmem:[%s3076] sm:$0xff]
    %v3078 = vld [vmem:[%s3076 + $0x10] sm:$0xff]
    %v3079 = vld [vmem:[%s3076 + $0x20] sm:$0xff]
    %v3080 = vld [vmem:[%s3076 + $0x30] sm:$0xff]
    %v3081 = vld [vmem:[%s3076 + $0x40] sm:$0xff]
    %v3082 = vld [vmem:[%s3076 + $0x50] sm:$0xff]
    %v3083 = vld [vmem:[%s3076 + $0x60] sm:$0xff]
    %v3084 = vld [vmem:[%s3076 + $0x70] sm:$0xff]
    %v3085 = vld [vmem:[%s3076 + $0xe0] sm:$0xff]
    %v3086 = vld [vmem:[%s3076 + $0xf0] sm:$0xff]
    %v3087 = vld [vmem:[%s3076 + $0x100] sm:$0xff]
    %v3088 = vld [vmem:[%s3076 + $0x110] sm:$0xff]
    %v3089 = vld [vmem:[%s3076 + $0x120] sm:$0xff]
    %v3090 = vld [vmem:[%s3076 + $0x130] sm:$0xff]
    %v3091 = vld [vmem:[%s3076 + $0x140] sm:$0xff]
    %v3092 = vld [vmem:[%s3076 + $0x150] sm:$0xff]
    %v3093 = vld [vmem:[%s3076 + $0x1] sm:$0xff]
    %v3094 = vld [vmem:[%s3076 + $0x11] sm:$0xff]
    %v3095 = vld [vmem:[%s3076 + $0x21] sm:$0xff]
    %v3096 = vld [vmem:[%s3076 + $0x31] sm:$0xff]
    %v3097 = vld [vmem:[%s3076 + $0x41] sm:$0xff]
    %v3098 = vld [vmem:[%s3076 + $0x51] sm:$0xff]
    %v3099 = vld [vmem:[%s3076 + $0x61] sm:$0xff]
    %v3100 = vld [vmem:[%s3076 + $0x71] sm:$0xff]
    %v3101 = vld [vmem:[%s3076 + $0xe1] sm:$0xff]
    %v3102 = vld [vmem:[%s3076 + $0xf1] sm:$0xff]
    %v3103 = vld [vmem:[%s3076 + $0x101] sm:$0xff]
    %v3104 = vld [vmem:[%s3076 + $0x111] sm:$0xff]
    %v3105 = vld [vmem:[%s3076 + $0x121] sm:$0xff]
    %v3106 = vld [vmem:[%s3076 + $0x131] sm:$0xff]
    %v3107 = vld [vmem:[%s3076 + $0x141] sm:$0xff]
    %v3108 = vld [vmem:[%s3076 + $0x151] sm:$0xff]
    %v3109 = vld [vmem:[%s3076 + $0x2] sm:$0xff]
    %v3110 = vld [vmem:[%s3076 + $0x12] sm:$0xff]
    %v3111 = vld [vmem:[%s3076 + $0x22] sm:$0xff]
    %v3112 = vld [vmem:[%s3076 + $0x32] sm:$0xff]
    %v3113 = vld [vmem:[%s3076 + $0x42] sm:$0xff]
    %v3114 = vld [vmem:[%s3076 + $0x52] sm:$0xff]
    %v3115 = vld [vmem:[%s3076 + $0x62] sm:$0xff]
    %v3116 = vld [vmem:[%s3076 + $0x72] sm:$0xff]
    %v3117 = vld [vmem:[%s3076 + $0xe2] sm:$0xff]
    %v3118 = vld [vmem:[%s3076 + $0xf2] sm:$0xff]
    %v3119 = vld [vmem:[%s3076 + $0x102] sm:$0xff]
    %v3120 = vld [vmem:[%s3076 + $0x112] sm:$0xff]
    %v3121 = vld [vmem:[%s3076 + $0x122] sm:$0xff]
    %v3122 = vld [vmem:[%s3076 + $0x132] sm:$0xff]
    %v3123 = vld [vmem:[%s3076 + $0x142] sm:$0xff]
    %v3124 = vld [vmem:[%s3076 + $0x152] sm:$0xff]
    %v3125 = vld [vmem:[%s3076 + $0x3] sm:$0xff]
    %v3126 = vld [vmem:[%s3076 + $0x13] sm:$0xff]
    %v3127 = vld [vmem:[%s3076 + $0x23] sm:$0xff]
    %v3128 = vld [vmem:[%s3076 + $0x33] sm:$0xff]
    %v3129 = vld [vmem:[%s3076 + $0x43] sm:$0xff]
    %v3130 = vld [vmem:[%s3076 + $0x53] sm:$0xff]
    %v3131 = vld [vmem:[%s3076 + $0x63] sm:$0xff]
    %v3132 = vld [vmem:[%s3076 + $0x73] sm:$0xff]
    %v3133 = vld [vmem:[%s3076 + $0xe3] sm:$0xff]
    %v3134 = vld [vmem:[%s3076 + $0xf3] sm:$0xff]
    %v3135 = vld [vmem:[%s3076 + $0x103] sm:$0xff]
    %v3136 = vld [vmem:[%s3076 + $0x113] sm:$0xff]
    %v3137 = vld [vmem:[%s3076 + $0x123] sm:$0xff]
    %v3138 = vld [vmem:[%s3076 + $0x133] sm:$0xff]
    %v3139 = vld [vmem:[%s3076 + $0x143] sm:$0xff]
    %v3140 = vld [vmem:[%s3076 + $0x153] sm:$0xff]
    %v3141 = vld [vmem:[%s3076 + $0x4] sm:$0xff]
    %v3142 = vld [vmem:[%s3076 + $0x14] sm:$0xff]
    %v3143 = vld [vmem:[%s3076 + $0x24] sm:$0xff]
    %v3144 = vld [vmem:[%s3076 + $0x34] sm:$0xff]
    %v3145 = vld [vmem:[%s3076 + $0x44] sm:$0xff]
    %v3146 = vld [vmem:[%s3076 + $0x54] sm:$0xff]
    %v3147 = vld [vmem:[%s3076 + $0x64] sm:$0xff]
    %v3148 = vld [vmem:[%s3076 + $0x74] sm:$0xff]
    %v3149 = vld [vmem:[%s3076 + $0xe4] sm:$0xff]
    %v3150 = vld [vmem:[%s3076 + $0xf4] sm:$0xff]
    %v3151 = vld [vmem:[%s3076 + $0x104] sm:$0xff]
    %v3152 = vld [vmem:[%s3076 + $0x114] sm:$0xff]
    %v3153 = vld [vmem:[%s3076 + $0x124] sm:$0xff]
    %v3154 = vld [vmem:[%s3076 + $0x134] sm:$0xff]
    %v3155 = vld [vmem:[%s3076 + $0x144] sm:$0xff]
    %v3156 = vld [vmem:[%s3076 + $0x154] sm:$0xff]
    %v3157 = vld [vmem:[%s3076 + $0x5] sm:$0xff]
    %v3158 = vld [vmem:[%s3076 + $0x15] sm:$0xff]
    %v3159 = vld [vmem:[%s3076 + $0x25] sm:$0xff]
    %v3160 = vld [vmem:[%s3076 + $0x35] sm:$0xff]
    %v3161 = vld [vmem:[%s3076 + $0x45] sm:$0xff]
    %v3162 = vld [vmem:[%s3076 + $0x55] sm:$0xff]
    %v3163 = vld [vmem:[%s3076 + $0x65] sm:$0xff]
    %v3164 = vld [vmem:[%s3076 + $0x75] sm:$0xff]
    %v3165 = vld [vmem:[%s3076 + $0xe5] sm:$0xff]
    %v3166 = vld [vmem:[%s3076 + $0xf5] sm:$0xff]
    %v3167 = vld [vmem:[%s3076 + $0x105] sm:$0xff]
    %v3168 = vld [vmem:[%s3076 + $0x115] sm:$0xff]
    %v3169 = vld [vmem:[%s3076 + $0x125] sm:$0xff]
    %v3170 = vld [vmem:[%s3076 + $0x135] sm:$0xff]
    %v3171 = vld [vmem:[%s3076 + $0x145] sm:$0xff]
    %v3172 = vld [vmem:[%s3076 + $0x155] sm:$0xff]
    %v3173 = vld [vmem:[%s3076 + $0x6] sm:$0xff]
    %v3174 = vld [vmem:[%s3076 + $0x16] sm:$0xff]
    %v3175 = vld [vmem:[%s3076 + $0x26] sm:$0xff]
    %v3176 = vld [vmem:[%s3076 + $0x36] sm:$0xff]
    %v3177 = vld [vmem:[%s3076 + $0x46] sm:$0xff]
    %v3178 = vld [vmem:[%s3076 + $0x56] sm:$0xff]
    %v3179 = vld [vmem:[%s3076 + $0x66] sm:$0xff]
    %v3180 = vld [vmem:[%s3076 + $0x76] sm:$0xff]
    %v3181 = vld [vmem:[%s3076 + $0xe6] sm:$0xff]
    %v3182 = vld [vmem:[%s3076 + $0xf6] sm:$0xff]
    %v3183 = vld [vmem:[%s3076 + $0x106] sm:$0xff]
    %v3184 = vld [vmem:[%s3076 + $0x116] sm:$0xff]
    %v3185 = vld [vmem:[%s3076 + $0x126] sm:$0xff]
    %v3186 = vld [vmem:[%s3076 + $0x136] sm:$0xff]
    %v3187 = vld [vmem:[%s3076 + $0x146] sm:$0xff]
    %v3188 = vld [vmem:[%s3076 + $0x156] sm:$0xff]
    %s3189 = scalar_lea.vmem [#allocation4], 80
    %v3190 = vld [vmem:[%s3189] sm:$0xff]
    %v3191 = vld [vmem:[%s3189 + $0x10] sm:$0xff]
    %v3192 = vld [vmem:[%s3189 + $0x20] sm:$0xff]
    %v3193 = vld [vmem:[%s3189 + $0x30] sm:$0xff]
    %v3194 = vld [vmem:[%s3189 + $0x40] sm:$0xff]
    %v3195 = vld [vmem:[%s3189 + $0x50] sm:$0xff]
    %v3196 = vld [vmem:[%s3189 + $0x60] sm:$0xff]
    %v3197 = vld [vmem:[%s3189 + $0x70] sm:$0xff]
    %v3198 = vld [vmem:[%s3189 + $0xe0] sm:$0xff]
    %v3199 = vld [vmem:[%s3189 + $0xf0] sm:$0xff]
    %v3200 = vld [vmem:[%s3189 + $0x100] sm:$0xff]
    %v3201 = vld [vmem:[%s3189 + $0x110] sm:$0xff]
    %v3202 = vld [vmem:[%s3189 + $0x120] sm:$0xff]
    %v3203 = vld [vmem:[%s3189 + $0x130] sm:$0xff]
    %v3204 = vld [vmem:[%s3189 + $0x140] sm:$0xff]
    %v3205 = vld [vmem:[%s3189 + $0x150] sm:$0xff]
    %v3206 = vld [vmem:[%s3189 + $0x1] sm:$0xff]
    %v3207 = vld [vmem:[%s3189 + $0x11] sm:$0xff]
    %v3208 = vld [vmem:[%s3189 + $0x21] sm:$0xff]
    %v3209 = vld [vmem:[%s3189 + $0x31] sm:$0xff]
    %v3210 = vld [vmem:[%s3189 + $0x41] sm:$0xff]
    %v3211 = vld [vmem:[%s3189 + $0x51] sm:$0xff]
    %v3212 = vld [vmem:[%s3189 + $0x61] sm:$0xff]
    %v3213 = vld [vmem:[%s3189 + $0x71] sm:$0xff]
    %v3214 = vld [vmem:[%s3189 + $0xe1] sm:$0xff]
    %v3215 = vld [vmem:[%s3189 + $0xf1] sm:$0xff]
    %v3216 = vld [vmem:[%s3189 + $0x101] sm:$0xff]
    %v3217 = vld [vmem:[%s3189 + $0x111] sm:$0xff]
    %v3218 = vld [vmem:[%s3189 + $0x121] sm:$0xff]
    %v3219 = vld [vmem:[%s3189 + $0x131] sm:$0xff]
    %v3220 = vld [vmem:[%s3189 + $0x141] sm:$0xff]
    %v3221 = vld [vmem:[%s3189 + $0x151] sm:$0xff]
    %v3222 = vld [vmem:[%s3189 + $0x2] sm:$0xff]
    %v3223 = vld [vmem:[%s3189 + $0x12] sm:$0xff]
    %v3224 = vld [vmem:[%s3189 + $0x22] sm:$0xff]
    %v3225 = vld [vmem:[%s3189 + $0x32] sm:$0xff]
    %v3226 = vld [vmem:[%s3189 + $0x42] sm:$0xff]
    %v3227 = vld [vmem:[%s3189 + $0x52] sm:$0xff]
    %v3228 = vld [vmem:[%s3189 + $0x62] sm:$0xff]
    %v3229 = vld [vmem:[%s3189 + $0x72] sm:$0xff]
    %v3230 = vld [vmem:[%s3189 + $0xe2] sm:$0xff]
    %v3231 = vld [vmem:[%s3189 + $0xf2] sm:$0xff]
    %v3232 = vld [vmem:[%s3189 + $0x102] sm:$0xff]
    %v3233 = vld [vmem:[%s3189 + $0x112] sm:$0xff]
    %v3234 = vld [vmem:[%s3189 + $0x122] sm:$0xff]
    %v3235 = vld [vmem:[%s3189 + $0x132] sm:$0xff]
    %v3236 = vld [vmem:[%s3189 + $0x142] sm:$0xff]
    %v3237 = vld [vmem:[%s3189 + $0x152] sm:$0xff]
    %v3238 = vld [vmem:[%s3189 + $0x3] sm:$0xff]
    %v3239 = vld [vmem:[%s3189 + $0x13] sm:$0xff]
    %v3240 = vld [vmem:[%s3189 + $0x23] sm:$0xff]
    %v3241 = vld [vmem:[%s3189 + $0x33] sm:$0xff]
    %v3242 = vld [vmem:[%s3189 + $0x43] sm:$0xff]
    %v3243 = vld [vmem:[%s3189 + $0x53] sm:$0xff]
    %v3244 = vld [vmem:[%s3189 + $0x63] sm:$0xff]
    %v3245 = vld [vmem:[%s3189 + $0x73] sm:$0xff]
    %v3246 = vld [vmem:[%s3189 + $0xe3] sm:$0xff]
    %v3247 = vld [vmem:[%s3189 + $0xf3] sm:$0xff]
    %v3248 = vld [vmem:[%s3189 + $0x103] sm:$0xff]
    %v3249 = vld [vmem:[%s3189 + $0x113] sm:$0xff]
    %v3250 = vld [vmem:[%s3189 + $0x123] sm:$0xff]
    %v3251 = vld [vmem:[%s3189 + $0x133] sm:$0xff]
    %v3252 = vld [vmem:[%s3189 + $0x143] sm:$0xff]
    %v3253 = vld [vmem:[%s3189 + $0x153] sm:$0xff]
    %v3254 = vld [vmem:[%s3189 + $0x4] sm:$0xff]
    %v3255 = vld [vmem:[%s3189 + $0x14] sm:$0xff]
    %v3256 = vld [vmem:[%s3189 + $0x24] sm:$0xff]
    %v3257 = vld [vmem:[%s3189 + $0x34] sm:$0xff]
    %v3258 = vld [vmem:[%s3189 + $0x44] sm:$0xff]
    %v3259 = vld [vmem:[%s3189 + $0x54] sm:$0xff]
    %v3260 = vld [vmem:[%s3189 + $0x64] sm:$0xff]
    %v3261 = vld [vmem:[%s3189 + $0x74] sm:$0xff]
    %v3262 = vld [vmem:[%s3189 + $0xe4] sm:$0xff]
    %v3263 = vld [vmem:[%s3189 + $0xf4] sm:$0xff]
    %v3264 = vld [vmem:[%s3189 + $0x104] sm:$0xff]
    %v3265 = vld [vmem:[%s3189 + $0x114] sm:$0xff]
    %v3266 = vld [vmem:[%s3189 + $0x124] sm:$0xff]
    %v3267 = vld [vmem:[%s3189 + $0x134] sm:$0xff]
    %v3268 = vld [vmem:[%s3189 + $0x144] sm:$0xff]
    %v3269 = vld [vmem:[%s3189 + $0x154] sm:$0xff]
    %v3270 = vld [vmem:[%s3189 + $0x5] sm:$0xff]
    %v3271 = vld [vmem:[%s3189 + $0x15] sm:$0xff]
    %v3272 = vld [vmem:[%s3189 + $0x25] sm:$0xff]
    %v3273 = vld [vmem:[%s3189 + $0x35] sm:$0xff]
    %v3274 = vld [vmem:[%s3189 + $0x45] sm:$0xff]
    %v3275 = vld [vmem:[%s3189 + $0x55] sm:$0xff]
    %v3276 = vld [vmem:[%s3189 + $0x65] sm:$0xff]
    %v3277 = vld [vmem:[%s3189 + $0x75] sm:$0xff]
    %v3278 = vld [vmem:[%s3189 + $0xe5] sm:$0xff]
    %v3279 = vld [vmem:[%s3189 + $0xf5] sm:$0xff]
    %v3280 = vld [vmem:[%s3189 + $0x105] sm:$0xff]
    %v3281 = vld [vmem:[%s3189 + $0x115] sm:$0xff]
    %v3282 = vld [vmem:[%s3189 + $0x125] sm:$0xff]
    %v3283 = vld [vmem:[%s3189 + $0x135] sm:$0xff]
    %v3284 = vld [vmem:[%s3189 + $0x145] sm:$0xff]
    %v3285 = vld [vmem:[%s3189 + $0x155] sm:$0xff]
    %v3286 = vld [vmem:[%s3189 + $0x6] sm:$0xff]
    %v3287 = vld [vmem:[%s3189 + $0x16] sm:$0xff]
    %v3288 = vld [vmem:[%s3189 + $0x26] sm:$0xff]
    %v3289 = vld [vmem:[%s3189 + $0x36] sm:$0xff]
    %v3290 = vld [vmem:[%s3189 + $0x46] sm:$0xff]
    %v3291 = vld [vmem:[%s3189 + $0x56] sm:$0xff]
    %v3292 = vld [vmem:[%s3189 + $0x66] sm:$0xff]
    %v3293 = vld [vmem:[%s3189 + $0x76] sm:$0xff]
    %v3294 = vld [vmem:[%s3189 + $0xe6] sm:$0xff]
    %v3295 = vld [vmem:[%s3189 + $0xf6] sm:$0xff]
    %v3296 = vld [vmem:[%s3189 + $0x106] sm:$0xff]
    %v3297 = vld [vmem:[%s3189 + $0x116] sm:$0xff]
    %v3298 = vld [vmem:[%s3189 + $0x126] sm:$0xff]
    %v3299 = vld [vmem:[%s3189 + $0x136] sm:$0xff]
    %v3300 = vld [vmem:[%s3189 + $0x146] sm:$0xff]
    %v3301 = vld [vmem:[%s3189 + $0x156] sm:$0xff]
    %s3302 = scalar_lea.vmem [#allocation4], 96
    %v3303 = vld [vmem:[%s3302] sm:$0xff]
    %v3304 = vld [vmem:[%s3302 + $0x10] sm:$0xff]
    %v3305 = vld [vmem:[%s3302 + $0x20] sm:$0xff]
    %v3306 = vld [vmem:[%s3302 + $0x30] sm:$0xff]
    %v3307 = vld [vmem:[%s3302 + $0x40] sm:$0xff]
    %v3308 = vld [vmem:[%s3302 + $0x50] sm:$0xff]
    %v3309 = vld [vmem:[%s3302 + $0x60] sm:$0xff]
    %v3310 = vld [vmem:[%s3302 + $0x70] sm:$0xff]
    %v3311 = vld [vmem:[%s3302 + $0xe0] sm:$0xff]
    %v3312 = vld [vmem:[%s3302 + $0xf0] sm:$0xff]
    %v3313 = vld [vmem:[%s3302 + $0x100] sm:$0xff]
    %v3314 = vld [vmem:[%s3302 + $0x110] sm:$0xff]
    %v3315 = vld [vmem:[%s3302 + $0x120] sm:$0xff]
    %v3316 = vld [vmem:[%s3302 + $0x130] sm:$0xff]
    %v3317 = vld [vmem:[%s3302 + $0x140] sm:$0xff]
    %v3318 = vld [vmem:[%s3302 + $0x150] sm:$0xff]
    %v3319 = vld [vmem:[%s3302 + $0x1] sm:$0xff]
    %v3320 = vld [vmem:[%s3302 + $0x11] sm:$0xff]
    %v3321 = vld [vmem:[%s3302 + $0x21] sm:$0xff]
    %v3322 = vld [vmem:[%s3302 + $0x31] sm:$0xff]
    %v3323 = vld [vmem:[%s3302 + $0x41] sm:$0xff]
    %v3324 = vld [vmem:[%s3302 + $0x51] sm:$0xff]
    %v3325 = vld [vmem:[%s3302 + $0x61] sm:$0xff]
    %v3326 = vld [vmem:[%s3302 + $0x71] sm:$0xff]
    %v3327 = vld [vmem:[%s3302 + $0xe1] sm:$0xff]
    %v3328 = vld [vmem:[%s3302 + $0xf1] sm:$0xff]
    %v3329 = vld [vmem:[%s3302 + $0x101] sm:$0xff]
    %v3330 = vld [vmem:[%s3302 + $0x111] sm:$0xff]
    %v3331 = vld [vmem:[%s3302 + $0x121] sm:$0xff]
    %v3332 = vld [vmem:[%s3302 + $0x131] sm:$0xff]
    %v3333 = vld [vmem:[%s3302 + $0x141] sm:$0xff]
    %v3334 = vld [vmem:[%s3302 + $0x151] sm:$0xff]
    %v3335 = vld [vmem:[%s3302 + $0x2] sm:$0xff]
    %v3336 = vld [vmem:[%s3302 + $0x12] sm:$0xff]
    %v3337 = vld [vmem:[%s3302 + $0x22] sm:$0xff]
    %v3338 = vld [vmem:[%s3302 + $0x32] sm:$0xff]
    %v3339 = vld [vmem:[%s3302 + $0x42] sm:$0xff]
    %v3340 = vld [vmem:[%s3302 + $0x52] sm:$0xff]
    %v3341 = vld [vmem:[%s3302 + $0x62] sm:$0xff]
    %v3342 = vld [vmem:[%s3302 + $0x72] sm:$0xff]
    %v3343 = vld [vmem:[%s3302 + $0xe2] sm:$0xff]
    %v3344 = vld [vmem:[%s3302 + $0xf2] sm:$0xff]
    %v3345 = vld [vmem:[%s3302 + $0x102] sm:$0xff]
    %v3346 = vld [vmem:[%s3302 + $0x112] sm:$0xff]
    %v3347 = vld [vmem:[%s3302 + $0x122] sm:$0xff]
    %v3348 = vld [vmem:[%s3302 + $0x132] sm:$0xff]
    %v3349 = vld [vmem:[%s3302 + $0x142] sm:$0xff]
    %v3350 = vld [vmem:[%s3302 + $0x152] sm:$0xff]
    %v3351 = vld [vmem:[%s3302 + $0x3] sm:$0xff]
    %v3352 = vld [vmem:[%s3302 + $0x13] sm:$0xff]
    %v3353 = vld [vmem:[%s3302 + $0x23] sm:$0xff]
    %v3354 = vld [vmem:[%s3302 + $0x33] sm:$0xff]
    %v3355 = vld [vmem:[%s3302 + $0x43] sm:$0xff]
    %v3356 = vld [vmem:[%s3302 + $0x53] sm:$0xff]
    %v3357 = vld [vmem:[%s3302 + $0x63] sm:$0xff]
    %v3358 = vld [vmem:[%s3302 + $0x73] sm:$0xff]
    %v3359 = vld [vmem:[%s3302 + $0xe3] sm:$0xff]
    %v3360 = vld [vmem:[%s3302 + $0xf3] sm:$0xff]
    %v3361 = vld [vmem:[%s3302 + $0x103] sm:$0xff]
    %v3362 = vld [vmem:[%s3302 + $0x113] sm:$0xff]
    %v3363 = vld [vmem:[%s3302 + $0x123] sm:$0xff]
    %v3364 = vld [vmem:[%s3302 + $0x133] sm:$0xff]
    %v3365 = vld [vmem:[%s3302 + $0x143] sm:$0xff]
    %v3366 = vld [vmem:[%s3302 + $0x153] sm:$0xff]
    %v3367 = vld [vmem:[%s3302 + $0x4] sm:$0xff]
    %v3368 = vld [vmem:[%s3302 + $0x14] sm:$0xff]
    %v3369 = vld [vmem:[%s3302 + $0x24] sm:$0xff]
    %v3370 = vld [vmem:[%s3302 + $0x34] sm:$0xff]
    %v3371 = vld [vmem:[%s3302 + $0x44] sm:$0xff]
    %v3372 = vld [vmem:[%s3302 + $0x54] sm:$0xff]
    %v3373 = vld [vmem:[%s3302 + $0x64] sm:$0xff]
    %v3374 = vld [vmem:[%s3302 + $0x74] sm:$0xff]
    %v3375 = vld [vmem:[%s3302 + $0xe4] sm:$0xff]
    %v3376 = vld [vmem:[%s3302 + $0xf4] sm:$0xff]
    %v3377 = vld [vmem:[%s3302 + $0x104] sm:$0xff]
    %v3378 = vld [vmem:[%s3302 + $0x114] sm:$0xff]
    %v3379 = vld [vmem:[%s3302 + $0x124] sm:$0xff]
    %v3380 = vld [vmem:[%s3302 + $0x134] sm:$0xff]
    %v3381 = vld [vmem:[%s3302 + $0x144] sm:$0xff]
    %v3382 = vld [vmem:[%s3302 + $0x154] sm:$0xff]
    %v3383 = vld [vmem:[%s3302 + $0x5] sm:$0xff]
    %v3384 = vld [vmem:[%s3302 + $0x15] sm:$0xff]
    %v3385 = vld [vmem:[%s3302 + $0x25] sm:$0xff]
    %v3386 = vld [vmem:[%s3302 + $0x35] sm:$0xff]
    %v3387 = vld [vmem:[%s3302 + $0x45] sm:$0xff]
    %v3388 = vld [vmem:[%s3302 + $0x55] sm:$0xff]
    %v3389 = vld [vmem:[%s3302 + $0x65] sm:$0xff]
    %v3390 = vld [vmem:[%s3302 + $0x75] sm:$0xff]
    %v3391 = vld [vmem:[%s3302 + $0xe5] sm:$0xff]
    %v3392 = vld [vmem:[%s3302 + $0xf5] sm:$0xff]
    %v3393 = vld [vmem:[%s3302 + $0x105] sm:$0xff]
    %v3394 = vld [vmem:[%s3302 + $0x115] sm:$0xff]
    %v3395 = vld [vmem:[%s3302 + $0x125] sm:$0xff]
    %v3396 = vld [vmem:[%s3302 + $0x135] sm:$0xff]
    %v3397 = vld [vmem:[%s3302 + $0x145] sm:$0xff]
    %v3398 = vld [vmem:[%s3302 + $0x155] sm:$0xff]
    %v3399 = vld [vmem:[%s3302 + $0x6] sm:$0xff]
    %v3400 = vld [vmem:[%s3302 + $0x16] sm:$0xff]
    %v3401 = vld [vmem:[%s3302 + $0x26] sm:$0xff]
    %v3402 = vld [vmem:[%s3302 + $0x36] sm:$0xff]
    %v3403 = vld [vmem:[%s3302 + $0x46] sm:$0xff]
    %v3404 = vld [vmem:[%s3302 + $0x56] sm:$0xff]
    %v3405 = vld [vmem:[%s3302 + $0x66] sm:$0xff]
    %v3406 = vld [vmem:[%s3302 + $0x76] sm:$0xff]
    %v3407 = vld [vmem:[%s3302 + $0xe6] sm:$0xff]
    %v3408 = vld [vmem:[%s3302 + $0xf6] sm:$0xff]
    %v3409 = vld [vmem:[%s3302 + $0x106] sm:$0xff]
    %v3410 = vld [vmem:[%s3302 + $0x116] sm:$0xff]
    %v3411 = vld [vmem:[%s3302 + $0x126] sm:$0xff]
    %v3412 = vld [vmem:[%s3302 + $0x136] sm:$0xff]
    %v3413 = vld [vmem:[%s3302 + $0x146] sm:$0xff]
    %v3414 = vld [vmem:[%s3302 + $0x156] sm:$0xff]
    %3431 = vrot.lane.b32.xlu0 %v2642, 2
    %v3432 = vpop.permute.xlu0 %3431
    %3433 = vrot.lane.b32.xlu0 %v2643, 2
    %v3434 = vpop.permute.xlu0 %3433
    %3435 = vrot.lane.b32.xlu0 %v2644, 2
    %v3436 = vpop.permute.xlu0 %3435
    %3437 = vrot.lane.b32.xlu0 %v2645, 2
    %v3438 = vpop.permute.xlu0 %3437
    %3439 = vrot.lane.b32.xlu0 %v2646, 2
    %v3440 = vpop.permute.xlu0 %3439
    %3441 = vrot.lane.b32.xlu0 %v2647, 2
    %v3442 = vpop.permute.xlu0 %3441
    %3443 = vrot.lane.b32.xlu0 %v2648, 2
    %v3444 = vpop.permute.xlu0 %3443
    %3445 = vrot.lane.b32.xlu0 %v2649, 2
    %v3446 = vpop.permute.xlu0 %3445
    %3447 = vrot.lane.b32.xlu0 %v2650, 2
    %v3448 = vpop.permute.xlu0 %3447
    %3449 = vrot.lane.b32.xlu0 %v2651, 2
    %v3450 = vpop.permute.xlu0 %3449
    %3451 = vrot.lane.b32.xlu0 %v2652, 2
    %v3452 = vpop.permute.xlu0 %3451
    %3453 = vrot.lane.b32.xlu0 %v2653, 2
    %v3454 = vpop.permute.xlu0 %3453
    %3455 = vrot.lane.b32.xlu0 %v2654, 2
    %v3456 = vpop.permute.xlu0 %3455
    %3457 = vrot.lane.b32.xlu0 %v2655, 2
    %v3458 = vpop.permute.xlu0 %3457
    %3459 = vrot.lane.b32.xlu0 %v2656, 2
    %v3460 = vpop.permute.xlu0 %3459
    %3461 = vrot.lane.b32.xlu0 %v2657, 2
    %v3462 = vpop.permute.xlu0 %3461
    %3495 = vrot.lane.b32.xlu0 %v2658, 4
    %v3496 = vpop.permute.xlu0 %3495
    %3497 = vrot.lane.b32.xlu0 %v2659, 4
    %v3498 = vpop.permute.xlu0 %3497
    %3499 = vrot.lane.b32.xlu0 %v2660, 4
    %v3500 = vpop.permute.xlu0 %3499
    %3501 = vrot.lane.b32.xlu0 %v2661, 4
    %v3502 = vpop.permute.xlu0 %3501
    %3503 = vrot.lane.b32.xlu0 %v2662, 4
    %v3504 = vpop.permute.xlu0 %3503
    %3505 = vrot.lane.b32.xlu0 %v2663, 4
    %v3506 = vpop.permute.xlu0 %3505
    %3507 = vrot.lane.b32.xlu0 %v2664, 4
    %v3508 = vpop.permute.xlu0 %3507
    %3509 = vrot.lane.b32.xlu0 %v2665, 4
    %v3510 = vpop.permute.xlu0 %3509
    %3511 = vrot.lane.b32.xlu0 %v2666, 4
    %v3512 = vpop.permute.xlu0 %3511
    %3513 = vrot.lane.b32.xlu0 %v2667, 4
    %v3514 = vpop.permute.xlu0 %3513
    %3515 = vrot.lane.b32.xlu0 %v2668, 4
    %v3516 = vpop.permute.xlu0 %3515
    %3517 = vrot.lane.b32.xlu0 %v2669, 4
    %v3518 = vpop.permute.xlu0 %3517
    %3519 = vrot.lane.b32.xlu0 %v2670, 4
    %v3520 = vpop.permute.xlu0 %3519
    %3521 = vrot.lane.b32.xlu0 %v2671, 4
    %v3522 = vpop.permute.xlu0 %3521
    %3523 = vrot.lane.b32.xlu0 %v2672, 4
    %v3524 = vpop.permute.xlu0 %3523
    %3525 = vrot.lane.b32.xlu0 %v2673, 4
    %v3526 = vpop.permute.xlu0 %3525
    %3559 = vrot.lane.b32.xlu0 %v2674, 6
    %v3560 = vpop.permute.xlu0 %3559
    %3561 = vrot.lane.b32.xlu0 %v2675, 6
    %v3562 = vpop.permute.xlu0 %3561
    %3563 = vrot.lane.b32.xlu0 %v2676, 6
    %v3564 = vpop.permute.xlu0 %3563
    %3565 = vrot.lane.b32.xlu0 %v2677, 6
    %v3566 = vpop.permute.xlu0 %3565
    %3567 = vrot.lane.b32.xlu0 %v2678, 6
    %v3568 = vpop.permute.xlu0 %3567
    %3569 = vrot.lane.b32.xlu0 %v2679, 6
    %v3570 = vpop.permute.xlu0 %3569
    %3571 = vrot.lane.b32.xlu0 %v2680, 6
    %v3572 = vpop.permute.xlu0 %3571
    %3573 = vrot.lane.b32.xlu0 %v2681, 6
    %v3574 = vpop.permute.xlu0 %3573
    %3575 = vrot.lane.b32.xlu0 %v2682, 6
    %v3576 = vpop.permute.xlu0 %3575
    %3577 = vrot.lane.b32.xlu0 %v2683, 6
    %v3578 = vpop.permute.xlu0 %3577
    %3579 = vrot.lane.b32.xlu0 %v2684, 6
    %v3580 = vpop.permute.xlu0 %3579
    %3581 = vrot.lane.b32.xlu0 %v2685, 6
    %v3582 = vpop.permute.xlu0 %3581
    %3583 = vrot.lane.b32.xlu0 %v2686, 6
    %v3584 = vpop.permute.xlu0 %3583
    %3585 = vrot.lane.b32.xlu0 %v2687, 6
    %v3586 = vpop.permute.xlu0 %3585
    %3587 = vrot.lane.b32.xlu0 %v2688, 6
    %v3588 = vpop.permute.xlu0 %3587
    %3589 = vrot.lane.b32.xlu0 %v2689, 6
    %v3590 = vpop.permute.xlu0 %3589
    %3623 = vrot.lane.b32.xlu0 %v2690, 8
    %v3624 = vpop.permute.xlu0 %3623
    %3625 = vrot.lane.b32.xlu0 %v2691, 8
    %v3626 = vpop.permute.xlu0 %3625
    %3627 = vrot.lane.b32.xlu0 %v2692, 8
    %v3628 = vpop.permute.xlu0 %3627
    %3629 = vrot.lane.b32.xlu0 %v2693, 8
    %v3630 = vpop.permute.xlu0 %3629
    %3631 = vrot.lane.b32.xlu0 %v2694, 8
    %v3632 = vpop.permute.xlu0 %3631
    %3633 = vrot.lane.b32.xlu0 %v2695, 8
    %v3634 = vpop.permute.xlu0 %3633
    %3635 = vrot.lane.b32.xlu0 %v2696, 8
    %v3636 = vpop.permute.xlu0 %3635
    %3637 = vrot.lane.b32.xlu0 %v2697, 8
    %v3638 = vpop.permute.xlu0 %3637
    %3639 = vrot.lane.b32.xlu0 %v2698, 8
    %v3640 = vpop.permute.xlu0 %3639
    %3641 = vrot.lane.b32.xlu0 %v2699, 8
    %v3642 = vpop.permute.xlu0 %3641
    %3643 = vrot.lane.b32.xlu0 %v2700, 8
    %v3644 = vpop.permute.xlu0 %3643
    %3645 = vrot.lane.b32.xlu0 %v2701, 8
    %v3646 = vpop.permute.xlu0 %3645
    %3647 = vrot.lane.b32.xlu0 %v2702, 8
    %v3648 = vpop.permute.xlu0 %3647
    %3649 = vrot.lane.b32.xlu0 %v2703, 8
    %v3650 = vpop.permute.xlu0 %3649
    %3651 = vrot.lane.b32.xlu0 %v2704, 8
    %v3652 = vpop.permute.xlu0 %3651
    %3653 = vrot.lane.b32.xlu0 %v2705, 8
    %v3654 = vpop.permute.xlu0 %3653
    %3687 = vrot.lane.b32.xlu0 %v2706, 10
    %v3688 = vpop.permute.xlu0 %3687
    %3689 = vrot.lane.b32.xlu0 %v2707, 10
    %v3690 = vpop.permute.xlu0 %3689
    %3691 = vrot.lane.b32.xlu0 %v2708, 10
    %v3692 = vpop.permute.xlu0 %3691
    %3693 = vrot.lane.b32.xlu0 %v2709, 10
    %v3694 = vpop.permute.xlu0 %3693
    %3695 = vrot.lane.b32.xlu0 %v2710, 10
    %v3696 = vpop.permute.xlu0 %3695
    %3697 = vrot.lane.b32.xlu0 %v2711, 10
    %v3698 = vpop.permute.xlu0 %3697
    %3699 = vrot.lane.b32.xlu0 %v2712, 10
    %v3700 = vpop.permute.xlu0 %3699
    %3701 = vrot.lane.b32.xlu0 %v2713, 10
    %v3702 = vpop.permute.xlu0 %3701
    %3703 = vrot.lane.b32.xlu0 %v2714, 10
    %v3704 = vpop.permute.xlu0 %3703
    %3705 = vrot.lane.b32.xlu0 %v2715, 10
    %v3706 = vpop.permute.xlu0 %3705
    %3707 = vrot.lane.b32.xlu0 %v2716, 10
    %v3708 = vpop.permute.xlu0 %3707
    %3709 = vrot.lane.b32.xlu0 %v2717, 10
    %v3710 = vpop.permute.xlu0 %3709
    %3711 = vrot.lane.b32.xlu0 %v2718, 10
    %v3712 = vpop.permute.xlu0 %3711
    %3713 = vrot.lane.b32.xlu0 %v2719, 10
    %v3714 = vpop.permute.xlu0 %3713
    %3715 = vrot.lane.b32.xlu0 %v2720, 10
    %v3716 = vpop.permute.xlu0 %3715
    %3717 = vrot.lane.b32.xlu0 %v2721, 10
    %v3718 = vpop.permute.xlu0 %3717
    %3751 = vrot.lane.b32.xlu0 %v2722, 12
    %v3752 = vpop.permute.xlu0 %3751
    %3753 = vrot.lane.b32.xlu0 %v2723, 12
    %v3754 = vpop.permute.xlu0 %3753
    %3755 = vrot.lane.b32.xlu0 %v2724, 12
    %v3756 = vpop.permute.xlu0 %3755
    %3757 = vrot.lane.b32.xlu0 %v2725, 12
    %v3758 = vpop.permute.xlu0 %3757
    %3759 = vrot.lane.b32.xlu0 %v2726, 12
    %v3760 = vpop.permute.xlu0 %3759
    %3761 = vrot.lane.b32.xlu0 %v2727, 12
    %v3762 = vpop.permute.xlu0 %3761
    %3763 = vrot.lane.b32.xlu0 %v2728, 12
    %v3764 = vpop.permute.xlu0 %3763
    %3765 = vrot.lane.b32.xlu0 %v2729, 12
    %v3766 = vpop.permute.xlu0 %3765
    %3767 = vrot.lane.b32.xlu0 %v2730, 12
    %v3768 = vpop.permute.xlu0 %3767
    %3769 = vrot.lane.b32.xlu0 %v2731, 12
    %v3770 = vpop.permute.xlu0 %3769
    %3771 = vrot.lane.b32.xlu0 %v2732, 12
    %v3772 = vpop.permute.xlu0 %3771
    %3773 = vrot.lane.b32.xlu0 %v2733, 12
    %v3774 = vpop.permute.xlu0 %3773
    %3775 = vrot.lane.b32.xlu0 %v2734, 12
    %v3776 = vpop.permute.xlu0 %3775
    %3777 = vrot.lane.b32.xlu0 %v2735, 12
    %v3778 = vpop.permute.xlu0 %3777
    %3779 = vrot.lane.b32.xlu0 %v2736, 12
    %v3780 = vpop.permute.xlu0 %3779
    %3781 = vrot.lane.b32.xlu0 %v2737, 12
    %v3782 = vpop.permute.xlu0 %3781
    %3815 = vrot.lane.b32.xlu0 %v2739, 14
    %v3816 = vpop.permute.xlu0 %3815
    %3817 = vrot.lane.b32.xlu0 %v2740, 14
    %v3818 = vpop.permute.xlu0 %3817
    %3819 = vrot.lane.b32.xlu0 %v2741, 14
    %v3820 = vpop.permute.xlu0 %3819
    %3821 = vrot.lane.b32.xlu0 %v2742, 14
    %v3822 = vpop.permute.xlu0 %3821
    %3823 = vrot.lane.b32.xlu0 %v2743, 14
    %v3824 = vpop.permute.xlu0 %3823
    %3825 = vrot.lane.b32.xlu0 %v2744, 14
    %v3826 = vpop.permute.xlu0 %3825
    %3827 = vrot.lane.b32.xlu0 %v2745, 14
    %v3828 = vpop.permute.xlu0 %3827
    %3829 = vrot.lane.b32.xlu0 %v2746, 14
    %v3830 = vpop.permute.xlu0 %3829
    %3831 = vrot.lane.b32.xlu0 %v2747, 14
    %v3832 = vpop.permute.xlu0 %3831
    %3833 = vrot.lane.b32.xlu0 %v2748, 14
    %v3834 = vpop.permute.xlu0 %3833
    %3835 = vrot.lane.b32.xlu0 %v2749, 14
    %v3836 = vpop.permute.xlu0 %3835
    %3837 = vrot.lane.b32.xlu0 %v2750, 14
    %v3838 = vpop.permute.xlu0 %3837
    %3839 = vrot.lane.b32.xlu0 %v2751, 14
    %v3840 = vpop.permute.xlu0 %3839
    %3841 = vrot.lane.b32.xlu0 %v2752, 14
    %v3842 = vpop.permute.xlu0 %3841
    %3843 = vrot.lane.b32.xlu0 %v2753, 14
    %v3844 = vpop.permute.xlu0 %3843
    %3845 = vrot.lane.b32.xlu0 %v2754, 14
    %v3846 = vpop.permute.xlu0 %3845
    %3879 = vrot.lane.b32.xlu0 %v2755, 16
    %v3880 = vpop.permute.xlu0 %3879
    %3881 = vrot.lane.b32.xlu0 %v2756, 16
    %v3882 = vpop.permute.xlu0 %3881
    %3883 = vrot.lane.b32.xlu0 %v2757, 16
    %v3884 = vpop.permute.xlu0 %3883
    %3885 = vrot.lane.b32.xlu0 %v2758, 16
    %v3886 = vpop.permute.xlu0 %3885
    %3887 = vrot.lane.b32.xlu0 %v2759, 16
    %v3888 = vpop.permute.xlu0 %3887
    %3889 = vrot.lane.b32.xlu0 %v2760, 16
    %v3890 = vpop.permute.xlu0 %3889
    %3891 = vrot.lane.b32.xlu0 %v2761, 16
    %v3892 = vpop.permute.xlu0 %3891
    %3893 = vrot.lane.b32.xlu0 %v2762, 16
    %v3894 = vpop.permute.xlu0 %3893
    %3895 = vrot.lane.b32.xlu0 %v2763, 16
    %v3896 = vpop.permute.xlu0 %3895
    %3897 = vrot.lane.b32.xlu0 %v2764, 16
    %v3898 = vpop.permute.xlu0 %3897
    %3899 = vrot.lane.b32.xlu0 %v2765, 16
    %v3900 = vpop.permute.xlu0 %3899
    %3901 = vrot.lane.b32.xlu0 %v2766, 16
    %v3902 = vpop.permute.xlu0 %3901
    %3903 = vrot.lane.b32.xlu0 %v2767, 16
    %v3904 = vpop.permute.xlu0 %3903
    %3905 = vrot.lane.b32.xlu0 %v2768, 16
    %v3906 = vpop.permute.xlu0 %3905
    %3907 = vrot.lane.b32.xlu0 %v2769, 16
    %v3908 = vpop.permute.xlu0 %3907
    %3909 = vrot.lane.b32.xlu0 %v2770, 16
    %v3910 = vpop.permute.xlu0 %3909
    %3943 = vrot.lane.b32.xlu0 %v2771, 18
    %v3944 = vpop.permute.xlu0 %3943
    %3945 = vrot.lane.b32.xlu0 %v2772, 18
    %v3946 = vpop.permute.xlu0 %3945
    %3947 = vrot.lane.b32.xlu0 %v2773, 18
    %v3948 = vpop.permute.xlu0 %3947
    %3949 = vrot.lane.b32.xlu0 %v2774, 18
    %v3950 = vpop.permute.xlu0 %3949
    %3951 = vrot.lane.b32.xlu0 %v2775, 18
    %v3952 = vpop.permute.xlu0 %3951
    %3953 = vrot.lane.b32.xlu0 %v2776, 18
    %v3954 = vpop.permute.xlu0 %3953
    %3955 = vrot.lane.b32.xlu0 %v2777, 18
    %v3956 = vpop.permute.xlu0 %3955
    %3957 = vrot.lane.b32.xlu0 %v2778, 18
    %v3958 = vpop.permute.xlu0 %3957
    %3959 = vrot.lane.b32.xlu0 %v2779, 18
    %v3960 = vpop.permute.xlu0 %3959
    %3961 = vrot.lane.b32.xlu0 %v2780, 18
    %v3962 = vpop.permute.xlu0 %3961
    %3963 = vrot.lane.b32.xlu0 %v2781, 18
    %v3964 = vpop.permute.xlu0 %3963
    %3965 = vrot.lane.b32.xlu0 %v2782, 18
    %v3966 = vpop.permute.xlu0 %3965
    %3967 = vrot.lane.b32.xlu0 %v2783, 18
    %v3968 = vpop.permute.xlu0 %3967
    %3969 = vrot.lane.b32.xlu0 %v2784, 18
    %v3970 = vpop.permute.xlu0 %3969
    %3971 = vrot.lane.b32.xlu0 %v2785, 18
    %v3972 = vpop.permute.xlu0 %3971
    %3973 = vrot.lane.b32.xlu0 %v2786, 18
    %v3974 = vpop.permute.xlu0 %3973
    %4007 = vrot.lane.b32.xlu0 %v2787, 20
    %v4008 = vpop.permute.xlu0 %4007
    %4009 = vrot.lane.b32.xlu0 %v2788, 20
    %v4010 = vpop.permute.xlu0 %4009
    %4011 = vrot.lane.b32.xlu0 %v2789, 20
    %v4012 = vpop.permute.xlu0 %4011
    %4013 = vrot.lane.b32.xlu0 %v2790, 20
    %v4014 = vpop.permute.xlu0 %4013
    %4015 = vrot.lane.b32.xlu0 %v2791, 20
    %v4016 = vpop.permute.xlu0 %4015
    %4017 = vrot.lane.b32.xlu0 %v2792, 20
    %v4018 = vpop.permute.xlu0 %4017
    %4019 = vrot.lane.b32.xlu0 %v2793, 20
    %v4020 = vpop.permute.xlu0 %4019
    %4021 = vrot.lane.b32.xlu0 %v2794, 20
    %v4022 = vpop.permute.xlu0 %4021
    %4023 = vrot.lane.b32.xlu0 %v2795, 20
    %v4024 = vpop.permute.xlu0 %4023
    %4025 = vrot.lane.b32.xlu0 %v2796, 20
    %v4026 = vpop.permute.xlu0 %4025
    %4027 = vrot.lane.b32.xlu0 %v2797, 20
    %v4028 = vpop.permute.xlu0 %4027
    %4029 = vrot.lane.b32.xlu0 %v2798, 20
    %v4030 = vpop.permute.xlu0 %4029
    %4031 = vrot.lane.b32.xlu0 %v2799, 20
    %v4032 = vpop.permute.xlu0 %4031
    %4033 = vrot.lane.b32.xlu0 %v2800, 20
    %v4034 = vpop.permute.xlu0 %4033
    %4035 = vrot.lane.b32.xlu0 %v2801, 20
    %v4036 = vpop.permute.xlu0 %4035
    %4037 = vrot.lane.b32.xlu0 %v2802, 20
    %v4038 = vpop.permute.xlu0 %4037
    %4071 = vrot.lane.b32.xlu0 %v2803, 22
    %v4072 = vpop.permute.xlu0 %4071
    %4073 = vrot.lane.b32.xlu0 %v2804, 22
    %v4074 = vpop.permute.xlu0 %4073
    %4075 = vrot.lane.b32.xlu0 %v2805, 22
    %v4076 = vpop.permute.xlu0 %4075
    %4077 = vrot.lane.b32.xlu0 %v2806, 22
    %v4078 = vpop.permute.xlu0 %4077
    %4079 = vrot.lane.b32.xlu0 %v2807, 22
    %v4080 = vpop.permute.xlu0 %4079
    %4081 = vrot.lane.b32.xlu0 %v2808, 22
    %v4082 = vpop.permute.xlu0 %4081
    %4083 = vrot.lane.b32.xlu0 %v2809, 22
    %v4084 = vpop.permute.xlu0 %4083
    %4085 = vrot.lane.b32.xlu0 %v2810, 22
    %v4086 = vpop.permute.xlu0 %4085
    %4087 = vrot.lane.b32.xlu0 %v2811, 22
    %v4088 = vpop.permute.xlu0 %4087
    %4089 = vrot.lane.b32.xlu0 %v2812, 22
    %v4090 = vpop.permute.xlu0 %4089
    %4091 = vrot.lane.b32.xlu0 %v2813, 22
    %v4092 = vpop.permute.xlu0 %4091
    %4093 = vrot.lane.b32.xlu0 %v2814, 22
    %v4094 = vpop.permute.xlu0 %4093
    %4095 = vrot.lane.b32.xlu0 %v2815, 22
    %v4096 = vpop.permute.xlu0 %4095
    %4097 = vrot.lane.b32.xlu0 %v2816, 22
    %v4098 = vpop.permute.xlu0 %4097
    %4099 = vrot.lane.b32.xlu0 %v2817, 22
    %v4100 = vpop.permute.xlu0 %4099
    %4101 = vrot.lane.b32.xlu0 %v2818, 22
    %v4102 = vpop.permute.xlu0 %4101
    %4135 = vrot.lane.b32.xlu0 %v2819, 24
    %v4136 = vpop.permute.xlu0 %4135
    %4137 = vrot.lane.b32.xlu0 %v2820, 24
    %v4138 = vpop.permute.xlu0 %4137
    %4139 = vrot.lane.b32.xlu0 %v2821, 24
    %v4140 = vpop.permute.xlu0 %4139
    %4141 = vrot.lane.b32.xlu0 %v2822, 24
    %v4142 = vpop.permute.xlu0 %4141
    %4143 = vrot.lane.b32.xlu0 %v2823, 24
    %v4144 = vpop.permute.xlu0 %4143
    %4145 = vrot.lane.b32.xlu0 %v2824, 24
    %v4146 = vpop.permute.xlu0 %4145
    %4147 = vrot.lane.b32.xlu0 %v2825, 24
    %v4148 = vpop.permute.xlu0 %4147
    %4149 = vrot.lane.b32.xlu0 %v2826, 24
    %v4150 = vpop.permute.xlu0 %4149
    %4151 = vrot.lane.b32.xlu0 %v2827, 24
    %v4152 = vpop.permute.xlu0 %4151
    %4153 = vrot.lane.b32.xlu0 %v2828, 24
    %v4154 = vpop.permute.xlu0 %4153
    %4155 = vrot.lane.b32.xlu0 %v2829, 24
    %v4156 = vpop.permute.xlu0 %4155
    %4157 = vrot.lane.b32.xlu0 %v2830, 24
    %v4158 = vpop.permute.xlu0 %4157
    %4159 = vrot.lane.b32.xlu0 %v2831, 24
    %v4160 = vpop.permute.xlu0 %4159
    %4161 = vrot.lane.b32.xlu0 %v2832, 24
    %v4162 = vpop.permute.xlu0 %4161
    %4163 = vrot.lane.b32.xlu0 %v2833, 24
    %v4164 = vpop.permute.xlu0 %4163
    %4165 = vrot.lane.b32.xlu0 %v2834, 24
    %v4166 = vpop.permute.xlu0 %4165
    %4199 = vrot.lane.b32.xlu0 %v2835, 26
    %v4200 = vpop.permute.xlu0 %4199
    %4201 = vrot.lane.b32.xlu0 %v2836, 26
    %v4202 = vpop.permute.xlu0 %4201
    %4203 = vrot.lane.b32.xlu0 %v2837, 26
    %v4204 = vpop.permute.xlu0 %4203
    %4205 = vrot.lane.b32.xlu0 %v2838, 26
    %v4206 = vpop.permute.xlu0 %4205
    %4207 = vrot.lane.b32.xlu0 %v2839, 26
    %v4208 = vpop.permute.xlu0 %4207
    %4209 = vrot.lane.b32.xlu0 %v2840, 26
    %v4210 = vpop.permute.xlu0 %4209
    %4211 = vrot.lane.b32.xlu0 %v2841, 26
    %v4212 = vpop.permute.xlu0 %4211
    %4213 = vrot.lane.b32.xlu0 %v2842, 26
    %v4214 = vpop.permute.xlu0 %4213
    %4215 = vrot.lane.b32.xlu0 %v2843, 26
    %v4216 = vpop.permute.xlu0 %4215
    %4217 = vrot.lane.b32.xlu0 %v2844, 26
    %v4218 = vpop.permute.xlu0 %4217
    %4219 = vrot.lane.b32.xlu0 %v2845, 26
    %v4220 = vpop.permute.xlu0 %4219
    %4221 = vrot.lane.b32.xlu0 %v2846, 26
    %v4222 = vpop.permute.xlu0 %4221
    %4223 = vrot.lane.b32.xlu0 %v2847, 26
    %v4224 = vpop.permute.xlu0 %4223
    %4225 = vrot.lane.b32.xlu0 %v2848, 26
    %v4226 = vpop.permute.xlu0 %4225
    %4227 = vrot.lane.b32.xlu0 %v2849, 26
    %v4228 = vpop.permute.xlu0 %4227
    %4229 = vrot.lane.b32.xlu0 %v2850, 26
    %v4230 = vpop.permute.xlu0 %4229
    %4263 = vrot.lane.b32.xlu0 %v2852, 28
    %v4264 = vpop.permute.xlu0 %4263
    %4265 = vrot.lane.b32.xlu0 %v2853, 28
    %v4266 = vpop.permute.xlu0 %4265
    %4267 = vrot.lane.b32.xlu0 %v2854, 28
    %v4268 = vpop.permute.xlu0 %4267
    %4269 = vrot.lane.b32.xlu0 %v2855, 28
    %v4270 = vpop.permute.xlu0 %4269
    %4271 = vrot.lane.b32.xlu0 %v2856, 28
    %v4272 = vpop.permute.xlu0 %4271
    %4273 = vrot.lane.b32.xlu0 %v2857, 28
    %v4274 = vpop.permute.xlu0 %4273
    %4275 = vrot.lane.b32.xlu0 %v2858, 28
    %v4276 = vpop.permute.xlu0 %4275
    %4277 = vrot.lane.b32.xlu0 %v2859, 28
    %v4278 = vpop.permute.xlu0 %4277
    %4279 = vrot.lane.b32.xlu0 %v2860, 28
    %v4280 = vpop.permute.xlu0 %4279
    %4281 = vrot.lane.b32.xlu0 %v2861, 28
    %v4282 = vpop.permute.xlu0 %4281
    %4283 = vrot.lane.b32.xlu0 %v2862, 28
    %v4284 = vpop.permute.xlu0 %4283
    %4285 = vrot.lane.b32.xlu0 %v2863, 28
    %v4286 = vpop.permute.xlu0 %4285
    %4287 = vrot.lane.b32.xlu0 %v2864, 28
    %v4288 = vpop.permute.xlu0 %4287
    %4289 = vrot.lane.b32.xlu0 %v2865, 28
    %v4290 = vpop.permute.xlu0 %4289
    %4291 = vrot.lane.b32.xlu0 %v2866, 28
    %v4292 = vpop.permute.xlu0 %4291
    %4293 = vrot.lane.b32.xlu0 %v2867, 28
    %v4294 = vpop.permute.xlu0 %4293
    %4327 = vrot.lane.b32.xlu0 %v2868, 30
    %v4328 = vpop.permute.xlu0 %4327
    %4329 = vrot.lane.b32.xlu0 %v2869, 30
    %v4330 = vpop.permute.xlu0 %4329
    %4331 = vrot.lane.b32.xlu0 %v2870, 30
    %v4332 = vpop.permute.xlu0 %4331
    %4333 = vrot.lane.b32.xlu0 %v2871, 30
    %v4334 = vpop.permute.xlu0 %4333
    %4335 = vrot.lane.b32.xlu0 %v2872, 30
    %v4336 = vpop.permute.xlu0 %4335
    %4337 = vrot.lane.b32.xlu0 %v2873, 30
    %v4338 = vpop.permute.xlu0 %4337
    %4339 = vrot.lane.b32.xlu0 %v2874, 30
    %v4340 = vpop.permute.xlu0 %4339
    %4341 = vrot.lane.b32.xlu0 %v2875, 30
    %v4342 = vpop.permute.xlu0 %4341
    %4343 = vrot.lane.b32.xlu0 %v2876, 30
    %v4344 = vpop.permute.xlu0 %4343
    %4345 = vrot.lane.b32.xlu0 %v2877, 30
    %v4346 = vpop.permute.xlu0 %4345
    %4347 = vrot.lane.b32.xlu0 %v2878, 30
    %v4348 = vpop.permute.xlu0 %4347
    %4349 = vrot.lane.b32.xlu0 %v2879, 30
    %v4350 = vpop.permute.xlu0 %4349
    %4351 = vrot.lane.b32.xlu0 %v2880, 30
    %v4352 = vpop.permute.xlu0 %4351
    %4353 = vrot.lane.b32.xlu0 %v2881, 30
    %v4354 = vpop.permute.xlu0 %4353
    %4355 = vrot.lane.b32.xlu0 %v2882, 30
    %v4356 = vpop.permute.xlu0 %4355
    %4357 = vrot.lane.b32.xlu0 %v2883, 30
    %v4358 = vpop.permute.xlu0 %4357
    %v4375 = vsel %vm2551, %v2626, %v3432
    %v4376 = vsel %vm2551, %v2627, %v3434
    %v4377 = vsel %vm2551, %v2628, %v3436
    %v4378 = vsel %vm2551, %v2629, %v3438
    %v4379 = vsel %vm2551, %v2630, %v3440
    %v4380 = vsel %vm2551, %v2631, %v3442
    %v4381 = vsel %vm2551, %v2632, %v3444
    %v4382 = vsel %vm2551, %v2633, %v3446
    %v4383 = vsel %vm2551, %v2634, %v3448
    %v4384 = vsel %vm2551, %v2635, %v3450
    %v4385 = vsel %vm2551, %v2636, %v3452
    %v4386 = vsel %vm2551, %v2637, %v3454
    %v4387 = vsel %vm2551, %v2638, %v3456
    %v4388 = vsel %vm2551, %v2639, %v3458
    %v4389 = vsel %vm2551, %v2640, %v3460
    %v4390 = vsel %vm2551, %v2641, %v3462
    %vm4391 = vcmask 31744
    %v4392 = vsel %vm4391, %v4375, %v3496
    %v4393 = vsel %vm4391, %v4376, %v3498
    %v4394 = vsel %vm4391, %v4377, %v3500
    %v4395 = vsel %vm4391, %v4378, %v3502
    %v4396 = vsel %vm4391, %v4379, %v3504
    %v4397 = vsel %vm4391, %v4380, %v3506
    %v4398 = vsel %vm4391, %v4381, %v3508
    %v4399 = vsel %vm4391, %v4382, %v3510
    %v4400 = vsel %vm4391, %v4383, %v3512
    %v4401 = vsel %vm4391, %v4384, %v3514
    %v4402 = vsel %vm4391, %v4385, %v3516
    %v4403 = vsel %vm4391, %v4386, %v3518
    %v4404 = vsel %vm4391, %v4387, %v3520
    %v4405 = vsel %vm4391, %v4388, %v3522
    %v4406 = vsel %vm4391, %v4389, %v3524
    %v4407 = vsel %vm4391, %v4390, %v3526
    %vm4408 = vcmask 48128
    %v4409 = vsel %vm4408, %v4392, %v3560
    %v4410 = vsel %vm4408, %v4393, %v3562
    %v4411 = vsel %vm4408, %v4394, %v3564
    %v4412 = vsel %vm4408, %v4395, %v3566
    %v4413 = vsel %vm4408, %v4396, %v3568
    %v4414 = vsel %vm4408, %v4397, %v3570
    %v4415 = vsel %vm4408, %v4398, %v3572
    %v4416 = vsel %vm4408, %v4399, %v3574
    %v4417 = vsel %vm4408, %v4400, %v3576
    %v4418 = vsel %vm4408, %v4401, %v3578
    %v4419 = vsel %vm4408, %v4402, %v3580
    %v4420 = vsel %vm4408, %v4403, %v3582
    %v4421 = vsel %vm4408, %v4404, %v3584
    %v4422 = vsel %vm4408, %v4405, %v3586
    %v4423 = vsel %vm4408, %v4406, %v3588
    %v4424 = vsel %vm4408, %v4407, %v3590
    %vm4425 = vcmask 64512
    %v4426 = vsel %vm4425, %v4409, %v3624
    %v4427 = vsel %vm4425, %v4410, %v3626
    %v4428 = vsel %vm4425, %v4411, %v3628
    %v4429 = vsel %vm4425, %v4412, %v3630
    %v4430 = vsel %vm4425, %v4413, %v3632
    %v4431 = vsel %vm4425, %v4414, %v3634
    %v4432 = vsel %vm4425, %v4415, %v3636
    %v4433 = vsel %vm4425, %v4416, %v3638
    %v4434 = vsel %vm4425, %v4417, %v3640
    %v4435 = vsel %vm4425, %v4418, %v3642
    %v4436 = vsel %vm4425, %v4419, %v3644
    %v4437 = vsel %vm4425, %v4420, %v3646
    %v4438 = vsel %vm4425, %v4421, %v3648
    %v4439 = vsel %vm4425, %v4422, %v3650
    %v4440 = vsel %vm4425, %v4423, %v3652
    %v4441 = vsel %vm4425, %v4424, %v3654
    %vm4442 = vcmask 80896
    %v4443 = vsel %vm4442, %v4426, %v3688
    %v4444 = vsel %vm4442, %v4427, %v3690
    %v4445 = vsel %vm4442, %v4428, %v3692
    %v4446 = vsel %vm4442, %v4429, %v3694
    %v4447 = vsel %vm4442, %v4430, %v3696
    %v4448 = vsel %vm4442, %v4431, %v3698
    %v4449 = vsel %vm4442, %v4432, %v3700
    %v4450 = vsel %vm4442, %v4433, %v3702
    %v4451 = vsel %vm4442, %v4434, %v3704
    %v4452 = vsel %vm4442, %v4435, %v3706
    %v4453 = vsel %vm4442, %v4436, %v3708
    %v4454 = vsel %vm4442, %v4437, %v3710
    %v4455 = vsel %vm4442, %v4438, %v3712
    %v4456 = vsel %vm4442, %v4439, %v3714
    %v4457 = vsel %vm4442, %v4440, %v3716
    %v4458 = vsel %vm4442, %v4441, %v3718
    %vm4459 = vcmask 97280
    %v4460 = vsel %vm4459, %v4443, %v3752
    %v4461 = vsel %vm4459, %v4444, %v3754
    %v4462 = vsel %vm4459, %v4445, %v3756
    %v4463 = vsel %vm4459, %v4446, %v3758
    %v4464 = vsel %vm4459, %v4447, %v3760
    %v4465 = vsel %vm4459, %v4448, %v3762
    %v4466 = vsel %vm4459, %v4449, %v3764
    %v4467 = vsel %vm4459, %v4450, %v3766
    %v4468 = vsel %vm4459, %v4451, %v3768
    %v4469 = vsel %vm4459, %v4452, %v3770
    %v4470 = vsel %vm4459, %v4453, %v3772
    %v4471 = vsel %vm4459, %v4454, %v3774
    %v4472 = vsel %vm4459, %v4455, %v3776
    %v4473 = vsel %vm4459, %v4456, %v3778
    %v4474 = vsel %vm4459, %v4457, %v3780
    %v4475 = vsel %vm4459, %v4458, %v3782
    %vm4476 = vcmask 113664
    %v4477 = vsel %vm4476, %v4460, %v3816
    %v4478 = vsel %vm4476, %v4461, %v3818
    %v4479 = vsel %vm4476, %v4462, %v3820
    %v4480 = vsel %vm4476, %v4463, %v3822
    %v4481 = vsel %vm4476, %v4464, %v3824
    %v4482 = vsel %vm4476, %v4465, %v3826
    %v4483 = vsel %vm4476, %v4466, %v3828
    %v4484 = vsel %vm4476, %v4467, %v3830
    %v4485 = vsel %vm4476, %v4468, %v3832
    %v4486 = vsel %vm4476, %v4469, %v3834
    %v4487 = vsel %vm4476, %v4470, %v3836
    %v4488 = vsel %vm4476, %v4471, %v3838
    %v4489 = vsel %vm4476, %v4472, %v3840
    %v4490 = vsel %vm4476, %v4473, %v3842
    %v4491 = vsel %vm4476, %v4474, %v3844
    %v4492 = vsel %vm4476, %v4475, %v3846
    %v4493 = vsel %vm130, %v4477, %v3880
    %v4494 = vsel %vm130, %v4478, %v3882
    %v4495 = vsel %vm130, %v4479, %v3884
    %v4496 = vsel %vm130, %v4480, %v3886
    %v4497 = vsel %vm130, %v4481, %v3888
    %v4498 = vsel %vm130, %v4482, %v3890
    %v4499 = vsel %vm130, %v4483, %v3892
    %v4500 = vsel %vm130, %v4484, %v3894
    %v4501 = vsel %vm130, %v4485, %v3896
    %v4502 = vsel %vm130, %v4486, %v3898
    %v4503 = vsel %vm130, %v4487, %v3900
    %v4504 = vsel %vm130, %v4488, %v3902
    %v4505 = vsel %vm130, %v4489, %v3904
    %v4506 = vsel %vm130, %v4490, %v3906
    %v4507 = vsel %vm130, %v4491, %v3908
    %v4508 = vsel %vm130, %v4492, %v3910
    %vm4509 = vcmask 146432
    %v4510 = vsel %vm4509, %v4493, %v3944
    %v4511 = vsel %vm4509, %v4494, %v3946
    %v4512 = vsel %vm4509, %v4495, %v3948
    %v4513 = vsel %vm4509, %v4496, %v3950
    %v4514 = vsel %vm4509, %v4497, %v3952
    %v4515 = vsel %vm4509, %v4498, %v3954
    %v4516 = vsel %vm4509, %v4499, %v3956
    %v4517 = vsel %vm4509, %v4500, %v3958
    %v4518 = vsel %vm4509, %v4501, %v3960
    %v4519 = vsel %vm4509, %v4502, %v3962
    %v4520 = vsel %vm4509, %v4503, %v3964
    %v4521 = vsel %vm4509, %v4504, %v3966
    %v4522 = vsel %vm4509, %v4505, %v3968
    %v4523 = vsel %vm4509, %v4506, %v3970
    %v4524 = vsel %vm4509, %v4507, %v3972
    %v4525 = vsel %vm4509, %v4508, %v3974
    %vm4526 = vcmask 162816
    %v4527 = vsel %vm4526, %v4510, %v4008
    %v4528 = vsel %vm4526, %v4511, %v4010
    %v4529 = vsel %vm4526, %v4512, %v4012
    %v4530 = vsel %vm4526, %v4513, %v4014
    %v4531 = vsel %vm4526, %v4514, %v4016
    %v4532 = vsel %vm4526, %v4515, %v4018
    %v4533 = vsel %vm4526, %v4516, %v4020
    %v4534 = vsel %vm4526, %v4517, %v4022
    %v4535 = vsel %vm4526, %v4518, %v4024
    %v4536 = vsel %vm4526, %v4519, %v4026
    %v4537 = vsel %vm4526, %v4520, %v4028
    %v4538 = vsel %vm4526, %v4521, %v4030
    %v4539 = vsel %vm4526, %v4522, %v4032
    %v4540 = vsel %vm4526, %v4523, %v4034
    %v4541 = vsel %vm4526, %v4524, %v4036
    %v4542 = vsel %vm4526, %v4525, %v4038
    %vm4543 = vcmask 179200
    %v4544 = vsel %vm4543, %v4527, %v4072
    %v4545 = vsel %vm4543, %v4528, %v4074
    %v4546 = vsel %vm4543, %v4529, %v4076
    %v4547 = vsel %vm4543, %v4530, %v4078
    %v4548 = vsel %vm4543, %v4531, %v4080
    %v4549 = vsel %vm4543, %v4532, %v4082
    %v4550 = vsel %vm4543, %v4533, %v4084
    %v4551 = vsel %vm4543, %v4534, %v4086
    %v4552 = vsel %vm4543, %v4535, %v4088
    %v4553 = vsel %vm4543, %v4536, %v4090
    %v4554 = vsel %vm4543, %v4537, %v4092
    %v4555 = vsel %vm4543, %v4538, %v4094
    %v4556 = vsel %vm4543, %v4539, %v4096
    %v4557 = vsel %vm4543, %v4540, %v4098
    %v4558 = vsel %vm4543, %v4541, %v4100
    %v4559 = vsel %vm4543, %v4542, %v4102
    %vm4560 = vcmask 195584
    %v4561 = vsel %vm4560, %v4544, %v4136
    %v4562 = vsel %vm4560, %v4545, %v4138
    %v4563 = vsel %vm4560, %v4546, %v4140
    %v4564 = vsel %vm4560, %v4547, %v4142
    %v4565 = vsel %vm4560, %v4548, %v4144
    %v4566 = vsel %vm4560, %v4549, %v4146
    %v4567 = vsel %vm4560, %v4550, %v4148
    %v4568 = vsel %vm4560, %v4551, %v4150
    %v4569 = vsel %vm4560, %v4552, %v4152
    %v4570 = vsel %vm4560, %v4553, %v4154
    %v4571 = vsel %vm4560, %v4554, %v4156
    %v4572 = vsel %vm4560, %v4555, %v4158
    %v4573 = vsel %vm4560, %v4556, %v4160
    %v4574 = vsel %vm4560, %v4557, %v4162
    %v4575 = vsel %vm4560, %v4558, %v4164
    %v4576 = vsel %vm4560, %v4559, %v4166
    %vm4577 = vcmask 211968
    %v4578 = vsel %vm4577, %v4561, %v4200
    %v4579 = vsel %vm4577, %v4562, %v4202
    %v4580 = vsel %vm4577, %v4563, %v4204
    %v4581 = vsel %vm4577, %v4564, %v4206
    %v4582 = vsel %vm4577, %v4565, %v4208
    %v4583 = vsel %vm4577, %v4566, %v4210
    %v4584 = vsel %vm4577, %v4567, %v4212
    %v4585 = vsel %vm4577, %v4568, %v4214
    %v4586 = vsel %vm4577, %v4569, %v4216
    %v4587 = vsel %vm4577, %v4570, %v4218
    %v4588 = vsel %vm4577, %v4571, %v4220
    %v4589 = vsel %vm4577, %v4572, %v4222
    %v4590 = vsel %vm4577, %v4573, %v4224
    %v4591 = vsel %vm4577, %v4574, %v4226
    %v4592 = vsel %vm4577, %v4575, %v4228
    %v4593 = vsel %vm4577, %v4576, %v4230
    %vm4594 = vcmask 228352
    %v4595 = vsel %vm4594, %v4578, %v4264
    %v4596 = vsel %vm4594, %v4579, %v4266
    %v4597 = vsel %vm4594, %v4580, %v4268
    %v4598 = vsel %vm4594, %v4581, %v4270
    %v4599 = vsel %vm4594, %v4582, %v4272
    %v4600 = vsel %vm4594, %v4583, %v4274
    %v4601 = vsel %vm4594, %v4584, %v4276
    %v4602 = vsel %vm4594, %v4585, %v4278
    %v4603 = vsel %vm4594, %v4586, %v4280
    %v4604 = vsel %vm4594, %v4587, %v4282
    %v4605 = vsel %vm4594, %v4588, %v4284
    %v4606 = vsel %vm4594, %v4589, %v4286
    %v4607 = vsel %vm4594, %v4590, %v4288
    %v4608 = vsel %vm4594, %v4591, %v4290
    %v4609 = vsel %vm4594, %v4592, %v4292
    %v4610 = vsel %vm4594, %v4593, %v4294
    %vm4611 = vcmask 244736
    %v4612 = vsel %vm4611, %v4595, %v4328
    %v4613 = vsel %vm4611, %v4596, %v4330
    %v4614 = vsel %vm4611, %v4597, %v4332
    %v4615 = vsel %vm4611, %v4598, %v4334
    %v4616 = vsel %vm4611, %v4599, %v4336
    %v4617 = vsel %vm4611, %v4600, %v4338
    %v4618 = vsel %vm4611, %v4601, %v4340
    %v4619 = vsel %vm4611, %v4602, %v4342
    %v4620 = vsel %vm4611, %v4603, %v4344
    %v4621 = vsel %vm4611, %v4604, %v4346
    %v4622 = vsel %vm4611, %v4605, %v4348
    %v4623 = vsel %vm4611, %v4606, %v4350
    %v4624 = vsel %vm4611, %v4607, %v4352
    %v4625 = vsel %vm4611, %v4608, %v4354
    %v4626 = vsel %vm4611, %v4609, %v4356
    %v4627 = vsel %vm4611, %v4610, %v4358
    %4644 = vrot.lane.b32.xlu0 %v2900, 2
    %v4645 = vpop.permute.xlu0 %4644
    %4646 = vrot.lane.b32.xlu0 %v2901, 2
    %v4647 = vpop.permute.xlu0 %4646
    %4648 = vrot.lane.b32.xlu0 %v2902, 2
    %v4649 = vpop.permute.xlu0 %4648
    %4650 = vrot.lane.b32.xlu0 %v2903, 2
    %v4651 = vpop.permute.xlu0 %4650
    %4652 = vrot.lane.b32.xlu0 %v2904, 2
    %v4653 = vpop.permute.xlu0 %4652
    %4654 = vrot.lane.b32.xlu0 %v2905, 2
    %v4655 = vpop.permute.xlu0 %4654
    %4656 = vrot.lane.b32.xlu0 %v2906, 2
    %v4657 = vpop.permute.xlu0 %4656
    %4658 = vrot.lane.b32.xlu0 %v2907, 2
    %v4659 = vpop.permute.xlu0 %4658
    %4660 = vrot.lane.b32.xlu0 %v2908, 2
    %v4661 = vpop.permute.xlu0 %4660
    %4662 = vrot.lane.b32.xlu0 %v2909, 2
    %v4663 = vpop.permute.xlu0 %4662
    %4664 = vrot.lane.b32.xlu0 %v2910, 2
    %v4665 = vpop.permute.xlu0 %4664
    %4666 = vrot.lane.b32.xlu0 %v2911, 2
    %v4667 = vpop.permute.xlu0 %4666
    %4668 = vrot.lane.b32.xlu0 %v2912, 2
    %v4669 = vpop.permute.xlu0 %4668
    %4670 = vrot.lane.b32.xlu0 %v2913, 2
    %v4671 = vpop.permute.xlu0 %4670
    %4672 = vrot.lane.b32.xlu0 %v2914, 2
    %v4673 = vpop.permute.xlu0 %4672
    %4674 = vrot.lane.b32.xlu0 %v2915, 2
    %v4675 = vpop.permute.xlu0 %4674
    %4708 = vrot.lane.b32.xlu0 %v2916, 4
    %v4709 = vpop.permute.xlu0 %4708
    %4710 = vrot.lane.b32.xlu0 %v2917, 4
    %v4711 = vpop.permute.xlu0 %4710
    %4712 = vrot.lane.b32.xlu0 %v2918, 4
    %v4713 = vpop.permute.xlu0 %4712
    %4714 = vrot.lane.b32.xlu0 %v2919, 4
    %v4715 = vpop.permute.xlu0 %4714
    %4716 = vrot.lane.b32.xlu0 %v2920, 4
    %v4717 = vpop.permute.xlu0 %4716
    %4718 = vrot.lane.b32.xlu0 %v2921, 4
    %v4719 = vpop.permute.xlu0 %4718
    %4720 = vrot.lane.b32.xlu0 %v2922, 4
    %v4721 = vpop.permute.xlu0 %4720
    %4722 = vrot.lane.b32.xlu0 %v2923, 4
    %v4723 = vpop.permute.xlu0 %4722
    %4724 = vrot.lane.b32.xlu0 %v2924, 4
    %v4725 = vpop.permute.xlu0 %4724
    %4726 = vrot.lane.b32.xlu0 %v2925, 4
    %v4727 = vpop.permute.xlu0 %4726
    %4728 = vrot.lane.b32.xlu0 %v2926, 4
    %v4729 = vpop.permute.xlu0 %4728
    %4730 = vrot.lane.b32.xlu0 %v2927, 4
    %v4731 = vpop.permute.xlu0 %4730
    %4732 = vrot.lane.b32.xlu0 %v2928, 4
    %v4733 = vpop.permute.xlu0 %4732
    %4734 = vrot.lane.b32.xlu0 %v2929, 4
    %v4735 = vpop.permute.xlu0 %4734
    %4736 = vrot.lane.b32.xlu0 %v2930, 4
    %v4737 = vpop.permute.xlu0 %4736
    %4738 = vrot.lane.b32.xlu0 %v2931, 4
    %v4739 = vpop.permute.xlu0 %4738
    %4772 = vrot.lane.b32.xlu0 %v2932, 6
    %v4773 = vpop.permute.xlu0 %4772
    %4774 = vrot.lane.b32.xlu0 %v2933, 6
    %v4775 = vpop.permute.xlu0 %4774
    %4776 = vrot.lane.b32.xlu0 %v2934, 6
    %v4777 = vpop.permute.xlu0 %4776
    %4778 = vrot.lane.b32.xlu0 %v2935, 6
    %v4779 = vpop.permute.xlu0 %4778
    %4780 = vrot.lane.b32.xlu0 %v2936, 6
    %v4781 = vpop.permute.xlu0 %4780
    %4782 = vrot.lane.b32.xlu0 %v2937, 6
    %v4783 = vpop.permute.xlu0 %4782
    %4784 = vrot.lane.b32.xlu0 %v2938, 6
    %v4785 = vpop.permute.xlu0 %4784
    %4786 = vrot.lane.b32.xlu0 %v2939, 6
    %v4787 = vpop.permute.xlu0 %4786
    %4788 = vrot.lane.b32.xlu0 %v2940, 6
    %v4789 = vpop.permute.xlu0 %4788
    %4790 = vrot.lane.b32.xlu0 %v2941, 6
    %v4791 = vpop.permute.xlu0 %4790
    %4792 = vrot.lane.b32.xlu0 %v2942, 6
    %v4793 = vpop.permute.xlu0 %4792
    %4794 = vrot.lane.b32.xlu0 %v2943, 6
    %v4795 = vpop.permute.xlu0 %4794
    %4796 = vrot.lane.b32.xlu0 %v2944, 6
    %v4797 = vpop.permute.xlu0 %4796
    %4798 = vrot.lane.b32.xlu0 %v2945, 6
    %v4799 = vpop.permute.xlu0 %4798
    %4800 = vrot.lane.b32.xlu0 %v2946, 6
    %v4801 = vpop.permute.xlu0 %4800
    %4802 = vrot.lane.b32.xlu0 %v2947, 6
    %v4803 = vpop.permute.xlu0 %4802
    %4836 = vrot.lane.b32.xlu0 %v2948, 8
    %v4837 = vpop.permute.xlu0 %4836
    %4838 = vrot.lane.b32.xlu0 %v2949, 8
    %v4839 = vpop.permute.xlu0 %4838
    %4840 = vrot.lane.b32.xlu0 %v2950, 8
    %v4841 = vpop.permute.xlu0 %4840
    %4842 = vrot.lane.b32.xlu0 %v2951, 8
    %v4843 = vpop.permute.xlu0 %4842
    %4844 = vrot.lane.b32.xlu0 %v2952, 8
    %v4845 = vpop.permute.xlu0 %4844
    %4846 = vrot.lane.b32.xlu0 %v2953, 8
    %v4847 = vpop.permute.xlu0 %4846
    %4848 = vrot.lane.b32.xlu0 %v2954, 8
    %v4849 = vpop.permute.xlu0 %4848
    %4850 = vrot.lane.b32.xlu0 %v2955, 8
    %v4851 = vpop.permute.xlu0 %4850
    %4852 = vrot.lane.b32.xlu0 %v2956, 8
    %v4853 = vpop.permute.xlu0 %4852
    %4854 = vrot.lane.b32.xlu0 %v2957, 8
    %v4855 = vpop.permute.xlu0 %4854
    %4856 = vrot.lane.b32.xlu0 %v2958, 8
    %v4857 = vpop.permute.xlu0 %4856
    %4858 = vrot.lane.b32.xlu0 %v2959, 8
    %v4859 = vpop.permute.xlu0 %4858
    %4860 = vrot.lane.b32.xlu0 %v2960, 8
    %v4861 = vpop.permute.xlu0 %4860
    %4862 = vrot.lane.b32.xlu0 %v2961, 8
    %v4863 = vpop.permute.xlu0 %4862
    %4864 = vrot.lane.b32.xlu0 %v2962, 8
    %v4865 = vpop.permute.xlu0 %4864
    %4866 = vrot.lane.b32.xlu0 %v2963, 8
    %v4867 = vpop.permute.xlu0 %4866
    %4900 = vrot.lane.b32.xlu0 %v2964, 10
    %v4901 = vpop.permute.xlu0 %4900
    %4902 = vrot.lane.b32.xlu0 %v2965, 10
    %v4903 = vpop.permute.xlu0 %4902
    %4904 = vrot.lane.b32.xlu0 %v2966, 10
    %v4905 = vpop.permute.xlu0 %4904
    %4906 = vrot.lane.b32.xlu0 %v2967, 10
    %v4907 = vpop.permute.xlu0 %4906
    %4908 = vrot.lane.b32.xlu0 %v2968, 10
    %v4909 = vpop.permute.xlu0 %4908
    %4910 = vrot.lane.b32.xlu0 %v2969, 10
    %v4911 = vpop.permute.xlu0 %4910
    %4912 = vrot.lane.b32.xlu0 %v2970, 10
    %v4913 = vpop.permute.xlu0 %4912
    %4914 = vrot.lane.b32.xlu0 %v2971, 10
    %v4915 = vpop.permute.xlu0 %4914
    %4916 = vrot.lane.b32.xlu0 %v2972, 10
    %v4917 = vpop.permute.xlu0 %4916
    %4918 = vrot.lane.b32.xlu0 %v2973, 10
    %v4919 = vpop.permute.xlu0 %4918
    %4920 = vrot.lane.b32.xlu0 %v2974, 10
    %v4921 = vpop.permute.xlu0 %4920
    %4922 = vrot.lane.b32.xlu0 %v2975, 10
    %v4923 = vpop.permute.xlu0 %4922
    %4924 = vrot.lane.b32.xlu0 %v2976, 10
    %v4925 = vpop.permute.xlu0 %4924
    %4926 = vrot.lane.b32.xlu0 %v2977, 10
    %v4927 = vpop.permute.xlu0 %4926
    %4928 = vrot.lane.b32.xlu0 %v2978, 10
    %v4929 = vpop.permute.xlu0 %4928
    %4930 = vrot.lane.b32.xlu0 %v2979, 10
    %v4931 = vpop.permute.xlu0 %4930
    %4964 = vrot.lane.b32.xlu0 %v2980, 12
    %v4965 = vpop.permute.xlu0 %4964
    %4966 = vrot.lane.b32.xlu0 %v2981, 12
    %v4967 = vpop.permute.xlu0 %4966
    %4968 = vrot.lane.b32.xlu0 %v2982, 12
    %v4969 = vpop.permute.xlu0 %4968
    %4970 = vrot.lane.b32.xlu0 %v2983, 12
    %v4971 = vpop.permute.xlu0 %4970
    %4972 = vrot.lane.b32.xlu0 %v2984, 12
    %v4973 = vpop.permute.xlu0 %4972
    %4974 = vrot.lane.b32.xlu0 %v2985, 12
    %v4975 = vpop.permute.xlu0 %4974
    %4976 = vrot.lane.b32.xlu0 %v2986, 12
    %v4977 = vpop.permute.xlu0 %4976
    %4978 = vrot.lane.b32.xlu0 %v2987, 12
    %v4979 = vpop.permute.xlu0 %4978
    %4980 = vrot.lane.b32.xlu0 %v2988, 12
    %v4981 = vpop.permute.xlu0 %4980
    %4982 = vrot.lane.b32.xlu0 %v2989, 12
    %v4983 = vpop.permute.xlu0 %4982
    %4984 = vrot.lane.b32.xlu0 %v2990, 12
    %v4985 = vpop.permute.xlu0 %4984
    %4986 = vrot.lane.b32.xlu0 %v2991, 12
    %v4987 = vpop.permute.xlu0 %4986
    %4988 = vrot.lane.b32.xlu0 %v2992, 12
    %v4989 = vpop.permute.xlu0 %4988
    %4990 = vrot.lane.b32.xlu0 %v2993, 12
    %v4991 = vpop.permute.xlu0 %4990
    %4992 = vrot.lane.b32.xlu0 %v2994, 12
    %v4993 = vpop.permute.xlu0 %4992
    %4994 = vrot.lane.b32.xlu0 %v2995, 12
    %v4995 = vpop.permute.xlu0 %4994
    %5028 = vrot.lane.b32.xlu0 %v2996, 14
    %v5029 = vpop.permute.xlu0 %5028
    %5030 = vrot.lane.b32.xlu0 %v2997, 14
    %v5031 = vpop.permute.xlu0 %5030
    %5032 = vrot.lane.b32.xlu0 %v2998, 14
    %v5033 = vpop.permute.xlu0 %5032
    %5034 = vrot.lane.b32.xlu0 %v2999, 14
    %v5035 = vpop.permute.xlu0 %5034
    %5036 = vrot.lane.b32.xlu0 %v3000, 14
    %v5037 = vpop.permute.xlu0 %5036
    %5038 = vrot.lane.b32.xlu0 %v3001, 14
    %v5039 = vpop.permute.xlu0 %5038
    %5040 = vrot.lane.b32.xlu0 %v3002, 14
    %v5041 = vpop.permute.xlu0 %5040
    %5042 = vrot.lane.b32.xlu0 %v3003, 14
    %v5043 = vpop.permute.xlu0 %5042
    %5044 = vrot.lane.b32.xlu0 %v3004, 14
    %v5045 = vpop.permute.xlu0 %5044
    %5046 = vrot.lane.b32.xlu0 %v3005, 14
    %v5047 = vpop.permute.xlu0 %5046
    %5048 = vrot.lane.b32.xlu0 %v3006, 14
    %v5049 = vpop.permute.xlu0 %5048
    %5050 = vrot.lane.b32.xlu0 %v3007, 14
    %v5051 = vpop.permute.xlu0 %5050
    %5052 = vrot.lane.b32.xlu0 %v3008, 14
    %v5053 = vpop.permute.xlu0 %5052
    %5054 = vrot.lane.b32.xlu0 %v3009, 14
    %v5055 = vpop.permute.xlu0 %5054
    %5056 = vrot.lane.b32.xlu0 %v3010, 14
    %v5057 = vpop.permute.xlu0 %5056
    %5058 = vrot.lane.b32.xlu0 %v3011, 14
    %v5059 = vpop.permute.xlu0 %5058
    %5092 = vrot.lane.b32.xlu0 %v3012, 16
    %v5093 = vpop.permute.xlu0 %5092
    %5094 = vrot.lane.b32.xlu0 %v3013, 16
    %v5095 = vpop.permute.xlu0 %5094
    %5096 = vrot.lane.b32.xlu0 %v3014, 16
    %v5097 = vpop.permute.xlu0 %5096
    %5098 = vrot.lane.b32.xlu0 %v3015, 16
    %v5099 = vpop.permute.xlu0 %5098
    %5100 = vrot.lane.b32.xlu0 %v3016, 16
    %v5101 = vpop.permute.xlu0 %5100
    %5102 = vrot.lane.b32.xlu0 %v3017, 16
    %v5103 = vpop.permute.xlu0 %5102
    %5104 = vrot.lane.b32.xlu0 %v3018, 16
    %v5105 = vpop.permute.xlu0 %5104
    %5106 = vrot.lane.b32.xlu0 %v3019, 16
    %v5107 = vpop.permute.xlu0 %5106
    %5108 = vrot.lane.b32.xlu0 %v3020, 16
    %v5109 = vpop.permute.xlu0 %5108
    %5110 = vrot.lane.b32.xlu0 %v3021, 16
    %v5111 = vpop.permute.xlu0 %5110
    %5112 = vrot.lane.b32.xlu0 %v3022, 16
    %v5113 = vpop.permute.xlu0 %5112
    %5114 = vrot.lane.b32.xlu0 %v3023, 16
    %v5115 = vpop.permute.xlu0 %5114
    %5116 = vrot.lane.b32.xlu0 %v3024, 16
    %v5117 = vpop.permute.xlu0 %5116
    %5118 = vrot.lane.b32.xlu0 %v3025, 16
    %v5119 = vpop.permute.xlu0 %5118
    %5120 = vrot.lane.b32.xlu0 %v3026, 16
    %v5121 = vpop.permute.xlu0 %5120
    %5122 = vrot.lane.b32.xlu0 %v3027, 16
    %v5123 = vpop.permute.xlu0 %5122
    %5156 = vrot.lane.b32.xlu0 %v3028, 18
    %v5157 = vpop.permute.xlu0 %5156
    %5158 = vrot.lane.b32.xlu0 %v3029, 18
    %v5159 = vpop.permute.xlu0 %5158
    %5160 = vrot.lane.b32.xlu0 %v3030, 18
    %v5161 = vpop.permute.xlu0 %5160
    %5162 = vrot.lane.b32.xlu0 %v3031, 18
    %v5163 = vpop.permute.xlu0 %5162
    %5164 = vrot.lane.b32.xlu0 %v3032, 18
    %v5165 = vpop.permute.xlu0 %5164
    %5166 = vrot.lane.b32.xlu0 %v3033, 18
    %v5167 = vpop.permute.xlu0 %5166
    %5168 = vrot.lane.b32.xlu0 %v3034, 18
    %v5169 = vpop.permute.xlu0 %5168
    %5170 = vrot.lane.b32.xlu0 %v3035, 18
    %v5171 = vpop.permute.xlu0 %5170
    %5172 = vrot.lane.b32.xlu0 %v3036, 18
    %v5173 = vpop.permute.xlu0 %5172
    %5174 = vrot.lane.b32.xlu0 %v3037, 18
    %v5175 = vpop.permute.xlu0 %5174
    %5176 = vrot.lane.b32.xlu0 %v3038, 18
    %v5177 = vpop.permute.xlu0 %5176
    %5178 = vrot.lane.b32.xlu0 %v3039, 18
    %v5179 = vpop.permute.xlu0 %5178
    %5180 = vrot.lane.b32.xlu0 %v3040, 18
    %v5181 = vpop.permute.xlu0 %5180
    %5182 = vrot.lane.b32.xlu0 %v3041, 18
    %v5183 = vpop.permute.xlu0 %5182
    %5184 = vrot.lane.b32.xlu0 %v3042, 18
    %v5185 = vpop.permute.xlu0 %5184
    %5186 = vrot.lane.b32.xlu0 %v3043, 18
    %v5187 = vpop.permute.xlu0 %5186
    %5220 = vrot.lane.b32.xlu0 %v3044, 20
    %v5221 = vpop.permute.xlu0 %5220
    %5222 = vrot.lane.b32.xlu0 %v3045, 20
    %v5223 = vpop.permute.xlu0 %5222
    %5224 = vrot.lane.b32.xlu0 %v3046, 20
    %v5225 = vpop.permute.xlu0 %5224
    %5226 = vrot.lane.b32.xlu0 %v3047, 20
    %v5227 = vpop.permute.xlu0 %5226
    %5228 = vrot.lane.b32.xlu0 %v3048, 20
    %v5229 = vpop.permute.xlu0 %5228
    %5230 = vrot.lane.b32.xlu0 %v3049, 20
    %v5231 = vpop.permute.xlu0 %5230
    %5232 = vrot.lane.b32.xlu0 %v3050, 20
    %v5233 = vpop.permute.xlu0 %5232
    %5234 = vrot.lane.b32.xlu0 %v3051, 20
    %v5235 = vpop.permute.xlu0 %5234
    %5236 = vrot.lane.b32.xlu0 %v3052, 20
    %v5237 = vpop.permute.xlu0 %5236
    %5238 = vrot.lane.b32.xlu0 %v3053, 20
    %v5239 = vpop.permute.xlu0 %5238
    %5240 = vrot.lane.b32.xlu0 %v3054, 20
    %v5241 = vpop.permute.xlu0 %5240
    %5242 = vrot.lane.b32.xlu0 %v3055, 20
    %v5243 = vpop.permute.xlu0 %5242
    %5244 = vrot.lane.b32.xlu0 %v3056, 20
    %v5245 = vpop.permute.xlu0 %5244
    %5246 = vrot.lane.b32.xlu0 %v3057, 20
    %v5247 = vpop.permute.xlu0 %5246
    %5248 = vrot.lane.b32.xlu0 %v3058, 20
    %v5249 = vpop.permute.xlu0 %5248
    %5250 = vrot.lane.b32.xlu0 %v3059, 20
    %v5251 = vpop.permute.xlu0 %5250
    %5284 = vrot.lane.b32.xlu0 %v3060, 22
    %v5285 = vpop.permute.xlu0 %5284
    %5286 = vrot.lane.b32.xlu0 %v3061, 22
    %v5287 = vpop.permute.xlu0 %5286
    %5288 = vrot.lane.b32.xlu0 %v3062, 22
    %v5289 = vpop.permute.xlu0 %5288
    %5290 = vrot.lane.b32.xlu0 %v3063, 22
    %v5291 = vpop.permute.xlu0 %5290
    %5292 = vrot.lane.b32.xlu0 %v3064, 22
    %v5293 = vpop.permute.xlu0 %5292
    %5294 = vrot.lane.b32.xlu0 %v3065, 22
    %v5295 = vpop.permute.xlu0 %5294
    %5296 = vrot.lane.b32.xlu0 %v3066, 22
    %v5297 = vpop.permute.xlu0 %5296
    %5298 = vrot.lane.b32.xlu0 %v3067, 22
    %v5299 = vpop.permute.xlu0 %5298
    %5300 = vrot.lane.b32.xlu0 %v3068, 22
    %v5301 = vpop.permute.xlu0 %5300
    %5302 = vrot.lane.b32.xlu0 %v3069, 22
    %v5303 = vpop.permute.xlu0 %5302
    %5304 = vrot.lane.b32.xlu0 %v3070, 22
    %v5305 = vpop.permute.xlu0 %5304
    %5306 = vrot.lane.b32.xlu0 %v3071, 22
    %v5307 = vpop.permute.xlu0 %5306
    %5308 = vrot.lane.b32.xlu0 %v3072, 22
    %v5309 = vpop.permute.xlu0 %5308
    %5310 = vrot.lane.b32.xlu0 %v3073, 22
    %v5311 = vpop.permute.xlu0 %5310
    %5312 = vrot.lane.b32.xlu0 %v3074, 22
    %v5313 = vpop.permute.xlu0 %5312
    %5314 = vrot.lane.b32.xlu0 %v3075, 22
    %v5315 = vpop.permute.xlu0 %5314
    %5348 = vrot.lane.b32.xlu0 %v3077, 24
    %v5349 = vpop.permute.xlu0 %5348
    %5350 = vrot.lane.b32.xlu0 %v3078, 24
    %v5351 = vpop.permute.xlu0 %5350
    %5352 = vrot.lane.b32.xlu0 %v3079, 24
    %v5353 = vpop.permute.xlu0 %5352
    %5354 = vrot.lane.b32.xlu0 %v3080, 24
    %v5355 = vpop.permute.xlu0 %5354
    %5356 = vrot.lane.b32.xlu0 %v3081, 24
    %v5357 = vpop.permute.xlu0 %5356
    %5358 = vrot.lane.b32.xlu0 %v3082, 24
    %v5359 = vpop.permute.xlu0 %5358
    %5360 = vrot.lane.b32.xlu0 %v3083, 24
    %v5361 = vpop.permute.xlu0 %5360
    %5362 = vrot.lane.b32.xlu0 %v3084, 24
    %v5363 = vpop.permute.xlu0 %5362
    %5364 = vrot.lane.b32.xlu0 %v3085, 24
    %v5365 = vpop.permute.xlu0 %5364
    %5366 = vrot.lane.b32.xlu0 %v3086, 24
    %v5367 = vpop.permute.xlu0 %5366
    %5368 = vrot.lane.b32.xlu0 %v3087, 24
    %v5369 = vpop.permute.xlu0 %5368
    %5370 = vrot.lane.b32.xlu0 %v3088, 24
    %v5371 = vpop.permute.xlu0 %5370
    %5372 = vrot.lane.b32.xlu0 %v3089, 24
    %v5373 = vpop.permute.xlu0 %5372
    %5374 = vrot.lane.b32.xlu0 %v3090, 24
    %v5375 = vpop.permute.xlu0 %5374
    %5376 = vrot.lane.b32.xlu0 %v3091, 24
    %v5377 = vpop.permute.xlu0 %5376
    %5378 = vrot.lane.b32.xlu0 %v3092, 24
    %v5379 = vpop.permute.xlu0 %5378
    %5412 = vrot.lane.b32.xlu0 %v3093, 26
    %v5413 = vpop.permute.xlu0 %5412
    %5414 = vrot.lane.b32.xlu0 %v3094, 26
    %v5415 = vpop.permute.xlu0 %5414
    %5416 = vrot.lane.b32.xlu0 %v3095, 26
    %v5417 = vpop.permute.xlu0 %5416
    %5418 = vrot.lane.b32.xlu0 %v3096, 26
    %v5419 = vpop.permute.xlu0 %5418
    %5420 = vrot.lane.b32.xlu0 %v3097, 26
    %v5421 = vpop.permute.xlu0 %5420
    %5422 = vrot.lane.b32.xlu0 %v3098, 26
    %v5423 = vpop.permute.xlu0 %5422
    %5424 = vrot.lane.b32.xlu0 %v3099, 26
    %v5425 = vpop.permute.xlu0 %5424
    %5426 = vrot.lane.b32.xlu0 %v3100, 26
    %v5427 = vpop.permute.xlu0 %5426
    %5428 = vrot.lane.b32.xlu0 %v3101, 26
    %v5429 = vpop.permute.xlu0 %5428
    %5430 = vrot.lane.b32.xlu0 %v3102, 26
    %v5431 = vpop.permute.xlu0 %5430
    %5432 = vrot.lane.b32.xlu0 %v3103, 26
    %v5433 = vpop.permute.xlu0 %5432
    %5434 = vrot.lane.b32.xlu0 %v3104, 26
    %v5435 = vpop.permute.xlu0 %5434
    %5436 = vrot.lane.b32.xlu0 %v3105, 26
    %v5437 = vpop.permute.xlu0 %5436
    %5438 = vrot.lane.b32.xlu0 %v3106, 26
    %v5439 = vpop.permute.xlu0 %5438
    %5440 = vrot.lane.b32.xlu0 %v3107, 26
    %v5441 = vpop.permute.xlu0 %5440
    %5442 = vrot.lane.b32.xlu0 %v3108, 26
    %v5443 = vpop.permute.xlu0 %5442
    %5476 = vrot.lane.b32.xlu0 %v3109, 28
    %v5477 = vpop.permute.xlu0 %5476
    %5478 = vrot.lane.b32.xlu0 %v3110, 28
    %v5479 = vpop.permute.xlu0 %5478
    %5480 = vrot.lane.b32.xlu0 %v3111, 28
    %v5481 = vpop.permute.xlu0 %5480
    %5482 = vrot.lane.b32.xlu0 %v3112, 28
    %v5483 = vpop.permute.xlu0 %5482
    %5484 = vrot.lane.b32.xlu0 %v3113, 28
    %v5485 = vpop.permute.xlu0 %5484
    %5486 = vrot.lane.b32.xlu0 %v3114, 28
    %v5487 = vpop.permute.xlu0 %5486
    %5488 = vrot.lane.b32.xlu0 %v3115, 28
    %v5489 = vpop.permute.xlu0 %5488
    %5490 = vrot.lane.b32.xlu0 %v3116, 28
    %v5491 = vpop.permute.xlu0 %5490
    %5492 = vrot.lane.b32.xlu0 %v3117, 28
    %v5493 = vpop.permute.xlu0 %5492
    %5494 = vrot.lane.b32.xlu0 %v3118, 28
    %v5495 = vpop.permute.xlu0 %5494
    %5496 = vrot.lane.b32.xlu0 %v3119, 28
    %v5497 = vpop.permute.xlu0 %5496
    %5498 = vrot.lane.b32.xlu0 %v3120, 28
    %v5499 = vpop.permute.xlu0 %5498
    %5500 = vrot.lane.b32.xlu0 %v3121, 28
    %v5501 = vpop.permute.xlu0 %5500
    %5502 = vrot.lane.b32.xlu0 %v3122, 28
    %v5503 = vpop.permute.xlu0 %5502
    %5504 = vrot.lane.b32.xlu0 %v3123, 28
    %v5505 = vpop.permute.xlu0 %5504
    %5506 = vrot.lane.b32.xlu0 %v3124, 28
    %v5507 = vpop.permute.xlu0 %5506
    %5540 = vrot.lane.b32.xlu0 %v3125, 30
    %v5541 = vpop.permute.xlu0 %5540
    %5542 = vrot.lane.b32.xlu0 %v3126, 30
    %v5543 = vpop.permute.xlu0 %5542
    %5544 = vrot.lane.b32.xlu0 %v3127, 30
    %v5545 = vpop.permute.xlu0 %5544
    %5546 = vrot.lane.b32.xlu0 %v3128, 30
    %v5547 = vpop.permute.xlu0 %5546
    %5548 = vrot.lane.b32.xlu0 %v3129, 30
    %v5549 = vpop.permute.xlu0 %5548
    %5550 = vrot.lane.b32.xlu0 %v3130, 30
    %v5551 = vpop.permute.xlu0 %5550
    %5552 = vrot.lane.b32.xlu0 %v3131, 30
    %v5553 = vpop.permute.xlu0 %5552
    %5554 = vrot.lane.b32.xlu0 %v3132, 30
    %v5555 = vpop.permute.xlu0 %5554
    %5556 = vrot.lane.b32.xlu0 %v3133, 30
    %v5557 = vpop.permute.xlu0 %5556
    %5558 = vrot.lane.b32.xlu0 %v3134, 30
    %v5559 = vpop.permute.xlu0 %5558
    %5560 = vrot.lane.b32.xlu0 %v3135, 30
    %v5561 = vpop.permute.xlu0 %5560
    %5562 = vrot.lane.b32.xlu0 %v3136, 30
    %v5563 = vpop.permute.xlu0 %5562
    %5564 = vrot.lane.b32.xlu0 %v3137, 30
    %v5565 = vpop.permute.xlu0 %5564
    %5566 = vrot.lane.b32.xlu0 %v3138, 30
    %v5567 = vpop.permute.xlu0 %5566
    %5568 = vrot.lane.b32.xlu0 %v3139, 30
    %v5569 = vpop.permute.xlu0 %5568
    %5570 = vrot.lane.b32.xlu0 %v3140, 30
    %v5571 = vpop.permute.xlu0 %5570
    %v5588 = vsel %vm2551, %v2884, %v4645
    %v5589 = vsel %vm2551, %v2885, %v4647
    %v5590 = vsel %vm2551, %v2886, %v4649
    %v5591 = vsel %vm2551, %v2887, %v4651
    %v5592 = vsel %vm2551, %v2888, %v4653
    %v5593 = vsel %vm2551, %v2889, %v4655
    %v5594 = vsel %vm2551, %v2890, %v4657
    %v5595 = vsel %vm2551, %v2891, %v4659
    %v5596 = vsel %vm2551, %v2892, %v4661
    %v5597 = vsel %vm2551, %v2893, %v4663
    %v5598 = vsel %vm2551, %v2894, %v4665
    %v5599 = vsel %vm2551, %v2895, %v4667
    %v5600 = vsel %vm2551, %v2896, %v4669
    %v5601 = vsel %vm2551, %v2897, %v4671
    %v5602 = vsel %vm2551, %v2898, %v4673
    %v5603 = vsel %vm2551, %v2899, %v4675
    %v5604 = vsel %vm4391, %v5588, %v4709
    %v5605 = vsel %vm4391, %v5589, %v4711
    %v5606 = vsel %vm4391, %v5590, %v4713
    %v5607 = vsel %vm4391, %v5591, %v4715
    %v5608 = vsel %vm4391, %v5592, %v4717
    %v5609 = vsel %vm4391, %v5593, %v4719
    %v5610 = vsel %vm4391, %v5594, %v4721
    %v5611 = vsel %vm4391, %v5595, %v4723
    %v5612 = vsel %vm4391, %v5596, %v4725
    %v5613 = vsel %vm4391, %v5597, %v4727
    %v5614 = vsel %vm4391, %v5598, %v4729
    %v5615 = vsel %vm4391, %v5599, %v4731
    %v5616 = vsel %vm4391, %v5600, %v4733
    %v5617 = vsel %vm4391, %v5601, %v4735
    %v5618 = vsel %vm4391, %v5602, %v4737
    %v5619 = vsel %vm4391, %v5603, %v4739
    %v5620 = vsel %vm4408, %v5604, %v4773
    %v5621 = vsel %vm4408, %v5605, %v4775
    %v5622 = vsel %vm4408, %v5606, %v4777
    %v5623 = vsel %vm4408, %v5607, %v4779
    %v5624 = vsel %vm4408, %v5608, %v4781
    %v5625 = vsel %vm4408, %v5609, %v4783
    %v5626 = vsel %vm4408, %v5610, %v4785
    %v5627 = vsel %vm4408, %v5611, %v4787
    %v5628 = vsel %vm4408, %v5612, %v4789
    %v5629 = vsel %vm4408, %v5613, %v4791
    %v5630 = vsel %vm4408, %v5614, %v4793
    %v5631 = vsel %vm4408, %v5615, %v4795
    %v5632 = vsel %vm4408, %v5616, %v4797
    %v5633 = vsel %vm4408, %v5617, %v4799
    %v5634 = vsel %vm4408, %v5618, %v4801
    %v5635 = vsel %vm4408, %v5619, %v4803
    %v5636 = vsel %vm4425, %v5620, %v4837
    %v5637 = vsel %vm4425, %v5621, %v4839
    %v5638 = vsel %vm4425, %v5622, %v4841
    %v5639 = vsel %vm4425, %v5623, %v4843
    %v5640 = vsel %vm4425, %v5624, %v4845
    %v5641 = vsel %vm4425, %v5625, %v4847
    %v5642 = vsel %vm4425, %v5626, %v4849
    %v5643 = vsel %vm4425, %v5627, %v4851
    %v5644 = vsel %vm4425, %v5628, %v4853
    %v5645 = vsel %vm4425, %v5629, %v4855
    %v5646 = vsel %vm4425, %v5630, %v4857
    %v5647 = vsel %vm4425, %v5631, %v4859
    %v5648 = vsel %vm4425, %v5632, %v4861
    %v5649 = vsel %vm4425, %v5633, %v4863
    %v5650 = vsel %vm4425, %v5634, %v4865
    %v5651 = vsel %vm4425, %v5635, %v4867
    %v5652 = vsel %vm4442, %v5636, %v4901
    %v5653 = vsel %vm4442, %v5637, %v4903
    %v5654 = vsel %vm4442, %v5638, %v4905
    %v5655 = vsel %vm4442, %v5639, %v4907
    %v5656 = vsel %vm4442, %v5640, %v4909
    %v5657 = vsel %vm4442, %v5641, %v4911
    %v5658 = vsel %vm4442, %v5642, %v4913
    %v5659 = vsel %vm4442, %v5643, %v4915
    %v5660 = vsel %vm4442, %v5644, %v4917
    %v5661 = vsel %vm4442, %v5645, %v4919
    %v5662 = vsel %vm4442, %v5646, %v4921
    %v5663 = vsel %vm4442, %v5647, %v4923
    %v5664 = vsel %vm4442, %v5648, %v4925
    %v5665 = vsel %vm4442, %v5649, %v4927
    %v5666 = vsel %vm4442, %v5650, %v4929
    %v5667 = vsel %vm4442, %v5651, %v4931
    %v5668 = vsel %vm4459, %v5652, %v4965
    %v5669 = vsel %vm4459, %v5653, %v4967
    %v5670 = vsel %vm4459, %v5654, %v4969
    %v5671 = vsel %vm4459, %v5655, %v4971
    %v5672 = vsel %vm4459, %v5656, %v4973
    %v5673 = vsel %vm4459, %v5657, %v4975
    %v5674 = vsel %vm4459, %v5658, %v4977
    %v5675 = vsel %vm4459, %v5659, %v4979
    %v5676 = vsel %vm4459, %v5660, %v4981
    %v5677 = vsel %vm4459, %v5661, %v4983
    %v5678 = vsel %vm4459, %v5662, %v4985
    %v5679 = vsel %vm4459, %v5663, %v4987
    %v5680 = vsel %vm4459, %v5664, %v4989
    %v5681 = vsel %vm4459, %v5665, %v4991
    %v5682 = vsel %vm4459, %v5666, %v4993
    %v5683 = vsel %vm4459, %v5667, %v4995
    %v5684 = vsel %vm4476, %v5668, %v5029
    %v5685 = vsel %vm4476, %v5669, %v5031
    %v5686 = vsel %vm4476, %v5670, %v5033
    %v5687 = vsel %vm4476, %v5671, %v5035
    %v5688 = vsel %vm4476, %v5672, %v5037
    %v5689 = vsel %vm4476, %v5673, %v5039
    %v5690 = vsel %vm4476, %v5674, %v5041
    %v5691 = vsel %vm4476, %v5675, %v5043
    %v5692 = vsel %vm4476, %v5676, %v5045
    %v5693 = vsel %vm4476, %v5677, %v5047
    %v5694 = vsel %vm4476, %v5678, %v5049
    %v5695 = vsel %vm4476, %v5679, %v5051
    %v5696 = vsel %vm4476, %v5680, %v5053
    %v5697 = vsel %vm4476, %v5681, %v5055
    %v5698 = vsel %vm4476, %v5682, %v5057
    %v5699 = vsel %vm4476, %v5683, %v5059
    %v5700 = vsel %vm130, %v5684, %v5093
    %v5701 = vsel %vm130, %v5685, %v5095
    %v5702 = vsel %vm130, %v5686, %v5097
    %v5703 = vsel %vm130, %v5687, %v5099
    %v5704 = vsel %vm130, %v5688, %v5101
    %v5705 = vsel %vm130, %v5689, %v5103
    %v5706 = vsel %vm130, %v5690, %v5105
    %v5707 = vsel %vm130, %v5691, %v5107
    %v5708 = vsel %vm130, %v5692, %v5109
    %v5709 = vsel %vm130, %v5693, %v5111
    %v5710 = vsel %vm130, %v5694, %v5113
    %v5711 = vsel %vm130, %v5695, %v5115
    %v5712 = vsel %vm130, %v5696, %v5117
    %v5713 = vsel %vm130, %v5697, %v5119
    %v5714 = vsel %vm130, %v5698, %v5121
    %v5715 = vsel %vm130, %v5699, %v5123
    %v5716 = vsel %vm4509, %v5700, %v5157
    %v5717 = vsel %vm4509, %v5701, %v5159
    %v5718 = vsel %vm4509, %v5702, %v5161
    %v5719 = vsel %vm4509, %v5703, %v5163
    %v5720 = vsel %vm4509, %v5704, %v5165
    %v5721 = vsel %vm4509, %v5705, %v5167
    %v5722 = vsel %vm4509, %v5706, %v5169
    %v5723 = vsel %vm4509, %v5707, %v5171
    %v5724 = vsel %vm4509, %v5708, %v5173
    %v5725 = vsel %vm4509, %v5709, %v5175
    %v5726 = vsel %vm4509, %v5710, %v5177
    %v5727 = vsel %vm4509, %v5711, %v5179
    %v5728 = vsel %vm4509, %v5712, %v5181
    %v5729 = vsel %vm4509, %v5713, %v5183
    %v5730 = vsel %vm4509, %v5714, %v5185
    %v5731 = vsel %vm4509, %v5715, %v5187
    %v5732 = vsel %vm4526, %v5716, %v5221
    %v5733 = vsel %vm4526, %v5717, %v5223
    %v5734 = vsel %vm4526, %v5718, %v5225
    %v5735 = vsel %vm4526, %v5719, %v5227
    %v5736 = vsel %vm4526, %v5720, %v5229
    %v5737 = vsel %vm4526, %v5721, %v5231
    %v5738 = vsel %vm4526, %v5722, %v5233
    %v5739 = vsel %vm4526, %v5723, %v5235
    %v5740 = vsel %vm4526, %v5724, %v5237
    %v5741 = vsel %vm4526, %v5725, %v5239
    %v5742 = vsel %vm4526, %v5726, %v5241
    %v5743 = vsel %vm4526, %v5727, %v5243
    %v5744 = vsel %vm4526, %v5728, %v5245
    %v5745 = vsel %vm4526, %v5729, %v5247
    %v5746 = vsel %vm4526, %v5730, %v5249
    %v5747 = vsel %vm4526, %v5731, %v5251
    %v5748 = vsel %vm4543, %v5732, %v5285
    %v5749 = vsel %vm4543, %v5733, %v5287
    %v5750 = vsel %vm4543, %v5734, %v5289
    %v5751 = vsel %vm4543, %v5735, %v5291
    %v5752 = vsel %vm4543, %v5736, %v5293
    %v5753 = vsel %vm4543, %v5737, %v5295
    %v5754 = vsel %vm4543, %v5738, %v5297
    %v5755 = vsel %vm4543, %v5739, %v5299
    %v5756 = vsel %vm4543, %v5740, %v5301
    %v5757 = vsel %vm4543, %v5741, %v5303
    %v5758 = vsel %vm4543, %v5742, %v5305
    %v5759 = vsel %vm4543, %v5743, %v5307
    %v5760 = vsel %vm4543, %v5744, %v5309
    %v5761 = vsel %vm4543, %v5745, %v5311
    %v5762 = vsel %vm4543, %v5746, %v5313
    %v5763 = vsel %vm4543, %v5747, %v5315
    %v5764 = vsel %vm4560, %v5748, %v5349
    %v5765 = vsel %vm4560, %v5749, %v5351
    %v5766 = vsel %vm4560, %v5750, %v5353
    %v5767 = vsel %vm4560, %v5751, %v5355
    %v5768 = vsel %vm4560, %v5752, %v5357
    %v5769 = vsel %vm4560, %v5753, %v5359
    %v5770 = vsel %vm4560, %v5754, %v5361
    %v5771 = vsel %vm4560, %v5755, %v5363
    %v5772 = vsel %vm4560, %v5756, %v5365
    %v5773 = vsel %vm4560, %v5757, %v5367
    %v5774 = vsel %vm4560, %v5758, %v5369
    %v5775 = vsel %vm4560, %v5759, %v5371
    %v5776 = vsel %vm4560, %v5760, %v5373
    %v5777 = vsel %vm4560, %v5761, %v5375
    %v5778 = vsel %vm4560, %v5762, %v5377
    %v5779 = vsel %vm4560, %v5763, %v5379
    %v5780 = vsel %vm4577, %v5764, %v5413
    %v5781 = vsel %vm4577, %v5765, %v5415
    %v5782 = vsel %vm4577, %v5766, %v5417
    %v5783 = vsel %vm4577, %v5767, %v5419
    %v5784 = vsel %vm4577, %v5768, %v5421
    %v5785 = vsel %vm4577, %v5769, %v5423
    %v5786 = vsel %vm4577, %v5770, %v5425
    %v5787 = vsel %vm4577, %v5771, %v5427
    %v5788 = vsel %vm4577, %v5772, %v5429
    %v5789 = vsel %vm4577, %v5773, %v5431
    %v5790 = vsel %vm4577, %v5774, %v5433
    %v5791 = vsel %vm4577, %v5775, %v5435
    %v5792 = vsel %vm4577, %v5776, %v5437
    %v5793 = vsel %vm4577, %v5777, %v5439
    %v5794 = vsel %vm4577, %v5778, %v5441
    %v5795 = vsel %vm4577, %v5779, %v5443
    %v5796 = vsel %vm4594, %v5780, %v5477
    %v5797 = vsel %vm4594, %v5781, %v5479
    %v5798 = vsel %vm4594, %v5782, %v5481
    %v5799 = vsel %vm4594, %v5783, %v5483
    %v5800 = vsel %vm4594, %v5784, %v5485
    %v5801 = vsel %vm4594, %v5785, %v5487
    %v5802 = vsel %vm4594, %v5786, %v5489
    %v5803 = vsel %vm4594, %v5787, %v5491
    %v5804 = vsel %vm4594, %v5788, %v5493
    %v5805 = vsel %vm4594, %v5789, %v5495
    %v5806 = vsel %vm4594, %v5790, %v5497
    %v5807 = vsel %vm4594, %v5791, %v5499
    %v5808 = vsel %vm4594, %v5792, %v5501
    %v5809 = vsel %vm4594, %v5793, %v5503
    %v5810 = vsel %vm4594, %v5794, %v5505
    %v5811 = vsel %vm4594, %v5795, %v5507
    %v5812 = vsel %vm4611, %v5796, %v5541
    %v5813 = vsel %vm4611, %v5797, %v5543
    %v5814 = vsel %vm4611, %v5798, %v5545
    %v5815 = vsel %vm4611, %v5799, %v5547
    %v5816 = vsel %vm4611, %v5800, %v5549
    %v5817 = vsel %vm4611, %v5801, %v5551
    %v5818 = vsel %vm4611, %v5802, %v5553
    %v5819 = vsel %vm4611, %v5803, %v5555
    %v5820 = vsel %vm4611, %v5804, %v5557
    %v5821 = vsel %vm4611, %v5805, %v5559
    %v5822 = vsel %vm4611, %v5806, %v5561
    %v5823 = vsel %vm4611, %v5807, %v5563
    %v5824 = vsel %vm4611, %v5808, %v5565
    %v5825 = vsel %vm4611, %v5809, %v5567
    %v5826 = vsel %vm4611, %v5810, %v5569
    %v5827 = vsel %vm4611, %v5811, %v5571
    %5844 = vrot.lane.b32.xlu0 %v3157, 2
    %v5845 = vpop.permute.xlu0 %5844
    %5846 = vrot.lane.b32.xlu0 %v3158, 2
    %v5847 = vpop.permute.xlu0 %5846
    %5848 = vrot.lane.b32.xlu0 %v3159, 2
    %v5849 = vpop.permute.xlu0 %5848
    %5850 = vrot.lane.b32.xlu0 %v3160, 2
    %v5851 = vpop.permute.xlu0 %5850
    %5852 = vrot.lane.b32.xlu0 %v3161, 2
    %v5853 = vpop.permute.xlu0 %5852
    %5854 = vrot.lane.b32.xlu0 %v3162, 2
    %v5855 = vpop.permute.xlu0 %5854
    %5856 = vrot.lane.b32.xlu0 %v3163, 2
    %v5857 = vpop.permute.xlu0 %5856
    %5858 = vrot.lane.b32.xlu0 %v3164, 2
    %v5859 = vpop.permute.xlu0 %5858
    %5860 = vrot.lane.b32.xlu0 %v3165, 2
    %v5861 = vpop.permute.xlu0 %5860
    %5862 = vrot.lane.b32.xlu0 %v3166, 2
    %v5863 = vpop.permute.xlu0 %5862
    %5864 = vrot.lane.b32.xlu0 %v3167, 2
    %v5865 = vpop.permute.xlu0 %5864
    %5866 = vrot.lane.b32.xlu0 %v3168, 2
    %v5867 = vpop.permute.xlu0 %5866
    %5868 = vrot.lane.b32.xlu0 %v3169, 2
    %v5869 = vpop.permute.xlu0 %5868
    %5870 = vrot.lane.b32.xlu0 %v3170, 2
    %v5871 = vpop.permute.xlu0 %5870
    %5872 = vrot.lane.b32.xlu0 %v3171, 2
    %v5873 = vpop.permute.xlu0 %5872
    %5874 = vrot.lane.b32.xlu0 %v3172, 2
    %v5875 = vpop.permute.xlu0 %5874
    %5908 = vrot.lane.b32.xlu0 %v3173, 4
    %v5909 = vpop.permute.xlu0 %5908
    %5910 = vrot.lane.b32.xlu0 %v3174, 4
    %v5911 = vpop.permute.xlu0 %5910
    %5912 = vrot.lane.b32.xlu0 %v3175, 4
    %v5913 = vpop.permute.xlu0 %5912
    %5914 = vrot.lane.b32.xlu0 %v3176, 4
    %v5915 = vpop.permute.xlu0 %5914
    %5916 = vrot.lane.b32.xlu0 %v3177, 4
    %v5917 = vpop.permute.xlu0 %5916
    %5918 = vrot.lane.b32.xlu0 %v3178, 4
    %v5919 = vpop.permute.xlu0 %5918
    %5920 = vrot.lane.b32.xlu0 %v3179, 4
    %v5921 = vpop.permute.xlu0 %5920
    %5922 = vrot.lane.b32.xlu0 %v3180, 4
    %v5923 = vpop.permute.xlu0 %5922
    %5924 = vrot.lane.b32.xlu0 %v3181, 4
    %v5925 = vpop.permute.xlu0 %5924
    %5926 = vrot.lane.b32.xlu0 %v3182, 4
    %v5927 = vpop.permute.xlu0 %5926
    %5928 = vrot.lane.b32.xlu0 %v3183, 4
    %v5929 = vpop.permute.xlu0 %5928
    %5930 = vrot.lane.b32.xlu0 %v3184, 4
    %v5931 = vpop.permute.xlu0 %5930
    %5932 = vrot.lane.b32.xlu0 %v3185, 4
    %v5933 = vpop.permute.xlu0 %5932
    %5934 = vrot.lane.b32.xlu0 %v3186, 4
    %v5935 = vpop.permute.xlu0 %5934
    %5936 = vrot.lane.b32.xlu0 %v3187, 4
    %v5937 = vpop.permute.xlu0 %5936
    %5938 = vrot.lane.b32.xlu0 %v3188, 4
    %v5939 = vpop.permute.xlu0 %5938
    %5972 = vrot.lane.b32.xlu0 %v3190, 6
    %v5973 = vpop.permute.xlu0 %5972
    %5974 = vrot.lane.b32.xlu0 %v3191, 6
    %v5975 = vpop.permute.xlu0 %5974
    %5976 = vrot.lane.b32.xlu0 %v3192, 6
    %v5977 = vpop.permute.xlu0 %5976
    %5978 = vrot.lane.b32.xlu0 %v3193, 6
    %v5979 = vpop.permute.xlu0 %5978
    %5980 = vrot.lane.b32.xlu0 %v3194, 6
    %v5981 = vpop.permute.xlu0 %5980
    %5982 = vrot.lane.b32.xlu0 %v3195, 6
    %v5983 = vpop.permute.xlu0 %5982
    %5984 = vrot.lane.b32.xlu0 %v3196, 6
    %v5985 = vpop.permute.xlu0 %5984
    %5986 = vrot.lane.b32.xlu0 %v3197, 6
    %v5987 = vpop.permute.xlu0 %5986
    %5988 = vrot.lane.b32.xlu0 %v3198, 6
    %v5989 = vpop.permute.xlu0 %5988
    %5990 = vrot.lane.b32.xlu0 %v3199, 6
    %v5991 = vpop.permute.xlu0 %5990
    %5992 = vrot.lane.b32.xlu0 %v3200, 6
    %v5993 = vpop.permute.xlu0 %5992
    %5994 = vrot.lane.b32.xlu0 %v3201, 6
    %v5995 = vpop.permute.xlu0 %5994
    %5996 = vrot.lane.b32.xlu0 %v3202, 6
    %v5997 = vpop.permute.xlu0 %5996
    %5998 = vrot.lane.b32.xlu0 %v3203, 6
    %v5999 = vpop.permute.xlu0 %5998
    %6000 = vrot.lane.b32.xlu0 %v3204, 6
    %v6001 = vpop.permute.xlu0 %6000
    %6002 = vrot.lane.b32.xlu0 %v3205, 6
    %v6003 = vpop.permute.xlu0 %6002
    %6036 = vrot.lane.b32.xlu0 %v3206, 8
    %v6037 = vpop.permute.xlu0 %6036
    %6038 = vrot.lane.b32.xlu0 %v3207, 8
    %v6039 = vpop.permute.xlu0 %6038
    %6040 = vrot.lane.b32.xlu0 %v3208, 8
    %v6041 = vpop.permute.xlu0 %6040
    %6042 = vrot.lane.b32.xlu0 %v3209, 8
    %v6043 = vpop.permute.xlu0 %6042
    %6044 = vrot.lane.b32.xlu0 %v3210, 8
    %v6045 = vpop.permute.xlu0 %6044
    %6046 = vrot.lane.b32.xlu0 %v3211, 8
    %v6047 = vpop.permute.xlu0 %6046
    %6048 = vrot.lane.b32.xlu0 %v3212, 8
    %v6049 = vpop.permute.xlu0 %6048
    %6050 = vrot.lane.b32.xlu0 %v3213, 8
    %v6051 = vpop.permute.xlu0 %6050
    %6052 = vrot.lane.b32.xlu0 %v3214, 8
    %v6053 = vpop.permute.xlu0 %6052
    %6054 = vrot.lane.b32.xlu0 %v3215, 8
    %v6055 = vpop.permute.xlu0 %6054
    %6056 = vrot.lane.b32.xlu0 %v3216, 8
    %v6057 = vpop.permute.xlu0 %6056
    %6058 = vrot.lane.b32.xlu0 %v3217, 8
    %v6059 = vpop.permute.xlu0 %6058
    %6060 = vrot.lane.b32.xlu0 %v3218, 8
    %v6061 = vpop.permute.xlu0 %6060
    %6062 = vrot.lane.b32.xlu0 %v3219, 8
    %v6063 = vpop.permute.xlu0 %6062
    %6064 = vrot.lane.b32.xlu0 %v3220, 8
    %v6065 = vpop.permute.xlu0 %6064
    %6066 = vrot.lane.b32.xlu0 %v3221, 8
    %v6067 = vpop.permute.xlu0 %6066
    %6100 = vrot.lane.b32.xlu0 %v3222, 10
    %v6101 = vpop.permute.xlu0 %6100
    %6102 = vrot.lane.b32.xlu0 %v3223, 10
    %v6103 = vpop.permute.xlu0 %6102
    %6104 = vrot.lane.b32.xlu0 %v3224, 10
    %v6105 = vpop.permute.xlu0 %6104
    %6106 = vrot.lane.b32.xlu0 %v3225, 10
    %v6107 = vpop.permute.xlu0 %6106
    %6108 = vrot.lane.b32.xlu0 %v3226, 10
    %v6109 = vpop.permute.xlu0 %6108
    %6110 = vrot.lane.b32.xlu0 %v3227, 10
    %v6111 = vpop.permute.xlu0 %6110
    %6112 = vrot.lane.b32.xlu0 %v3228, 10
    %v6113 = vpop.permute.xlu0 %6112
    %6114 = vrot.lane.b32.xlu0 %v3229, 10
    %v6115 = vpop.permute.xlu0 %6114
    %6116 = vrot.lane.b32.xlu0 %v3230, 10
    %v6117 = vpop.permute.xlu0 %6116
    %6118 = vrot.lane.b32.xlu0 %v3231, 10
    %v6119 = vpop.permute.xlu0 %6118
    %6120 = vrot.lane.b32.xlu0 %v3232, 10
    %v6121 = vpop.permute.xlu0 %6120
    %6122 = vrot.lane.b32.xlu0 %v3233, 10
    %v6123 = vpop.permute.xlu0 %6122
    %6124 = vrot.lane.b32.xlu0 %v3234, 10
    %v6125 = vpop.permute.xlu0 %6124
    %6126 = vrot.lane.b32.xlu0 %v3235, 10
    %v6127 = vpop.permute.xlu0 %6126
    %6128 = vrot.lane.b32.xlu0 %v3236, 10
    %v6129 = vpop.permute.xlu0 %6128
    %6130 = vrot.lane.b32.xlu0 %v3237, 10
    %v6131 = vpop.permute.xlu0 %6130
    %6164 = vrot.lane.b32.xlu0 %v3238, 12
    %v6165 = vpop.permute.xlu0 %6164
    %6166 = vrot.lane.b32.xlu0 %v3239, 12
    %v6167 = vpop.permute.xlu0 %6166
    %6168 = vrot.lane.b32.xlu0 %v3240, 12
    %v6169 = vpop.permute.xlu0 %6168
    %6170 = vrot.lane.b32.xlu0 %v3241, 12
    %v6171 = vpop.permute.xlu0 %6170
    %6172 = vrot.lane.b32.xlu0 %v3242, 12
    %v6173 = vpop.permute.xlu0 %6172
    %6174 = vrot.lane.b32.xlu0 %v3243, 12
    %v6175 = vpop.permute.xlu0 %6174
    %6176 = vrot.lane.b32.xlu0 %v3244, 12
    %v6177 = vpop.permute.xlu0 %6176
    %6178 = vrot.lane.b32.xlu0 %v3245, 12
    %v6179 = vpop.permute.xlu0 %6178
    %6180 = vrot.lane.b32.xlu0 %v3246, 12
    %v6181 = vpop.permute.xlu0 %6180
    %6182 = vrot.lane.b32.xlu0 %v3247, 12
    %v6183 = vpop.permute.xlu0 %6182
    %6184 = vrot.lane.b32.xlu0 %v3248, 12
    %v6185 = vpop.permute.xlu0 %6184
    %6186 = vrot.lane.b32.xlu0 %v3249, 12
    %v6187 = vpop.permute.xlu0 %6186
    %6188 = vrot.lane.b32.xlu0 %v3250, 12
    %v6189 = vpop.permute.xlu0 %6188
    %6190 = vrot.lane.b32.xlu0 %v3251, 12
    %v6191 = vpop.permute.xlu0 %6190
    %6192 = vrot.lane.b32.xlu0 %v3252, 12
    %v6193 = vpop.permute.xlu0 %6192
    %6194 = vrot.lane.b32.xlu0 %v3253, 12
    %v6195 = vpop.permute.xlu0 %6194
    %6228 = vrot.lane.b32.xlu0 %v3254, 14
    %v6229 = vpop.permute.xlu0 %6228
    %6230 = vrot.lane.b32.xlu0 %v3255, 14
    %v6231 = vpop.permute.xlu0 %6230
    %6232 = vrot.lane.b32.xlu0 %v3256, 14
    %v6233 = vpop.permute.xlu0 %6232
    %6234 = vrot.lane.b32.xlu0 %v3257, 14
    %v6235 = vpop.permute.xlu0 %6234
    %6236 = vrot.lane.b32.xlu0 %v3258, 14
    %v6237 = vpop.permute.xlu0 %6236
    %6238 = vrot.lane.b32.xlu0 %v3259, 14
    %v6239 = vpop.permute.xlu0 %6238
    %6240 = vrot.lane.b32.xlu0 %v3260, 14
    %v6241 = vpop.permute.xlu0 %6240
    %6242 = vrot.lane.b32.xlu0 %v3261, 14
    %v6243 = vpop.permute.xlu0 %6242
    %6244 = vrot.lane.b32.xlu0 %v3262, 14
    %v6245 = vpop.permute.xlu0 %6244
    %6246 = vrot.lane.b32.xlu0 %v3263, 14
    %v6247 = vpop.permute.xlu0 %6246
    %6248 = vrot.lane.b32.xlu0 %v3264, 14
    %v6249 = vpop.permute.xlu0 %6248
    %6250 = vrot.lane.b32.xlu0 %v3265, 14
    %v6251 = vpop.permute.xlu0 %6250
    %6252 = vrot.lane.b32.xlu0 %v3266, 14
    %v6253 = vpop.permute.xlu0 %6252
    %6254 = vrot.lane.b32.xlu0 %v3267, 14
    %v6255 = vpop.permute.xlu0 %6254
    %6256 = vrot.lane.b32.xlu0 %v3268, 14
    %v6257 = vpop.permute.xlu0 %6256
    %6258 = vrot.lane.b32.xlu0 %v3269, 14
    %v6259 = vpop.permute.xlu0 %6258
    %6292 = vrot.lane.b32.xlu0 %v3270, 16
    %v6293 = vpop.permute.xlu0 %6292
    %6294 = vrot.lane.b32.xlu0 %v3271, 16
    %v6295 = vpop.permute.xlu0 %6294
    %6296 = vrot.lane.b32.xlu0 %v3272, 16
    %v6297 = vpop.permute.xlu0 %6296
    %6298 = vrot.lane.b32.xlu0 %v3273, 16
    %v6299 = vpop.permute.xlu0 %6298
    %6300 = vrot.lane.b32.xlu0 %v3274, 16
    %v6301 = vpop.permute.xlu0 %6300
    %6302 = vrot.lane.b32.xlu0 %v3275, 16
    %v6303 = vpop.permute.xlu0 %6302
    %6304 = vrot.lane.b32.xlu0 %v3276, 16
    %v6305 = vpop.permute.xlu0 %6304
    %6306 = vrot.lane.b32.xlu0 %v3277, 16
    %v6307 = vpop.permute.xlu0 %6306
    %6308 = vrot.lane.b32.xlu0 %v3278, 16
    %v6309 = vpop.permute.xlu0 %6308
    %6310 = vrot.lane.b32.xlu0 %v3279, 16
    %v6311 = vpop.permute.xlu0 %6310
    %6312 = vrot.lane.b32.xlu0 %v3280, 16
    %v6313 = vpop.permute.xlu0 %6312
    %6314 = vrot.lane.b32.xlu0 %v3281, 16
    %v6315 = vpop.permute.xlu0 %6314
    %6316 = vrot.lane.b32.xlu0 %v3282, 16
    %v6317 = vpop.permute.xlu0 %6316
    %6318 = vrot.lane.b32.xlu0 %v3283, 16
    %v6319 = vpop.permute.xlu0 %6318
    %6320 = vrot.lane.b32.xlu0 %v3284, 16
    %v6321 = vpop.permute.xlu0 %6320
    %6322 = vrot.lane.b32.xlu0 %v3285, 16
    %v6323 = vpop.permute.xlu0 %6322
    %6356 = vrot.lane.b32.xlu0 %v3286, 18
    %v6357 = vpop.permute.xlu0 %6356
    %6358 = vrot.lane.b32.xlu0 %v3287, 18
    %v6359 = vpop.permute.xlu0 %6358
    %6360 = vrot.lane.b32.xlu0 %v3288, 18
    %v6361 = vpop.permute.xlu0 %6360
    %6362 = vrot.lane.b32.xlu0 %v3289, 18
    %v6363 = vpop.permute.xlu0 %6362
    %6364 = vrot.lane.b32.xlu0 %v3290, 18
    %v6365 = vpop.permute.xlu0 %6364
    %6366 = vrot.lane.b32.xlu0 %v3291, 18
    %v6367 = vpop.permute.xlu0 %6366
    %6368 = vrot.lane.b32.xlu0 %v3292, 18
    %v6369 = vpop.permute.xlu0 %6368
    %6370 = vrot.lane.b32.xlu0 %v3293, 18
    %v6371 = vpop.permute.xlu0 %6370
    %6372 = vrot.lane.b32.xlu0 %v3294, 18
    %v6373 = vpop.permute.xlu0 %6372
    %6374 = vrot.lane.b32.xlu0 %v3295, 18
    %v6375 = vpop.permute.xlu0 %6374
    %6376 = vrot.lane.b32.xlu0 %v3296, 18
    %v6377 = vpop.permute.xlu0 %6376
    %6378 = vrot.lane.b32.xlu0 %v3297, 18
    %v6379 = vpop.permute.xlu0 %6378
    %6380 = vrot.lane.b32.xlu0 %v3298, 18
    %v6381 = vpop.permute.xlu0 %6380
    %6382 = vrot.lane.b32.xlu0 %v3299, 18
    %v6383 = vpop.permute.xlu0 %6382
    %6384 = vrot.lane.b32.xlu0 %v3300, 18
    %v6385 = vpop.permute.xlu0 %6384
    %6386 = vrot.lane.b32.xlu0 %v3301, 18
    %v6387 = vpop.permute.xlu0 %6386
    %6420 = vrot.lane.b32.xlu0 %v3303, 20
    %v6421 = vpop.permute.xlu0 %6420
    %6422 = vrot.lane.b32.xlu0 %v3304, 20
    %v6423 = vpop.permute.xlu0 %6422
    %6424 = vrot.lane.b32.xlu0 %v3305, 20
    %v6425 = vpop.permute.xlu0 %6424
    %6426 = vrot.lane.b32.xlu0 %v3306, 20
    %v6427 = vpop.permute.xlu0 %6426
    %6428 = vrot.lane.b32.xlu0 %v3307, 20
    %v6429 = vpop.permute.xlu0 %6428
    %6430 = vrot.lane.b32.xlu0 %v3308, 20
    %v6431 = vpop.permute.xlu0 %6430
    %6432 = vrot.lane.b32.xlu0 %v3309, 20
    %v6433 = vpop.permute.xlu0 %6432
    %6434 = vrot.lane.b32.xlu0 %v3310, 20
    %v6435 = vpop.permute.xlu0 %6434
    %6436 = vrot.lane.b32.xlu0 %v3311, 20
    %v6437 = vpop.permute.xlu0 %6436
    %6438 = vrot.lane.b32.xlu0 %v3312, 20
    %v6439 = vpop.permute.xlu0 %6438
    %6440 = vrot.lane.b32.xlu0 %v3313, 20
    %v6441 = vpop.permute.xlu0 %6440
    %6442 = vrot.lane.b32.xlu0 %v3314, 20
    %v6443 = vpop.permute.xlu0 %6442
    %6444 = vrot.lane.b32.xlu0 %v3315, 20
    %v6445 = vpop.permute.xlu0 %6444
    %6446 = vrot.lane.b32.xlu0 %v3316, 20
    %v6447 = vpop.permute.xlu0 %6446
    %6448 = vrot.lane.b32.xlu0 %v3317, 20
    %v6449 = vpop.permute.xlu0 %6448
    %6450 = vrot.lane.b32.xlu0 %v3318, 20
    %v6451 = vpop.permute.xlu0 %6450
    %6484 = vrot.lane.b32.xlu0 %v3319, 22
    %v6485 = vpop.permute.xlu0 %6484
    %6486 = vrot.lane.b32.xlu0 %v3320, 22
    %v6487 = vpop.permute.xlu0 %6486
    %6488 = vrot.lane.b32.xlu0 %v3321, 22
    %v6489 = vpop.permute.xlu0 %6488
    %6490 = vrot.lane.b32.xlu0 %v3322, 22
    %v6491 = vpop.permute.xlu0 %6490
    %6492 = vrot.lane.b32.xlu0 %v3323, 22
    %v6493 = vpop.permute.xlu0 %6492
    %6494 = vrot.lane.b32.xlu0 %v3324, 22
    %v6495 = vpop.permute.xlu0 %6494
    %6496 = vrot.lane.b32.xlu0 %v3325, 22
    %v6497 = vpop.permute.xlu0 %6496
    %6498 = vrot.lane.b32.xlu0 %v3326, 22
    %v6499 = vpop.permute.xlu0 %6498
    %6500 = vrot.lane.b32.xlu0 %v3327, 22
    %v6501 = vpop.permute.xlu0 %6500
    %6502 = vrot.lane.b32.xlu0 %v3328, 22
    %v6503 = vpop.permute.xlu0 %6502
    %6504 = vrot.lane.b32.xlu0 %v3329, 22
    %v6505 = vpop.permute.xlu0 %6504
    %6506 = vrot.lane.b32.xlu0 %v3330, 22
    %v6507 = vpop.permute.xlu0 %6506
    %6508 = vrot.lane.b32.xlu0 %v3331, 22
    %v6509 = vpop.permute.xlu0 %6508
    %6510 = vrot.lane.b32.xlu0 %v3332, 22
    %v6511 = vpop.permute.xlu0 %6510
    %6512 = vrot.lane.b32.xlu0 %v3333, 22
    %v6513 = vpop.permute.xlu0 %6512
    %6514 = vrot.lane.b32.xlu0 %v3334, 22
    %v6515 = vpop.permute.xlu0 %6514
    %6548 = vrot.lane.b32.xlu0 %v3335, 24
    %v6549 = vpop.permute.xlu0 %6548
    %6550 = vrot.lane.b32.xlu0 %v3336, 24
    %v6551 = vpop.permute.xlu0 %6550
    %6552 = vrot.lane.b32.xlu0 %v3337, 24
    %v6553 = vpop.permute.xlu0 %6552
    %6554 = vrot.lane.b32.xlu0 %v3338, 24
    %v6555 = vpop.permute.xlu0 %6554
    %6556 = vrot.lane.b32.xlu0 %v3339, 24
    %v6557 = vpop.permute.xlu0 %6556
    %6558 = vrot.lane.b32.xlu0 %v3340, 24
    %v6559 = vpop.permute.xlu0 %6558
    %6560 = vrot.lane.b32.xlu0 %v3341, 24
    %v6561 = vpop.permute.xlu0 %6560
    %6562 = vrot.lane.b32.xlu0 %v3342, 24
    %v6563 = vpop.permute.xlu0 %6562
    %6564 = vrot.lane.b32.xlu0 %v3343, 24
    %v6565 = vpop.permute.xlu0 %6564
    %6566 = vrot.lane.b32.xlu0 %v3344, 24
    %v6567 = vpop.permute.xlu0 %6566
    %6568 = vrot.lane.b32.xlu0 %v3345, 24
    %v6569 = vpop.permute.xlu0 %6568
    %6570 = vrot.lane.b32.xlu0 %v3346, 24
    %v6571 = vpop.permute.xlu0 %6570
    %6572 = vrot.lane.b32.xlu0 %v3347, 24
    %v6573 = vpop.permute.xlu0 %6572
    %6574 = vrot.lane.b32.xlu0 %v3348, 24
    %v6575 = vpop.permute.xlu0 %6574
    %6576 = vrot.lane.b32.xlu0 %v3349, 24
    %v6577 = vpop.permute.xlu0 %6576
    %6578 = vrot.lane.b32.xlu0 %v3350, 24
    %v6579 = vpop.permute.xlu0 %6578
    %6612 = vrot.lane.b32.xlu0 %v3351, 26
    %v6613 = vpop.permute.xlu0 %6612
    %6614 = vrot.lane.b32.xlu0 %v3352, 26
    %v6615 = vpop.permute.xlu0 %6614
    %6616 = vrot.lane.b32.xlu0 %v3353, 26
    %v6617 = vpop.permute.xlu0 %6616
    %6618 = vrot.lane.b32.xlu0 %v3354, 26
    %v6619 = vpop.permute.xlu0 %6618
    %6620 = vrot.lane.b32.xlu0 %v3355, 26
    %v6621 = vpop.permute.xlu0 %6620
    %6622 = vrot.lane.b32.xlu0 %v3356, 26
    %v6623 = vpop.permute.xlu0 %6622
    %6624 = vrot.lane.b32.xlu0 %v3357, 26
    %v6625 = vpop.permute.xlu0 %6624
    %6626 = vrot.lane.b32.xlu0 %v3358, 26
    %v6627 = vpop.permute.xlu0 %6626
    %6628 = vrot.lane.b32.xlu0 %v3359, 26
    %v6629 = vpop.permute.xlu0 %6628
    %6630 = vrot.lane.b32.xlu0 %v3360, 26
    %v6631 = vpop.permute.xlu0 %6630
    %6632 = vrot.lane.b32.xlu0 %v3361, 26
    %v6633 = vpop.permute.xlu0 %6632
    %6634 = vrot.lane.b32.xlu0 %v3362, 26
    %v6635 = vpop.permute.xlu0 %6634
    %6636 = vrot.lane.b32.xlu0 %v3363, 26
    %v6637 = vpop.permute.xlu0 %6636
    %6638 = vrot.lane.b32.xlu0 %v3364, 26
    %v6639 = vpop.permute.xlu0 %6638
    %6640 = vrot.lane.b32.xlu0 %v3365, 26
    %v6641 = vpop.permute.xlu0 %6640
    %6642 = vrot.lane.b32.xlu0 %v3366, 26
    %v6643 = vpop.permute.xlu0 %6642
    %6676 = vrot.lane.b32.xlu0 %v3367, 28
    %v6677 = vpop.permute.xlu0 %6676
    %6678 = vrot.lane.b32.xlu0 %v3368, 28
    %v6679 = vpop.permute.xlu0 %6678
    %6680 = vrot.lane.b32.xlu0 %v3369, 28
    %v6681 = vpop.permute.xlu0 %6680
    %6682 = vrot.lane.b32.xlu0 %v3370, 28
    %v6683 = vpop.permute.xlu0 %6682
    %6684 = vrot.lane.b32.xlu0 %v3371, 28
    %v6685 = vpop.permute.xlu0 %6684
    %6686 = vrot.lane.b32.xlu0 %v3372, 28
    %v6687 = vpop.permute.xlu0 %6686
    %6688 = vrot.lane.b32.xlu0 %v3373, 28
    %v6689 = vpop.permute.xlu0 %6688
    %6690 = vrot.lane.b32.xlu0 %v3374, 28
    %v6691 = vpop.permute.xlu0 %6690
    %6692 = vrot.lane.b32.xlu0 %v3375, 28
    %v6693 = vpop.permute.xlu0 %6692
    %6694 = vrot.lane.b32.xlu0 %v3376, 28
    %v6695 = vpop.permute.xlu0 %6694
    %6696 = vrot.lane.b32.xlu0 %v3377, 28
    %v6697 = vpop.permute.xlu0 %6696
    %6698 = vrot.lane.b32.xlu0 %v3378, 28
    %v6699 = vpop.permute.xlu0 %6698
    %6700 = vrot.lane.b32.xlu0 %v3379, 28
    %v6701 = vpop.permute.xlu0 %6700
    %6702 = vrot.lane.b32.xlu0 %v3380, 28
    %v6703 = vpop.permute.xlu0 %6702
    %6704 = vrot.lane.b32.xlu0 %v3381, 28
    %v6705 = vpop.permute.xlu0 %6704
    %6706 = vrot.lane.b32.xlu0 %v3382, 28
    %v6707 = vpop.permute.xlu0 %6706
    %6740 = vrot.lane.b32.xlu0 %v3383, 30
    %v6741 = vpop.permute.xlu0 %6740
    %6742 = vrot.lane.b32.xlu0 %v3384, 30
    %v6743 = vpop.permute.xlu0 %6742
    %6744 = vrot.lane.b32.xlu0 %v3385, 30
    %v6745 = vpop.permute.xlu0 %6744
    %6746 = vrot.lane.b32.xlu0 %v3386, 30
    %v6747 = vpop.permute.xlu0 %6746
    %6748 = vrot.lane.b32.xlu0 %v3387, 30
    %v6749 = vpop.permute.xlu0 %6748
    %6750 = vrot.lane.b32.xlu0 %v3388, 30
    %v6751 = vpop.permute.xlu0 %6750
    %6752 = vrot.lane.b32.xlu0 %v3389, 30
    %v6753 = vpop.permute.xlu0 %6752
    %6754 = vrot.lane.b32.xlu0 %v3390, 30
    %v6755 = vpop.permute.xlu0 %6754
    %6756 = vrot.lane.b32.xlu0 %v3391, 30
    %v6757 = vpop.permute.xlu0 %6756
    %6758 = vrot.lane.b32.xlu0 %v3392, 30
    %v6759 = vpop.permute.xlu0 %6758
    %6760 = vrot.lane.b32.xlu0 %v3393, 30
    %v6761 = vpop.permute.xlu0 %6760
    %6762 = vrot.lane.b32.xlu0 %v3394, 30
    %v6763 = vpop.permute.xlu0 %6762
    %6764 = vrot.lane.b32.xlu0 %v3395, 30
    %v6765 = vpop.permute.xlu0 %6764
    %6766 = vrot.lane.b32.xlu0 %v3396, 30
    %v6767 = vpop.permute.xlu0 %6766
    %6768 = vrot.lane.b32.xlu0 %v3397, 30
    %v6769 = vpop.permute.xlu0 %6768
    %6770 = vrot.lane.b32.xlu0 %v3398, 30
    %v6771 = vpop.permute.xlu0 %6770
    %v6788 = vsel %vm2551, %v3141, %v5845
    %v6789 = vsel %vm2551, %v3142, %v5847
    %v6790 = vsel %vm2551, %v3143, %v5849
    %v6791 = vsel %vm2551, %v3144, %v5851
    %v6792 = vsel %vm2551, %v3145, %v5853
    %v6793 = vsel %vm2551, %v3146, %v5855
    %v6794 = vsel %vm2551, %v3147, %v5857
    %v6795 = vsel %vm2551, %v3148, %v5859
    %v6796 = vsel %vm2551, %v3149, %v5861
    %v6797 = vsel %vm2551, %v3150, %v5863
    %v6798 = vsel %vm2551, %v3151, %v5865
    %v6799 = vsel %vm2551, %v3152, %v5867
    %v6800 = vsel %vm2551, %v3153, %v5869
    %v6801 = vsel %vm2551, %v3154, %v5871
    %v6802 = vsel %vm2551, %v3155, %v5873
    %v6803 = vsel %vm2551, %v3156, %v5875
    %v6804 = vsel %vm4391, %v6788, %v5909
    %v6805 = vsel %vm4391, %v6789, %v5911
    %v6806 = vsel %vm4391, %v6790, %v5913
    %v6807 = vsel %vm4391, %v6791, %v5915
    %v6808 = vsel %vm4391, %v6792, %v5917
    %v6809 = vsel %vm4391, %v6793, %v5919
    %v6810 = vsel %vm4391, %v6794, %v5921
    %v6811 = vsel %vm4391, %v6795, %v5923
    %v6812 = vsel %vm4391, %v6796, %v5925
    %v6813 = vsel %vm4391, %v6797, %v5927
    %v6814 = vsel %vm4391, %v6798, %v5929
    %v6815 = vsel %vm4391, %v6799, %v5931
    %v6816 = vsel %vm4391, %v6800, %v5933
    %v6817 = vsel %vm4391, %v6801, %v5935
    %v6818 = vsel %vm4391, %v6802, %v5937
    %v6819 = vsel %vm4391, %v6803, %v5939
    %v6820 = vsel %vm4408, %v6804, %v5973
    %v6821 = vsel %vm4408, %v6805, %v5975
    %v6822 = vsel %vm4408, %v6806, %v5977
    %v6823 = vsel %vm4408, %v6807, %v5979
    %v6824 = vsel %vm4408, %v6808, %v5981
    %v6825 = vsel %vm4408, %v6809, %v5983
    %v6826 = vsel %vm4408, %v6810, %v5985
    %v6827 = vsel %vm4408, %v6811, %v5987
    %v6828 = vsel %vm4408, %v6812, %v5989
    %v6829 = vsel %vm4408, %v6813, %v5991
    %v6830 = vsel %vm4408, %v6814, %v5993
    %v6831 = vsel %vm4408, %v6815, %v5995
    %v6832 = vsel %vm4408, %v6816, %v5997
    %v6833 = vsel %vm4408, %v6817, %v5999
    %v6834 = vsel %vm4408, %v6818, %v6001
    %v6835 = vsel %vm4408, %v6819, %v6003
    %v6836 = vsel %vm4425, %v6820, %v6037
    %v6837 = vsel %vm4425, %v6821, %v6039
    %v6838 = vsel %vm4425, %v6822, %v6041
    %v6839 = vsel %vm4425, %v6823, %v6043
    %v6840 = vsel %vm4425, %v6824, %v6045
    %v6841 = vsel %vm4425, %v6825, %v6047
    %v6842 = vsel %vm4425, %v6826, %v6049
    %v6843 = vsel %vm4425, %v6827, %v6051
    %v6844 = vsel %vm4425, %v6828, %v6053
    %v6845 = vsel %vm4425, %v6829, %v6055
    %v6846 = vsel %vm4425, %v6830, %v6057
    %v6847 = vsel %vm4425, %v6831, %v6059
    %v6848 = vsel %vm4425, %v6832, %v6061
    %v6849 = vsel %vm4425, %v6833, %v6063
    %v6850 = vsel %vm4425, %v6834, %v6065
    %v6851 = vsel %vm4425, %v6835, %v6067
    %v6852 = vsel %vm4442, %v6836, %v6101
    %v6853 = vsel %vm4442, %v6837, %v6103
    %v6854 = vsel %vm4442, %v6838, %v6105
    %v6855 = vsel %vm4442, %v6839, %v6107
    %v6856 = vsel %vm4442, %v6840, %v6109
    %v6857 = vsel %vm4442, %v6841, %v6111
    %v6858 = vsel %vm4442, %v6842, %v6113
    %v6859 = vsel %vm4442, %v6843, %v6115
    %v6860 = vsel %vm4442, %v6844, %v6117
    %v6861 = vsel %vm4442, %v6845, %v6119
    %v6862 = vsel %vm4442, %v6846, %v6121
    %v6863 = vsel %vm4442, %v6847, %v6123
    %v6864 = vsel %vm4442, %v6848, %v6125
    %v6865 = vsel %vm4442, %v6849, %v6127
    %v6866 = vsel %vm4442, %v6850, %v6129
    %v6867 = vsel %vm4442, %v6851, %v6131
    %v6868 = vsel %vm4459, %v6852, %v6165
    %v6869 = vsel %vm4459, %v6853, %v6167
    %v6870 = vsel %vm4459, %v6854, %v6169
    %v6871 = vsel %vm4459, %v6855, %v6171
    %v6872 = vsel %vm4459, %v6856, %v6173
    %v6873 = vsel %vm4459, %v6857, %v6175
    %v6874 = vsel %vm4459, %v6858, %v6177
    %v6875 = vsel %vm4459, %v6859, %v6179
    %v6876 = vsel %vm4459, %v6860, %v6181
    %v6877 = vsel %vm4459, %v6861, %v6183
    %v6878 = vsel %vm4459, %v6862, %v6185
    %v6879 = vsel %vm4459, %v6863, %v6187
    %v6880 = vsel %vm4459, %v6864, %v6189
    %v6881 = vsel %vm4459, %v6865, %v6191
    %v6882 = vsel %vm4459, %v6866, %v6193
    %v6883 = vsel %vm4459, %v6867, %v6195
    %v6884 = vsel %vm4476, %v6868, %v6229
    %v6885 = vsel %vm4476, %v6869, %v6231
    %v6886 = vsel %vm4476, %v6870, %v6233
    %v6887 = vsel %vm4476, %v6871, %v6235
    %v6888 = vsel %vm4476, %v6872, %v6237
    %v6889 = vsel %vm4476, %v6873, %v6239
    %v6890 = vsel %vm4476, %v6874, %v6241
    %v6891 = vsel %vm4476, %v6875, %v6243
    %v6892 = vsel %vm4476, %v6876, %v6245
    %v6893 = vsel %vm4476, %v6877, %v6247
    %v6894 = vsel %vm4476, %v6878, %v6249
    %v6895 = vsel %vm4476, %v6879, %v6251
    %v6896 = vsel %vm4476, %v6880, %v6253
    %v6897 = vsel %vm4476, %v6881, %v6255
    %v6898 = vsel %vm4476, %v6882, %v6257
    %v6899 = vsel %vm4476, %v6883, %v6259
    %v6900 = vsel %vm130, %v6884, %v6293
    %v6901 = vsel %vm130, %v6885, %v6295
    %v6902 = vsel %vm130, %v6886, %v6297
    %v6903 = vsel %vm130, %v6887, %v6299
    %v6904 = vsel %vm130, %v6888, %v6301
    %v6905 = vsel %vm130, %v6889, %v6303
    %v6906 = vsel %vm130, %v6890, %v6305
    %v6907 = vsel %vm130, %v6891, %v6307
    %v6908 = vsel %vm130, %v6892, %v6309
    %v6909 = vsel %vm130, %v6893, %v6311
    %v6910 = vsel %vm130, %v6894, %v6313
    %v6911 = vsel %vm130, %v6895, %v6315
    %v6912 = vsel %vm130, %v6896, %v6317
    %v6913 = vsel %vm130, %v6897, %v6319
    %v6914 = vsel %vm130, %v6898, %v6321
    %v6915 = vsel %vm130, %v6899, %v6323
    %v6916 = vsel %vm4509, %v6900, %v6357
    %v6917 = vsel %vm4509, %v6901, %v6359
    %v6918 = vsel %vm4509, %v6902, %v6361
    %v6919 = vsel %vm4509, %v6903, %v6363
    %v6920 = vsel %vm4509, %v6904, %v6365
    %v6921 = vsel %vm4509, %v6905, %v6367
    %v6922 = vsel %vm4509, %v6906, %v6369
    %v6923 = vsel %vm4509, %v6907, %v6371
    %v6924 = vsel %vm4509, %v6908, %v6373
    %v6925 = vsel %vm4509, %v6909, %v6375
    %v6926 = vsel %vm4509, %v6910, %v6377
    %v6927 = vsel %vm4509, %v6911, %v6379
    %v6928 = vsel %vm4509, %v6912, %v6381
    %v6929 = vsel %vm4509, %v6913, %v6383
    %v6930 = vsel %vm4509, %v6914, %v6385
    %v6931 = vsel %vm4509, %v6915, %v6387
    %v6932 = vsel %vm4526, %v6916, %v6421
    %v6933 = vsel %vm4526, %v6917, %v6423
    %v6934 = vsel %vm4526, %v6918, %v6425
    %v6935 = vsel %vm4526, %v6919, %v6427
    %v6936 = vsel %vm4526, %v6920, %v6429
    %v6937 = vsel %vm4526, %v6921, %v6431
    %v6938 = vsel %vm4526, %v6922, %v6433
    %v6939 = vsel %vm4526, %v6923, %v6435
    %v6940 = vsel %vm4526, %v6924, %v6437
    %v6941 = vsel %vm4526, %v6925, %v6439
    %v6942 = vsel %vm4526, %v6926, %v6441
    %v6943 = vsel %vm4526, %v6927, %v6443
    %v6944 = vsel %vm4526, %v6928, %v6445
    %v6945 = vsel %vm4526, %v6929, %v6447
    %v6946 = vsel %vm4526, %v6930, %v6449
    %v6947 = vsel %vm4526, %v6931, %v6451
    %v6948 = vsel %vm4543, %v6932, %v6485
    %v6949 = vsel %vm4543, %v6933, %v6487
    %v6950 = vsel %vm4543, %v6934, %v6489
    %v6951 = vsel %vm4543, %v6935, %v6491
    %v6952 = vsel %vm4543, %v6936, %v6493
    %v6953 = vsel %vm4543, %v6937, %v6495
    %v6954 = vsel %vm4543, %v6938, %v6497
    %v6955 = vsel %vm4543, %v6939, %v6499
    %v6956 = vsel %vm4543, %v6940, %v6501
    %v6957 = vsel %vm4543, %v6941, %v6503
    %v6958 = vsel %vm4543, %v6942, %v6505
    %v6959 = vsel %vm4543, %v6943, %v6507
    %v6960 = vsel %vm4543, %v6944, %v6509
    %v6961 = vsel %vm4543, %v6945, %v6511
    %v6962 = vsel %vm4543, %v6946, %v6513
    %v6963 = vsel %vm4543, %v6947, %v6515
    %v6964 = vsel %vm4560, %v6948, %v6549
    %v6965 = vsel %vm4560, %v6949, %v6551
    %v6966 = vsel %vm4560, %v6950, %v6553
    %v6967 = vsel %vm4560, %v6951, %v6555
    %v6968 = vsel %vm4560, %v6952, %v6557
    %v6969 = vsel %vm4560, %v6953, %v6559
    %v6970 = vsel %vm4560, %v6954, %v6561
    %v6971 = vsel %vm4560, %v6955, %v6563
    %v6972 = vsel %vm4560, %v6956, %v6565
    %v6973 = vsel %vm4560, %v6957, %v6567
    %v6974 = vsel %vm4560, %v6958, %v6569
    %v6975 = vsel %vm4560, %v6959, %v6571
    %v6976 = vsel %vm4560, %v6960, %v6573
    %v6977 = vsel %vm4560, %v6961, %v6575
    %v6978 = vsel %vm4560, %v6962, %v6577
    %v6979 = vsel %vm4560, %v6963, %v6579
    %v6980 = vsel %vm4577, %v6964, %v6613
    %v6981 = vsel %vm4577, %v6965, %v6615
    %v6982 = vsel %vm4577, %v6966, %v6617
    %v6983 = vsel %vm4577, %v6967, %v6619
    %v6984 = vsel %vm4577, %v6968, %v6621
    %v6985 = vsel %vm4577, %v6969, %v6623
    %v6986 = vsel %vm4577, %v6970, %v6625
    %v6987 = vsel %vm4577, %v6971, %v6627
    %v6988 = vsel %vm4577, %v6972, %v6629
    %v6989 = vsel %vm4577, %v6973, %v6631
    %v6990 = vsel %vm4577, %v6974, %v6633
    %v6991 = vsel %vm4577, %v6975, %v6635
    %v6992 = vsel %vm4577, %v6976, %v6637
    %v6993 = vsel %vm4577, %v6977, %v6639
    %v6994 = vsel %vm4577, %v6978, %v6641
    %v6995 = vsel %vm4577, %v6979, %v6643
    %v6996 = vsel %vm4594, %v6980, %v6677
    %v6997 = vsel %vm4594, %v6981, %v6679
    %v6998 = vsel %vm4594, %v6982, %v6681
    %v6999 = vsel %vm4594, %v6983, %v6683
    %v7000 = vsel %vm4594, %v6984, %v6685
    %v7001 = vsel %vm4594, %v6985, %v6687
    %v7002 = vsel %vm4594, %v6986, %v6689
    %v7003 = vsel %vm4594, %v6987, %v6691
    %v7004 = vsel %vm4594, %v6988, %v6693
    %v7005 = vsel %vm4594, %v6989, %v6695
    %v7006 = vsel %vm4594, %v6990, %v6697
    %v7007 = vsel %vm4594, %v6991, %v6699
    %v7008 = vsel %vm4594, %v6992, %v6701
    %v7009 = vsel %vm4594, %v6993, %v6703
    %v7010 = vsel %vm4594, %v6994, %v6705
    %v7011 = vsel %vm4594, %v6995, %v6707
    %v7012 = vsel %vm4611, %v6996, %v6741
    %v7013 = vsel %vm4611, %v6997, %v6743
    %v7014 = vsel %vm4611, %v6998, %v6745
    %v7015 = vsel %vm4611, %v6999, %v6747
    %v7016 = vsel %vm4611, %v7000, %v6749
    %v7017 = vsel %vm4611, %v7001, %v6751
    %v7018 = vsel %vm4611, %v7002, %v6753
    %v7019 = vsel %vm4611, %v7003, %v6755
    %v7020 = vsel %vm4611, %v7004, %v6757
    %v7021 = vsel %vm4611, %v7005, %v6759
    %v7022 = vsel %vm4611, %v7006, %v6761
    %v7023 = vsel %vm4611, %v7007, %v6763
    %v7024 = vsel %vm4611, %v7008, %v6765
    %v7025 = vsel %vm4611, %v7009, %v6767
    %v7026 = vsel %vm4611, %v7010, %v6769
    %v7027 = vsel %vm4611, %v7011, %v6771
    %7044 = vrot.lane.b32.xlu0 %v5812, 32
    %v7045 = vpop.permute.xlu0 %7044
    %7046 = vrot.lane.b32.xlu0 %v5813, 32
    %v7047 = vpop.permute.xlu0 %7046
    %7048 = vrot.lane.b32.xlu0 %v5814, 32
    %v7049 = vpop.permute.xlu0 %7048
    %7050 = vrot.lane.b32.xlu0 %v5815, 32
    %v7051 = vpop.permute.xlu0 %7050
    %7052 = vrot.lane.b32.xlu0 %v5816, 32
    %v7053 = vpop.permute.xlu0 %7052
    %7054 = vrot.lane.b32.xlu0 %v5817, 32
    %v7055 = vpop.permute.xlu0 %7054
    %7056 = vrot.lane.b32.xlu0 %v5818, 32
    %v7057 = vpop.permute.xlu0 %7056
    %7058 = vrot.lane.b32.xlu0 %v5819, 32
    %v7059 = vpop.permute.xlu0 %7058
    %7060 = vrot.lane.b32.xlu0 %v5820, 32
    %v7061 = vpop.permute.xlu0 %7060
    %7062 = vrot.lane.b32.xlu0 %v5821, 32
    %v7063 = vpop.permute.xlu0 %7062
    %7064 = vrot.lane.b32.xlu0 %v5822, 32
    %v7065 = vpop.permute.xlu0 %7064
    %7066 = vrot.lane.b32.xlu0 %v5823, 32
    %v7067 = vpop.permute.xlu0 %7066
    %7068 = vrot.lane.b32.xlu0 %v5824, 32
    %v7069 = vpop.permute.xlu0 %7068
    %7070 = vrot.lane.b32.xlu0 %v5825, 32
    %v7071 = vpop.permute.xlu0 %7070
    %7072 = vrot.lane.b32.xlu0 %v5826, 32
    %v7073 = vpop.permute.xlu0 %7072
    %7074 = vrot.lane.b32.xlu0 %v5827, 32
    %v7075 = vpop.permute.xlu0 %7074
    %7108 = vrot.lane.b32.xlu0 %v7012, 64
    %v7109 = vpop.permute.xlu0 %7108
    %7110 = vrot.lane.b32.xlu0 %v7013, 64
    %v7111 = vpop.permute.xlu0 %7110
    %7112 = vrot.lane.b32.xlu0 %v7014, 64
    %v7113 = vpop.permute.xlu0 %7112
    %7114 = vrot.lane.b32.xlu0 %v7015, 64
    %v7115 = vpop.permute.xlu0 %7114
    %7116 = vrot.lane.b32.xlu0 %v7016, 64
    %v7117 = vpop.permute.xlu0 %7116
    %7118 = vrot.lane.b32.xlu0 %v7017, 64
    %v7119 = vpop.permute.xlu0 %7118
    %7120 = vrot.lane.b32.xlu0 %v7018, 64
    %v7121 = vpop.permute.xlu0 %7120
    %7122 = vrot.lane.b32.xlu0 %v7019, 64
    %v7123 = vpop.permute.xlu0 %7122
    %7124 = vrot.lane.b32.xlu0 %v7020, 64
    %v7125 = vpop.permute.xlu0 %7124
    %7126 = vrot.lane.b32.xlu0 %v7021, 64
    %v7127 = vpop.permute.xlu0 %7126
    %7128 = vrot.lane.b32.xlu0 %v7022, 64
    %v7129 = vpop.permute.xlu0 %7128
    %7130 = vrot.lane.b32.xlu0 %v7023, 64
    %v7131 = vpop.permute.xlu0 %7130
    %7132 = vrot.lane.b32.xlu0 %v7024, 64
    %v7133 = vpop.permute.xlu0 %7132
    %7134 = vrot.lane.b32.xlu0 %v7025, 64
    %v7135 = vpop.permute.xlu0 %7134
    %7136 = vrot.lane.b32.xlu0 %v7026, 64
    %v7137 = vpop.permute.xlu0 %7136
    %7138 = vrot.lane.b32.xlu0 %v7027, 64
    %v7139 = vpop.permute.xlu0 %7138
    %7172 = vrot.lane.b32.xlu0 %v3399, 96
    %v7173 = vpop.permute.xlu0 %7172
    %7174 = vrot.lane.b32.xlu0 %v3400, 96
    %v7175 = vpop.permute.xlu0 %7174
    %7176 = vrot.lane.b32.xlu0 %v3401, 96
    %v7177 = vpop.permute.xlu0 %7176
    %7178 = vrot.lane.b32.xlu0 %v3402, 96
    %v7179 = vpop.permute.xlu0 %7178
    %7180 = vrot.lane.b32.xlu0 %v3403, 96
    %v7181 = vpop.permute.xlu0 %7180
    %7182 = vrot.lane.b32.xlu0 %v3404, 96
    %v7183 = vpop.permute.xlu0 %7182
    %7184 = vrot.lane.b32.xlu0 %v3405, 96
    %v7185 = vpop.permute.xlu0 %7184
    %7186 = vrot.lane.b32.xlu0 %v3406, 96
    %v7187 = vpop.permute.xlu0 %7186
    %7188 = vrot.lane.b32.xlu0 %v3407, 96
    %v7189 = vpop.permute.xlu0 %7188
    %7190 = vrot.lane.b32.xlu0 %v3408, 96
    %v7191 = vpop.permute.xlu0 %7190
    %7192 = vrot.lane.b32.xlu0 %v3409, 96
    %v7193 = vpop.permute.xlu0 %7192
    %7194 = vrot.lane.b32.xlu0 %v3410, 96
    %v7195 = vpop.permute.xlu0 %7194
    %7196 = vrot.lane.b32.xlu0 %v3411, 96
    %v7197 = vpop.permute.xlu0 %7196
    %7198 = vrot.lane.b32.xlu0 %v3412, 96
    %v7199 = vpop.permute.xlu0 %7198
    %7200 = vrot.lane.b32.xlu0 %v3413, 96
    %v7201 = vpop.permute.xlu0 %7200
    %7202 = vrot.lane.b32.xlu0 %v3414, 96
    %v7203 = vpop.permute.xlu0 %7202
    %v7220 = vsel %vm798, %v4612, %v7045
    %v7221 = vsel %vm798, %v4613, %v7047
    %v7222 = vsel %vm798, %v4614, %v7049
    %v7223 = vsel %vm798, %v4615, %v7051
    %v7224 = vsel %vm798, %v4616, %v7053
    %v7225 = vsel %vm798, %v4617, %v7055
    %v7226 = vsel %vm798, %v4618, %v7057
    %v7227 = vsel %vm798, %v4619, %v7059
    %v7228 = vsel %vm798, %v4620, %v7061
    %v7229 = vsel %vm798, %v4621, %v7063
    %v7230 = vsel %vm798, %v4622, %v7065
    %v7231 = vsel %vm798, %v4623, %v7067
    %v7232 = vsel %vm798, %v4624, %v7069
    %v7233 = vsel %vm798, %v4625, %v7071
    %v7234 = vsel %vm798, %v4626, %v7073
    %v7235 = vsel %vm798, %v4627, %v7075
    %v7236 = vsel %vm832, %v7220, %v7109
    %v7237 = vsel %vm832, %v7221, %v7111
    %v7238 = vsel %vm832, %v7222, %v7113
    %v7239 = vsel %vm832, %v7223, %v7115
    %v7240 = vsel %vm832, %v7224, %v7117
    %v7241 = vsel %vm832, %v7225, %v7119
    %v7242 = vsel %vm832, %v7226, %v7121
    %v7243 = vsel %vm832, %v7227, %v7123
    %v7244 = vsel %vm832, %v7228, %v7125
    %v7245 = vsel %vm832, %v7229, %v7127
    %v7246 = vsel %vm832, %v7230, %v7129
    %v7247 = vsel %vm832, %v7231, %v7131
    %v7248 = vsel %vm832, %v7232, %v7133
    %v7249 = vsel %vm832, %v7233, %v7135
    %v7250 = vsel %vm832, %v7234, %v7137
    %v7251 = vsel %vm832, %v7235, %v7139
    %v7252 = vsel %vm866, %v7236, %v7173
    %v7253 = vsel %vm866, %v7237, %v7175
    %v7254 = vsel %vm866, %v7238, %v7177
    %v7255 = vsel %vm866, %v7239, %v7179
    %v7256 = vsel %vm866, %v7240, %v7181
    %v7257 = vsel %vm866, %v7241, %v7183
    %v7258 = vsel %vm866, %v7242, %v7185
    %v7259 = vsel %vm866, %v7243, %v7187
    %v7260 = vsel %vm866, %v7244, %v7189
    %v7261 = vsel %vm866, %v7245, %v7191
    %v7262 = vsel %vm866, %v7246, %v7193
    %v7263 = vsel %vm866, %v7247, %v7195
    %v7264 = vsel %vm866, %v7248, %v7197
    %v7265 = vsel %vm866, %v7249, %v7199
    %v7266 = vsel %vm866, %v7250, %v7201
    %v7267 = vsel %vm866, %v7251, %v7203
    %vm7268 = vcmask 801792
    %v7270 = vsel %vm7268, %v7252, 0
    %v7273 = vsel %vm7268, %v7253, 0
    %v7276 = vsel %vm7268, %v7254, 0
    %v7279 = vsel %vm7268, %v7255, 0
    %v7282 = vsel %vm7268, %v7256, 0
    %v7285 = vsel %vm7268, %v7257, 0
    %v7288 = vsel %vm7268, %v7258, 0
    %v7291 = vsel %vm7268, %v7259, 0
    %v7294 = vsel %vm7268, %v7260, 0
    %v7297 = vsel %vm7268, %v7261, 0
    %v7300 = vsel %vm7268, %v7262, 0
    %v7303 = vsel %vm7268, %v7263, 0
    %v7306 = vsel %vm7268, %v7264, 0
    %v7309 = vsel %vm7268, %v7265, 0
    %v7312 = vsel %vm7268, %v7266, 0
    %v7315 = vsel %vm7268, %v7267, 0
    %v7318 = vsel %vm2193, %v2550, 0
    %7320 = vmatprep.subr.mxu0 0.0
    %7321 = vmatpush1.msra.mxu0 %v2538
    %7322 = vmatprep.subr.mxu0 0.0
    %7323 = vmatpush1.msra.mxu0 %v2539
    %7324 = vmatprep.subr.mxu0 0.0
    %7325 = vmatpush1.msra.mxu0 %v2540
    %7326 = vmatprep.subr.mxu0 0.0
    %7327 = vmatpush1.msra.mxu0 %v2541
    %7328 = vmatprep.subr.mxu0 0.0
    %7329 = vmatpush1.msra.mxu0 %v2542
    %7330 = vmatprep.subr.mxu0 0.0
    %7331 = vmatpush1.msra.mxu0 %v2543
    %7332 = vmatprep.subr.mxu0 0.0
    %7333 = vmatpush1.msra.mxu0 %v2544
    %7334 = vmatprep.subr.mxu0 0.0
    %7335 = vmatpush1.msra.mxu0 %v2545
    %7336 = vmatprep.subr.mxu0 0.0
    %7337 = vmatpush1.msra.mxu0 %v2546
    %7338 = vmatprep.subr.mxu0 0.0
    %7339 = vmatpush1.msra.mxu0 %v2547
    %7340 = vmatprep.subr.mxu0 0.0
    %7341 = vmatpush1.msra.mxu0 %v2548
    %7342 = vmatprep.subr.mxu0 0.0
    %7343 = vmatpush1.msra.mxu0 %v2549
    %7344 = vmatprep.subr.mxu0 0.0
    %7345 = vmatpush1.msra.mxu0 %v7318
    %7346 = vmatprep.subr.mxu0 0.0
    %7347 = vmatpush1.msra.mxu0 0.0
    %7348 = vmatprep.subr.mxu0 0.0
    %7349 = vmatpush1.msra.mxu0 0.0
    %7350 = vmatprep.subr.mxu0 0.0
    %7351 = vmatpush1.msra.mxu0 0.0
    %7352 = vmatprep.subr.mxu0 0.0
    %7353 = vmatpush1.msra.mxu0 0.0
    %7354 = vmatprep.subr.mxu0 0.0
    %7355 = vmatpush1.msra.mxu0 0.0
    %7356 = vmatprep.subr.mxu0 0.0
    %7357 = vmatpush1.msra.mxu0 0.0
    %7358 = vmatprep.subr.mxu0 0.0
    %7359 = vmatpush1.msra.mxu0 0.0
    %7360 = vmatprep.subr.mxu0 0.0
    %7361 = vmatpush1.msra.mxu0 0.0
    %7362 = vmatprep.subr.mxu0 0.0
    %7363 = vmatpush1.msra.mxu0 0.0
    %7364 = vmatprep.subr.mxu0 0.0
    %7365 = vmatpush1.msra.mxu0 0.0
    %7366 = vmatprep.subr.mxu0 0.0
    %7367 = vmatpush1.msra.mxu0 0.0
    %7368 = vmatprep.subr.mxu0 0.0
    %7369 = vmatpush1.msra.mxu0 0.0
    %7370 = vmatprep.subr.mxu0 0.0
    %7371 = vmatpush1.msra.mxu0 0.0
    %7372 = vmatprep.subr.mxu0 0.0
    %7373 = vmatpush1.msra.mxu0 0.0
    %7374 = vmatprep.subr.mxu0 0.0
    %7375 = vmatpush1.msra.mxu0 0.0
    %7376 = vmatprep.subr.mxu0 0.0
    %7377 = vmatpush1.msra.mxu0 0.0
    %7378 = vmatprep.subr.mxu0 0.0
    %7379 = vmatpush1.msra.mxu0 0.0
    %7380 = vmatprep.subr.mxu0 0.0
    %7381 = vmatpush1.msra.mxu0 0.0
    %7382 = vmatprep.subr.mxu0 0.0
    %7383 = vmatpush1.msra.mxu0 0.0
    %7384 = vmatprep.mubr.f32.mxu0 0.0
    %7385 = vmatmul.mubr.f32.gmra.mrb[0].mxu0 %v7270
    %v7386 = vpop.f32.mrb[0].mxu0
    %v7387 = vadd.f32 0.0, %v7386
    %v7388 = vpop.f32.mrb[0].mxu0
    %7389 = vmatprep.mubr.f32.mxu0 0.0
    %7390 = vmatmul.mubr.f32.gmra.mrb[0].mxu0 %v7273
    %v7391 = vpop.f32.mrb[0].mxu0
    %v7392 = vadd.f32 0.0, %v7391
    %v7393 = vpop.f32.mrb[0].mxu0
    %7394 = vmatprep.mubr.f32.mxu0 0.0
    %7395 = vmatmul.mubr.f32.gmra.mrb[0].mxu0 %v7276
    %v7396 = vpop.f32.mrb[0].mxu0
    %v7397 = vadd.f32 0.0, %v7396
    %v7398 = vpop.f32.mrb[0].mxu0
    %7399 = vmatprep.mubr.f32.mxu0 0.0
    %7400 = vmatmul.mubr.f32.gmra.mrb[0].mxu0 %v7279
    %v7401 = vpop.f32.mrb[0].mxu0
    %v7402 = vadd.f32 0.0, %v7401
    %v7403 = vpop.f32.mrb[0].mxu0
    %7404 = vmatprep.mubr.f32.mxu0 0.0
    %7405 = vmatmul.mubr.f32.gmra.mrb[0].mxu0 %v7282
    %v7406 = vpop.f32.mrb[0].mxu0
    %v7407 = vadd.f32 0.0, %v7406
    %v7408 = vpop.f32.mrb[0].mxu0
    %7409 = vmatprep.mubr.f32.mxu0 0.0
    %7410 = vmatmul.mubr.f32.gmra.mrb[0].mxu0 %v7285
    %v7411 = vpop.f32.mrb[0].mxu0
    %v7412 = vadd.f32 0.0, %v7411
    %v7413 = vpop.f32.mrb[0].mxu0
    %7414 = vmatprep.mubr.f32.mxu0 0.0
    %7415 = vmatmul.mubr.f32.gmra.mrb[0].mxu0 %v7288
    %v7416 = vpop.f32.mrb[0].mxu0
    %v7417 = vadd.f32 0.0, %v7416
    %v7418 = vpop.f32.mrb[0].mxu0
    %7419 = vmatprep.mubr.f32.mxu0 0.0
    %7420 = vmatmul.mubr.f32.gmra.mrb[0].mxu0 %v7291
    %v7421 = vpop.f32.mrb[0].mxu0
    %v7422 = vadd.f32 0.0, %v7421
    %v7423 = vpop.f32.mrb[0].mxu0
    %7424 = vmatprep.mubr.f32.mxu0 0.0
    %7425 = vmatmul.mubr.f32.gmra.mrb[0].mxu0 %v7294
    %v7426 = vpop.f32.mrb[0].mxu0
    %v7427 = vadd.f32 0.0, %v7426
    %v7428 = vpop.f32.mrb[0].mxu0
    %7429 = vmatprep.mubr.f32.mxu0 0.0
    %7430 = vmatmul.mubr.f32.gmra.mrb[0].mxu0 %v7297
    %v7431 = vpop.f32.mrb[0].mxu0
    %v7432 = vadd.f32 0.0, %v7431
    %v7433 = vpop.f32.mrb[0].mxu0
    %7434 = vmatprep.mubr.f32.mxu0 0.0
    %7435 = vmatmul.mubr.f32.gmra.mrb[0].mxu0 %v7300
    %v7436 = vpop.f32.mrb[0].mxu0
    %v7437 = vadd.f32 0.0, %v7436
    %v7438 = vpop.f32.mrb[0].mxu0
    %7439 = vmatprep.mubr.f32.mxu0 0.0
    %7440 = vmatmul.mubr.f32.gmra.mrb[0].mxu0 %v7303
    %v7441 = vpop.f32.mrb[0].mxu0
    %v7442 = vadd.f32 0.0, %v7441
    %v7443 = vpop.f32.mrb[0].mxu0
    %7444 = vmatprep.mubr.f32.mxu0 0.0
    %7445 = vmatmul.mubr.f32.gmra.mrb[0].mxu0 %v7306
    %v7446 = vpop.f32.mrb[0].mxu0
    %v7447 = vadd.f32 0.0, %v7446
    %v7448 = vpop.f32.mrb[0].mxu0
    %7449 = vmatprep.mubr.f32.mxu0 0.0
    %7450 = vmatmul.mubr.f32.gmra.mrb[0].mxu0 %v7309
    %v7451 = vpop.f32.mrb[0].mxu0
    %v7452 = vadd.f32 0.0, %v7451
    %v7453 = vpop.f32.mrb[0].mxu0
    %7454 = vmatprep.mubr.f32.mxu0 0.0
    %7455 = vmatmul.mubr.f32.gmra.mrb[0].mxu0 %v7312
    %v7456 = vpop.f32.mrb[0].mxu0
    %v7457 = vadd.f32 0.0, %v7456
    %v7458 = vpop.f32.mrb[0].mxu0
    %7459 = vmatprep.mubr.f32.mxu0 0.0
    %7460 = vmatmul.mubr.f32.gmra.mrb[0].mxu0 %v7315
    %v7461 = vpop.f32.mrb[0].mxu0
    %v7462 = vadd.f32 0.0, %v7461
    %v7463 = vpop.f32.mrb[0].mxu0
    %7464 = vdwg.mxu0
    %v7465 = vxor.u32 %v7387, 2147483648
    %v7466 = vxor.u32 %v7392, 2147483648
    %v7467 = vxor.u32 %v7397, 2147483648
    %v7468 = vxor.u32 %v7402, 2147483648
    %v7469 = vxor.u32 %v7407, 2147483648
    %v7470 = vxor.u32 %v7412, 2147483648
    %v7471 = vxor.u32 %v7417, 2147483648
    %v7472 = vxor.u32 %v7422, 2147483648
    %v7473 = vxor.u32 %v7427, 2147483648
    %v7474 = vxor.u32 %v7432, 2147483648
    %v7475 = vxor.u32 %v7437, 2147483648
    %v7476 = vxor.u32 %v7442, 2147483648
    %v7477 = vxor.u32 %v7447, 2147483648
    %v7478 = vxor.u32 %v7452, 2147483648
    %v7479 = vxor.u32 %v7457, 2147483648
    %v7480 = vxor.u32 %v7462, 2147483648
    %v7481 = vmul.f32 %v7465, 1.442695
    %v7482 = vpow.pop %v7481
    %v7483 = vmul.f32 %v7466, 1.442695
    %v7484 = vpow.pop %v7483
    %v7485 = vmul.f32 %v7467, 1.442695
    %v7486 = vpow.pop %v7485
    %v7487 = vmul.f32 %v7468, 1.442695
    %v7488 = vpow.pop %v7487
    %v7489 = vmul.f32 %v7469, 1.442695
    %v7490 = vpow.pop %v7489
    %v7491 = vmul.f32 %v7470, 1.442695
    %v7492 = vpow.pop %v7491
    %v7493 = vmul.f32 %v7471, 1.442695
    %v7494 = vpow.pop %v7493
    %v7495 = vmul.f32 %v7472, 1.442695
    %v7496 = vpow.pop %v7495
    %v7497 = vmul.f32 %v7473, 1.442695
    %v7498 = vpow.pop %v7497
    %v7499 = vmul.f32 %v7474, 1.442695
    %v7500 = vpow.pop %v7499
    %v7501 = vmul.f32 %v7475, 1.442695
    %v7502 = vpow.pop %v7501
    %v7503 = vmul.f32 %v7476, 1.442695
    %v7504 = vpow.pop %v7503
    %v7505 = vmul.f32 %v7477, 1.442695
    %v7506 = vpow.pop %v7505
    %v7507 = vmul.f32 %v7478, 1.442695
    %v7508 = vpow.pop %v7507
    %v7509 = vmul.f32 %v7479, 1.442695
    %v7510 = vpow.pop %v7509
    %v7511 = vmul.f32 %v7480, 1.442695
    %v7512 = vpow.pop %v7511
    %v7513 = vadd.f32 %v7482, 1.0
    %v7514 = vadd.f32 %v7484, 1.0
    %v7515 = vadd.f32 %v7486, 1.0
    %v7516 = vadd.f32 %v7488, 1.0
    %v7517 = vadd.f32 %v7490, 1.0
    %v7518 = vadd.f32 %v7492, 1.0
    %v7519 = vadd.f32 %v7494, 1.0
    %v7520 = vadd.f32 %v7496, 1.0
    %v7521 = vadd.f32 %v7498, 1.0
    %v7522 = vadd.f32 %v7500, 1.0
    %v7523 = vadd.f32 %v7502, 1.0
    %v7524 = vadd.f32 %v7504, 1.0
    %v7525 = vadd.f32 %v7506, 1.0
    %v7526 = vadd.f32 %v7508, 1.0
    %v7527 = vadd.f32 %v7510, 1.0
    %v7528 = vadd.f32 %v7512, 1.0
    %v7529 = vrcp.pop %v7513
    %v7530 = vmul.f32 1.0, %v7529
    %v7531 = vrcp.pop %v7514
    %v7532 = vmul.f32 1.0, %v7531
    %v7533 = vrcp.pop %v7515
    %v7534 = vmul.f32 1.0, %v7533
    %v7535 = vrcp.pop %v7516
    %v7536 = vmul.f32 1.0, %v7535
    %v7537 = vrcp.pop %v7517
    %v7538 = vmul.f32 1.0, %v7537
    %v7539 = vrcp.pop %v7518
    %v7540 = vmul.f32 1.0, %v7539
    %v7541 = vrcp.pop %v7519
    %v7542 = vmul.f32 1.0, %v7541
    %v7543 = vrcp.pop %v7520
    %v7544 = vmul.f32 1.0, %v7543
    %v7545 = vrcp.pop %v7521
    %v7546 = vmul.f32 1.0, %v7545
    %v7547 = vrcp.pop %v7522
    %v7548 = vmul.f32 1.0, %v7547
    %v7549 = vrcp.pop %v7523
    %v7550 = vmul.f32 1.0, %v7549
    %v7551 = vrcp.pop %v7524
    %v7552 = vmul.f32 1.0, %v7551
    %v7553 = vrcp.pop %v7525
    %v7554 = vmul.f32 1.0, %v7553
    %v7555 = vrcp.pop %v7526
    %v7556 = vmul.f32 1.0, %v7555
    %v7557 = vrcp.pop %v7527
    %v7558 = vmul.f32 1.0, %v7557
    %v7559 = vrcp.pop %v7528
    %v7560 = vmul.f32 1.0, %v7559
    %7562 = vset.pattern.permute.xlu0 0
    %7563 = vperm.xlu0 %7562, %v7530
    %v7564 = vpop.permute.xlu0 %7563
    %7567 = vset.pattern.permute.xlu0 0
    %7568 = vperm.xlu0 %7567, %v7532
    %v7569 = vpop.permute.xlu0 %7568
    %7572 = vset.pattern.permute.xlu0 0
    %7573 = vperm.xlu0 %7572, %v7534
    %v7574 = vpop.permute.xlu0 %7573
    %7577 = vset.pattern.permute.xlu0 0
    %7578 = vperm.xlu0 %7577, %v7536
    %v7579 = vpop.permute.xlu0 %7578
    %7582 = vset.pattern.permute.xlu0 0
    %7583 = vperm.xlu0 %7582, %v7538
    %v7584 = vpop.permute.xlu0 %7583
    %7587 = vset.pattern.permute.xlu0 0
    %7588 = vperm.xlu0 %7587, %v7540
    %v7589 = vpop.permute.xlu0 %7588
    %7592 = vset.pattern.permute.xlu0 0
    %7593 = vperm.xlu0 %7592, %v7542
    %v7594 = vpop.permute.xlu0 %7593
    %7597 = vset.pattern.permute.xlu0 0
    %7598 = vperm.xlu0 %7597, %v7544
    %v7599 = vpop.permute.xlu0 %7598
    %7602 = vset.pattern.permute.xlu0 0
    %7603 = vperm.xlu0 %7602, %v7546
    %v7604 = vpop.permute.xlu0 %7603
    %7607 = vset.pattern.permute.xlu0 0
    %7608 = vperm.xlu0 %7607, %v7548
    %v7609 = vpop.permute.xlu0 %7608
    %7612 = vset.pattern.permute.xlu0 0
    %7613 = vperm.xlu0 %7612, %v7550
    %v7614 = vpop.permute.xlu0 %7613
    %7617 = vset.pattern.permute.xlu0 0
    %7618 = vperm.xlu0 %7617, %v7552
    %v7619 = vpop.permute.xlu0 %7618
    %7622 = vset.pattern.permute.xlu0 0
    %7623 = vperm.xlu0 %7622, %v7554
    %v7624 = vpop.permute.xlu0 %7623
    %7627 = vset.pattern.permute.xlu0 0
    %7628 = vperm.xlu0 %7627, %v7556
    %v7629 = vpop.permute.xlu0 %7628
    %7632 = vset.pattern.permute.xlu0 0
    %7633 = vperm.xlu0 %7632, %v7558
    %v7634 = vpop.permute.xlu0 %7633
    %7637 = vset.pattern.permute.xlu0 0
    %7638 = vperm.xlu0 %7637, %v7560
    %v7639 = vpop.permute.xlu0 %7638
    %v7641 = vmul.f32 %v2393, %v7564
    %v7642 = vmul.f32 %v2394, %v7569
    %v7643 = vmul.f32 %v2395, %v7574
    %v7644 = vmul.f32 %v2396, %v7579
    %v7645 = vmul.f32 %v2397, %v7584
    %v7646 = vmul.f32 %v2398, %v7589
    %v7647 = vmul.f32 %v2399, %v7594
    %v7648 = vmul.f32 %v2400, %v7599
    %v7649 = vmul.f32 %v2401, %v7604
    %v7650 = vmul.f32 %v2402, %v7609
    %v7651 = vmul.f32 %v2403, %v7614
    %v7652 = vmul.f32 %v2404, %v7619
    %v7653 = vmul.f32 %v2405, %v7624
    %v7654 = vmul.f32 %v2406, %v7629
    %v7655 = vmul.f32 %v2407, %v7634
    %v7656 = vmul.f32 %v2408, %v7639
    %v7657 = vadd.f32 %v7641, %v96
    %v7658 = vadd.f32 %v7642, %v97
    %v7659 = vadd.f32 %v7643, %v98
    %v7660 = vadd.f32 %v7644, %v99
    %v7661 = vadd.f32 %v7645, %v100
    %v7662 = vadd.f32 %v7646, %v101
    %v7663 = vadd.f32 %v7647, %v102
    %v7664 = vadd.f32 %v7648, %v103
    %v7665 = vadd.f32 %v7649, %v104
    %v7666 = vadd.f32 %v7650, %v105
    %v7667 = vadd.f32 %v7651, %v106
    %v7668 = vadd.f32 %v7652, %v107
    %v7669 = vadd.f32 %v7653, %v108
    %v7670 = vadd.f32 %v7654, %v109
    %v7671 = vadd.f32 %v7655, %v110
    %v7672 = vadd.f32 %v7656, %v111
    %v7673 = vmax.f32 %v7657, 0.0
    %v7674 = vmax.f32 %v7658, 0.0
    %v7675 = vmax.f32 %v7659, 0.0
    %v7676 = vmax.f32 %v7660, 0.0
    %v7677 = vmax.f32 %v7661, 0.0
    %v7678 = vmax.f32 %v7662, 0.0
    %v7679 = vmax.f32 %v7663, 0.0
    %v7680 = vmax.f32 %v7664, 0.0
    %v7681 = vmax.f32 %v7665, 0.0
    %v7682 = vmax.f32 %v7666, 0.0
    %v7683 = vmax.f32 %v7667, 0.0
    %v7684 = vmax.f32 %v7668, 0.0
    %v7685 = vmax.f32 %v7669, 0.0
    %v7686 = vmax.f32 %v7670, 0.0
    %v7687 = vmax.f32 %v7671, 0.0
    %v7688 = vmax.f32 %v7672, 0.0
    %7689 = vst.msk [vmem:[#allocation14] sm:$0xff] %vm130, %v7673
    %7690 = vst.msk [vmem:[#allocation14 + $0x8] sm:$0xff] %vm130, %v7674
    %7691 = vst.msk [vmem:[#allocation14 + $0x10] sm:$0xff] %vm130, %v7675
    %7692 = vst.msk [vmem:[#allocation14 + $0x18] sm:$0xff] %vm130, %v7676
    %7693 = vst.msk [vmem:[#allocation14 + $0x20] sm:$0xff] %vm130, %v7677
    %7694 = vst.msk [vmem:[#allocation14 + $0x28] sm:$0xff] %vm130, %v7678
    %7695 = vst.msk [vmem:[#allocation14 + $0x30] sm:$0xff] %vm130, %v7679
    %7696 = vst.msk [vmem:[#allocation14 + $0x38] sm:$0xff] %vm130, %v7680
    %7697 = vst.msk [vmem:[#allocation14 + $0x40] sm:$0xff] %vm130, %v7681
    %7698 = vst.msk [vmem:[#allocation14 + $0x48] sm:$0xff] %vm130, %v7682
    %7699 = vst.msk [vmem:[#allocation14 + $0x50] sm:$0xff] %vm130, %v7683
    %7700 = vst.msk [vmem:[#allocation14 + $0x58] sm:$0xff] %vm130, %v7684
    %7701 = vst.msk [vmem:[#allocation14 + $0x60] sm:$0xff] %vm130, %v7685
    %7702 = vst.msk [vmem:[#allocation14 + $0x68] sm:$0xff] %vm130, %v7686
    %7703 = vst.msk [vmem:[#allocation14 + $0x70] sm:$0xff] %vm130, %v7687
    %7704 = vst.msk [vmem:[#allocation14 + $0x78] sm:$0xff] %vm130, %v7688
    // Predicated region
    $region54: #{_lambda_.1} parent=1 // pred_check
      _
    $region55: #{_lambda_.1} parent=1 // pred_check_branch
      %7706 = sbr.rel (0) target = $region57
    $region56: #{_lambda_.1} parent=1 // pred_region
      %s7708 = ssub.s32 2048, 2048
      %7709 = vsyncadd [#allocation7], %s7708
      %s7710 = sshll.u32 [#allocation14], 4
      %s7711 = int_to_ptr.vmem [resolvable:$true] %s7710
      %7716 = dma.vmem_to_hbm [thread:$0]  %s7711, 2048, %s8, [#allocation7], 128, 128, 8
    $region57: #{_lambda_.1} parent=1 // pred_fallthru
      _
    // Predicated region
    $region58: #{_lambda_.1} parent=1 // pred_check
      _
    $region59: #{_lambda_.1} parent=1 // pred_check_branch
      %7718 = sbr.rel (0) target = $region61
    $region60: #{_lambda_.1} parent=1 // pred_region
      %7719 = dma.done [#allocation7], 2048
    $region61: #{_lambda_.1} parent=1 // pred_fallthru
      _
    %7720 = vsyncpa [#allocation6], 1
    %7721 = vsyncpa [#allocation9], 1
    %7722 = vsyncpa [#allocation12], 1
    %7723 = vsyncpa [#allocation7], 1

</llo_original>
